<compile_context>
chip_gen: v7x
topology: tpu7x:2x2x1
jax: 0.10.0
libtpu: 0.0.40
codegen_flags: <defaults>
</compile_context>

<pallas_src>
import functools

import jax
import jax.numpy as jnp
from jax.experimental import pallas as pl
from jax.experimental.pallas import tpu as pltpu


# ------------------------------- small helpers -------------------------------
def _round_up(x, m):
    return ((x + m - 1) // m) * m


def _cdiv(a, b):
    return -(-a // b)


def _pick_tile(dim, max_tile, mult):
    """Largest tile (multiple of `mult`, <= max_tile) with minimal padding."""
    dim_r = _round_up(dim, mult)
    if dim_r <= max_tile:
        return dim_r
    nblk = _cdiv(dim_r, max_tile)
    return _round_up(_cdiv(dim_r, nblk), mult)


def _vmem_limit_bytes():
    # ~64 MiB scoped limit on 128-MiB-VMEM parts (v5e/v6e), ~48 MiB on v7x
    # (64 MiB physical); conservative 48 MiB fallback if the query fails.
    try:
        cap = int(pltpu.get_tpu_info().vmem_capacity_bytes)
    except Exception:
        cap = 64 * 1024 * 1024
    return int(min(max(cap - 16 * 1024 * 1024, 32 * 1024 * 1024),
                   64 * 1024 * 1024))


_VMEM_LIMIT_BYTES = _vmem_limit_bytes()


# ------------------- single-K-block matmul + bias (+ ReLU) -------------------
def _mm_bias_act_kernel(x_ref, w_ref, b_ref, o_ref, *, relu):
    out = jnp.dot(x_ref[...], w_ref[...],
                  preferred_element_type=jnp.float32) + b_ref[...]
    if relu:
        out = jnp.maximum(out, 0.0)
    o_ref[...] = out.astype(o_ref.dtype)


def pallas_matmul_bias(x, wp, bp, n_out, *, relu, out_dtype=jnp.bfloat16):
    """out = [relu](x @ W + b) with pre-padded bf16 weights / f32 bias row.

    The full K fits in one block for every conv in this network (K <= 640), so
    there is no accumulator read-modify-write and K is padded only to the next
    multiple of 128 (e.g. conv3: 576 -> 640, not 1024).
    """
    M, K = x.shape
    Kp, Np = wp.shape
    # keep the double-buffered x tile around <= 2 MiB even for unusually big K.
    max_tm = min(512, max(64, ((2 * 1024 * 1024) // (2 * Kp)) // 16 * 16))
    tm = _pick_tile(M, max_tm, 16)              # multiple of 16: bf16 packing
    tn = 256 if Np % 256 == 0 else 128          # lane-dense output
    Mp = _round_up(M, tm)

    xp = jnp.pad(x.astype(jnp.bfloat16), ((0, Mp - M), (0, Kp - K)))

    out = pl.pallas_call(
        functools.partial(_mm_bias_act_kernel, relu=relu),
        out_shape=jax.ShapeDtypeStruct((Mp, Np), out_dtype),
        grid_spec=pltpu.PrefetchScalarGridSpec(
            num_scalar_prefetch=0,
            grid=(Mp // tm, Np // tn),
            in_specs=[
                pl.BlockSpec((tm, Kp), lambda i, j: (i, 0)),
                pl.BlockSpec((Kp, tn), lambda i, j: (0, j)),
                pl.BlockSpec((1, tn), lambda i, j: (0, j)),
            ],
            out_specs=pl.BlockSpec((tm, tn), lambda i, j: (i, j)),
        ),
        compiler_params=pltpu.CompilerParams(
            dimension_semantics=("parallel", "parallel"),
            vmem_limit_bytes=_VMEM_LIMIT_BYTES,
        ),
    )(xp, wp, bp)
    return out[:M, :n_out]


# ---------------- fused conv3 (3x3, stride 1) + fc1 + fc2 + heads ------------
def _conv3_fc_heads_kernel(x_ref, w3_ref, b3_ref, w1_ref, b1_ref, w2_ref,
                           b2_ref, wh_ref, bh_ref, o_ref,
                           acc_ref, h1_ref, h2_ref):
    """One batch tile of conv3 -> fc1 -> fc2 -> [Value | Advantage].

    x_ref holds conv3's im2col patches in position-major layout (P3, tm, K3):
    flatten_nhwc(conv3_out) @ W1  ==  sum_p conv3_out[:, p, :] @ W1r[p],
    so the NHWC flatten turns into a sum of plain 2-D matmuls and the whole
    chain stays in VMEM (no HBM round trip for conv3 / fc activations).
    """
    p3 = x_ref.shape[0]
    acc_ref[...] = jnp.zeros_like(acc_ref)
    for p in range(p3):  # static unroll: conv3 at position p + fc1 partial sum
        c3 = jnp.dot(x_ref[p], w3_ref[...], preferred_element_type=jnp.float32)
        c3 = jnp.maximum(c3 + b3_ref[...], 0.0).astype(jnp.bfloat16)
        acc_ref[...] += jnp.dot(c3, w1_ref[p],
                                preferred_element_type=jnp.float32)
    h1_ref[...] = jnp.maximum(acc_ref[...] + b1_ref[...], 0.0).astype(h1_ref.dtype)
    a2 = jnp.dot(h1_ref[...], w2_ref[...], preferred_element_type=jnp.float32)
    h2_ref[...] = jnp.maximum(a2 + b2_ref[...], 0.0).astype(h2_ref.dtype)
    ah = jnp.dot(h2_ref[...], wh_ref[...], preferred_element_type=jnp.float32)
    o_ref[...] = (ah + bh_ref[...]).astype(o_ref.dtype)


def pallas_conv3_fc_heads(pat3, w3, b3, w1r, b1, w2, b2, wh, bh):
    P3, B, K3 = pat3.shape
    K3p, C3 = w3.shape
    H1 = w1r.shape[2]
    H2 = w2.shape[1]
    Nhp = wh.shape[1]

    # Batch tile: aim for >=2 grid steps once B >= 32 so both v7x TensorCores
    # get work, capped so the double-buffered patch slab stays <= ~9 MiB.
    max_tm = 128
    while max_tm > 16 and P3 * max_tm * K3p * 2 * 2 > 9 * 1024 * 1024:
        max_tm //= 2
    tm = min(max_tm, max(16, _round_up(_cdiv(B, 2), 16)))
    Bp = _round_up(B, tm)

    xp = jnp.pad(pat3, ((0, 0), (0, Bp - B), (0, K3p - K3)))

    out = pl.pallas_call(
        _conv3_fc_heads_kernel,
        out_shape=jax.ShapeDtypeStruct((Bp, Nhp), jnp.float32),
        grid_spec=pltpu.PrefetchScalarGridSpec(
            num_scalar_prefetch=0,
            grid=(Bp // tm,),
            in_specs=[
                pl.BlockSpec((P3, tm, K3p), lambda i: (0, i, 0)),
                # grid-invariant resident weights (index maps ignore i)
                pl.BlockSpec((K3p, C3), lambda i: (0, 0)),
                pl.BlockSpec((1, C3), lambda i: (0, 0)),
                pl.BlockSpec((P3, C3, H1), lambda i: (0, 0, 0)),
                pl.BlockSpec((1, H1), lambda i: (0, 0)),
                pl.BlockSpec((H1, H2), lambda i: (0, 0)),
                pl.BlockSpec((1, H2), lambda i: (0, 0)),
                pl.BlockSpec((H2, Nhp), lambda i: (0, 0)),
                pl.BlockSpec((1, Nhp), lambda i: (0, 0)),
            ],
            out_specs=pl.BlockSpec((tm, Nhp), lambda i: (i, 0)),
            scratch_shapes=[
                pltpu.VMEM((tm, H1), jnp.float32),    # fc1 pre-act accumulator
                pltpu.VMEM((tm, H1), jnp.bfloat16),   # fc1 activations
                pltpu.VMEM((tm, H2), jnp.bfloat16),   # fc2 activations
            ],
        ),
        compiler_params=pltpu.CompilerParams(
            dimension_semantics=("parallel",),
            vmem_limit_bytes=_VMEM_LIMIT_BYTES,
        ),
    )(xp, w3, b3, w1r, b1, w2, b2, wh, bh)
    return out[:B]


# ------------------------------ im2col (NHWC) --------------------------------
def _im2col_nhwc(x, kh, kw, stride):
    """x: (B,H,W,C) -> (B*OH*OW, kh*kw*C); K-order = (i, j, c)."""
    B, H, W, C = x.shape
    OH = (H - kh) // stride + 1
    OW = (W - kw) // stride + 1
    cols = [x[:, i:i + stride * OH:stride, j:j + stride * OW:stride, :]
            for i in range(kh) for j in range(kw)]
    p = jnp.stack(cols, axis=3)                       # (B, OH, OW, kh*kw, C)
    return p.reshape(B * OH * OW, kh * kw * C), OH, OW


def _im2col_pos_major(x, kh, kw):
    """Stride-1 im2col in position-major layout: (OH*OW, B, kh*kw*C)."""
    B, H, W, C = x.shape
    OH, OW = H - kh + 1, W - kw + 1
    cols = [x[:, i:i + OH, j:j + OW, :] for i in range(kh) for j in range(kw)]
    p = jnp.stack(cols, axis=3)                       # (B, OH, OW, kh*kw, C)
    p = p.transpose(1, 2, 0, 3, 4)                    # (OH, OW, B, kh*kw, C)
    return p.reshape(OH * OW, B, kh * kw * C)


# --------------------------------- parameters --------------------------------
def _init_linear(key, fan_in, fan_out):
    k1, k2 = jax.random.split(key)
    bound = 1.0 / float(fan_in) ** 0.5
    w = jax.random.uniform(k1, (fan_in, fan_out), jnp.float32, -bound, bound)
    b = jax.random.uniform(k2, (fan_out,), jnp.float32, -bound, bound)
    return w, b


def _init_conv(key, cin, cout, k):
    fan_in = cin * k * k
    k1, k2 = jax.random.split(key)
    bound = 1.0 / float(fan_in) ** 0.5
    w = jax.random.uniform(k1, (cout, cin, k, k), jnp.float32, -bound, bound)
    b = jax.random.uniform(k2, (cout,), jnp.float32, -bound, bound)
    return w, b


def _conv_out(s, k, st):
    return (s - k) // st + 1


def init_params(key, input_dims, n_actions):
    c, h, w = input_dims
    keys = jax.random.split(key, 7)
    params = {}
    params["c1w"], params["c1b"] = _init_conv(keys[0], c, 32, 8)
    params["c2w"], params["c2b"] = _init_conv(keys[1], 32, 64, 4)
    params["c3w"], params["c3b"] = _init_conv(keys[2], 64, 64, 3)
    h1, w1 = _conv_out(h, 8, 4), _conv_out(w, 8, 4)
    h2, w2 = _conv_out(h1, 4, 2), _conv_out(w1, 4, 2)
    h3, w3 = _conv_out(h2, 3, 1), _conv_out(w2, 3, 1)
    conv_output_dims = 64 * h3 * w3
    params["fc1w"], params["fc1b"] = _init_linear(keys[3], conv_output_dims, 1024)
    params["fc2w"], params["fc2b"] = _init_linear(keys[4], 1024, 512)
    params["vw"], params["vb"] = _init_linear(keys[5], 512, 1)
    params["aw"], params["ab"] = _init_linear(keys[6], 512, n_actions)
    return params


def prepare_params(params, input_dims):
    """One-time conversion of PyTorch-layout parameters into the padded,
    reordered, bf16 matmul operands the kernels consume (hoisted out of the
    per-call forward path)."""
    _, h, w = input_dims
    H1, W1 = _conv_out(h, 8, 4), _conv_out(w, 8, 4)
    H2, W2 = _conv_out(H1, 4, 2), _conv_out(W1, 4, 2)
    H3, W3 = _conv_out(H2, 3, 1), _conv_out(W2, 3, 1)
    c3_out = params["c3w"].shape[0]

    def conv_matmul_weights(w_oihw, b, pad_n):
        cout, cin, kh, kw = w_oihw.shape
        k = kh * kw * cin
        kp = _round_up(k, 128)
        np_ = _round_up(cout, 128) if pad_n else cout
        wm = jnp.transpose(w_oihw, (2, 3, 1, 0)).reshape(k, cout)  # K-order (i,j,c)
        wm = jnp.pad(wm, ((0, kp - k), (0, np_ - cout))).astype(jnp.bfloat16)
        bm = jnp.pad(b.astype(jnp.float32), (0, np_ - cout)).reshape(1, np_)
        return wm, bm

    pp = {}
    pp["c1w"], pp["c1b"] = conv_matmul_weights(params["c1w"], params["c1b"], True)
    pp["c2w"], pp["c2b"] = conv_matmul_weights(params["c2w"], params["c2b"], True)
    pp["c3w"], pp["c3b"] = conv_matmul_weights(params["c3w"], params["c3b"], False)

    # fc1: reorder rows from torch NCHW-flatten to NHWC and group by spatial
    # position p = h*W3 + w  ->  W1r[p, c, :].
    fc1w = params["fc1w"].reshape(c3_out, H3, W3, -1).transpose(1, 2, 0, 3)
    pp["fc1w"] = fc1w.reshape(H3 * W3, c3_out, -1).astype(jnp.bfloat16)
    pp["fc1b"] = params["fc1b"].astype(jnp.float32).reshape(1, -1)
    pp["fc2w"] = params["fc2w"].astype(jnp.bfloat16)
    pp["fc2b"] = params["fc2b"].astype(jnp.float32).reshape(1, -1)

    # Value / Advantage heads fused into one lane-dense matmul.
    hw = jnp.concatenate([params["vw"], params["aw"]], axis=1)
    hb = jnp.concatenate([params["vb"], params["ab"]], axis=0)
    nh = hw.shape[1]
    nhp = _round_up(nh, 128)
    pp["hw"] = jnp.pad(hw, ((0, 0), (0, nhp - nh))).astype(jnp.bfloat16)
    pp["hb"] = jnp.pad(hb.astype(jnp.float32), (0, nhp - nh)).reshape(1, nhp)
    return pp


# -------------------------------- forward pass --------------------------------
def build_forward(input_dims, n_actions):
    """Returns a jitted forward(prepped_params, x_nchw) -> (value, advantage)."""
    _, h, w = input_dims
    H1, W1 = _conv_out(h, 8, 4), _conv_out(w, 8, 4)
    H2, W2 = _conv_out(H1, 4, 2), _conv_out(W1, 4, 2)

    @jax.jit
    def forward(pp, x):
        B = x.shape[0]
        # single NCHW -> NHWC transpose + bf16 cast at entry; everything
        # downstream stays NHWC bf16 (halves im2col / activation HBM bytes).
        xh = jnp.transpose(x, (0, 2, 3, 1)).astype(jnp.bfloat16)

        # conv1 / conv2 as im2col matmuls (patch gather is XLA glue).
        p1, _, _ = _im2col_nhwc(xh, 8, 8, 4)
        y1 = pallas_matmul_bias(p1, pp["c1w"], pp["c1b"], 32, relu=True)
        y1 = y1.reshape(B, H1, W1, 32)
        p2, _, _ = _im2col_nhwc(y1, 4, 4, 2)
        y2 = pallas_matmul_bias(p2, pp["c2w"], pp["c2b"], 64, relu=True)
        y2 = y2.reshape(B, H2, W2, 64)

        # conv3 + fc1 + fc2 + heads in one pallas_call (conv3 patches position-
        # major so the NHWC flatten becomes a sum of 2-D matmuls in VMEM).
        p3 = _im2col_pos_major(y2, 3, 3)
        head = pallas_conv3_fc_heads(p3, pp["c3w"], pp["c3b"],
                                     pp["fc1w"], pp["fc1b"],
                                     pp["fc2w"], pp["fc2b"],
                                     pp["hw"], pp["hb"])
        return head[:, :1], head[:, 1:1 + n_actions]

    return forward


# ------------------------------ pure-JAX reference ----------------------------
def _im2col_nchw(x, kh, kw, stride):
    B, C, H, W = x.shape
    OH = (H - kh) // stride + 1
    OW = (W - kw) // stride + 1
    cols = []
    for i in range(kh):
        for j in range(kw):
            cols.append(x[:, :, i:i + stride * OH:stride,
                              j:j + stride * OW:stride])
    p = jnp.stack(cols, axis=2)            # (B, C, kh*kw, OH, OW)
    p = p.transpose(0, 3, 4, 1, 2)         # (B, OH, OW, C, kh*kw)
    return p.reshape(B * OH * OW, C * kh * kw), OH, OW


@jax.jit
def reference_forward(params, x):
    """PyTorch-layout (NCHW / OIHW / NCHW-flatten) reference mirroring the
    kernel's precision policy (bf16 operands, f32 accumulation, bf16 acts)."""
    def dot(a, b):
        return jnp.dot(a.astype(jnp.bfloat16), b.astype(jnp.bfloat16),
                       preferred_element_type=jnp.float32)

    def conv(x, w, b, s):
        Cout, Cin, kh, kw = w.shape
        B = x.shape[0]
        p, OH, OW = _im2col_nchw(x, kh, kw, s)
        wm = w.reshape(Cout, Cin * kh * kw).T
        y = jnp.maximum(dot(p, wm) + b, 0.0).astype(jnp.bfloat16)
        return y.reshape(B, OH, OW, Cout).transpose(0, 3, 1, 2)  # NCHW

    h = conv(x, params["c1w"], params["c1b"], 4)
    h = conv(h, params["c2w"], params["c2b"], 2)
    h = conv(h, params["c3w"], params["c3b"], 1)
    flat = h.reshape(h.shape[0], -1)        # NCHW flatten, like torch .view
    h1 = jnp.maximum(dot(flat, params["fc1w"]) + params["fc1b"], 0.0).astype(jnp.bfloat16)
    h2 = jnp.maximum(dot(h1, params["fc2w"]) + params["fc2b"], 0.0).astype(jnp.bfloat16)
    v = dot(h2, params["vw"]) + params["vb"]
    a = dot(h2, params["aw"]) + params["ab"]
    return v, a


if __name__ == "__main__":
    # 44x44 survives the conv stack (44 -> 10 -> 4 -> 2) and exercises the
    # position-major conv3/fc1 decomposition with P3 = 4 spatial positions.
    batch = 2
    input_dims = (4, 44, 44)
    n_actions = 6

    key = jax.random.PRNGKey(0)
    kp, kx = jax.random.split(key)
    params = init_params(kp, input_dims, n_actions)
    x = jax.random.normal(kx, (batch, *input_dims), jnp.float32)

    # one-time weight prep (hoisted out of the forward path)
    prepped = prepare_params(params, input_dims)
    forward = build_forward(input_dims, n_actions)

    value, advantage = forward(prepped, x)
    value = jax.block_until_ready(value)
    advantage = jax.block_until_ready(advantage)

    assert value.shape == (batch, 1)
    assert advantage.shape == (batch, n_actions)

    v_ref, a_ref = reference_forward(params, x)
    v_ref = jax.block_until_ready(v_ref)
    a_ref = jax.block_until_ready(a_ref)

    assert jnp.allclose(value, v_ref, rtol=2e-3, atol=2e-3)
    assert jnp.allclose(advantage, a_ref, rtol=2e-3, atol=2e-3)

    print("KERNEL_OK")
</pallas_src>

<mosaic_0001>
module attributes {stable_mosaic.version = 11 : i64} {
  func.func @_mm_bias_act_kernel(%arg0: i32, %arg1: i32, %arg2: memref<208x256xbf16, #tpu.memory_space<vmem>>, %arg3: memref<256x128xbf16, #tpu.memory_space<vmem>>, %arg4: memref<1x128xf32, #tpu.memory_space<vmem>>, %arg5: memref<208x128xbf16, #tpu.memory_space<vmem>>) attributes {dimension_semantics = [#tpu.dimension_semantics<parallel>, #tpu.dimension_semantics<parallel>], iteration_bounds = array<i64: 1, 1>, scalar_prefetch = 0 : i64, scratch_operands = 0 : i64, tpu.core_type = #tpu.core_type<tc>, window_params = [{transform_indices = @transform_0, window_bounds = array<i64: 208, 256>}, {transform_indices = @transform_1, window_bounds = array<i64: 256, 128>}, {transform_indices = @transform_2, window_bounds = array<i64: 1, 128>}, {transform_indices = @transform_3, window_bounds = array<i64: 208, 128>}]} {
    %c0 = arith.constant 0 : index
    %c0_0 = arith.constant 0 : index
    %0 = vector.load %arg2[%c0, %c0_0] : memref<208x256xbf16, #tpu.memory_space<vmem>>, vector<208x256xbf16>
    %c0_1 = arith.constant 0 : index
    %c0_2 = arith.constant 0 : index
    %1 = vector.load %arg3[%c0_1, %c0_2] : memref<256x128xbf16, #tpu.memory_space<vmem>>, vector<256x128xbf16>
    %cst = arith.constant dense<0.000000e+00> : vector<208x128xf32>
    %2 = tpu.matmul %0, %1, %cst {dimension_numbers = #tpu.dot_dimension_numbers<[1], [0], [0], [1], [0, 0, 1, 1], [], []>} : vector<208x256xbf16>, vector<256x128xbf16>, vector<208x128xf32> -> vector<208x128xf32>
    %c0_3 = arith.constant 0 : index
    %c0_4 = arith.constant 0 : index
    %3 = vector.load %arg4[%c0_3, %c0_4] : memref<1x128xf32, #tpu.memory_space<vmem>>, vector<1x128xf32>
    %4 = vector.broadcast %3 : vector<1x128xf32> to vector<208x128xf32>
    %5 = arith.addf %2, %4 : vector<208x128xf32>
    %cst_5 = arith.constant 0.000000e+00 : f32
    %6 = vector.broadcast %cst_5 : f32 to vector<208x128xf32>
    %7 = arith.maximumf %5, %6 : vector<208x128xf32>
    %8 = arith.truncf %7 : vector<208x128xf32> to vector<208x128xbf16>
    %c0_6 = arith.constant 0 : index
    %c0_7 = arith.constant 0 : index
    %9 = vector.load %arg5[%c0_6, %c0_7] : memref<208x128xbf16, #tpu.memory_space<vmem>>, vector<208x128xbf16>
    tpu.vector_store %arg5[%c0_6, %c0_7], %8 {strides = array<i32>} : memref<208x128xbf16, #tpu.memory_space<vmem>>, vector<208x128xbf16>,
    return
  }
  func.func @transform_0(%arg0: i32, %arg1: i32) -> (i32, i32) {
    %c0_i32 = arith.constant 0 : i32
    %c0_i32_0 = arith.constant 0 : i32
    return %arg0, %c0_i32 : i32, i32
  }
  func.func @transform_1(%arg0: i32, %arg1: i32) -> (i32, i32) {
    %c0_i32 = arith.constant 0 : i32
    %c0_i32_0 = arith.constant 0 : i32
    return %c0_i32, %arg1 : i32, i32
  }
  func.func @transform_2(%arg0: i32, %arg1: i32) -> (i32, i32) {
    %c0_i32 = arith.constant 0 : i32
    %c0_i32_0 = arith.constant 0 : i32
    return %c0_i32, %arg1 : i32, i32
  }
  func.func @transform_3(%arg0: i32, %arg1: i32) -> (i32, i32) {
    %c0_i32 = arith.constant 0 : i32
    return %arg0, %arg1 : i32, i32
  }
}

module attributes {stable_mosaic.version = 11 : i64} {
  func.func @_mm_bias_act_kernel(%arg0: i32, %arg1: i32, %arg2: memref<32x512xbf16, #tpu.memory_space<vmem>>, %arg3: memref<512x128xbf16, #tpu.memory_space<vmem>>, %arg4: memref<1x128xf32, #tpu.memory_space<vmem>>, %arg5: memref<32x128xbf16, #tpu.memory_space<vmem>>) attributes {dimension_semantics = [#tpu.dimension_semantics<parallel>, #tpu.dimension_semantics<parallel>], iteration_bounds = array<i64: 1, 1>, scalar_prefetch = 0 : i64, scratch_operands = 0 : i64, tpu.core_type = #tpu.core_type<tc>, window_params = [{transform_indices = @transform_0, window_bounds = array<i64: 32, 512>}, {transform_indices = @transform_1, window_bounds = array<i64: 512, 128>}, {transform_indices = @transform_2, window_bounds = array<i64: 1, 128>}, {transform_indices = @transform_3, window_bounds = array<i64: 32, 128>}]} {
    %c0 = arith.constant 0 : index
    %c0_0 = arith.constant 0 : index
    %0 = vector.load %arg2[%c0, %c0_0] : memref<32x512xbf16, #tpu.memory_space<vmem>>, vector<32x512xbf16>
    %c0_1 = arith.constant 0 : index
    %c0_2 = arith.constant 0 : index
    %1 = vector.load %arg3[%c0_1, %c0_2] : memref<512x128xbf16, #tpu.memory_space<vmem>>, vector<512x128xbf16>
    %cst = arith.constant dense<0.000000e+00> : vector<32x128xf32>
    %2 = tpu.matmul %0, %1, %cst {dimension_numbers = #tpu.dot_dimension_numbers<[1], [0], [0], [1], [0, 0, 1, 1], [], []>} : vector<32x512xbf16>, vector<512x128xbf16>, vector<32x128xf32> -> vector<32x128xf32>
    %c0_3 = arith.constant 0 : index
    %c0_4 = arith.constant 0 : index
    %3 = vector.load %arg4[%c0_3, %c0_4] : memref<1x128xf32, #tpu.memory_space<vmem>>, vector<1x128xf32>
    %4 = vector.broadcast %3 : vector<1x128xf32> to vector<32x128xf32>
    %5 = arith.addf %2, %4 : vector<32x128xf32>
    %cst_5 = arith.constant 0.000000e+00 : f32
    %6 = vector.broadcast %cst_5 : f32 to vector<32x128xf32>
    %7 = arith.maximumf %5, %6 : vector<32x128xf32>
    %8 = arith.truncf %7 : vector<32x128xf32> to vector<32x128xbf16>
    %c0_6 = arith.constant 0 : index
    %c0_7 = arith.constant 0 : index
    %9 = vector.load %arg5[%c0_6, %c0_7] : memref<32x128xbf16, #tpu.memory_space<vmem>>, vector<32x128xbf16>
    tpu.vector_store %arg5[%c0_6, %c0_7], %8 {strides = array<i32>} : memref<32x128xbf16, #tpu.memory_space<vmem>>, vector<32x128xbf16>,
    return
  }
  func.func @transform_0(%arg0: i32, %arg1: i32) -> (i32, i32) {
    %c0_i32 = arith.constant 0 : i32
    %c0_i32_0 = arith.constant 0 : i32
    return %arg0, %c0_i32 : i32, i32
  }
  func.func @transform_1(%arg0: i32, %arg1: i32) -> (i32, i32) {
    %c0_i32 = arith.constant 0 : i32
    %c0_i32_0 = arith.constant 0 : i32
    return %c0_i32, %arg1 : i32, i32
  }
  func.func @transform_2(%arg0: i32, %arg1: i32) -> (i32, i32) {
    %c0_i32 = arith.constant 0 : i32
    %c0_i32_0 = arith.constant 0 : i32
    return %c0_i32, %arg1 : i32, i32
  }
  func.func @transform_3(%arg0: i32, %arg1: i32) -> (i32, i32) {
    %c0_i32 = arith.constant 0 : i32
    return %arg0, %arg1 : i32, i32
  }
}

module attributes {stable_mosaic.version = 11 : i64} {
  func.func @_conv3_fc_heads_kernel(%arg0: i32, %arg1: memref<4x16x640xbf16, #tpu.memory_space<vmem>>, %arg2: memref<640x64xbf16, #tpu.memory_space<vmem>>, %arg3: memref<1x64xf32, #tpu.memory_space<vmem>>, %arg4: memref<4x64x1024xbf16, #tpu.memory_space<vmem>>, %arg5: memref<1x1024xf32, #tpu.memory_space<vmem>>, %arg6: memref<1024x512xbf16, #tpu.memory_space<vmem>>, %arg7: memref<1x512xf32, #tpu.memory_space<vmem>>, %arg8: memref<512x128xbf16, #tpu.memory_space<vmem>>, %arg9: memref<1x128xf32, #tpu.memory_space<vmem>>, %arg10: memref<16x128xf32, #tpu.memory_space<vmem>>, %arg11: memref<16x1024xf32, #tpu.memory_space<vmem>>, %arg12: memref<16x1024xbf16, #tpu.memory_space<vmem>>, %arg13: memref<16x512xbf16, #tpu.memory_space<vmem>>) attributes {dimension_semantics = [#tpu.dimension_semantics<parallel>], iteration_bounds = array<i64: 1>, scalar_prefetch = 0 : i64, scratch_operands = 3 : i64, tpu.core_type = #tpu.core_type<tc>, window_params = [{transform_indices = @transform_0, window_bounds = array<i64: 4, 16, 640>}, {pipeline_mode = #tpu.pipeline_mode<synchronous>, transform_indices = @transform_1, window_bounds = array<i64: 640, 64>}, {pipeline_mode = #tpu.pipeline_mode<synchronous>, transform_indices = @transform_2, window_bounds = array<i64: 1, 64>}, {pipeline_mode = #tpu.pipeline_mode<synchronous>, transform_indices = @transform_3, window_bounds = array<i64: 4, 64, 1024>}, {pipeline_mode = #tpu.pipeline_mode<synchronous>, transform_indices = @transform_4, window_bounds = array<i64: 1, 1024>}, {pipeline_mode = #tpu.pipeline_mode<synchronous>, transform_indices = @transform_5, window_bounds = array<i64: 1024, 512>}, {pipeline_mode = #tpu.pipeline_mode<synchronous>, transform_indices = @transform_6, window_bounds = array<i64: 1, 512>}, {pipeline_mode = #tpu.pipeline_mode<synchronous>, transform_indices = @transform_7, window_bounds = array<i64: 512, 128>}, {pipeline_mode = #tpu.pipeline_mode<synchronous>, transform_indices = @transform_8, window_bounds = array<i64: 1, 128>}, {transform_indices = @transform_9, window_bounds = array<i64: 16, 128>}]} {
    %cst = arith.constant 0.000000e+00 : f32
    %0 = vector.broadcast %cst : f32 to vector<16x1024xf32>
    %c0 = arith.constant 0 : index
    %c0_0 = arith.constant 0 : index
    %1 = vector.load %arg11[%c0, %c0_0] : memref<16x1024xf32, #tpu.memory_space<vmem>>, vector<16x1024xf32>
    tpu.vector_store %arg11[%c0, %c0_0], %0 {strides = array<i32>} : memref<16x1024xf32, #tpu.memory_space<vmem>>, vector<16x1024xf32>,
    %c0_1 = arith.constant 0 : index
    %c0_2 = arith.constant 0 : index
    %c0_3 = arith.constant 0 : index
    %2 = vector.load %arg1[%c0_1, %c0_2, %c0_3] : memref<4x16x640xbf16, #tpu.memory_space<vmem>>, vector<1x16x640xbf16>
    %3 = vector.shape_cast %2 : vector<1x16x640xbf16> to vector<16x640xbf16>
    %c0_4 = arith.constant 0 : index
    %c0_5 = arith.constant 0 : index
    %4 = vector.load %arg2[%c0_4, %c0_5] : memref<640x64xbf16, #tpu.memory_space<vmem>>, vector<640x64xbf16>
    %cst_6 = arith.constant dense<0.000000e+00> : vector<16x64xf32>
    %5 = tpu.matmul %3, %4, %cst_6 {dimension_numbers = #tpu.dot_dimension_numbers<[1], [0], [0], [1], [0, 0, 1, 1], [], []>} : vector<16x640xbf16>, vector<640x64xbf16>, vector<16x64xf32> -> vector<16x64xf32>
    %c0_7 = arith.constant 0 : index
    %c0_8 = arith.constant 0 : index
    %6 = vector.load %arg3[%c0_7, %c0_8] : memref<1x64xf32, #tpu.memory_space<vmem>>, vector<1x64xf32>
    %7 = vector.broadcast %6 : vector<1x64xf32> to vector<16x64xf32>
    %8 = arith.addf %5, %7 : vector<16x64xf32>
    %cst_9 = arith.constant 0.000000e+00 : f32
    %9 = vector.broadcast %cst_9 : f32 to vector<16x64xf32>
    %10 = arith.maximumf %8, %9 : vector<16x64xf32>
    %11 = arith.truncf %10 : vector<16x64xf32> to vector<16x64xbf16>
    %c0_10 = arith.constant 0 : index
    %c0_11 = arith.constant 0 : index
    %12 = vector.load %arg11[%c0_10, %c0_11] : memref<16x1024xf32, #tpu.memory_space<vmem>>, vector<16x1024xf32>
    %c0_12 = arith.constant 0 : index
    %c0_13 = arith.constant 0 : index
    %c0_14 = arith.constant 0 : index
    %13 = vector.load %arg4[%c0_12, %c0_13, %c0_14] : memref<4x64x1024xbf16, #tpu.memory_space<vmem>>, vector<1x64x1024xbf16>
    %14 = vector.shape_cast %13 : vector<1x64x1024xbf16> to vector<64x1024xbf16>
    %cst_15 = arith.constant dense<0.000000e+00> : vector<16x1024xf32>
    %15 = tpu.matmul %11, %14, %cst_15 {dimension_numbers = #tpu.dot_dimension_numbers<[1], [0], [0], [1], [0, 0, 1, 1], [], []>} : vector<16x64xbf16>, vector<64x1024xbf16>, vector<16x1024xf32> -> vector<16x1024xf32>
    %16 = arith.addf %12, %15 : vector<16x1024xf32>
    %c0_16 = arith.constant 0 : index
    %c0_17 = arith.constant 0 : index
    %17 = vector.load %arg11[%c0_16, %c0_17] : memref<16x1024xf32, #tpu.memory_space<vmem>>, vector<16x1024xf32>
    tpu.vector_store %arg11[%c0_16, %c0_17], %16 {strides = array<i32>} : memref<16x1024xf32, #tpu.memory_space<vmem>>, vector<16x1024xf32>,
    %c1 = arith.constant 1 : index
    %c0_18 = arith.constant 0 : index
    %c0_19 = arith.constant 0 : index
    %18 = vector.load %arg1[%c1, %c0_18, %c0_19] : memref<4x16x640xbf16, #tpu.memory_space<vmem>>, vector<1x16x640xbf16>
    %19 = vector.shape_cast %18 : vector<1x16x640xbf16> to vector<16x640xbf16>
    %c0_20 = arith.constant 0 : index
    %c0_21 = arith.constant 0 : index
    %20 = vector.load %arg2[%c0_20, %c0_21] : memref<640x64xbf16, #tpu.memory_space<vmem>>, vector<640x64xbf16>
    %cst_22 = arith.constant dense<0.000000e+00> : vector<16x64xf32>
    %21 = tpu.matmul %19, %20, %cst_22 {dimension_numbers = #tpu.dot_dimension_numbers<[1], [0], [0], [1], [0, 0, 1, 1], [], []>} : vector<16x640xbf16>, vector<640x64xbf16>, vector<16x64xf32> -> vector<16x64xf32>
    %c0_23 = arith.constant 0 : index
    %c0_24 = arith.constant 0 : index
    %22 = vector.load %arg3[%c0_23, %c0_24] : memref<1x64xf32, #tpu.memory_space<vmem>>, vector<1x64xf32>
    %23 = vector.broadcast %22 : vector<1x64xf32> to vector<16x64xf32>
    %24 = arith.addf %21, %23 : vector<16x64xf32>
    %cst_25 = arith.constant 0.000000e+00 : f32
    %25 = vector.broadcast %cst_25 : f32 to vector<16x64xf32>
    %26 = arith.maximumf %24, %25 : vector<16x64xf32>
    %27 = arith.truncf %26 : vector<16x64xf32> to vector<16x64xbf16>
    %c0_26 = arith.constant 0 : index
    %c0_27 = arith.constant 0 : index
    %28 = vector.load %arg11[%c0_26, %c0_27] : memref<16x1024xf32, #tpu.memory_space<vmem>>, vector<16x1024xf32>
    %c1_28 = arith.constant 1 : index
    %c0_29 = arith.constant 0 : index
    %c0_30 = arith.constant 0 : index
    %29 = vector.load %arg4[%c1_28, %c0_29, %c0_30] : memref<4x64x1024xbf16, #tpu.memory_space<vmem>>, vector<1x64x1024xbf16>
    %30 = vector.shape_cast %29 : vector<1x64x1024xbf16> to vector<64x1024xbf16>
    %cst_31 = arith.constant dense<0.000000e+00> : vector<16x1024xf32>
    %31 = tpu.matmul %27, %30, %cst_31 {dimension_numbers = #tpu.dot_dimension_numbers<[1], [0], [0], [1], [0, 0, 1, 1], [], []>} : vector<16x64xbf16>, vector<64x1024xbf16>, vector<16x1024xf32> -> vector<16x1024xf32>
    %32 = arith.addf %28, %31 : vector<16x1024xf32>
    %c0_32 = arith.constant 0 : index
    %c0_33 = arith.constant 0 : index
    %33 = vector.load %arg11[%c0_32, %c0_33] : memref<16x1024xf32, #tpu.memory_space<vmem>>, vector<16x1024xf32>
    tpu.vector_store %arg11[%c0_32, %c0_33], %32 {strides = array<i32>} : memref<16x1024xf32, #tpu.memory_space<vmem>>, vector<16x1024xf32>,
    %c2 = arith.constant 2 : index
    %c0_34 = arith.constant 0 : index
    %c0_35 = arith.constant 0 : index
    %34 = vector.load %arg1[%c2, %c0_34, %c0_35] : memref<4x16x640xbf16, #tpu.memory_space<vmem>>, vector<1x16x640xbf16>
    %35 = vector.shape_cast %34 : vector<1x16x640xbf16> to vector<16x640xbf16>
    %c0_36 = arith.constant 0 : index
    %c0_37 = arith.constant 0 : index
    %36 = vector.load %arg2[%c0_36, %c0_37] : memref<640x64xbf16, #tpu.memory_space<vmem>>, vector<640x64xbf16>
    %cst_38 = arith.constant dense<0.000000e+00> : vector<16x64xf32>
    %37 = tpu.matmul %35, %36, %cst_38 {dimension_numbers = #tpu.dot_dimension_numbers<[1], [0], [0], [1], [0, 0, 1, 1], [], []>} : vector<16x640xbf16>, vector<640x64xbf16>, vector<16x64xf32> -> vector<16x64xf32>
    %c0_39 = arith.constant 0 : index
    %c0_40 = arith.constant 0 : index
    %38 = vector.load %arg3[%c0_39, %c0_40] : memref<1x64xf32, #tpu.memory_space<vmem>>, vector<1x64xf32>
    %39 = vector.broadcast %38 : vector<1x64xf32> to vector<16x64xf32>
    %40 = arith.addf %37, %39 : vector<16x64xf32>
    %cst_41 = arith.constant 0.000000e+00 : f32
    %41 = vector.broadcast %cst_41 : f32 to vector<16x64xf32>
    %42 = arith.maximumf %40, %41 : vector<16x64xf32>
    %43 = arith.truncf %42 : vector<16x64xf32> to vector<16x64xbf16>
    %c0_42 = arith.constant 0 : index
    %c0_43 = arith.constant 0 : index
    %44 = vector.load %arg11[%c0_42, %c0_43] : memref<16x1024xf32, #tpu.memory_space<vmem>>, vector<16x1024xf32>
    %c2_44 = arith.constant 2 : index
    %c0_45 = arith.constant 0 : index
    %c0_46 = arith.constant 0 : index
    %45 = vector.load %arg4[%c2_44, %c0_45, %c0_46] : memref<4x64x1024xbf16, #tpu.memory_space<vmem>>, vector<1x64x1024xbf16>
    %46 = vector.shape_cast %45 : vector<1x64x1024xbf16> to vector<64x1024xbf16>
    %cst_47 = arith.constant dense<0.000000e+00> : vector<16x1024xf32>
    %47 = tpu.matmul %43, %46, %cst_47 {dimension_numbers = #tpu.dot_dimension_numbers<[1], [0], [0], [1], [0, 0, 1, 1], [], []>} : vector<16x64xbf16>, vector<64x1024xbf16>, vector<16x1024xf32> -> vector<16x1024xf32>
    %48 = arith.addf %44, %47 : vector<16x1024xf32>
    %c0_48 = arith.constant 0 : index
    %c0_49 = arith.constant 0 : index
    %49 = vector.load %arg11[%c0_48, %c0_49] : memref<16x1024xf32, #tpu.memory_space<vmem>>, vector<16x1024xf32>
    tpu.vector_store %arg11[%c0_48, %c0_49], %48 {strides = array<i32>} : memref<16x1024xf32, #tpu.memory_space<vmem>>, vector<16x1024xf32>,
    %c3 = arith.constant 3 : index
    %c0_50 = arith.constant 0 : index
    %c0_51 = arith.constant 0 : index
    %50 = vector.load %arg1[%c3, %c0_50, %c0_51] : memref<4x16x640xbf16, #tpu.memory_space<vmem>>, vector<1x16x640xbf16>
    %51 = vector.shape_cast %50 : vector<1x16x640xbf16> to vector<16x640xbf16>
    %c0_52 = arith.constant 0 : index
    %c0_53 = arith.constant 0 : index
    %52 = vector.load %arg2[%c0_52, %c0_53] : memref<640x64xbf16, #tpu.memory_space<vmem>>, vector<640x64xbf16>
    %cst_54 = arith.constant dense<0.000000e+00> : vector<16x64xf32>
    %53 = tpu.matmul %51, %52, %cst_54 {dimension_numbers = #tpu.dot_dimension_numbers<[1], [0], [0], [1], [0, 0, 1, 1], [], []>} : vector<16x640xbf16>, vector<640x64xbf16>, vector<16x64xf32> -> vector<16x64xf32>
    %c0_55 = arith.constant 0 : index
    %c0_56 = arith.constant 0 : index
    %54 = vector.load %arg3[%c0_55, %c0_56] : memref<1x64xf32, #tpu.memory_space<vmem>>, vector<1x64xf32>
    %55 = vector.broadcast %54 : vector<1x64xf32> to vector<16x64xf32>
    %56 = arith.addf %53, %55 : vector<16x64xf32>
    %cst_57 = arith.constant 0.000000e+00 : f32
    %57 = vector.broadcast %cst_57 : f32 to vector<16x64xf32>
    %58 = arith.maximumf %56, %57 : vector<16x64xf32>
    %59 = arith.truncf %58 : vector<16x64xf32> to vector<16x64xbf16>
    %c0_58 = arith.constant 0 : index
    %c0_59 = arith.constant 0 : index
    %60 = vector.load %arg11[%c0_58, %c0_59] : memref<16x1024xf32, #tpu.memory_space<vmem>>, vector<16x1024xf32>
    %c3_60 = arith.constant 3 : index
    %c0_61 = arith.constant 0 : index
    %c0_62 = arith.constant 0 : index
    %61 = vector.load %arg4[%c3_60, %c0_61, %c0_62] : memref<4x64x1024xbf16, #tpu.memory_space<vmem>>, vector<1x64x1024xbf16>
    %62 = vector.shape_cast %61 : vector<1x64x1024xbf16> to vector<64x1024xbf16>
    %cst_63 = arith.constant dense<0.000000e+00> : vector<16x1024xf32>
    %63 = tpu.matmul %59, %62, %cst_63 {dimension_numbers = #tpu.dot_dimension_numbers<[1], [0], [0], [1], [0, 0, 1, 1], [], []>} : vector<16x64xbf16>, vector<64x1024xbf16>, vector<16x1024xf32> -> vector<16x1024xf32>
    %64 = arith.addf %60, %63 : vector<16x1024xf32>
    %c0_64 = arith.constant 0 : index
    %c0_65 = arith.constant 0 : index
    %65 = vector.load %arg11[%c0_64, %c0_65] : memref<16x1024xf32, #tpu.memory_space<vmem>>, vector<16x1024xf32>
    tpu.vector_store %arg11[%c0_64, %c0_65], %64 {strides = array<i32>} : memref<16x1024xf32, #tpu.memory_space<vmem>>, vector<16x1024xf32>,
    %c0_66 = arith.constant 0 : index
    %c0_67 = arith.constant 0 : index
    %66 = vector.load %arg11[%c0_66, %c0_67] : memref<16x1024xf32, #tpu.memory_space<vmem>>, vector<16x1024xf32>
    %c0_68 = arith.constant 0 : index
    %c0_69 = arith.constant 0 : index
    %67 = vector.load %arg5[%c0_68, %c0_69] : memref<1x1024xf32, #tpu.memory_space<vmem>>, vector<1x1024xf32>
    %68 = vector.broadcast %67 : vector<1x1024xf32> to vector<16x1024xf32>
    %69 = arith.addf %66, %68 : vector<16x1024xf32>
    %cst_70 = arith.constant 0.000000e+00 : f32
    %70 = vector.broadcast %cst_70 : f32 to vector<16x1024xf32>
    %71 = arith.maximumf %69, %70 : vector<16x1024xf32>
    %72 = arith.truncf %71 : vector<16x1024xf32> to vector<16x1024xbf16>
    %c0_71 = arith.constant 0 : index
    %c0_72 = arith.constant 0 : index
    %73 = vector.load %arg12[%c0_71, %c0_72] : memref<16x1024xbf16, #tpu.memory_space<vmem>>, vector<16x1024xbf16>
    tpu.vector_store %arg12[%c0_71, %c0_72], %72 {strides = array<i32>} : memref<16x1024xbf16, #tpu.memory_space<vmem>>, vector<16x1024xbf16>,
    %c0_73 = arith.constant 0 : index
    %c0_74 = arith.constant 0 : index
    %74 = vector.load %arg12[%c0_73, %c0_74] : memref<16x1024xbf16, #tpu.memory_space<vmem>>, vector<16x1024xbf16>
    %c0_75 = arith.constant 0 : index
    %c0_76 = arith.constant 0 : index
    %75 = vector.load %arg6[%c0_75, %c0_76] : memref<1024x512xbf16, #tpu.memory_space<vmem>>, vector<1024x512xbf16>
    %cst_77 = arith.constant dense<0.000000e+00> : vector<16x512xf32>
    %76 = tpu.matmul %74, %75, %cst_77 {dimension_numbers = #tpu.dot_dimension_numbers<[1], [0], [0], [1], [0, 0, 1, 1], [], []>} : vector<16x1024xbf16>, vector<1024x512xbf16>, vector<16x512xf32> -> vector<16x512xf32>
    %c0_78 = arith.constant 0 : index
    %c0_79 = arith.constant 0 : index
    %77 = vector.load %arg7[%c0_78, %c0_79] : memref<1x512xf32, #tpu.memory_space<vmem>>, vector<1x512xf32>
    %78 = vector.broadcast %77 : vector<1x512xf32> to vector<16x512xf32>
    %79 = arith.addf %76, %78 : vector<16x512xf32>
    %cst_80 = arith.constant 0.000000e+00 : f32
    %80 = vector.broadcast %cst_80 : f32 to vector<16x512xf32>
    %81 = arith.maximumf %79, %80 : vector<16x512xf32>
    %82 = arith.truncf %81 : vector<16x512xf32> to vector<16x512xbf16>
    %c0_81 = arith.constant 0 : index
    %c0_82 = arith.constant 0 : index
    %83 = vector.load %arg13[%c0_81, %c0_82] : memref<16x512xbf16, #tpu.memory_space<vmem>>, vector<16x512xbf16>
    tpu.vector_store %arg13[%c0_81, %c0_82], %82 {strides = array<i32>} : memref<16x512xbf16, #tpu.memory_space<vmem>>, vector<16x512xbf16>,
    %c0_83 = arith.constant 0 : index
    %c0_84 = arith.constant 0 : index
    %84 = vector.load %arg13[%c0_83, %c0_84] : memref<16x512xbf16, #tpu.memory_space<vmem>>, vector<16x512xbf16>
    %c0_85 = arith.constant 0 : index
    %c0_86 = arith.constant 0 : index
    %85 = vector.load %arg8[%c0_85, %c0_86] : memref<512x128xbf16, #tpu.memory_space<vmem>>, vector<512x128xbf16>
    %cst_87 = arith.constant dense<0.000000e+00> : vector<16x128xf32>
    %86 = tpu.matmul %84, %85, %cst_87 {dimension_numbers = #tpu.dot_dimension_numbers<[1], [0], [0], [1], [0, 0, 1, 1], [], []>} : vector<16x512xbf16>, vector<512x128xbf16>, vector<16x128xf32> -> vector<16x128xf32>
    %c0_88 = arith.constant 0 : index
    %c0_89 = arith.constant 0 : index
    %87 = vector.load %arg9[%c0_88, %c0_89] : memref<1x128xf32, #tpu.memory_space<vmem>>, vector<1x128xf32>
    %88 = vector.broadcast %87 : vector<1x128xf32> to vector<16x128xf32>
    %89 = arith.addf %86, %88 : vector<16x128xf32>
    %c0_90 = arith.constant 0 : index
    %c0_91 = arith.constant 0 : index
    %90 = vector.load %arg10[%c0_90, %c0_91] : memref<16x128xf32, #tpu.memory_space<vmem>>, vector<16x128xf32>
    tpu.vector_store %arg10[%c0_90, %c0_91], %89 {strides = array<i32>} : memref<16x128xf32, #tpu.memory_space<vmem>>, vector<16x128xf32>,
    return
  }
  func.func @transform_0(%arg0: i32) -> (i32, i32, i32) {
    %c0_i32 = arith.constant 0 : i32
    %c0_i32_0 = arith.constant 0 : i32
    %c0_i32_1 = arith.constant 0 : i32
    return %c0_i32, %arg0, %c0_i32_0 : i32, i32, i32
  }
  func.func @transform_1(%arg0: i32) -> (i32, i32) {
    %c0_i32 = arith.constant 0 : i32
    %c0_i32_0 = arith.constant 0 : i32
    %c0_i32_1 = arith.constant 0 : i32
    return %c0_i32, %c0_i32_0 : i32, i32
  }
  func.func @transform_2(%arg0: i32) -> (i32, i32) {
    %c0_i32 = arith.constant 0 : i32
    %c0_i32_0 = arith.constant 0 : i32
    %c0_i32_1 = arith.constant 0 : i32
    return %c0_i32, %c0_i32_0 : i32, i32
  }
  func.func @transform_3(%arg0: i32) -> (i32, i32, i32) {
    %c0_i32 = arith.constant 0 : i32
    %c0_i32_0 = arith.constant 0 : i32
    %c0_i32_1 = arith.constant 0 : i32
    %c0_i32_2 = arith.constant 0 : i32
    return %c0_i32, %c0_i32_0, %c0_i32_1 : i32, i32, i32
  }
  func.func @transform_4(%arg0: i32) -> (i32, i32) {
    %c0_i32 = arith.constant 0 : i32
    %c0_i32_0 = arith.constant 0 : i32
    %c0_i32_1 = arith.constant 0 : i32
    return %c0_i32, %c0_i32_0 : i32, i32
  }
  func.func @transform_5(%arg0: i32) -> (i32, i32) {
    %c0_i32 = arith.constant 0 : i32
    %c0_i32_0 = arith.constant 0 : i32
    %c0_i32_1 = arith.constant 0 : i32
    return %c0_i32, %c0_i32_0 : i32, i32
  }
  func.func @transform_6(%arg0: i32) -> (i32, i32) {
    %c0_i32 = arith.constant 0 : i32
    %c0_i32_0 = arith.constant 0 : i32
    %c0_i32_1 = arith.constant 0 : i32
    return %c0_i32, %c0_i32_0 : i32, i32
  }
  func.func @transform_7(%arg0: i32) -> (i32, i32) {
    %c0_i32 = arith.constant 0 : i32
    %c0_i32_0 = arith.constant 0 : i32
    %c0_i32_1 = arith.constant 0 : i32
    return %c0_i32, %c0_i32_0 : i32, i32
  }
  func.func @transform_8(%arg0: i32) -> (i32, i32) {
    %c0_i32 = arith.constant 0 : i32
    %c0_i32_0 = arith.constant 0 : i32
    %c0_i32_1 = arith.constant 0 : i32
    return %c0_i32, %c0_i32_0 : i32, i32
  }
  func.func @transform_9(%arg0: i32) -> (i32, i32) {
    %c0_i32 = arith.constant 0 : i32
    %c0_i32_0 = arith.constant 0 : i32
    return %arg0, %c0_i32 : i32, i32
  }
}

</mosaic_0001>

<llo_original>
// kernel: forward.3
$region0: #{forward.3}
  #allocation0 [shape = 'u32[]', space=smem, size = 0x4, offset = 0x4, fixed_abs, tag = 'smem constant byte address 0x4 - core index']
  #allocation1 [shape = 'u32[144,128]{1,0:T(1,128)}', space=vmem, size = 0x12000, scoped, tag = 'internal scratch']
  %s0 = inlined_call_operand.vmem [shape: bf16[208,256], index: 0, kind: input, shape index: {}]
  %s1 = inlined_call_operand.vmem [shape: bf16[256,128], index: 1, kind: input, shape index: {}]
  %s2 = inlined_call_operand.vmem [shape: f32[1,128], index: 2, kind: input, shape index: {}]
  %s3 = inlined_call_operand.vmem [shape: bf16[208,128], index: 3, kind: output, shape index: {}]
  %s4 = sld [smem:[#allocation0]]
  $region22: #{forward.3} parent=0
    _
  %s6 = ssub.s32 1, %s4
  %s7 = scalar_select 0, %s6, %s4
  // Predicated region
  $region2: #{forward.3} parent=0 // pred_check
    _
  $region3: #{forward.3} parent=0 // pred_check_branch
    %9 = sbr.rel (0) target = $region5
  $region4: #{forward.3} parent=0 // pred_region
    _
  $region5: #{forward.3} parent=0 // pred_fallthru
    _
  // Predicated region
  $region6: #{forward.3} parent=0 // pred_check
    _
  $region7: #{forward.3} parent=0 // pred_check_branch
    %11 = sbr.rel (0) target = $region9
  $region8: #{forward.3} parent=0 // pred_region
    _
  $region9: #{forward.3} parent=0 // pred_fallthru
    _
  // Predicated region
  $region10: #{forward.3} parent=0 // pred_check
    _
  $region11: #{forward.3} parent=0 // pred_check_branch
    %13 = sbr.rel (0) target = $region13
  $region12: #{forward.3} parent=0 // pred_region
    _
  $region13: #{forward.3} parent=0 // pred_fallthru
    _
  %v15 = vld [vmem:[%s0] sm:$0xff]
  %v16 = vld [vmem:[%s0 + $0x8] sm:$0xff]
  %v17 = vld [vmem:[%s0 + $0x10] sm:$0xff]
  %v18 = vld [vmem:[%s0 + $0x18] sm:$0xff]
  %v19 = vld [vmem:[%s0 + $0x20] sm:$0xff]
  %v20 = vld [vmem:[%s0 + $0x28] sm:$0xff]
  %v21 = vld [vmem:[%s0 + $0x30] sm:$0xff]
  %v22 = vld [vmem:[%s0 + $0x38] sm:$0xff]
  %v23 = vld [vmem:[%s0 + $0x40] sm:$0xff]
  %v24 = vld [vmem:[%s0 + $0x48] sm:$0xff]
  %v25 = vld [vmem:[%s0 + $0x50] sm:$0xff]
  %v26 = vld [vmem:[%s0 + $0x58] sm:$0xff]
  %v27 = vld [vmem:[%s0 + $0x60] sm:$0xff]
  %v28 = vld [vmem:[%s0 + $0x68] sm:$0xff]
  %v29 = vld [vmem:[%s0 + $0x70] sm:$0xff]
  %v30 = vld [vmem:[%s0 + $0x78] sm:$0xff]
  %v31 = vld [vmem:[%s0 + $0x80] sm:$0xff]
  %v32 = vld [vmem:[%s0 + $0x88] sm:$0xff]
  %v33 = vld [vmem:[%s0 + $0x90] sm:$0xff]
  %v34 = vld [vmem:[%s0 + $0x98] sm:$0xff]
  %v35 = vld [vmem:[%s0 + $0xa0] sm:$0xff]
  %v36 = vld [vmem:[%s0 + $0xa8] sm:$0xff]
  %v37 = vld [vmem:[%s0 + $0xb0] sm:$0xff]
  %v38 = vld [vmem:[%s0 + $0xb8] sm:$0xff]
  %v39 = vld [vmem:[%s0 + $0xc0] sm:$0xff]
  %v40 = vld [vmem:[%s0 + $0xc8] sm:$0xff]
  %v41 = vld [vmem:[%s1] sm:$0xf]
  %v42 = vld [vmem:[%s1 + $0x4] sm:$0xf]
  %v43 = vld [vmem:[%s1 + $0x8] sm:$0xf]
  %v44 = vld [vmem:[%s1 + $0xc] sm:$0xf]
  %v45 = vld [vmem:[%s1 + $0x10] sm:$0xf]
  %v46 = vld [vmem:[%s1 + $0x14] sm:$0xf]
  %v47 = vld [vmem:[%s1 + $0x18] sm:$0xf]
  %v48 = vld [vmem:[%s1 + $0x1c] sm:$0xf]
  %v49 = vld [vmem:[%s1 + $0x20] sm:$0xf]
  %v50 = vld [vmem:[%s1 + $0x24] sm:$0xf]
  %v51 = vld [vmem:[%s1 + $0x28] sm:$0xf]
  %v52 = vld [vmem:[%s1 + $0x2c] sm:$0xf]
  %v53 = vld [vmem:[%s1 + $0x30] sm:$0xf]
  %v54 = vld [vmem:[%s1 + $0x34] sm:$0xf]
  %v55 = vld [vmem:[%s1 + $0x38] sm:$0xf]
  %v56 = vld [vmem:[%s1 + $0x3c] sm:$0xf]
  %v57 = vld [vmem:[%s1 + $0x40] sm:$0xf]
  %v58 = vld [vmem:[%s1 + $0x44] sm:$0xf]
  %v59 = vld [vmem:[%s1 + $0x48] sm:$0xf]
  %v60 = vld [vmem:[%s1 + $0x4c] sm:$0xf]
  %v61 = vld [vmem:[%s1 + $0x50] sm:$0xf]
  %v62 = vld [vmem:[%s1 + $0x54] sm:$0xf]
  %v63 = vld [vmem:[%s1 + $0x58] sm:$0xf]
  %v64 = vld [vmem:[%s1 + $0x5c] sm:$0xf]
  %v65 = vld [vmem:[%s1 + $0x60] sm:$0xf]
  %v66 = vld [vmem:[%s1 + $0x64] sm:$0xf]
  %v67 = vld [vmem:[%s1 + $0x68] sm:$0xf]
  %v68 = vld [vmem:[%s1 + $0x6c] sm:$0xf]
  %v69 = vld [vmem:[%s1 + $0x70] sm:$0xf]
  %v70 = vld [vmem:[%s1 + $0x74] sm:$0xf]
  %v71 = vld [vmem:[%s1 + $0x78] sm:$0xf]
  %v72 = vld [vmem:[%s1 + $0x7c] sm:$0xf]
  %v73 = vld [vmem:[%s2] sm:$0x1]
  %v75 = vlaneseq
  %v76 = vshrl.u32 %v75, 7
  %v77 = vsub.s32 0, %v76
  %v78 = vrot.slane %v73, %v77
  %v106 = vunpack.c.l.b16 %v15
  %v107 = vunpack.c.h.b16 %v15
  %v108 = vunpack.c.l.b16 %v16
  %v109 = vunpack.c.h.b16 %v16
  %v110 = vunpack.c.l.b16 %v17
  %v111 = vunpack.c.h.b16 %v17
  %v112 = vunpack.c.l.b16 %v18
  %v113 = vunpack.c.h.b16 %v18
  %v114 = vunpack.c.l.b16 %v19
  %v115 = vunpack.c.h.b16 %v19
  %v116 = vunpack.c.l.b16 %v20
  %v117 = vunpack.c.h.b16 %v20
  %v118 = vunpack.c.l.b16 %v21
  %v119 = vunpack.c.h.b16 %v21
  %v120 = vunpack.c.l.b16 %v22
  %v121 = vunpack.c.h.b16 %v22
  %v122 = vunpack.c.l.b16 %v23
  %v123 = vunpack.c.h.b16 %v23
  %v124 = vunpack.c.l.b16 %v24
  %v125 = vunpack.c.h.b16 %v24
  %v126 = vunpack.c.l.b16 %v25
  %v127 = vunpack.c.h.b16 %v25
  %v128 = vunpack.c.l.b16 %v26
  %v129 = vunpack.c.h.b16 %v26
  %v130 = vunpack.c.l.b16 %v27
  %v131 = vunpack.c.h.b16 %v27
  %v132 = vunpack.c.l.b16 %v28
  %v133 = vunpack.c.h.b16 %v28
  %v134 = vunpack.c.l.b16 %v29
  %v135 = vunpack.c.h.b16 %v29
  %v136 = vunpack.c.l.b16 %v30
  %v137 = vunpack.c.h.b16 %v30
  %v138 = vunpack.c.l.b16 %v31
  %v139 = vunpack.c.h.b16 %v31
  %v140 = vunpack.c.l.b16 %v32
  %v141 = vunpack.c.h.b16 %v32
  %v142 = vunpack.c.l.b16 %v33
  %v143 = vunpack.c.h.b16 %v33
  %v144 = vunpack.c.l.b16 %v34
  %v145 = vunpack.c.h.b16 %v34
  %v146 = vunpack.c.l.b16 %v35
  %v147 = vunpack.c.h.b16 %v35
  %v148 = vunpack.c.l.b16 %v36
  %v149 = vunpack.c.h.b16 %v36
  %v150 = vunpack.c.l.b16 %v37
  %v151 = vunpack.c.h.b16 %v37
  %v152 = vunpack.c.l.b16 %v38
  %v153 = vunpack.c.h.b16 %v38
  %v154 = vunpack.c.l.b16 %v39
  %v155 = vunpack.c.h.b16 %v39
  %v156 = vunpack.c.l.b16 %v40
  %v157 = vunpack.c.h.b16 %v40
  %v158 = vpack.c.b16 %v108, %v106
  %v159 = vpack.c.b16 %v109, %v107
  %v160 = vpack.c.b16 %v112, %v110
  %v161 = vpack.c.b16 %v113, %v111
  %v162 = vpack.c.b16 %v116, %v114
  %v163 = vpack.c.b16 %v117, %v115
  %v164 = vpack.c.b16 %v120, %v118
  %v165 = vpack.c.b16 %v121, %v119
  %v166 = vpack.c.b16 %v124, %v122
  %v167 = vpack.c.b16 %v125, %v123
  %v168 = vpack.c.b16 %v128, %v126
  %v169 = vpack.c.b16 %v129, %v127
  %v170 = vpack.c.b16 %v132, %v130
  %v171 = vpack.c.b16 %v133, %v131
  %v172 = vpack.c.b16 %v136, %v134
  %v173 = vpack.c.b16 %v137, %v135
  %v174 = vpack.c.b16 %v140, %v138
  %v175 = vpack.c.b16 %v141, %v139
  %v176 = vpack.c.b16 %v144, %v142
  %v177 = vpack.c.b16 %v145, %v143
  %v178 = vpack.c.b16 %v148, %v146
  %v179 = vpack.c.b16 %v149, %v147
  %v180 = vpack.c.b16 %v152, %v150
  %v181 = vpack.c.b16 %v153, %v151
  %v182 = vpack.c.b16 %v156, %v154
  %v183 = vpack.c.b16 %v157, %v155
  %v242 = vunpack.c.l.b16 %v41
  %v243 = vunpack.c.l.b16 %v42
  %v244 = vunpack.c.l.b16 %v43
  %v245 = vunpack.c.l.b16 %v44
  %v246 = vunpack.c.l.b16 %v45
  %v247 = vunpack.c.l.b16 %v46
  %v248 = vunpack.c.l.b16 %v47
  %v249 = vunpack.c.l.b16 %v48
  %v250 = vunpack.c.l.b16 %v49
  %v251 = vunpack.c.l.b16 %v50
  %v252 = vunpack.c.l.b16 %v51
  %v253 = vunpack.c.l.b16 %v52
  %v254 = vunpack.c.l.b16 %v53
  %v255 = vunpack.c.l.b16 %v54
  %v256 = vunpack.c.l.b16 %v55
  %v257 = vunpack.c.l.b16 %v56
  %v258 = vunpack.c.l.b16 %v57
  %v259 = vunpack.c.l.b16 %v58
  %v260 = vunpack.c.l.b16 %v59
  %v261 = vunpack.c.l.b16 %v60
  %v262 = vunpack.c.l.b16 %v61
  %v263 = vunpack.c.l.b16 %v62
  %v264 = vunpack.c.l.b16 %v63
  %v265 = vunpack.c.l.b16 %v64
  %v266 = vunpack.c.l.b16 %v65
  %v267 = vunpack.c.l.b16 %v66
  %v268 = vunpack.c.l.b16 %v67
  %v269 = vunpack.c.l.b16 %v68
  %v270 = vunpack.c.l.b16 %v69
  %v271 = vunpack.c.l.b16 %v70
  %v272 = vunpack.c.l.b16 %v71
  %v273 = vunpack.c.l.b16 %v72
  %v274 = vpack.c.b16 %v243, %v242
  %v275 = vpack.c.b16 %v245, %v244
  %v276 = vpack.c.b16 %v247, %v246
  %v277 = vpack.c.b16 %v249, %v248
  %v278 = vpack.c.b16 %v251, %v250
  %v279 = vpack.c.b16 %v253, %v252
  %v280 = vpack.c.b16 %v255, %v254
  %v281 = vpack.c.b16 %v257, %v256
  %v282 = vpack.c.b16 %v259, %v258
  %v283 = vpack.c.b16 %v261, %v260
  %v284 = vpack.c.b16 %v263, %v262
  %v285 = vpack.c.b16 %v265, %v264
  %v286 = vpack.c.b16 %v267, %v266
  %v287 = vpack.c.b16 %v269, %v268
  %v288 = vpack.c.b16 %v271, %v270
  %v289 = vpack.c.b16 %v273, %v272
  %306 = vmatprep.subr.bf16.mxu0 0
  %307 = vmatpush1.bf16.msra.mxu0 %v274
  %308 = vmatprep.subr.bf16.mxu0 0
  %309 = vmatpush1.bf16.msra.mxu0 %v275
  %310 = vmatprep.subr.bf16.mxu0 0
  %311 = vmatpush1.bf16.msra.mxu0 %v276
  %312 = vmatprep.subr.bf16.mxu0 0
  %313 = vmatpush1.bf16.msra.mxu0 %v277
  %314 = vmatprep.subr.bf16.mxu0 0
  %315 = vmatpush1.bf16.msra.mxu0 %v278
  %316 = vmatprep.subr.bf16.mxu0 0
  %317 = vmatpush1.bf16.msra.mxu0 %v279
  %318 = vmatprep.subr.bf16.mxu0 0
  %319 = vmatpush1.bf16.msra.mxu0 %v280
  %320 = vmatprep.subr.bf16.mxu0 0
  %321 = vmatpush1.bf16.msra.mxu0 %v281
  %322 = vmatprep.subr.bf16.mxu0 0
  %323 = vmatpush1.bf16.msra.mxu0 %v282
  %324 = vmatprep.subr.bf16.mxu0 0
  %325 = vmatpush1.bf16.msra.mxu0 %v283
  %326 = vmatprep.subr.bf16.mxu0 0
  %327 = vmatpush1.bf16.msra.mxu0 %v284
  %328 = vmatprep.subr.bf16.mxu0 0
  %329 = vmatpush1.bf16.msra.mxu0 %v285
  %330 = vmatprep.subr.bf16.mxu0 0
  %331 = vmatpush1.bf16.msra.mxu0 %v286
  %332 = vmatprep.subr.bf16.mxu0 0
  %333 = vmatpush1.bf16.msra.mxu0 %v287
  %334 = vmatprep.subr.bf16.mxu0 0
  %335 = vmatpush1.bf16.msra.mxu0 %v288
  %336 = vmatprep.subr.bf16.mxu0 0
  %337 = vmatpush1.bf16.msra.mxu0 %v289
  %338 = vmatprep.mubr.bf16.mxu0 %v159
  %339 = vmatmul.mubr.bf16.gmra.mrb[0].mxu0 %v158
  %v340 = vpop.f32.mrb[0].mxu0
  %v341 = vadd.f32 %v78, %v340
  %v342 = vpop.f32.mrb[0].mxu0
  %v343 = vpop.f32.mrb[0].mxu0
  %v344 = vadd.f32 %v78, %v343
  %v345 = vpop.f32.mrb[0].mxu0
  %346 = vmatprep.mubr.bf16.mxu0 %v161
  %347 = vmatmul.mubr.bf16.gmra.mrb[0].mxu0 %v160
  %v348 = vpop.f32.mrb[0].mxu0
  %v349 = vadd.f32 %v78, %v348
  %v350 = vpop.f32.mrb[0].mxu0
  %v351 = vpop.f32.mrb[0].mxu0
  %v352 = vadd.f32 %v78, %v351
  %v353 = vpop.f32.mrb[0].mxu0
  %354 = vmatprep.mubr.bf16.mxu0 %v163
  %355 = vmatmul.mubr.bf16.gmra.mrb[0].mxu0 %v162
  %v356 = vpop.f32.mrb[0].mxu0
  %v357 = vadd.f32 %v78, %v356
  %v358 = vpop.f32.mrb[0].mxu0
  %v359 = vpop.f32.mrb[0].mxu0
  %v360 = vadd.f32 %v78, %v359
  %v361 = vpop.f32.mrb[0].mxu0
  %362 = vmatprep.mubr.bf16.mxu0 %v165
  %363 = vmatmul.mubr.bf16.gmra.mrb[0].mxu0 %v164
  %v364 = vpop.f32.mrb[0].mxu0
  %v365 = vadd.f32 %v78, %v364
  %v366 = vpop.f32.mrb[0].mxu0
  %v367 = vpop.f32.mrb[0].mxu0
  %v368 = vadd.f32 %v78, %v367
  %v369 = vpop.f32.mrb[0].mxu0
  %370 = vmatprep.mubr.bf16.mxu0 %v167
  %371 = vmatmul.mubr.bf16.gmra.mrb[0].mxu0 %v166
  %v372 = vpop.f32.mrb[0].mxu0
  %v373 = vadd.f32 %v78, %v372
  %v374 = vpop.f32.mrb[0].mxu0
  %v375 = vpop.f32.mrb[0].mxu0
  %v376 = vadd.f32 %v78, %v375
  %v377 = vpop.f32.mrb[0].mxu0
  %378 = vmatprep.mubr.bf16.mxu0 %v169
  %379 = vmatmul.mubr.bf16.gmra.mrb[0].mxu0 %v168
  %v380 = vpop.f32.mrb[0].mxu0
  %v381 = vadd.f32 %v78, %v380
  %v382 = vpop.f32.mrb[0].mxu0
  %v383 = vpop.f32.mrb[0].mxu0
  %v384 = vadd.f32 %v78, %v383
  %v385 = vpop.f32.mrb[0].mxu0
  %386 = vmatprep.mubr.bf16.mxu0 %v171
  %387 = vmatmul.mubr.bf16.gmra.mrb[0].mxu0 %v170
  %v388 = vpop.f32.mrb[0].mxu0
  %v389 = vadd.f32 %v78, %v388
  %v390 = vpop.f32.mrb[0].mxu0
  %v391 = vpop.f32.mrb[0].mxu0
  %v392 = vadd.f32 %v78, %v391
  %v393 = vpop.f32.mrb[0].mxu0
  %394 = vmatprep.mubr.bf16.mxu0 %v173
  %395 = vmatmul.mubr.bf16.gmra.mrb[0].mxu0 %v172
  %v396 = vpop.f32.mrb[0].mxu0
  %v397 = vadd.f32 %v78, %v396
  %v398 = vpop.f32.mrb[0].mxu0
  %v399 = vpop.f32.mrb[0].mxu0
  %v400 = vadd.f32 %v78, %v399
  %v401 = vpop.f32.mrb[0].mxu0
  %402 = vmatprep.mubr.bf16.mxu0 %v175
  %403 = vmatmul.mubr.bf16.gmra.mrb[0].mxu0 %v174
  %v404 = vpop.f32.mrb[0].mxu0
  %v405 = vadd.f32 %v78, %v404
  %v406 = vpop.f32.mrb[0].mxu0
  %v407 = vpop.f32.mrb[0].mxu0
  %v408 = vadd.f32 %v78, %v407
  %v409 = vpop.f32.mrb[0].mxu0
  %410 = vmatprep.mubr.bf16.mxu0 %v177
  %411 = vmatmul.mubr.bf16.gmra.mrb[0].mxu0 %v176
  %v412 = vpop.f32.mrb[0].mxu0
  %v413 = vadd.f32 %v78, %v412
  %v414 = vpop.f32.mrb[0].mxu0
  %v415 = vpop.f32.mrb[0].mxu0
  %v416 = vadd.f32 %v78, %v415
  %v417 = vpop.f32.mrb[0].mxu0
  %418 = vmatprep.mubr.bf16.mxu0 %v179
  %419 = vmatmul.mubr.bf16.gmra.mrb[0].mxu0 %v178
  %v420 = vpop.f32.mrb[0].mxu0
  %v421 = vadd.f32 %v78, %v420
  %v422 = vpop.f32.mrb[0].mxu0
  %v423 = vpop.f32.mrb[0].mxu0
  %v424 = vadd.f32 %v78, %v423
  %v425 = vpop.f32.mrb[0].mxu0
  %426 = vmatprep.mubr.bf16.mxu0 %v181
  %427 = vmatmul.mubr.bf16.gmra.mrb[0].mxu0 %v180
  %v428 = vpop.f32.mrb[0].mxu0
  %v429 = vadd.f32 %v78, %v428
  %v430 = vpop.f32.mrb[0].mxu0
  %v431 = vpop.f32.mrb[0].mxu0
  %v432 = vadd.f32 %v78, %v431
  %v433 = vpop.f32.mrb[0].mxu0
  %434 = vmatprep.mubr.bf16.mxu0 %v183
  %435 = vmatmul.mubr.bf16.gmra.mrb[0].mxu0 %v182
  %v436 = vpop.f32.mrb[0].mxu0
  %v437 = vadd.f32 %v78, %v436
  %v438 = vpop.f32.mrb[0].mxu0
  %v439 = vpop.f32.mrb[0].mxu0
  %v440 = vadd.f32 %v78, %v439
  %v441 = vpop.f32.mrb[0].mxu0
  %442 = vdwg.mxu0
  %v443 = vmax.f32 %v341, 0.0
  %v444 = vmax.f32 %v344, 0.0
  %v445 = vmax.f32 %v349, 0.0
  %v446 = vmax.f32 %v352, 0.0
  %v447 = vmax.f32 %v357, 0.0
  %v448 = vmax.f32 %v360, 0.0
  %v449 = vmax.f32 %v365, 0.0
  %v450 = vmax.f32 %v368, 0.0
  %v451 = vmax.f32 %v373, 0.0
  %v452 = vmax.f32 %v376, 0.0
  %v453 = vmax.f32 %v381, 0.0
  %v454 = vmax.f32 %v384, 0.0
  %v455 = vmax.f32 %v389, 0.0
  %v456 = vmax.f32 %v392, 0.0
  %v457 = vmax.f32 %v397, 0.0
  %v458 = vmax.f32 %v400, 0.0
  %v459 = vmax.f32 %v405, 0.0
  %v460 = vmax.f32 %v408, 0.0
  %v461 = vmax.f32 %v413, 0.0
  %v462 = vmax.f32 %v416, 0.0
  %v463 = vmax.f32 %v421, 0.0
  %v464 = vmax.f32 %v424, 0.0
  %v465 = vmax.f32 %v429, 0.0
  %v466 = vmax.f32 %v432, 0.0
  %v467 = vmax.f32 %v437, 0.0
  %v468 = vmax.f32 %v440, 0.0
  %v469 = vpack.c.bf16 %v444, %v443
  %v470 = vpack.c.bf16 %v446, %v445
  %v471 = vpack.c.bf16 %v448, %v447
  %v472 = vpack.c.bf16 %v450, %v449
  %v473 = vpack.c.bf16 %v452, %v451
  %v474 = vpack.c.bf16 %v454, %v453
  %v475 = vpack.c.bf16 %v456, %v455
  %v476 = vpack.c.bf16 %v458, %v457
  %v477 = vpack.c.bf16 %v460, %v459
  %v478 = vpack.c.bf16 %v462, %v461
  %v479 = vpack.c.bf16 %v464, %v463
  %v480 = vpack.c.bf16 %v466, %v465
  %v481 = vpack.c.bf16 %v468, %v467
  %v495 = vunpack.c.l.b16 %v469
  %v496 = vunpack.c.h.b16 %v469
  %v497 = vunpack.c.l.b16 %v470
  %v498 = vunpack.c.h.b16 %v470
  %v499 = vunpack.c.l.b16 %v471
  %v500 = vunpack.c.h.b16 %v471
  %v501 = vunpack.c.l.b16 %v472
  %v502 = vunpack.c.h.b16 %v472
  %v503 = vunpack.c.l.b16 %v473
  %v504 = vunpack.c.h.b16 %v473
  %v505 = vunpack.c.l.b16 %v474
  %v506 = vunpack.c.h.b16 %v474
  %v507 = vunpack.c.l.b16 %v475
  %v508 = vunpack.c.h.b16 %v475
  %v509 = vunpack.c.l.b16 %v476
  %v510 = vunpack.c.h.b16 %v476
  %v511 = vunpack.c.l.b16 %v477
  %v512 = vunpack.c.h.b16 %v477
  %v513 = vunpack.c.l.b16 %v478
  %v514 = vunpack.c.h.b16 %v478
  %v515 = vunpack.c.l.b16 %v479
  %v516 = vunpack.c.h.b16 %v479
  %v517 = vunpack.c.l.b16 %v480
  %v518 = vunpack.c.h.b16 %v480
  %v519 = vunpack.c.l.b16 %v481
  %v520 = vunpack.c.h.b16 %v481
  %v521 = vpack.c.b16 %v495, %v495
  %v522 = vpack.c.b16 %v496, %v496
  %v523 = vpack.c.b16 %v497, %v497
  %v524 = vpack.c.b16 %v498, %v498
  %v525 = vpack.c.b16 %v499, %v499
  %v526 = vpack.c.b16 %v500, %v500
  %v527 = vpack.c.b16 %v501, %v501
  %v528 = vpack.c.b16 %v502, %v502
  %v529 = vpack.c.b16 %v503, %v503
  %v530 = vpack.c.b16 %v504, %v504
  %v531 = vpack.c.b16 %v505, %v505
  %v532 = vpack.c.b16 %v506, %v506
  %v533 = vpack.c.b16 %v507, %v507
  %v534 = vpack.c.b16 %v508, %v508
  %v535 = vpack.c.b16 %v509, %v509
  %v536 = vpack.c.b16 %v510, %v510
  %v537 = vpack.c.b16 %v511, %v511
  %v538 = vpack.c.b16 %v512, %v512
  %v539 = vpack.c.b16 %v513, %v513
  %v540 = vpack.c.b16 %v514, %v514
  %v541 = vpack.c.b16 %v515, %v515
  %v542 = vpack.c.b16 %v516, %v516
  %v543 = vpack.c.b16 %v517, %v517
  %v544 = vpack.c.b16 %v518, %v518
  %v545 = vpack.c.b16 %v519, %v519
  %v546 = vpack.c.b16 %v520, %v520
  %573 = vst [vmem:[%s3] sm:$0xf] %v521
  %574 = vst [vmem:[%s3 + $0x4] sm:$0xf] %v522
  %575 = vst [vmem:[%s3 + $0x8] sm:$0xf] %v523
  %576 = vst [vmem:[%s3 + $0xc] sm:$0xf] %v524
  %577 = vst [vmem:[%s3 + $0x10] sm:$0xf] %v525
  %578 = vst [vmem:[%s3 + $0x14] sm:$0xf] %v526
  %579 = vst [vmem:[%s3 + $0x18] sm:$0xf] %v527
  %580 = vst [vmem:[%s3 + $0x1c] sm:$0xf] %v528
  %581 = vst [vmem:[%s3 + $0x20] sm:$0xf] %v529
  %582 = vst [vmem:[%s3 + $0x24] sm:$0xf] %v530
  %583 = vst [vmem:[%s3 + $0x28] sm:$0xf] %v531
  %584 = vst [vmem:[%s3 + $0x2c] sm:$0xf] %v532
  %585 = vst [vmem:[%s3 + $0x30] sm:$0xf] %v533
  %586 = vst [vmem:[%s3 + $0x34] sm:$0xf] %v534
  %587 = vst [vmem:[%s3 + $0x38] sm:$0xf] %v535
  %588 = vst [vmem:[%s3 + $0x3c] sm:$0xf] %v536
  %589 = vst [vmem:[%s3 + $0x40] sm:$0xf] %v537
  %590 = vst [vmem:[%s3 + $0x44] sm:$0xf] %v538
  %591 = vst [vmem:[%s3 + $0x48] sm:$0xf] %v539
  %592 = vst [vmem:[%s3 + $0x4c] sm:$0xf] %v540
  %593 = vst [vmem:[%s3 + $0x50] sm:$0xf] %v541
  %594 = vst [vmem:[%s3 + $0x54] sm:$0xf] %v542
  %595 = vst [vmem:[%s3 + $0x58] sm:$0xf] %v543
  %596 = vst [vmem:[%s3 + $0x5c] sm:$0xf] %v544
  %597 = vst [vmem:[%s3 + $0x60] sm:$0xf] %v545
  %598 = vst [vmem:[%s3 + $0x64] sm:$0xf] %v546
  // Predicated region
  $region14: #{forward.3} parent=0 // pred_check
    _
  $region15: #{forward.3} parent=0 // pred_check_branch
    %600 = sbr.rel (0) target = $region17
  $region16: #{forward.3} parent=0 // pred_region
    _
  $region17: #{forward.3} parent=0 // pred_fallthru
    _
  // Predicated region
  $region18: #{forward.3} parent=0 // pred_check
    _
  $region19: #{forward.3} parent=0 // pred_check_branch
    %602 = sbr.rel (0) target = $region21
  $region20: #{forward.3} parent=0 // pred_region
    _
  $region21: #{forward.3} parent=0 // pred_fallthru
    _

// kernel: forward.4
$region0: #{forward.4}
  #allocation0 [shape = 'u32[]', space=smem, size = 0x4, offset = 0x4, fixed_abs, tag = 'smem constant byte address 0x4 - core index']
  #allocation1 [shape = 'u32[144,128]{1,0:T(1,128)}', space=vmem, size = 0x12000, scoped, tag = 'internal scratch']
  %s0 = inlined_call_operand.vmem [shape: bf16[32,512], index: 0, kind: input, shape index: {}]
  %s1 = inlined_call_operand.vmem [shape: bf16[512,128], index: 1, kind: input, shape index: {}]
  %s2 = inlined_call_operand.vmem [shape: f32[1,128], index: 2, kind: input, shape index: {}]
  %s3 = inlined_call_operand.vmem [shape: bf16[32,128], index: 3, kind: output, shape index: {}]
  %s4 = sld [smem:[#allocation0]]
  $region22: #{forward.4} parent=0
    _
  %s6 = ssub.s32 1, %s4
  %s7 = scalar_select 0, %s6, %s4
  // Predicated region
  $region2: #{forward.4} parent=0 // pred_check
    _
  $region3: #{forward.4} parent=0 // pred_check_branch
    %9 = sbr.rel (0) target = $region5
  $region4: #{forward.4} parent=0 // pred_region
    _
  $region5: #{forward.4} parent=0 // pred_fallthru
    _
  // Predicated region
  $region6: #{forward.4} parent=0 // pred_check
    _
  $region7: #{forward.4} parent=0 // pred_check_branch
    %11 = sbr.rel (0) target = $region9
  $region8: #{forward.4} parent=0 // pred_region
    _
  $region9: #{forward.4} parent=0 // pred_fallthru
    _
  // Predicated region
  $region10: #{forward.4} parent=0 // pred_check
    _
  $region11: #{forward.4} parent=0 // pred_check_branch
    %13 = sbr.rel (0) target = $region13
  $region12: #{forward.4} parent=0 // pred_region
    _
  $region13: #{forward.4} parent=0 // pred_fallthru
    _
  %v15 = vld [vmem:[%s0] sm:$0xff]
  %v16 = vld [vmem:[%s0 + $0x8] sm:$0xff]
  %v17 = vld [vmem:[%s0 + $0x10] sm:$0xff]
  %v18 = vld [vmem:[%s0 + $0x18] sm:$0xff]
  %v19 = vld [vmem:[%s0 + $0x20] sm:$0xff]
  %v20 = vld [vmem:[%s0 + $0x28] sm:$0xff]
  %v21 = vld [vmem:[%s0 + $0x30] sm:$0xff]
  %v22 = vld [vmem:[%s0 + $0x38] sm:$0xff]
  %v23 = vld [vmem:[%s1] sm:$0xf]
  %v24 = vld [vmem:[%s1 + $0x4] sm:$0xf]
  %v25 = vld [vmem:[%s1 + $0x8] sm:$0xf]
  %v26 = vld [vmem:[%s1 + $0xc] sm:$0xf]
  %v27 = vld [vmem:[%s1 + $0x10] sm:$0xf]
  %v28 = vld [vmem:[%s1 + $0x14] sm:$0xf]
  %v29 = vld [vmem:[%s1 + $0x18] sm:$0xf]
  %v30 = vld [vmem:[%s1 + $0x1c] sm:$0xf]
  %v31 = vld [vmem:[%s1 + $0x20] sm:$0xf]
  %v32 = vld [vmem:[%s1 + $0x24] sm:$0xf]
  %v33 = vld [vmem:[%s1 + $0x28] sm:$0xf]
  %v34 = vld [vmem:[%s1 + $0x2c] sm:$0xf]
  %v35 = vld [vmem:[%s1 + $0x30] sm:$0xf]
  %v36 = vld [vmem:[%s1 + $0x34] sm:$0xf]
  %v37 = vld [vmem:[%s1 + $0x38] sm:$0xf]
  %v38 = vld [vmem:[%s1 + $0x3c] sm:$0xf]
  %v39 = vld [vmem:[%s1 + $0x40] sm:$0xf]
  %v40 = vld [vmem:[%s1 + $0x44] sm:$0xf]
  %v41 = vld [vmem:[%s1 + $0x48] sm:$0xf]
  %v42 = vld [vmem:[%s1 + $0x4c] sm:$0xf]
  %v43 = vld [vmem:[%s1 + $0x50] sm:$0xf]
  %v44 = vld [vmem:[%s1 + $0x54] sm:$0xf]
  %v45 = vld [vmem:[%s1 + $0x58] sm:$0xf]
  %v46 = vld [vmem:[%s1 + $0x5c] sm:$0xf]
  %v47 = vld [vmem:[%s1 + $0x60] sm:$0xf]
  %v48 = vld [vmem:[%s1 + $0x64] sm:$0xf]
  %v49 = vld [vmem:[%s1 + $0x68] sm:$0xf]
  %v50 = vld [vmem:[%s1 + $0x6c] sm:$0xf]
  %v51 = vld [vmem:[%s1 + $0x70] sm:$0xf]
  %v52 = vld [vmem:[%s1 + $0x74] sm:$0xf]
  %v53 = vld [vmem:[%s1 + $0x78] sm:$0xf]
  %v54 = vld [vmem:[%s1 + $0x7c] sm:$0xf]
  %v55 = vld [vmem:[%s1 + $0x80] sm:$0xf]
  %v56 = vld [vmem:[%s1 + $0x84] sm:$0xf]
  %v57 = vld [vmem:[%s1 + $0x88] sm:$0xf]
  %v58 = vld [vmem:[%s1 + $0x8c] sm:$0xf]
  %v59 = vld [vmem:[%s1 + $0x90] sm:$0xf]
  %v60 = vld [vmem:[%s1 + $0x94] sm:$0xf]
  %v61 = vld [vmem:[%s1 + $0x98] sm:$0xf]
  %v62 = vld [vmem:[%s1 + $0x9c] sm:$0xf]
  %v63 = vld [vmem:[%s1 + $0xa0] sm:$0xf]
  %v64 = vld [vmem:[%s1 + $0xa4] sm:$0xf]
  %v65 = vld [vmem:[%s1 + $0xa8] sm:$0xf]
  %v66 = vld [vmem:[%s1 + $0xac] sm:$0xf]
  %v67 = vld [vmem:[%s1 + $0xb0] sm:$0xf]
  %v68 = vld [vmem:[%s1 + $0xb4] sm:$0xf]
  %v69 = vld [vmem:[%s1 + $0xb8] sm:$0xf]
  %v70 = vld [vmem:[%s1 + $0xbc] sm:$0xf]
  %v71 = vld [vmem:[%s1 + $0xc0] sm:$0xf]
  %v72 = vld [vmem:[%s1 + $0xc4] sm:$0xf]
  %v73 = vld [vmem:[%s1 + $0xc8] sm:$0xf]
  %v74 = vld [vmem:[%s1 + $0xcc] sm:$0xf]
  %v75 = vld [vmem:[%s1 + $0xd0] sm:$0xf]
  %v76 = vld [vmem:[%s1 + $0xd4] sm:$0xf]
  %v77 = vld [vmem:[%s1 + $0xd8] sm:$0xf]
  %v78 = vld [vmem:[%s1 + $0xdc] sm:$0xf]
  %v79 = vld [vmem:[%s1 + $0xe0] sm:$0xf]
  %v80 = vld [vmem:[%s1 + $0xe4] sm:$0xf]
  %v81 = vld [vmem:[%s1 + $0xe8] sm:$0xf]
  %v82 = vld [vmem:[%s1 + $0xec] sm:$0xf]
  %v83 = vld [vmem:[%s1 + $0xf0] sm:$0xf]
  %v84 = vld [vmem:[%s1 + $0xf4] sm:$0xf]
  %v85 = vld [vmem:[%s1 + $0xf8] sm:$0xf]
  %v86 = vld [vmem:[%s1 + $0xfc] sm:$0xf]
  %v87 = vld [vmem:[%s2] sm:$0x1]
  %v89 = vlaneseq
  %v90 = vshrl.u32 %v89, 7
  %v91 = vsub.s32 0, %v90
  %v92 = vrot.slane %v87, %v91
  %v102 = vunpack.c.l.b16 %v15
  %v103 = vunpack.c.h.b16 %v15
  %v104 = vunpack.c.l.b16 %v16
  %v105 = vunpack.c.h.b16 %v16
  %v106 = vunpack.c.l.b16 %v17
  %v107 = vunpack.c.h.b16 %v17
  %v108 = vunpack.c.l.b16 %v18
  %v109 = vunpack.c.h.b16 %v18
  %v110 = vunpack.c.l.b16 %v19
  %v111 = vunpack.c.h.b16 %v19
  %v112 = vunpack.c.l.b16 %v20
  %v113 = vunpack.c.h.b16 %v20
  %v114 = vunpack.c.l.b16 %v21
  %v115 = vunpack.c.h.b16 %v21
  %v116 = vunpack.c.l.b16 %v22
  %v117 = vunpack.c.h.b16 %v22
  %v118 = vpack.c.b16 %v106, %v102
  %v119 = vpack.c.b16 %v107, %v103
  %v120 = vpack.c.b16 %v108, %v104
  %v121 = vpack.c.b16 %v109, %v105
  %v122 = vpack.c.b16 %v114, %v110
  %v123 = vpack.c.b16 %v115, %v111
  %v124 = vpack.c.b16 %v116, %v112
  %v125 = vpack.c.b16 %v117, %v113
  %v198 = vunpack.c.l.b16 %v23
  %v199 = vunpack.c.l.b16 %v24
  %v200 = vunpack.c.l.b16 %v25
  %v201 = vunpack.c.l.b16 %v26
  %v202 = vunpack.c.l.b16 %v27
  %v203 = vunpack.c.l.b16 %v28
  %v204 = vunpack.c.l.b16 %v29
  %v205 = vunpack.c.l.b16 %v30
  %v206 = vunpack.c.l.b16 %v31
  %v207 = vunpack.c.l.b16 %v32
  %v208 = vunpack.c.l.b16 %v33
  %v209 = vunpack.c.l.b16 %v34
  %v210 = vunpack.c.l.b16 %v35
  %v211 = vunpack.c.l.b16 %v36
  %v212 = vunpack.c.l.b16 %v37
  %v213 = vunpack.c.l.b16 %v38
  %v214 = vunpack.c.l.b16 %v39
  %v215 = vunpack.c.l.b16 %v40
  %v216 = vunpack.c.l.b16 %v41
  %v217 = vunpack.c.l.b16 %v42
  %v218 = vunpack.c.l.b16 %v43
  %v219 = vunpack.c.l.b16 %v44
  %v220 = vunpack.c.l.b16 %v45
  %v221 = vunpack.c.l.b16 %v46
  %v222 = vunpack.c.l.b16 %v47
  %v223 = vunpack.c.l.b16 %v48
  %v224 = vunpack.c.l.b16 %v49
  %v225 = vunpack.c.l.b16 %v50
  %v226 = vunpack.c.l.b16 %v51
  %v227 = vunpack.c.l.b16 %v52
  %v228 = vunpack.c.l.b16 %v53
  %v229 = vunpack.c.l.b16 %v54
  %v230 = vunpack.c.l.b16 %v55
  %v231 = vunpack.c.l.b16 %v56
  %v232 = vunpack.c.l.b16 %v57
  %v233 = vunpack.c.l.b16 %v58
  %v234 = vunpack.c.l.b16 %v59
  %v235 = vunpack.c.l.b16 %v60
  %v236 = vunpack.c.l.b16 %v61
  %v237 = vunpack.c.l.b16 %v62
  %v238 = vunpack.c.l.b16 %v63
  %v239 = vunpack.c.l.b16 %v64
  %v240 = vunpack.c.l.b16 %v65
  %v241 = vunpack.c.l.b16 %v66
  %v242 = vunpack.c.l.b16 %v67
  %v243 = vunpack.c.l.b16 %v68
  %v244 = vunpack.c.l.b16 %v69
  %v245 = vunpack.c.l.b16 %v70
  %v246 = vunpack.c.l.b16 %v71
  %v247 = vunpack.c.l.b16 %v72
  %v248 = vunpack.c.l.b16 %v73
  %v249 = vunpack.c.l.b16 %v74
  %v250 = vunpack.c.l.b16 %v75
  %v251 = vunpack.c.l.b16 %v76
  %v252 = vunpack.c.l.b16 %v77
  %v253 = vunpack.c.l.b16 %v78
  %v254 = vunpack.c.l.b16 %v79
  %v255 = vunpack.c.l.b16 %v80
  %v256 = vunpack.c.l.b16 %v81
  %v257 = vunpack.c.l.b16 %v82
  %v258 = vunpack.c.l.b16 %v83
  %v259 = vunpack.c.l.b16 %v84
  %v260 = vunpack.c.l.b16 %v85
  %v261 = vunpack.c.l.b16 %v86
  %v262 = vpack.c.b16 %v199, %v198
  %v263 = vpack.c.b16 %v201, %v200
  %v264 = vpack.c.b16 %v203, %v202
  %v265 = vpack.c.b16 %v205, %v204
  %v266 = vpack.c.b16 %v207, %v206
  %v267 = vpack.c.b16 %v209, %v208
  %v268 = vpack.c.b16 %v211, %v210
  %v269 = vpack.c.b16 %v213, %v212
  %v270 = vpack.c.b16 %v215, %v214
  %v271 = vpack.c.b16 %v217, %v216
  %v272 = vpack.c.b16 %v219, %v218
  %v273 = vpack.c.b16 %v221, %v220
  %v274 = vpack.c.b16 %v223, %v222
  %v275 = vpack.c.b16 %v225, %v224
  %v276 = vpack.c.b16 %v227, %v226
  %v277 = vpack.c.b16 %v229, %v228
  %v278 = vpack.c.b16 %v231, %v230
  %v279 = vpack.c.b16 %v233, %v232
  %v280 = vpack.c.b16 %v235, %v234
  %v281 = vpack.c.b16 %v237, %v236
  %v282 = vpack.c.b16 %v239, %v238
  %v283 = vpack.c.b16 %v241, %v240
  %v284 = vpack.c.b16 %v243, %v242
  %v285 = vpack.c.b16 %v245, %v244
  %v286 = vpack.c.b16 %v247, %v246
  %v287 = vpack.c.b16 %v249, %v248
  %v288 = vpack.c.b16 %v251, %v250
  %v289 = vpack.c.b16 %v253, %v252
  %v290 = vpack.c.b16 %v255, %v254
  %v291 = vpack.c.b16 %v257, %v256
  %v292 = vpack.c.b16 %v259, %v258
  %v293 = vpack.c.b16 %v261, %v260
  %326 = vmatprep.subr.bf16.mxu0 0
  %327 = vmatpush1.bf16.msra.mxu0 %v262
  %328 = vmatprep.subr.bf16.mxu0 0
  %329 = vmatpush1.bf16.msra.mxu0 %v263
  %330 = vmatprep.subr.bf16.mxu0 0
  %331 = vmatpush1.bf16.msra.mxu0 %v264
  %332 = vmatprep.subr.bf16.mxu0 0
  %333 = vmatpush1.bf16.msra.mxu0 %v265
  %334 = vmatprep.subr.bf16.mxu0 0
  %335 = vmatpush1.bf16.msra.mxu0 %v266
  %336 = vmatprep.subr.bf16.mxu0 0
  %337 = vmatpush1.bf16.msra.mxu0 %v267
  %338 = vmatprep.subr.bf16.mxu0 0
  %339 = vmatpush1.bf16.msra.mxu0 %v268
  %340 = vmatprep.subr.bf16.mxu0 0
  %341 = vmatpush1.bf16.msra.mxu0 %v269
  %342 = vmatprep.subr.bf16.mxu0 0
  %343 = vmatpush1.bf16.msra.mxu0 %v270
  %344 = vmatprep.subr.bf16.mxu0 0
  %345 = vmatpush1.bf16.msra.mxu0 %v271
  %346 = vmatprep.subr.bf16.mxu0 0
  %347 = vmatpush1.bf16.msra.mxu0 %v272
  %348 = vmatprep.subr.bf16.mxu0 0
  %349 = vmatpush1.bf16.msra.mxu0 %v273
  %350 = vmatprep.subr.bf16.mxu0 0
  %351 = vmatpush1.bf16.msra.mxu0 %v274
  %352 = vmatprep.subr.bf16.mxu0 0
  %353 = vmatpush1.bf16.msra.mxu0 %v275
  %354 = vmatprep.subr.bf16.mxu0 0
  %355 = vmatpush1.bf16.msra.mxu0 %v276
  %356 = vmatprep.subr.bf16.mxu0 0
  %357 = vmatpush1.bf16.msra.mxu0 %v277
  %358 = vmatprep.mubr.bf16.mxu0 %v119
  %359 = vmatmul.mubr.bf16.gmra.mrb[0].mxu0 %v118
  %v360 = vpop.f32.mrb[0].mxu0
  %v361 = vadd.f32 %v92, %v360
  %v362 = vpop.f32.mrb[0].mxu0
  %v363 = vpop.f32.mrb[0].mxu0
  %v364 = vadd.f32 %v92, %v363
  %v365 = vpop.f32.mrb[0].mxu0
  %366 = vmatprep.mubr.bf16.mxu0 %v123
  %367 = vmatmul.mubr.bf16.gmra.mrb[0].mxu0 %v122
  %v368 = vpop.f32.mrb[0].mxu0
  %v369 = vadd.f32 %v92, %v368
  %v370 = vpop.f32.mrb[0].mxu0
  %v371 = vpop.f32.mrb[0].mxu0
  %v372 = vadd.f32 %v92, %v371
  %v373 = vpop.f32.mrb[0].mxu0
  %374 = vdwg.mxu0
  %375 = vmatprep.subr.bf16.mxu0 0
  %376 = vmatpush1.bf16.msra.mxu0 %v278
  %377 = vmatprep.subr.bf16.mxu0 0
  %378 = vmatpush1.bf16.msra.mxu0 %v279
  %379 = vmatprep.subr.bf16.mxu0 0
  %380 = vmatpush1.bf16.msra.mxu0 %v280
  %381 = vmatprep.subr.bf16.mxu0 0
  %382 = vmatpush1.bf16.msra.mxu0 %v281
  %383 = vmatprep.subr.bf16.mxu0 0
  %384 = vmatpush1.bf16.msra.mxu0 %v282
  %385 = vmatprep.subr.bf16.mxu0 0
  %386 = vmatpush1.bf16.msra.mxu0 %v283
  %387 = vmatprep.subr.bf16.mxu0 0
  %388 = vmatpush1.bf16.msra.mxu0 %v284
  %389 = vmatprep.subr.bf16.mxu0 0
  %390 = vmatpush1.bf16.msra.mxu0 %v285
  %391 = vmatprep.subr.bf16.mxu0 0
  %392 = vmatpush1.bf16.msra.mxu0 %v286
  %393 = vmatprep.subr.bf16.mxu0 0
  %394 = vmatpush1.bf16.msra.mxu0 %v287
  %395 = vmatprep.subr.bf16.mxu0 0
  %396 = vmatpush1.bf16.msra.mxu0 %v288
  %397 = vmatprep.subr.bf16.mxu0 0
  %398 = vmatpush1.bf16.msra.mxu0 %v289
  %399 = vmatprep.subr.bf16.mxu0 0
  %400 = vmatpush1.bf16.msra.mxu0 %v290
  %401 = vmatprep.subr.bf16.mxu0 0
  %402 = vmatpush1.bf16.msra.mxu0 %v291
  %403 = vmatprep.subr.bf16.mxu0 0
  %404 = vmatpush1.bf16.msra.mxu0 %v292
  %405 = vmatprep.subr.bf16.mxu0 0
  %406 = vmatpush1.bf16.msra.mxu0 %v293
  %407 = vmatprep.mubr.bf16.mxu0 %v121
  %408 = vmatmul.mubr.bf16.gmra.mrb[0].mxu0 %v120
  %v409 = vpop.f32.mrb[0].mxu0
  %v410 = vadd.f32 %v361, %v409
  %v411 = vpop.f32.mrb[0].mxu0
  %v412 = vpop.f32.mrb[0].mxu0
  %v413 = vadd.f32 %v364, %v412
  %v414 = vpop.f32.mrb[0].mxu0
  %415 = vmatprep.mubr.bf16.mxu0 %v125
  %416 = vmatmul.mubr.bf16.gmra.mrb[0].mxu0 %v124
  %v417 = vpop.f32.mrb[0].mxu0
  %v418 = vadd.f32 %v369, %v417
  %v419 = vpop.f32.mrb[0].mxu0
  %v420 = vpop.f32.mrb[0].mxu0
  %v421 = vadd.f32 %v372, %v420
  %v422 = vpop.f32.mrb[0].mxu0
  %423 = vdwg.mxu0
  %v424 = vmax.f32 %v410, 0.0
  %v425 = vmax.f32 %v413, 0.0
  %v426 = vmax.f32 %v418, 0.0
  %v427 = vmax.f32 %v421, 0.0
  %v428 = vpack.c.bf16 %v425, %v424
  %v429 = vpack.c.bf16 %v427, %v426
  %v432 = vunpack.c.l.b16 %v428
  %v433 = vunpack.c.h.b16 %v428
  %v434 = vunpack.c.l.b16 %v429
  %v435 = vunpack.c.h.b16 %v429
  %v436 = vpack.c.b16 %v432, %v432
  %v437 = vpack.c.b16 %v433, %v433
  %v438 = vpack.c.b16 %v434, %v434
  %v439 = vpack.c.b16 %v435, %v435
  %444 = vst [vmem:[%s3] sm:$0xf] %v436
  %445 = vst [vmem:[%s3 + $0x4] sm:$0xf] %v437
  %446 = vst [vmem:[%s3 + $0x8] sm:$0xf] %v438
  %447 = vst [vmem:[%s3 + $0xc] sm:$0xf] %v439
  // Predicated region
  $region14: #{forward.4} parent=0 // pred_check
    _
  $region15: #{forward.4} parent=0 // pred_check_branch
    %449 = sbr.rel (0) target = $region17
  $region16: #{forward.4} parent=0 // pred_region
    _
  $region17: #{forward.4} parent=0 // pred_fallthru
    _
  // Predicated region
  $region18: #{forward.4} parent=0 // pred_check
    _
  $region19: #{forward.4} parent=0 // pred_check_branch
    %451 = sbr.rel (0) target = $region21
  $region20: #{forward.4} parent=0 // pred_region
    _
  $region21: #{forward.4} parent=0 // pred_fallthru
    _

// kernel: forward.5
$region0: #{forward.5}
  #allocation0 [shape = 'u32[]', space=smem, size = 0x4, offset = 0x4, fixed_abs, tag = 'smem constant byte address 0x4 - core index']
  #allocation1 [shape = 'u32[144,128]{1,0:T(1,128)}', space=vmem, size = 0x12000, scoped, tag = 'internal scratch']
  #allocation2 [shape = 'f32[16,1024]{1,0:T(8,128)}', space=vmem, size = 0x10000, scoped, tag = 'scratch operand']
  #allocation3 [shape = 'bf16[16,1024]{1,0:T(16,128)(2,1)}', space=vmem, size = 0x8000, scoped, tag = 'scratch operand']
  #allocation4 [shape = 'bf16[16,512]{1,0:T(16,128)(2,1)}', space=vmem, size = 0x4000, scoped, tag = 'scratch operand']
  %s0 = inlined_call_operand.vmem [shape: bf16[4,16,640], index: 0, kind: input, shape index: {}]
  %s1 = inlined_call_operand.vmem [shape: bf16[640,64], index: 1, kind: input, shape index: {}]
  %s2 = inlined_call_operand.vmem [shape: f32[1,64], index: 2, kind: input, shape index: {}]
  %s3 = inlined_call_operand.vmem [shape: bf16[4,64,1024], index: 3, kind: input, shape index: {}]
  %s4 = inlined_call_operand.vmem [shape: f32[1,1024], index: 4, kind: input, shape index: {}]
  %s5 = inlined_call_operand.vmem [shape: bf16[1024,512], index: 5, kind: input, shape index: {}]
  %s6 = inlined_call_operand.vmem [shape: f32[1,512], index: 6, kind: input, shape index: {}]
  %s7 = inlined_call_operand.vmem [shape: bf16[512,128], index: 7, kind: input, shape index: {}]
  %s8 = inlined_call_operand.vmem [shape: f32[1,128], index: 8, kind: input, shape index: {}]
  %s9 = inlined_call_operand.vmem [shape: f32[16,128], index: 9, kind: output, shape index: {}]
  %s10 = sld [smem:[#allocation0]]
  $region46: #{forward.5} parent=0
    _
  %s12 = ssub.s32 1, %s10
  %s13 = scalar_select 0, %s12, %s10
  // Predicated region
  $region2: #{forward.5} parent=0 // pred_check
    _
  $region3: #{forward.5} parent=0 // pred_check_branch
    %15 = sbr.rel (0) target = $region5
  $region4: #{forward.5} parent=0 // pred_region
    _
  $region5: #{forward.5} parent=0 // pred_fallthru
    _
  // Predicated region
  $region6: #{forward.5} parent=0 // pred_check
    _
  $region7: #{forward.5} parent=0 // pred_check_branch
    %17 = sbr.rel (0) target = $region9
  $region8: #{forward.5} parent=0 // pred_region
    _
  $region9: #{forward.5} parent=0 // pred_fallthru
    _
  // Predicated region
  $region10: #{forward.5} parent=0 // pred_check
    _
  $region11: #{forward.5} parent=0 // pred_check_branch
    %19 = sbr.rel (0) target = $region13
  $region12: #{forward.5} parent=0 // pred_region
    _
  $region13: #{forward.5} parent=0 // pred_fallthru
    _
  // Predicated region
  $region14: #{forward.5} parent=0 // pred_check
    _
  $region15: #{forward.5} parent=0 // pred_check_branch
    %21 = sbr.rel (0) target = $region17
  $region16: #{forward.5} parent=0 // pred_region
    _
  $region17: #{forward.5} parent=0 // pred_fallthru
    _
  // Predicated region
  $region18: #{forward.5} parent=0 // pred_check
    _
  $region19: #{forward.5} parent=0 // pred_check_branch
    %23 = sbr.rel (0) target = $region21
  $region20: #{forward.5} parent=0 // pred_region
    _
  $region21: #{forward.5} parent=0 // pred_fallthru
    _
  // Predicated region
  $region22: #{forward.5} parent=0 // pred_check
    _
  $region23: #{forward.5} parent=0 // pred_check_branch
    %25 = sbr.rel (0) target = $region25
  $region24: #{forward.5} parent=0 // pred_region
    _
  $region25: #{forward.5} parent=0 // pred_fallthru
    _
  // Predicated region
  $region26: #{forward.5} parent=0 // pred_check
    _
  $region27: #{forward.5} parent=0 // pred_check_branch
    %27 = sbr.rel (0) target = $region29
  $region28: #{forward.5} parent=0 // pred_region
    _
  $region29: #{forward.5} parent=0 // pred_fallthru
    _
  // Predicated region
  $region30: #{forward.5} parent=0 // pred_check
    _
  $region31: #{forward.5} parent=0 // pred_check_branch
    %29 = sbr.rel (0) target = $region33
  $region32: #{forward.5} parent=0 // pred_region
    _
  $region33: #{forward.5} parent=0 // pred_fallthru
    _
  // Predicated region
  $region34: #{forward.5} parent=0 // pred_check
    _
  $region35: #{forward.5} parent=0 // pred_check_branch
    %31 = sbr.rel (0) target = $region37
  $region36: #{forward.5} parent=0 // pred_region
    _
  $region37: #{forward.5} parent=0 // pred_fallthru
    _
  %33 = vst [vmem:[#allocation2] sm:$0xff] 0.0
  %34 = vst [vmem:[#allocation2 + $0x8] sm:$0xff] 0.0
  %35 = vst [vmem:[#allocation2 + $0x10] sm:$0xff] 0.0
  %36 = vst [vmem:[#allocation2 + $0x18] sm:$0xff] 0.0
  %37 = vst [vmem:[#allocation2 + $0x20] sm:$0xff] 0.0
  %38 = vst [vmem:[#allocation2 + $0x28] sm:$0xff] 0.0
  %39 = vst [vmem:[#allocation2 + $0x30] sm:$0xff] 0.0
  %40 = vst [vmem:[#allocation2 + $0x38] sm:$0xff] 0.0
  %41 = vst [vmem:[#allocation2 + $0x40] sm:$0xff] 0.0
  %42 = vst [vmem:[#allocation2 + $0x48] sm:$0xff] 0.0
  %43 = vst [vmem:[#allocation2 + $0x50] sm:$0xff] 0.0
  %44 = vst [vmem:[#allocation2 + $0x58] sm:$0xff] 0.0
  %45 = vst [vmem:[#allocation2 + $0x60] sm:$0xff] 0.0
  %46 = vst [vmem:[#allocation2 + $0x68] sm:$0xff] 0.0
  %47 = vst [vmem:[#allocation2 + $0x70] sm:$0xff] 0.0
  %48 = vst [vmem:[#allocation2 + $0x78] sm:$0xff] 0.0
  %v49 = vld [vmem:[%s0] sm:$0xff]
  %v50 = vld [vmem:[%s0 + $0x8] sm:$0xff]
  %v51 = vld [vmem:[%s0 + $0x10] sm:$0xf]
  %v52 = vld [vmem:[%s0 + $0x14] sm:$0xff]
  %v53 = vld [vmem:[%s0 + $0x1c] sm:$0xff]
  %v54 = vld [vmem:[%s0 + $0x24] sm:$0xf]
  %v55 = vld [vmem:[%s1] sm:$0xf]
  %v56 = vld [vmem:[%s1 + $0x4] sm:$0xf]
  %v57 = vld [vmem:[%s1 + $0x8] sm:$0xf]
  %v58 = vld [vmem:[%s1 + $0xc] sm:$0xf]
  %v59 = vld [vmem:[%s1 + $0x10] sm:$0xf]
  %v60 = vld [vmem:[%s1 + $0x14] sm:$0xf]
  %v61 = vld [vmem:[%s1 + $0x18] sm:$0xf]
  %v62 = vld [vmem:[%s1 + $0x1c] sm:$0xf]
  %v63 = vld [vmem:[%s1 + $0x20] sm:$0xf]
  %v64 = vld [vmem:[%s1 + $0x24] sm:$0xf]
  %v65 = vld [vmem:[%s1 + $0x28] sm:$0xf]
  %v66 = vld [vmem:[%s1 + $0x2c] sm:$0xf]
  %v67 = vld [vmem:[%s1 + $0x30] sm:$0xf]
  %v68 = vld [vmem:[%s1 + $0x34] sm:$0xf]
  %v69 = vld [vmem:[%s1 + $0x38] sm:$0xf]
  %v70 = vld [vmem:[%s1 + $0x3c] sm:$0xf]
  %v71 = vld [vmem:[%s1 + $0x40] sm:$0xf]
  %v72 = vld [vmem:[%s1 + $0x44] sm:$0xf]
  %v73 = vld [vmem:[%s1 + $0x48] sm:$0xf]
  %v74 = vld [vmem:[%s1 + $0x4c] sm:$0xf]
  %v75 = vld [vmem:[%s1 + $0x50] sm:$0xf]
  %v76 = vld [vmem:[%s1 + $0x54] sm:$0xf]
  %v77 = vld [vmem:[%s1 + $0x58] sm:$0xf]
  %v78 = vld [vmem:[%s1 + $0x5c] sm:$0xf]
  %v79 = vld [vmem:[%s1 + $0x60] sm:$0xf]
  %v80 = vld [vmem:[%s1 + $0x64] sm:$0xf]
  %v81 = vld [vmem:[%s1 + $0x68] sm:$0xf]
  %v82 = vld [vmem:[%s1 + $0x6c] sm:$0xf]
  %v83 = vld [vmem:[%s1 + $0x70] sm:$0xf]
  %v84 = vld [vmem:[%s1 + $0x74] sm:$0xf]
  %v85 = vld [vmem:[%s1 + $0x78] sm:$0xf]
  %v86 = vld [vmem:[%s1 + $0x7c] sm:$0xf]
  %v87 = vld [vmem:[%s1 + $0x80] sm:$0xf]
  %v88 = vld [vmem:[%s1 + $0x84] sm:$0xf]
  %v89 = vld [vmem:[%s1 + $0x88] sm:$0xf]
  %v90 = vld [vmem:[%s1 + $0x8c] sm:$0xf]
  %v91 = vld [vmem:[%s1 + $0x90] sm:$0xf]
  %v92 = vld [vmem:[%s1 + $0x94] sm:$0xf]
  %v93 = vld [vmem:[%s1 + $0x98] sm:$0xf]
  %v94 = vld [vmem:[%s1 + $0x9c] sm:$0xf]
  %v95 = vld [vmem:[%s1 + $0xa0] sm:$0xf]
  %v96 = vld [vmem:[%s1 + $0xa4] sm:$0xf]
  %v97 = vld [vmem:[%s1 + $0xa8] sm:$0xf]
  %v98 = vld [vmem:[%s1 + $0xac] sm:$0xf]
  %v99 = vld [vmem:[%s1 + $0xb0] sm:$0xf]
  %v100 = vld [vmem:[%s1 + $0xb4] sm:$0xf]
  %v101 = vld [vmem:[%s1 + $0xb8] sm:$0xf]
  %v102 = vld [vmem:[%s1 + $0xbc] sm:$0xf]
  %v103 = vld [vmem:[%s1 + $0xc0] sm:$0xf]
  %v104 = vld [vmem:[%s1 + $0xc4] sm:$0xf]
  %v105 = vld [vmem:[%s1 + $0xc8] sm:$0xf]
  %v106 = vld [vmem:[%s1 + $0xcc] sm:$0xf]
  %v107 = vld [vmem:[%s1 + $0xd0] sm:$0xf]
  %v108 = vld [vmem:[%s1 + $0xd4] sm:$0xf]
  %v109 = vld [vmem:[%s1 + $0xd8] sm:$0xf]
  %v110 = vld [vmem:[%s1 + $0xdc] sm:$0xf]
  %v111 = vld [vmem:[%s1 + $0xe0] sm:$0xf]
  %v112 = vld [vmem:[%s1 + $0xe4] sm:$0xf]
  %v113 = vld [vmem:[%s1 + $0xe8] sm:$0xf]
  %v114 = vld [vmem:[%s1 + $0xec] sm:$0xf]
  %v115 = vld [vmem:[%s1 + $0xf0] sm:$0xf]
  %v116 = vld [vmem:[%s1 + $0xf4] sm:$0xf]
  %v117 = vld [vmem:[%s1 + $0xf8] sm:$0xf]
  %v118 = vld [vmem:[%s1 + $0xfc] sm:$0xf]
  %v119 = vld [vmem:[%s1 + $0x100] sm:$0xf]
  %v120 = vld [vmem:[%s1 + $0x104] sm:$0xf]
  %v121 = vld [vmem:[%s1 + $0x108] sm:$0xf]
  %v122 = vld [vmem:[%s1 + $0x10c] sm:$0xf]
  %v123 = vld [vmem:[%s1 + $0x110] sm:$0xf]
  %v124 = vld [vmem:[%s1 + $0x114] sm:$0xf]
  %v125 = vld [vmem:[%s1 + $0x118] sm:$0xf]
  %v126 = vld [vmem:[%s1 + $0x11c] sm:$0xf]
  %v127 = vld [vmem:[%s1 + $0x120] sm:$0xf]
  %v128 = vld [vmem:[%s1 + $0x124] sm:$0xf]
  %v129 = vld [vmem:[%s1 + $0x128] sm:$0xf]
  %v130 = vld [vmem:[%s1 + $0x12c] sm:$0xf]
  %v131 = vld [vmem:[%s1 + $0x130] sm:$0xf]
  %v132 = vld [vmem:[%s1 + $0x134] sm:$0xf]
  %v133 = vld [vmem:[%s1 + $0x138] sm:$0xf]
  %v134 = vld [vmem:[%s1 + $0x13c] sm:$0xf]
  %v135 = vld [vmem:[%s2] sm:$0x1]
  %v137 = vlaneseq
  %v138 = vshrl.u32 %v137, 7
  %v139 = vsub.s32 0, %v138
  %v140 = vrot.slane %v135, %v139
  %v148 = vunpack.c.l.b16 %v49
  %v149 = vunpack.c.h.b16 %v49
  %v150 = vunpack.c.l.b16 %v50
  %v151 = vunpack.c.h.b16 %v50
  %v152 = vunpack.c.l.b16 %v51
  %v153 = vunpack.c.l.b16 %v52
  %v154 = vunpack.c.h.b16 %v52
  %v155 = vunpack.c.l.b16 %v53
  %v156 = vunpack.c.h.b16 %v53
  %v157 = vunpack.c.l.b16 %v54
  %v158 = vpack.c.b16 %v153, %v148
  %v159 = vpack.c.b16 %v154, %v149
  %v160 = vpack.c.b16 %v155, %v150
  %v161 = vpack.c.b16 %v156, %v151
  %v162 = vpack.c.b16 %v157, %v152
  %v248 = vunpack.c.l.b16 %v55
  %v249 = vunpack.c.l.b16 %v56
  %v250 = vunpack.c.l.b16 %v57
  %v251 = vunpack.c.l.b16 %v58
  %v252 = vunpack.c.l.b16 %v59
  %v253 = vunpack.c.l.b16 %v60
  %v254 = vunpack.c.l.b16 %v61
  %v255 = vunpack.c.l.b16 %v62
  %v256 = vunpack.c.l.b16 %v63
  %v257 = vunpack.c.l.b16 %v64
  %v258 = vunpack.c.l.b16 %v65
  %v259 = vunpack.c.l.b16 %v66
  %v260 = vunpack.c.l.b16 %v67
  %v261 = vunpack.c.l.b16 %v68
  %v262 = vunpack.c.l.b16 %v69
  %v263 = vunpack.c.l.b16 %v70
  %v264 = vunpack.c.l.b16 %v71
  %v265 = vunpack.c.l.b16 %v72
  %v266 = vunpack.c.l.b16 %v73
  %v267 = vunpack.c.l.b16 %v74
  %v268 = vunpack.c.l.b16 %v75
  %v269 = vunpack.c.l.b16 %v76
  %v270 = vunpack.c.l.b16 %v77
  %v271 = vunpack.c.l.b16 %v78
  %v272 = vunpack.c.l.b16 %v79
  %v273 = vunpack.c.l.b16 %v80
  %v274 = vunpack.c.l.b16 %v81
  %v275 = vunpack.c.l.b16 %v82
  %v276 = vunpack.c.l.b16 %v83
  %v277 = vunpack.c.l.b16 %v84
  %v278 = vunpack.c.l.b16 %v85
  %v279 = vunpack.c.l.b16 %v86
  %v280 = vunpack.c.l.b16 %v87
  %v281 = vunpack.c.l.b16 %v88
  %v282 = vunpack.c.l.b16 %v89
  %v283 = vunpack.c.l.b16 %v90
  %v284 = vunpack.c.l.b16 %v91
  %v285 = vunpack.c.l.b16 %v92
  %v286 = vunpack.c.l.b16 %v93
  %v287 = vunpack.c.l.b16 %v94
  %v288 = vunpack.c.l.b16 %v95
  %v289 = vunpack.c.l.b16 %v96
  %v290 = vunpack.c.l.b16 %v97
  %v291 = vunpack.c.l.b16 %v98
  %v292 = vunpack.c.l.b16 %v99
  %v293 = vunpack.c.l.b16 %v100
  %v294 = vunpack.c.l.b16 %v101
  %v295 = vunpack.c.l.b16 %v102
  %v296 = vunpack.c.l.b16 %v103
  %v297 = vunpack.c.l.b16 %v104
  %v298 = vunpack.c.l.b16 %v105
  %v299 = vunpack.c.l.b16 %v106
  %v300 = vunpack.c.l.b16 %v107
  %v301 = vunpack.c.l.b16 %v108
  %v302 = vunpack.c.l.b16 %v109
  %v303 = vunpack.c.l.b16 %v110
  %v304 = vunpack.c.l.b16 %v111
  %v305 = vunpack.c.l.b16 %v112
  %v306 = vunpack.c.l.b16 %v113
  %v307 = vunpack.c.l.b16 %v114
  %v308 = vunpack.c.l.b16 %v115
  %v309 = vunpack.c.l.b16 %v116
  %v310 = vunpack.c.l.b16 %v117
  %v311 = vunpack.c.l.b16 %v118
  %v312 = vunpack.c.l.b16 %v119
  %v313 = vunpack.c.l.b16 %v120
  %v314 = vunpack.c.l.b16 %v121
  %v315 = vunpack.c.l.b16 %v122
  %v316 = vunpack.c.l.b16 %v123
  %v317 = vunpack.c.l.b16 %v124
  %v318 = vunpack.c.l.b16 %v125
  %v319 = vunpack.c.l.b16 %v126
  %v320 = vunpack.c.l.b16 %v127
  %v321 = vunpack.c.l.b16 %v128
  %v322 = vunpack.c.l.b16 %v129
  %v323 = vunpack.c.l.b16 %v130
  %v324 = vunpack.c.l.b16 %v131
  %v325 = vunpack.c.l.b16 %v132
  %v326 = vunpack.c.l.b16 %v133
  %v327 = vunpack.c.l.b16 %v134
  %v328 = vpack.c.b16 %v249, %v248
  %v329 = vpack.c.b16 %v251, %v250
  %v330 = vpack.c.b16 %v253, %v252
  %v331 = vpack.c.b16 %v255, %v254
  %v332 = vpack.c.b16 %v257, %v256
  %v333 = vpack.c.b16 %v259, %v258
  %v334 = vpack.c.b16 %v261, %v260
  %v335 = vpack.c.b16 %v263, %v262
  %v336 = vpack.c.b16 %v265, %v264
  %v337 = vpack.c.b16 %v267, %v266
  %v338 = vpack.c.b16 %v269, %v268
  %v339 = vpack.c.b16 %v271, %v270
  %v340 = vpack.c.b16 %v273, %v272
  %v341 = vpack.c.b16 %v275, %v274
  %v342 = vpack.c.b16 %v277, %v276
  %v343 = vpack.c.b16 %v279, %v278
  %v344 = vpack.c.b16 %v281, %v280
  %v345 = vpack.c.b16 %v283, %v282
  %v346 = vpack.c.b16 %v285, %v284
  %v347 = vpack.c.b16 %v287, %v286
  %v348 = vpack.c.b16 %v289, %v288
  %v349 = vpack.c.b16 %v291, %v290
  %v350 = vpack.c.b16 %v293, %v292
  %v351 = vpack.c.b16 %v295, %v294
  %v352 = vpack.c.b16 %v297, %v296
  %v353 = vpack.c.b16 %v299, %v298
  %v354 = vpack.c.b16 %v301, %v300
  %v355 = vpack.c.b16 %v303, %v302
  %v356 = vpack.c.b16 %v305, %v304
  %v357 = vpack.c.b16 %v307, %v306
  %v358 = vpack.c.b16 %v309, %v308
  %v359 = vpack.c.b16 %v311, %v310
  %v360 = vpack.c.b16 %v313, %v312
  %v361 = vpack.c.b16 %v315, %v314
  %v362 = vpack.c.b16 %v317, %v316
  %v363 = vpack.c.b16 %v319, %v318
  %v364 = vpack.c.b16 %v321, %v320
  %v365 = vpack.c.b16 %v323, %v322
  %v366 = vpack.c.b16 %v325, %v324
  %v367 = vpack.c.b16 %v327, %v326
  %408 = vmatprep.subr.bf16.mxu0 0
  %409 = vmatpush1.bf16.msra.mxu0 %v328
  %410 = vmatprep.subr.bf16.mxu0 0
  %411 = vmatpush1.bf16.msra.mxu0 %v329
  %412 = vmatprep.subr.bf16.mxu0 0
  %413 = vmatpush1.bf16.msra.mxu0 %v330
  %414 = vmatprep.subr.bf16.mxu0 0
  %415 = vmatpush1.bf16.msra.mxu0 %v331
  %416 = vmatprep.subr.bf16.mxu0 0
  %417 = vmatpush1.bf16.msra.mxu0 %v332
  %418 = vmatprep.subr.bf16.mxu0 0
  %419 = vmatpush1.bf16.msra.mxu0 %v333
  %420 = vmatprep.subr.bf16.mxu0 0
  %421 = vmatpush1.bf16.msra.mxu0 %v334
  %422 = vmatprep.subr.bf16.mxu0 0
  %423 = vmatpush1.bf16.msra.mxu0 %v335
  %424 = vmatprep.subr.bf16.mxu0 0
  %425 = vmatpush1.bf16.msra.mxu0 %v336
  %426 = vmatprep.subr.bf16.mxu0 0
  %427 = vmatpush1.bf16.msra.mxu0 %v337
  %428 = vmatprep.subr.bf16.mxu0 0
  %429 = vmatpush1.bf16.msra.mxu0 %v338
  %430 = vmatprep.subr.bf16.mxu0 0
  %431 = vmatpush1.bf16.msra.mxu0 %v339
  %432 = vmatprep.subr.bf16.mxu0 0
  %433 = vmatpush1.bf16.msra.mxu0 %v340
  %434 = vmatprep.subr.bf16.mxu0 0
  %435 = vmatpush1.bf16.msra.mxu0 %v341
  %436 = vmatprep.subr.bf16.mxu0 0
  %437 = vmatpush1.bf16.msra.mxu0 %v342
  %438 = vmatprep.subr.bf16.mxu0 0
  %439 = vmatpush1.bf16.msra.mxu0 %v343
  %440 = vmatprep.mubr.bf16.mxu0 %v159
  %441 = vmatmul.mubr.bf16.gmra.mrb[0].mxu0 %v158
  %v442 = vpop.f32.mrb[0].mxu0
  %v443 = vadd.f32 %v140, %v442
  %v444 = vpop.f32.mrb[0].mxu0
  %v445 = vpop.f32.mrb[0].mxu0
  %v446 = vadd.f32 %v140, %v445
  %v447 = vpop.f32.mrb[0].mxu0
  %448 = vdwg.mxu0
  %449 = vmatprep.subr.bf16.mxu0 0
  %450 = vmatpush1.bf16.msra.mxu0 %v344
  %451 = vmatprep.subr.bf16.mxu0 0
  %452 = vmatpush1.bf16.msra.mxu0 %v345
  %453 = vmatprep.subr.bf16.mxu0 0
  %454 = vmatpush1.bf16.msra.mxu0 %v346
  %455 = vmatprep.subr.bf16.mxu0 0
  %456 = vmatpush1.bf16.msra.mxu0 %v347
  %457 = vmatprep.subr.bf16.mxu0 0
  %458 = vmatpush1.bf16.msra.mxu0 %v348
  %459 = vmatprep.subr.bf16.mxu0 0
  %460 = vmatpush1.bf16.msra.mxu0 %v349
  %461 = vmatprep.subr.bf16.mxu0 0
  %462 = vmatpush1.bf16.msra.mxu0 %v350
  %463 = vmatprep.subr.bf16.mxu0 0
  %464 = vmatpush1.bf16.msra.mxu0 %v351
  %465 = vmatprep.subr.bf16.mxu0 0
  %466 = vmatpush1.bf16.msra.mxu0 %v352
  %467 = vmatprep.subr.bf16.mxu0 0
  %468 = vmatpush1.bf16.msra.mxu0 %v353
  %469 = vmatprep.subr.bf16.mxu0 0
  %470 = vmatpush1.bf16.msra.mxu0 %v354
  %471 = vmatprep.subr.bf16.mxu0 0
  %472 = vmatpush1.bf16.msra.mxu0 %v355
  %473 = vmatprep.subr.bf16.mxu0 0
  %474 = vmatpush1.bf16.msra.mxu0 %v356
  %475 = vmatprep.subr.bf16.mxu0 0
  %476 = vmatpush1.bf16.msra.mxu0 %v357
  %477 = vmatprep.subr.bf16.mxu0 0
  %478 = vmatpush1.bf16.msra.mxu0 %v358
  %479 = vmatprep.subr.bf16.mxu0 0
  %480 = vmatpush1.bf16.msra.mxu0 %v359
  %481 = vmatprep.mubr.bf16.mxu0 %v161
  %482 = vmatmul.mubr.bf16.gmra.mrb[0].mxu0 %v160
  %v483 = vpop.f32.mrb[0].mxu0
  %v484 = vadd.f32 %v443, %v483
  %v485 = vpop.f32.mrb[0].mxu0
  %v486 = vpop.f32.mrb[0].mxu0
  %v487 = vadd.f32 %v446, %v486
  %v488 = vpop.f32.mrb[0].mxu0
  %489 = vdwg.mxu0
  %490 = vmatprep.subr.bf16.mxu0 0
  %491 = vmatpush1.bf16.msra.mxu0 %v360
  %492 = vmatprep.subr.bf16.mxu0 0
  %493 = vmatpush1.bf16.msra.mxu0 %v361
  %494 = vmatprep.subr.bf16.mxu0 0
  %495 = vmatpush1.bf16.msra.mxu0 %v362
  %496 = vmatprep.subr.bf16.mxu0 0
  %497 = vmatpush1.bf16.msra.mxu0 %v363
  %498 = vmatprep.subr.bf16.mxu0 0
  %499 = vmatpush1.bf16.msra.mxu0 %v364
  %500 = vmatprep.subr.bf16.mxu0 0
  %501 = vmatpush1.bf16.msra.mxu0 %v365
  %502 = vmatprep.subr.bf16.mxu0 0
  %503 = vmatpush1.bf16.msra.mxu0 %v366
  %504 = vmatprep.subr.bf16.mxu0 0
  %505 = vmatpush1.bf16.msra.mxu0 %v367
  %506 = vmatprep.subr.bf16.mxu0 0
  %507 = vmatpush1.bf16.msra.mxu0 0
  %508 = vmatprep.subr.bf16.mxu0 0
  %509 = vmatpush1.bf16.msra.mxu0 0
  %510 = vmatprep.subr.bf16.mxu0 0
  %511 = vmatpush1.bf16.msra.mxu0 0
  %512 = vmatprep.subr.bf16.mxu0 0
  %513 = vmatpush1.bf16.msra.mxu0 0
  %514 = vmatprep.subr.bf16.mxu0 0
  %515 = vmatpush1.bf16.msra.mxu0 0
  %516 = vmatprep.subr.bf16.mxu0 0
  %517 = vmatpush1.bf16.msra.mxu0 0
  %518 = vmatprep.subr.bf16.mxu0 0
  %519 = vmatpush1.bf16.msra.mxu0 0
  %520 = vmatprep.subr.bf16.mxu0 0
  %521 = vmatpush1.bf16.msra.mxu0 0
  %522 = vmatprep.mubr.bf16.mxu0 0
  %523 = vmatmul.mubr.bf16.gmra.mrb[0].mxu0 %v162
  %v524 = vpop.f32.mrb[0].mxu0
  %v525 = vadd.f32 %v484, %v524
  %v526 = vpop.f32.mrb[0].mxu0
  %v527 = vpop.f32.mrb[0].mxu0
  %v528 = vadd.f32 %v487, %v527
  %v529 = vpop.f32.mrb[0].mxu0
  %530 = vdwg.mxu0
  %v531 = vmax.f32 %v525, 0.0
  %v532 = vmax.f32 %v528, 0.0
  %v533 = vpack.c.bf16 %v532, %v531
  %v534 = vld [vmem:[#allocation2] sm:$0xff]
  %v535 = vld [vmem:[#allocation2 + $0x8] sm:$0xff]
  %v536 = vld [vmem:[#allocation2 + $0x10] sm:$0xff]
  %v537 = vld [vmem:[#allocation2 + $0x18] sm:$0xff]
  %v538 = vld [vmem:[#allocation2 + $0x20] sm:$0xff]
  %v539 = vld [vmem:[#allocation2 + $0x28] sm:$0xff]
  %v540 = vld [vmem:[#allocation2 + $0x30] sm:$0xff]
  %v541 = vld [vmem:[#allocation2 + $0x38] sm:$0xff]
  %v542 = vld [vmem:[#allocation2 + $0x40] sm:$0xff]
  %v543 = vld [vmem:[#allocation2 + $0x48] sm:$0xff]
  %v544 = vld [vmem:[#allocation2 + $0x50] sm:$0xff]
  %v545 = vld [vmem:[#allocation2 + $0x58] sm:$0xff]
  %v546 = vld [vmem:[#allocation2 + $0x60] sm:$0xff]
  %v547 = vld [vmem:[#allocation2 + $0x68] sm:$0xff]
  %v548 = vld [vmem:[#allocation2 + $0x70] sm:$0xff]
  %v549 = vld [vmem:[#allocation2 + $0x78] sm:$0xff]
  %v550 = vld [vmem:[%s3] sm:$0xff]
  %v551 = vld [vmem:[%s3 + $0x8] sm:$0xff]
  %v552 = vld [vmem:[%s3 + $0x10] sm:$0xff]
  %v553 = vld [vmem:[%s3 + $0x18] sm:$0xff]
  %v554 = vld [vmem:[%s3 + $0x20] sm:$0xff]
  %v555 = vld [vmem:[%s3 + $0x28] sm:$0xff]
  %v556 = vld [vmem:[%s3 + $0x30] sm:$0xff]
  %v557 = vld [vmem:[%s3 + $0x38] sm:$0xff]
  %v558 = vld [vmem:[%s3 + $0x40] sm:$0xff]
  %v559 = vld [vmem:[%s3 + $0x48] sm:$0xff]
  %v560 = vld [vmem:[%s3 + $0x50] sm:$0xff]
  %v561 = vld [vmem:[%s3 + $0x58] sm:$0xff]
  %v562 = vld [vmem:[%s3 + $0x60] sm:$0xff]
  %v563 = vld [vmem:[%s3 + $0x68] sm:$0xff]
  %v564 = vld [vmem:[%s3 + $0x70] sm:$0xff]
  %v565 = vld [vmem:[%s3 + $0x78] sm:$0xff]
  %v566 = vld [vmem:[%s3 + $0x80] sm:$0xff]
  %v567 = vld [vmem:[%s3 + $0x88] sm:$0xff]
  %v568 = vld [vmem:[%s3 + $0x90] sm:$0xff]
  %v569 = vld [vmem:[%s3 + $0x98] sm:$0xff]
  %v570 = vld [vmem:[%s3 + $0xa0] sm:$0xff]
  %v571 = vld [vmem:[%s3 + $0xa8] sm:$0xff]
  %v572 = vld [vmem:[%s3 + $0xb0] sm:$0xff]
  %v573 = vld [vmem:[%s3 + $0xb8] sm:$0xff]
  %v574 = vld [vmem:[%s3 + $0xc0] sm:$0xff]
  %v575 = vld [vmem:[%s3 + $0xc8] sm:$0xff]
  %v576 = vld [vmem:[%s3 + $0xd0] sm:$0xff]
  %v577 = vld [vmem:[%s3 + $0xd8] sm:$0xff]
  %v578 = vld [vmem:[%s3 + $0xe0] sm:$0xff]
  %v579 = vld [vmem:[%s3 + $0xe8] sm:$0xff]
  %v580 = vld [vmem:[%s3 + $0xf0] sm:$0xff]
  %v581 = vld [vmem:[%s3 + $0xf8] sm:$0xff]
  %v614 = vunpack.c.l.b16 %v550
  %v615 = vunpack.c.h.b16 %v550
  %v616 = vunpack.c.l.b16 %v551
  %v617 = vunpack.c.h.b16 %v551
  %v618 = vunpack.c.l.b16 %v552
  %v619 = vunpack.c.h.b16 %v552
  %v620 = vunpack.c.l.b16 %v553
  %v621 = vunpack.c.h.b16 %v553
  %v622 = vunpack.c.l.b16 %v554
  %v623 = vunpack.c.h.b16 %v554
  %v624 = vunpack.c.l.b16 %v555
  %v625 = vunpack.c.h.b16 %v555
  %v626 = vunpack.c.l.b16 %v556
  %v627 = vunpack.c.h.b16 %v556
  %v628 = vunpack.c.l.b16 %v557
  %v629 = vunpack.c.h.b16 %v557
  %v630 = vunpack.c.l.b16 %v558
  %v631 = vunpack.c.h.b16 %v558
  %v632 = vunpack.c.l.b16 %v559
  %v633 = vunpack.c.h.b16 %v559
  %v634 = vunpack.c.l.b16 %v560
  %v635 = vunpack.c.h.b16 %v560
  %v636 = vunpack.c.l.b16 %v561
  %v637 = vunpack.c.h.b16 %v561
  %v638 = vunpack.c.l.b16 %v562
  %v639 = vunpack.c.h.b16 %v562
  %v640 = vunpack.c.l.b16 %v563
  %v641 = vunpack.c.h.b16 %v563
  %v642 = vunpack.c.l.b16 %v564
  %v643 = vunpack.c.h.b16 %v564
  %v644 = vunpack.c.l.b16 %v565
  %v645 = vunpack.c.h.b16 %v565
  %v646 = vunpack.c.l.b16 %v566
  %v647 = vunpack.c.h.b16 %v566
  %v648 = vunpack.c.l.b16 %v567
  %v649 = vunpack.c.h.b16 %v567
  %v650 = vunpack.c.l.b16 %v568
  %v651 = vunpack.c.h.b16 %v568
  %v652 = vunpack.c.l.b16 %v569
  %v653 = vunpack.c.h.b16 %v569
  %v654 = vunpack.c.l.b16 %v570
  %v655 = vunpack.c.h.b16 %v570
  %v656 = vunpack.c.l.b16 %v571
  %v657 = vunpack.c.h.b16 %v571
  %v658 = vunpack.c.l.b16 %v572
  %v659 = vunpack.c.h.b16 %v572
  %v660 = vunpack.c.l.b16 %v573
  %v661 = vunpack.c.h.b16 %v573
  %v662 = vunpack.c.l.b16 %v574
  %v663 = vunpack.c.h.b16 %v574
  %v664 = vunpack.c.l.b16 %v575
  %v665 = vunpack.c.h.b16 %v575
  %v666 = vunpack.c.l.b16 %v576
  %v667 = vunpack.c.h.b16 %v576
  %v668 = vunpack.c.l.b16 %v577
  %v669 = vunpack.c.h.b16 %v577
  %v670 = vunpack.c.l.b16 %v578
  %v671 = vunpack.c.h.b16 %v578
  %v672 = vunpack.c.l.b16 %v579
  %v673 = vunpack.c.h.b16 %v579
  %v674 = vunpack.c.l.b16 %v580
  %v675 = vunpack.c.h.b16 %v580
  %v676 = vunpack.c.l.b16 %v581
  %v677 = vunpack.c.h.b16 %v581
  %v678 = vpack.c.b16 %v622, %v614
  %v679 = vpack.c.b16 %v623, %v615
  %v680 = vpack.c.b16 %v624, %v616
  %v681 = vpack.c.b16 %v625, %v617
  %v682 = vpack.c.b16 %v626, %v618
  %v683 = vpack.c.b16 %v627, %v619
  %v684 = vpack.c.b16 %v628, %v620
  %v685 = vpack.c.b16 %v629, %v621
  %v686 = vpack.c.b16 %v638, %v630
  %v687 = vpack.c.b16 %v639, %v631
  %v688 = vpack.c.b16 %v640, %v632
  %v689 = vpack.c.b16 %v641, %v633
  %v690 = vpack.c.b16 %v642, %v634
  %v691 = vpack.c.b16 %v643, %v635
  %v692 = vpack.c.b16 %v644, %v636
  %v693 = vpack.c.b16 %v645, %v637
  %v694 = vpack.c.b16 %v654, %v646
  %v695 = vpack.c.b16 %v655, %v647
  %v696 = vpack.c.b16 %v656, %v648
  %v697 = vpack.c.b16 %v657, %v649
  %v698 = vpack.c.b16 %v658, %v650
  %v699 = vpack.c.b16 %v659, %v651
  %v700 = vpack.c.b16 %v660, %v652
  %v701 = vpack.c.b16 %v661, %v653
  %v702 = vpack.c.b16 %v670, %v662
  %v703 = vpack.c.b16 %v671, %v663
  %v704 = vpack.c.b16 %v672, %v664
  %v705 = vpack.c.b16 %v673, %v665
  %v706 = vpack.c.b16 %v674, %v666
  %v707 = vpack.c.b16 %v675, %v667
  %v708 = vpack.c.b16 %v676, %v668
  %v709 = vpack.c.b16 %v677, %v669
  %vm742 = vcmask 523264
  %v744 = vsel %vm742, %v533, 0
  %746 = vmatprep.subr.bf16.mxu0 %v679
  %747 = vmatpush1.bf16.msra.mxu0 %v678
  %748 = vmatprep.subr.bf16.mxu0 %v687
  %749 = vmatpush1.bf16.msra.mxu0 %v686
  %750 = vmatprep.subr.bf16.mxu0 %v695
  %751 = vmatpush1.bf16.msra.mxu0 %v694
  %752 = vmatprep.subr.bf16.mxu0 %v703
  %753 = vmatpush1.bf16.msra.mxu0 %v702
  %754 = vmatprep.subr.bf16.mxu0 0
  %755 = vmatpush1.bf16.msra.mxu0 0
  %756 = vmatprep.subr.bf16.mxu0 0
  %757 = vmatpush1.bf16.msra.mxu0 0
  %758 = vmatprep.subr.bf16.mxu0 0
  %759 = vmatpush1.bf16.msra.mxu0 0
  %760 = vmatprep.subr.bf16.mxu0 0
  %761 = vmatpush1.bf16.msra.mxu0 0
  %762 = vmatprep.subr.bf16.mxu0 0
  %763 = vmatpush1.bf16.msra.mxu0 0
  %764 = vmatprep.subr.bf16.mxu0 0
  %765 = vmatpush1.bf16.msra.mxu0 0
  %766 = vmatprep.subr.bf16.mxu0 0
  %767 = vmatpush1.bf16.msra.mxu0 0
  %768 = vmatprep.subr.bf16.mxu0 0
  %769 = vmatpush1.bf16.msra.mxu0 0
  %770 = vmatprep.subr.bf16.mxu0 0
  %771 = vmatpush1.bf16.msra.mxu0 0
  %772 = vmatprep.subr.bf16.mxu0 0
  %773 = vmatpush1.bf16.msra.mxu0 0
  %774 = vmatprep.subr.bf16.mxu0 0
  %775 = vmatpush1.bf16.msra.mxu0 0
  %776 = vmatprep.subr.bf16.mxu0 0
  %777 = vmatpush1.bf16.msra.mxu0 0
  %778 = vmatprep.mubr.bf16.mxu0 0
  %779 = vmatmul.mubr.bf16.gmra.mrb[0].mxu0 %v744
  %v780 = vpop.f32.mrb[0].mxu0
  %v781 = vadd.f32 0.0, %v780
  %v782 = vpop.f32.mrb[0].mxu0
  %v783 = vadd.f32 0.0, %v782
  %v784 = vpop.f32.mrb[0].mxu0
  %v785 = vadd.f32 0.0, %v784
  %v786 = vpop.f32.mrb[0].mxu0
  %v787 = vadd.f32 0.0, %v786
  %788 = vdwg.mxu0
  %789 = vmatprep.subr.bf16.mxu0 %v681
  %790 = vmatpush1.bf16.msra.mxu0 %v680
  %791 = vmatprep.subr.bf16.mxu0 %v689
  %792 = vmatpush1.bf16.msra.mxu0 %v688
  %793 = vmatprep.subr.bf16.mxu0 %v697
  %794 = vmatpush1.bf16.msra.mxu0 %v696
  %795 = vmatprep.subr.bf16.mxu0 %v705
  %796 = vmatpush1.bf16.msra.mxu0 %v704
  %797 = vmatprep.subr.bf16.mxu0 0
  %798 = vmatpush1.bf16.msra.mxu0 0
  %799 = vmatprep.subr.bf16.mxu0 0
  %800 = vmatpush1.bf16.msra.mxu0 0
  %801 = vmatprep.subr.bf16.mxu0 0
  %802 = vmatpush1.bf16.msra.mxu0 0
  %803 = vmatprep.subr.bf16.mxu0 0
  %804 = vmatpush1.bf16.msra.mxu0 0
  %805 = vmatprep.subr.bf16.mxu0 0
  %806 = vmatpush1.bf16.msra.mxu0 0
  %807 = vmatprep.subr.bf16.mxu0 0
  %808 = vmatpush1.bf16.msra.mxu0 0
  %809 = vmatprep.subr.bf16.mxu0 0
  %810 = vmatpush1.bf16.msra.mxu0 0
  %811 = vmatprep.subr.bf16.mxu0 0
  %812 = vmatpush1.bf16.msra.mxu0 0
  %813 = vmatprep.subr.bf16.mxu0 0
  %814 = vmatpush1.bf16.msra.mxu0 0
  %815 = vmatprep.subr.bf16.mxu0 0
  %816 = vmatpush1.bf16.msra.mxu0 0
  %817 = vmatprep.subr.bf16.mxu0 0
  %818 = vmatpush1.bf16.msra.mxu0 0
  %819 = vmatprep.subr.bf16.mxu0 0
  %820 = vmatpush1.bf16.msra.mxu0 0
  %821 = vmatprep.mubr.bf16.mxu0 0
  %822 = vmatmul.mubr.bf16.gmra.mrb[0].mxu0 %v744
  %v823 = vpop.f32.mrb[0].mxu0
  %v824 = vadd.f32 0.0, %v823
  %v825 = vpop.f32.mrb[0].mxu0
  %v826 = vadd.f32 0.0, %v825
  %v827 = vpop.f32.mrb[0].mxu0
  %v828 = vadd.f32 0.0, %v827
  %v829 = vpop.f32.mrb[0].mxu0
  %v830 = vadd.f32 0.0, %v829
  %831 = vdwg.mxu0
  %832 = vmatprep.subr.bf16.mxu0 %v683
  %833 = vmatpush1.bf16.msra.mxu0 %v682
  %834 = vmatprep.subr.bf16.mxu0 %v691
  %835 = vmatpush1.bf16.msra.mxu0 %v690
  %836 = vmatprep.subr.bf16.mxu0 %v699
  %837 = vmatpush1.bf16.msra.mxu0 %v698
  %838 = vmatprep.subr.bf16.mxu0 %v707
  %839 = vmatpush1.bf16.msra.mxu0 %v706
  %840 = vmatprep.subr.bf16.mxu0 0
  %841 = vmatpush1.bf16.msra.mxu0 0
  %842 = vmatprep.subr.bf16.mxu0 0
  %843 = vmatpush1.bf16.msra.mxu0 0
  %844 = vmatprep.subr.bf16.mxu0 0
  %845 = vmatpush1.bf16.msra.mxu0 0
  %846 = vmatprep.subr.bf16.mxu0 0
  %847 = vmatpush1.bf16.msra.mxu0 0
  %848 = vmatprep.subr.bf16.mxu0 0
  %849 = vmatpush1.bf16.msra.mxu0 0
  %850 = vmatprep.subr.bf16.mxu0 0
  %851 = vmatpush1.bf16.msra.mxu0 0
  %852 = vmatprep.subr.bf16.mxu0 0
  %853 = vmatpush1.bf16.msra.mxu0 0
  %854 = vmatprep.subr.bf16.mxu0 0
  %855 = vmatpush1.bf16.msra.mxu0 0
  %856 = vmatprep.subr.bf16.mxu0 0
  %857 = vmatpush1.bf16.msra.mxu0 0
  %858 = vmatprep.subr.bf16.mxu0 0
  %859 = vmatpush1.bf16.msra.mxu0 0
  %860 = vmatprep.subr.bf16.mxu0 0
  %861 = vmatpush1.bf16.msra.mxu0 0
  %862 = vmatprep.subr.bf16.mxu0 0
  %863 = vmatpush1.bf16.msra.mxu0 0
  %864 = vmatprep.mubr.bf16.mxu0 0
  %865 = vmatmul.mubr.bf16.gmra.mrb[0].mxu0 %v744
  %v866 = vpop.f32.mrb[0].mxu0
  %v867 = vadd.f32 0.0, %v866
  %v868 = vpop.f32.mrb[0].mxu0
  %v869 = vadd.f32 0.0, %v868
  %v870 = vpop.f32.mrb[0].mxu0
  %v871 = vadd.f32 0.0, %v870
  %v872 = vpop.f32.mrb[0].mxu0
  %v873 = vadd.f32 0.0, %v872
  %874 = vdwg.mxu0
  %875 = vmatprep.subr.bf16.mxu0 %v685
  %876 = vmatpush1.bf16.msra.mxu0 %v684
  %877 = vmatprep.subr.bf16.mxu0 %v693
  %878 = vmatpush1.bf16.msra.mxu0 %v692
  %879 = vmatprep.subr.bf16.mxu0 %v701
  %880 = vmatpush1.bf16.msra.mxu0 %v700
  %881 = vmatprep.subr.bf16.mxu0 %v709
  %882 = vmatpush1.bf16.msra.mxu0 %v708
  %883 = vmatprep.subr.bf16.mxu0 0
  %884 = vmatpush1.bf16.msra.mxu0 0
  %885 = vmatprep.subr.bf16.mxu0 0
  %886 = vmatpush1.bf16.msra.mxu0 0
  %887 = vmatprep.subr.bf16.mxu0 0
  %888 = vmatpush1.bf16.msra.mxu0 0
  %889 = vmatprep.subr.bf16.mxu0 0
  %890 = vmatpush1.bf16.msra.mxu0 0
  %891 = vmatprep.subr.bf16.mxu0 0
  %892 = vmatpush1.bf16.msra.mxu0 0
  %893 = vmatprep.subr.bf16.mxu0 0
  %894 = vmatpush1.bf16.msra.mxu0 0
  %895 = vmatprep.subr.bf16.mxu0 0
  %896 = vmatpush1.bf16.msra.mxu0 0
  %897 = vmatprep.subr.bf16.mxu0 0
  %898 = vmatpush1.bf16.msra.mxu0 0
  %899 = vmatprep.subr.bf16.mxu0 0
  %900 = vmatpush1.bf16.msra.mxu0 0
  %901 = vmatprep.subr.bf16.mxu0 0
  %902 = vmatpush1.bf16.msra.mxu0 0
  %903 = vmatprep.subr.bf16.mxu0 0
  %904 = vmatpush1.bf16.msra.mxu0 0
  %905 = vmatprep.subr.bf16.mxu0 0
  %906 = vmatpush1.bf16.msra.mxu0 0
  %907 = vmatprep.mubr.bf16.mxu0 0
  %908 = vmatmul.mubr.bf16.gmra.mrb[0].mxu0 %v744
  %v909 = vpop.f32.mrb[0].mxu0
  %v910 = vadd.f32 0.0, %v909
  %v911 = vpop.f32.mrb[0].mxu0
  %v912 = vadd.f32 0.0, %v911
  %v913 = vpop.f32.mrb[0].mxu0
  %v914 = vadd.f32 0.0, %v913
  %v915 = vpop.f32.mrb[0].mxu0
  %v916 = vadd.f32 0.0, %v915
  %917 = vdwg.mxu0
  %v918 = vadd.f32 %v534, %v781
  %v919 = vadd.f32 %v535, %v783
  %v920 = vadd.f32 %v536, %v824
  %v921 = vadd.f32 %v537, %v826
  %v922 = vadd.f32 %v538, %v867
  %v923 = vadd.f32 %v539, %v869
  %v924 = vadd.f32 %v540, %v910
  %v925 = vadd.f32 %v541, %v912
  %v926 = vadd.f32 %v542, %v785
  %v927 = vadd.f32 %v543, %v787
  %v928 = vadd.f32 %v544, %v828
  %v929 = vadd.f32 %v545, %v830
  %v930 = vadd.f32 %v546, %v871
  %v931 = vadd.f32 %v547, %v873
  %v932 = vadd.f32 %v548, %v914
  %v933 = vadd.f32 %v549, %v916
  %934 = vst [vmem:[#allocation2] sm:$0xff] %v918
  %935 = vst [vmem:[#allocation2 + $0x8] sm:$0xff] %v919
  %936 = vst [vmem:[#allocation2 + $0x10] sm:$0xff] %v920
  %937 = vst [vmem:[#allocation2 + $0x18] sm:$0xff] %v921
  %938 = vst [vmem:[#allocation2 + $0x20] sm:$0xff] %v922
  %939 = vst [vmem:[#allocation2 + $0x28] sm:$0xff] %v923
  %940 = vst [vmem:[#allocation2 + $0x30] sm:$0xff] %v924
  %941 = vst [vmem:[#allocation2 + $0x38] sm:$0xff] %v925
  %942 = vst [vmem:[#allocation2 + $0x40] sm:$0xff] %v926
  %943 = vst [vmem:[#allocation2 + $0x48] sm:$0xff] %v927
  %944 = vst [vmem:[#allocation2 + $0x50] sm:$0xff] %v928
  %945 = vst [vmem:[#allocation2 + $0x58] sm:$0xff] %v929
  %946 = vst [vmem:[#allocation2 + $0x60] sm:$0xff] %v930
  %947 = vst [vmem:[#allocation2 + $0x68] sm:$0xff] %v931
  %948 = vst [vmem:[#allocation2 + $0x70] sm:$0xff] %v932
  %949 = vst [vmem:[#allocation2 + $0x78] sm:$0xff] %v933
  %s950 = scalar_lea.vmem %s0, 40
  %v951 = vld [vmem:[%s950] sm:$0xff]
  %v952 = vld [vmem:[%s950 + $0x8] sm:$0xff]
  %v953 = vld [vmem:[%s950 + $0x10] sm:$0xf]
  %v954 = vld [vmem:[%s950 + $0x14] sm:$0xff]
  %v955 = vld [vmem:[%s950 + $0x1c] sm:$0xff]
  %v956 = vld [vmem:[%s950 + $0x24] sm:$0xf]
  %v957 = vld [vmem:[%s1] sm:$0xf]
  %v958 = vld [vmem:[%s1 + $0x4] sm:$0xf]
  %v959 = vld [vmem:[%s1 + $0x8] sm:$0xf]
  %v960 = vld [vmem:[%s1 + $0xc] sm:$0xf]
  %v961 = vld [vmem:[%s1 + $0x10] sm:$0xf]
  %v962 = vld [vmem:[%s1 + $0x14] sm:$0xf]
  %v963 = vld [vmem:[%s1 + $0x18] sm:$0xf]
  %v964 = vld [vmem:[%s1 + $0x1c] sm:$0xf]
  %v965 = vld [vmem:[%s1 + $0x20] sm:$0xf]
  %v966 = vld [vmem:[%s1 + $0x24] sm:$0xf]
  %v967 = vld [vmem:[%s1 + $0x28] sm:$0xf]
  %v968 = vld [vmem:[%s1 + $0x2c] sm:$0xf]
  %v969 = vld [vmem:[%s1 + $0x30] sm:$0xf]
  %v970 = vld [vmem:[%s1 + $0x34] sm:$0xf]
  %v971 = vld [vmem:[%s1 + $0x38] sm:$0xf]
  %v972 = vld [vmem:[%s1 + $0x3c] sm:$0xf]
  %v973 = vld [vmem:[%s1 + $0x40] sm:$0xf]
  %v974 = vld [vmem:[%s1 + $0x44] sm:$0xf]
  %v975 = vld [vmem:[%s1 + $0x48] sm:$0xf]
  %v976 = vld [vmem:[%s1 + $0x4c] sm:$0xf]
  %v977 = vld [vmem:[%s1 + $0x50] sm:$0xf]
  %v978 = vld [vmem:[%s1 + $0x54] sm:$0xf]
  %v979 = vld [vmem:[%s1 + $0x58] sm:$0xf]
  %v980 = vld [vmem:[%s1 + $0x5c] sm:$0xf]
  %v981 = vld [vmem:[%s1 + $0x60] sm:$0xf]
  %v982 = vld [vmem:[%s1 + $0x64] sm:$0xf]
  %v983 = vld [vmem:[%s1 + $0x68] sm:$0xf]
  %v984 = vld [vmem:[%s1 + $0x6c] sm:$0xf]
  %v985 = vld [vmem:[%s1 + $0x70] sm:$0xf]
  %v986 = vld [vmem:[%s1 + $0x74] sm:$0xf]
  %v987 = vld [vmem:[%s1 + $0x78] sm:$0xf]
  %v988 = vld [vmem:[%s1 + $0x7c] sm:$0xf]
  %v989 = vld [vmem:[%s1 + $0x80] sm:$0xf]
  %v990 = vld [vmem:[%s1 + $0x84] sm:$0xf]
  %v991 = vld [vmem:[%s1 + $0x88] sm:$0xf]
  %v992 = vld [vmem:[%s1 + $0x8c] sm:$0xf]
  %v993 = vld [vmem:[%s1 + $0x90] sm:$0xf]
  %v994 = vld [vmem:[%s1 + $0x94] sm:$0xf]
  %v995 = vld [vmem:[%s1 + $0x98] sm:$0xf]
  %v996 = vld [vmem:[%s1 + $0x9c] sm:$0xf]
  %v997 = vld [vmem:[%s1 + $0xa0] sm:$0xf]
  %v998 = vld [vmem:[%s1 + $0xa4] sm:$0xf]
  %v999 = vld [vmem:[%s1 + $0xa8] sm:$0xf]
  %v1000 = vld [vmem:[%s1 + $0xac] sm:$0xf]
  %v1001 = vld [vmem:[%s1 + $0xb0] sm:$0xf]
  %v1002 = vld [vmem:[%s1 + $0xb4] sm:$0xf]
  %v1003 = vld [vmem:[%s1 + $0xb8] sm:$0xf]
  %v1004 = vld [vmem:[%s1 + $0xbc] sm:$0xf]
  %v1005 = vld [vmem:[%s1 + $0xc0] sm:$0xf]
  %v1006 = vld [vmem:[%s1 + $0xc4] sm:$0xf]
  %v1007 = vld [vmem:[%s1 + $0xc8] sm:$0xf]
  %v1008 = vld [vmem:[%s1 + $0xcc] sm:$0xf]
  %v1009 = vld [vmem:[%s1 + $0xd0] sm:$0xf]
  %v1010 = vld [vmem:[%s1 + $0xd4] sm:$0xf]
  %v1011 = vld [vmem:[%s1 + $0xd8] sm:$0xf]
  %v1012 = vld [vmem:[%s1 + $0xdc] sm:$0xf]
  %v1013 = vld [vmem:[%s1 + $0xe0] sm:$0xf]
  %v1014 = vld [vmem:[%s1 + $0xe4] sm:$0xf]
  %v1015 = vld [vmem:[%s1 + $0xe8] sm:$0xf]
  %v1016 = vld [vmem:[%s1 + $0xec] sm:$0xf]
  %v1017 = vld [vmem:[%s1 + $0xf0] sm:$0xf]
  %v1018 = vld [vmem:[%s1 + $0xf4] sm:$0xf]
  %v1019 = vld [vmem:[%s1 + $0xf8] sm:$0xf]
  %v1020 = vld [vmem:[%s1 + $0xfc] sm:$0xf]
  %v1021 = vld [vmem:[%s1 + $0x100] sm:$0xf]
  %v1022 = vld [vmem:[%s1 + $0x104] sm:$0xf]
  %v1023 = vld [vmem:[%s1 + $0x108] sm:$0xf]
  %v1024 = vld [vmem:[%s1 + $0x10c] sm:$0xf]
  %v1025 = vld [vmem:[%s1 + $0x110] sm:$0xf]
  %v1026 = vld [vmem:[%s1 + $0x114] sm:$0xf]
  %v1027 = vld [vmem:[%s1 + $0x118] sm:$0xf]
  %v1028 = vld [vmem:[%s1 + $0x11c] sm:$0xf]
  %v1029 = vld [vmem:[%s1 + $0x120] sm:$0xf]
  %v1030 = vld [vmem:[%s1 + $0x124] sm:$0xf]
  %v1031 = vld [vmem:[%s1 + $0x128] sm:$0xf]
  %v1032 = vld [vmem:[%s1 + $0x12c] sm:$0xf]
  %v1033 = vld [vmem:[%s1 + $0x130] sm:$0xf]
  %v1034 = vld [vmem:[%s1 + $0x134] sm:$0xf]
  %v1035 = vld [vmem:[%s1 + $0x138] sm:$0xf]
  %v1036 = vld [vmem:[%s1 + $0x13c] sm:$0xf]
  %v1037 = vld [vmem:[%s2] sm:$0x1]
  %v1039 = vlaneseq
  %v1040 = vshrl.u32 %v1039, 7
  %v1041 = vsub.s32 0, %v1040
  %v1042 = vrot.slane %v1037, %v1041
  %v1050 = vunpack.c.l.b16 %v951
  %v1051 = vunpack.c.h.b16 %v951
  %v1052 = vunpack.c.l.b16 %v952
  %v1053 = vunpack.c.h.b16 %v952
  %v1054 = vunpack.c.l.b16 %v953
  %v1055 = vunpack.c.l.b16 %v954
  %v1056 = vunpack.c.h.b16 %v954
  %v1057 = vunpack.c.l.b16 %v955
  %v1058 = vunpack.c.h.b16 %v955
  %v1059 = vunpack.c.l.b16 %v956
  %v1060 = vpack.c.b16 %v1055, %v1050
  %v1061 = vpack.c.b16 %v1056, %v1051
  %v1062 = vpack.c.b16 %v1057, %v1052
  %v1063 = vpack.c.b16 %v1058, %v1053
  %v1064 = vpack.c.b16 %v1059, %v1054
  %v1150 = vunpack.c.l.b16 %v957
  %v1151 = vunpack.c.l.b16 %v958
  %v1152 = vunpack.c.l.b16 %v959
  %v1153 = vunpack.c.l.b16 %v960
  %v1154 = vunpack.c.l.b16 %v961
  %v1155 = vunpack.c.l.b16 %v962
  %v1156 = vunpack.c.l.b16 %v963
  %v1157 = vunpack.c.l.b16 %v964
  %v1158 = vunpack.c.l.b16 %v965
  %v1159 = vunpack.c.l.b16 %v966
  %v1160 = vunpack.c.l.b16 %v967
  %v1161 = vunpack.c.l.b16 %v968
  %v1162 = vunpack.c.l.b16 %v969
  %v1163 = vunpack.c.l.b16 %v970
  %v1164 = vunpack.c.l.b16 %v971
  %v1165 = vunpack.c.l.b16 %v972
  %v1166 = vunpack.c.l.b16 %v973
  %v1167 = vunpack.c.l.b16 %v974
  %v1168 = vunpack.c.l.b16 %v975
  %v1169 = vunpack.c.l.b16 %v976
  %v1170 = vunpack.c.l.b16 %v977
  %v1171 = vunpack.c.l.b16 %v978
  %v1172 = vunpack.c.l.b16 %v979
  %v1173 = vunpack.c.l.b16 %v980
  %v1174 = vunpack.c.l.b16 %v981
  %v1175 = vunpack.c.l.b16 %v982
  %v1176 = vunpack.c.l.b16 %v983
  %v1177 = vunpack.c.l.b16 %v984
  %v1178 = vunpack.c.l.b16 %v985
  %v1179 = vunpack.c.l.b16 %v986
  %v1180 = vunpack.c.l.b16 %v987
  %v1181 = vunpack.c.l.b16 %v988
  %v1182 = vunpack.c.l.b16 %v989
  %v1183 = vunpack.c.l.b16 %v990
  %v1184 = vunpack.c.l.b16 %v991
  %v1185 = vunpack.c.l.b16 %v992
  %v1186 = vunpack.c.l.b16 %v993
  %v1187 = vunpack.c.l.b16 %v994
  %v1188 = vunpack.c.l.b16 %v995
  %v1189 = vunpack.c.l.b16 %v996
  %v1190 = vunpack.c.l.b16 %v997
  %v1191 = vunpack.c.l.b16 %v998
  %v1192 = vunpack.c.l.b16 %v999
  %v1193 = vunpack.c.l.b16 %v1000
  %v1194 = vunpack.c.l.b16 %v1001
  %v1195 = vunpack.c.l.b16 %v1002
  %v1196 = vunpack.c.l.b16 %v1003
  %v1197 = vunpack.c.l.b16 %v1004
  %v1198 = vunpack.c.l.b16 %v1005
  %v1199 = vunpack.c.l.b16 %v1006
  %v1200 = vunpack.c.l.b16 %v1007
  %v1201 = vunpack.c.l.b16 %v1008
  %v1202 = vunpack.c.l.b16 %v1009
  %v1203 = vunpack.c.l.b16 %v1010
  %v1204 = vunpack.c.l.b16 %v1011
  %v1205 = vunpack.c.l.b16 %v1012
  %v1206 = vunpack.c.l.b16 %v1013
  %v1207 = vunpack.c.l.b16 %v1014
  %v1208 = vunpack.c.l.b16 %v1015
  %v1209 = vunpack.c.l.b16 %v1016
  %v1210 = vunpack.c.l.b16 %v1017
  %v1211 = vunpack.c.l.b16 %v1018
  %v1212 = vunpack.c.l.b16 %v1019
  %v1213 = vunpack.c.l.b16 %v1020
  %v1214 = vunpack.c.l.b16 %v1021
  %v1215 = vunpack.c.l.b16 %v1022
  %v1216 = vunpack.c.l.b16 %v1023
  %v1217 = vunpack.c.l.b16 %v1024
  %v1218 = vunpack.c.l.b16 %v1025
  %v1219 = vunpack.c.l.b16 %v1026
  %v1220 = vunpack.c.l.b16 %v1027
  %v1221 = vunpack.c.l.b16 %v1028
  %v1222 = vunpack.c.l.b16 %v1029
  %v1223 = vunpack.c.l.b16 %v1030
  %v1224 = vunpack.c.l.b16 %v1031
  %v1225 = vunpack.c.l.b16 %v1032
  %v1226 = vunpack.c.l.b16 %v1033
  %v1227 = vunpack.c.l.b16 %v1034
  %v1228 = vunpack.c.l.b16 %v1035
  %v1229 = vunpack.c.l.b16 %v1036
  %v1230 = vpack.c.b16 %v1151, %v1150
  %v1231 = vpack.c.b16 %v1153, %v1152
  %v1232 = vpack.c.b16 %v1155, %v1154
  %v1233 = vpack.c.b16 %v1157, %v1156
  %v1234 = vpack.c.b16 %v1159, %v1158
  %v1235 = vpack.c.b16 %v1161, %v1160
  %v1236 = vpack.c.b16 %v1163, %v1162
  %v1237 = vpack.c.b16 %v1165, %v1164
  %v1238 = vpack.c.b16 %v1167, %v1166
  %v1239 = vpack.c.b16 %v1169, %v1168
  %v1240 = vpack.c.b16 %v1171, %v1170
  %v1241 = vpack.c.b16 %v1173, %v1172
  %v1242 = vpack.c.b16 %v1175, %v1174
  %v1243 = vpack.c.b16 %v1177, %v1176
  %v1244 = vpack.c.b16 %v1179, %v1178
  %v1245 = vpack.c.b16 %v1181, %v1180
  %v1246 = vpack.c.b16 %v1183, %v1182
  %v1247 = vpack.c.b16 %v1185, %v1184
  %v1248 = vpack.c.b16 %v1187, %v1186
  %v1249 = vpack.c.b16 %v1189, %v1188
  %v1250 = vpack.c.b16 %v1191, %v1190
  %v1251 = vpack.c.b16 %v1193, %v1192
  %v1252 = vpack.c.b16 %v1195, %v1194
  %v1253 = vpack.c.b16 %v1197, %v1196
  %v1254 = vpack.c.b16 %v1199, %v1198
  %v1255 = vpack.c.b16 %v1201, %v1200
  %v1256 = vpack.c.b16 %v1203, %v1202
  %v1257 = vpack.c.b16 %v1205, %v1204
  %v1258 = vpack.c.b16 %v1207, %v1206
  %v1259 = vpack.c.b16 %v1209, %v1208
  %v1260 = vpack.c.b16 %v1211, %v1210
  %v1261 = vpack.c.b16 %v1213, %v1212
  %v1262 = vpack.c.b16 %v1215, %v1214
  %v1263 = vpack.c.b16 %v1217, %v1216
  %v1264 = vpack.c.b16 %v1219, %v1218
  %v1265 = vpack.c.b16 %v1221, %v1220
  %v1266 = vpack.c.b16 %v1223, %v1222
  %v1267 = vpack.c.b16 %v1225, %v1224
  %v1268 = vpack.c.b16 %v1227, %v1226
  %v1269 = vpack.c.b16 %v1229, %v1228
  %1310 = vmatprep.subr.bf16.mxu0 0
  %1311 = vmatpush1.bf16.msra.mxu0 %v1230
  %1312 = vmatprep.subr.bf16.mxu0 0
  %1313 = vmatpush1.bf16.msra.mxu0 %v1231
  %1314 = vmatprep.subr.bf16.mxu0 0
  %1315 = vmatpush1.bf16.msra.mxu0 %v1232
  %1316 = vmatprep.subr.bf16.mxu0 0
  %1317 = vmatpush1.bf16.msra.mxu0 %v1233
  %1318 = vmatprep.subr.bf16.mxu0 0
  %1319 = vmatpush1.bf16.msra.mxu0 %v1234
  %1320 = vmatprep.subr.bf16.mxu0 0
  %1321 = vmatpush1.bf16.msra.mxu0 %v1235
  %1322 = vmatprep.subr.bf16.mxu0 0
  %1323 = vmatpush1.bf16.msra.mxu0 %v1236
  %1324 = vmatprep.subr.bf16.mxu0 0
  %1325 = vmatpush1.bf16.msra.mxu0 %v1237
  %1326 = vmatprep.subr.bf16.mxu0 0
  %1327 = vmatpush1.bf16.msra.mxu0 %v1238
  %1328 = vmatprep.subr.bf16.mxu0 0
  %1329 = vmatpush1.bf16.msra.mxu0 %v1239
  %1330 = vmatprep.subr.bf16.mxu0 0
  %1331 = vmatpush1.bf16.msra.mxu0 %v1240
  %1332 = vmatprep.subr.bf16.mxu0 0
  %1333 = vmatpush1.bf16.msra.mxu0 %v1241
  %1334 = vmatprep.subr.bf16.mxu0 0
  %1335 = vmatpush1.bf16.msra.mxu0 %v1242
  %1336 = vmatprep.subr.bf16.mxu0 0
  %1337 = vmatpush1.bf16.msra.mxu0 %v1243
  %1338 = vmatprep.subr.bf16.mxu0 0
  %1339 = vmatpush1.bf16.msra.mxu0 %v1244
  %1340 = vmatprep.subr.bf16.mxu0 0
  %1341 = vmatpush1.bf16.msra.mxu0 %v1245
  %1342 = vmatprep.mubr.bf16.mxu0 %v1061
  %1343 = vmatmul.mubr.bf16.gmra.mrb[0].mxu0 %v1060
  %v1344 = vpop.f32.mrb[0].mxu0
  %v1345 = vadd.f32 %v1042, %v1344
  %v1346 = vpop.f32.mrb[0].mxu0
  %v1347 = vpop.f32.mrb[0].mxu0
  %v1348 = vadd.f32 %v1042, %v1347
  %v1349 = vpop.f32.mrb[0].mxu0
  %1350 = vdwg.mxu0
  %1351 = vmatprep.subr.bf16.mxu0 0
  %1352 = vmatpush1.bf16.msra.mxu0 %v1246
  %1353 = vmatprep.subr.bf16.mxu0 0
  %1354 = vmatpush1.bf16.msra.mxu0 %v1247
  %1355 = vmatprep.subr.bf16.mxu0 0
  %1356 = vmatpush1.bf16.msra.mxu0 %v1248
  %1357 = vmatprep.subr.bf16.mxu0 0
  %1358 = vmatpush1.bf16.msra.mxu0 %v1249
  %1359 = vmatprep.subr.bf16.mxu0 0
  %1360 = vmatpush1.bf16.msra.mxu0 %v1250
  %1361 = vmatprep.subr.bf16.mxu0 0
  %1362 = vmatpush1.bf16.msra.mxu0 %v1251
  %1363 = vmatprep.subr.bf16.mxu0 0
  %1364 = vmatpush1.bf16.msra.mxu0 %v1252
  %1365 = vmatprep.subr.bf16.mxu0 0
  %1366 = vmatpush1.bf16.msra.mxu0 %v1253
  %1367 = vmatprep.subr.bf16.mxu0 0
  %1368 = vmatpush1.bf16.msra.mxu0 %v1254
  %1369 = vmatprep.subr.bf16.mxu0 0
  %1370 = vmatpush1.bf16.msra.mxu0 %v1255
  %1371 = vmatprep.subr.bf16.mxu0 0
  %1372 = vmatpush1.bf16.msra.mxu0 %v1256
  %1373 = vmatprep.subr.bf16.mxu0 0
  %1374 = vmatpush1.bf16.msra.mxu0 %v1257
  %1375 = vmatprep.subr.bf16.mxu0 0
  %1376 = vmatpush1.bf16.msra.mxu0 %v1258
  %1377 = vmatprep.subr.bf16.mxu0 0
  %1378 = vmatpush1.bf16.msra.mxu0 %v1259
  %1379 = vmatprep.subr.bf16.mxu0 0
  %1380 = vmatpush1.bf16.msra.mxu0 %v1260
  %1381 = vmatprep.subr.bf16.mxu0 0
  %1382 = vmatpush1.bf16.msra.mxu0 %v1261
  %1383 = vmatprep.mubr.bf16.mxu0 %v1063
  %1384 = vmatmul.mubr.bf16.gmra.mrb[0].mxu0 %v1062
  %v1385 = vpop.f32.mrb[0].mxu0
  %v1386 = vadd.f32 %v1345, %v1385
  %v1387 = vpop.f32.mrb[0].mxu0
  %v1388 = vpop.f32.mrb[0].mxu0
  %v1389 = vadd.f32 %v1348, %v1388
  %v1390 = vpop.f32.mrb[0].mxu0
  %1391 = vdwg.mxu0
  %1392 = vmatprep.subr.bf16.mxu0 0
  %1393 = vmatpush1.bf16.msra.mxu0 %v1262
  %1394 = vmatprep.subr.bf16.mxu0 0
  %1395 = vmatpush1.bf16.msra.mxu0 %v1263
  %1396 = vmatprep.subr.bf16.mxu0 0
  %1397 = vmatpush1.bf16.msra.mxu0 %v1264
  %1398 = vmatprep.subr.bf16.mxu0 0
  %1399 = vmatpush1.bf16.msra.mxu0 %v1265
  %1400 = vmatprep.subr.bf16.mxu0 0
  %1401 = vmatpush1.bf16.msra.mxu0 %v1266
  %1402 = vmatprep.subr.bf16.mxu0 0
  %1403 = vmatpush1.bf16.msra.mxu0 %v1267
  %1404 = vmatprep.subr.bf16.mxu0 0
  %1405 = vmatpush1.bf16.msra.mxu0 %v1268
  %1406 = vmatprep.subr.bf16.mxu0 0
  %1407 = vmatpush1.bf16.msra.mxu0 %v1269
  %1408 = vmatprep.subr.bf16.mxu0 0
  %1409 = vmatpush1.bf16.msra.mxu0 0
  %1410 = vmatprep.subr.bf16.mxu0 0
  %1411 = vmatpush1.bf16.msra.mxu0 0
  %1412 = vmatprep.subr.bf16.mxu0 0
  %1413 = vmatpush1.bf16.msra.mxu0 0
  %1414 = vmatprep.subr.bf16.mxu0 0
  %1415 = vmatpush1.bf16.msra.mxu0 0
  %1416 = vmatprep.subr.bf16.mxu0 0
  %1417 = vmatpush1.bf16.msra.mxu0 0
  %1418 = vmatprep.subr.bf16.mxu0 0
  %1419 = vmatpush1.bf16.msra.mxu0 0
  %1420 = vmatprep.subr.bf16.mxu0 0
  %1421 = vmatpush1.bf16.msra.mxu0 0
  %1422 = vmatprep.subr.bf16.mxu0 0
  %1423 = vmatpush1.bf16.msra.mxu0 0
  %1424 = vmatprep.mubr.bf16.mxu0 0
  %1425 = vmatmul.mubr.bf16.gmra.mrb[0].mxu0 %v1064
  %v1426 = vpop.f32.mrb[0].mxu0
  %v1427 = vadd.f32 %v1386, %v1426
  %v1428 = vpop.f32.mrb[0].mxu0
  %v1429 = vpop.f32.mrb[0].mxu0
  %v1430 = vadd.f32 %v1389, %v1429
  %v1431 = vpop.f32.mrb[0].mxu0
  %1432 = vdwg.mxu0
  %v1433 = vmax.f32 %v1427, 0.0
  %v1434 = vmax.f32 %v1430, 0.0
  %v1435 = vpack.c.bf16 %v1434, %v1433
  %v1436 = vld [vmem:[#allocation2] sm:$0xff]
  %v1437 = vld [vmem:[#allocation2 + $0x8] sm:$0xff]
  %v1438 = vld [vmem:[#allocation2 + $0x10] sm:$0xff]
  %v1439 = vld [vmem:[#allocation2 + $0x18] sm:$0xff]
  %v1440 = vld [vmem:[#allocation2 + $0x20] sm:$0xff]
  %v1441 = vld [vmem:[#allocation2 + $0x28] sm:$0xff]
  %v1442 = vld [vmem:[#allocation2 + $0x30] sm:$0xff]
  %v1443 = vld [vmem:[#allocation2 + $0x38] sm:$0xff]
  %v1444 = vld [vmem:[#allocation2 + $0x40] sm:$0xff]
  %v1445 = vld [vmem:[#allocation2 + $0x48] sm:$0xff]
  %v1446 = vld [vmem:[#allocation2 + $0x50] sm:$0xff]
  %v1447 = vld [vmem:[#allocation2 + $0x58] sm:$0xff]
  %v1448 = vld [vmem:[#allocation2 + $0x60] sm:$0xff]
  %v1449 = vld [vmem:[#allocation2 + $0x68] sm:$0xff]
  %v1450 = vld [vmem:[#allocation2 + $0x70] sm:$0xff]
  %v1451 = vld [vmem:[#allocation2 + $0x78] sm:$0xff]
  %s1452 = scalar_lea.vmem %s3, 256
  %v1453 = vld [vmem:[%s1452] sm:$0xff]
  %v1454 = vld [vmem:[%s1452 + $0x8] sm:$0xff]
  %v1455 = vld [vmem:[%s1452 + $0x10] sm:$0xff]
  %v1456 = vld [vmem:[%s1452 + $0x18] sm:$0xff]
  %v1457 = vld [vmem:[%s1452 + $0x20] sm:$0xff]
  %v1458 = vld [vmem:[%s1452 + $0x28] sm:$0xff]
  %v1459 = vld [vmem:[%s1452 + $0x30] sm:$0xff]
  %v1460 = vld [vmem:[%s1452 + $0x38] sm:$0xff]
  %v1461 = vld [vmem:[%s1452 + $0x40] sm:$0xff]
  %v1462 = vld [vmem:[%s1452 + $0x48] sm:$0xff]
  %v1463 = vld [vmem:[%s1452 + $0x50] sm:$0xff]
  %v1464 = vld [vmem:[%s1452 + $0x58] sm:$0xff]
  %v1465 = vld [vmem:[%s1452 + $0x60] sm:$0xff]
  %v1466 = vld [vmem:[%s1452 + $0x68] sm:$0xff]
  %v1467 = vld [vmem:[%s1452 + $0x70] sm:$0xff]
  %v1468 = vld [vmem:[%s1452 + $0x78] sm:$0xff]
  %v1469 = vld [vmem:[%s1452 + $0x80] sm:$0xff]
  %v1470 = vld [vmem:[%s1452 + $0x88] sm:$0xff]
  %v1471 = vld [vmem:[%s1452 + $0x90] sm:$0xff]
  %v1472 = vld [vmem:[%s1452 + $0x98] sm:$0xff]
  %v1473 = vld [vmem:[%s1452 + $0xa0] sm:$0xff]
  %v1474 = vld [vmem:[%s1452 + $0xa8] sm:$0xff]
  %v1475 = vld [vmem:[%s1452 + $0xb0] sm:$0xff]
  %v1476 = vld [vmem:[%s1452 + $0xb8] sm:$0xff]
  %v1477 = vld [vmem:[%s1452 + $0xc0] sm:$0xff]
  %v1478 = vld [vmem:[%s1452 + $0xc8] sm:$0xff]
  %v1479 = vld [vmem:[%s1452 + $0xd0] sm:$0xff]
  %v1480 = vld [vmem:[%s1452 + $0xd8] sm:$0xff]
  %v1481 = vld [vmem:[%s1452 + $0xe0] sm:$0xff]
  %v1482 = vld [vmem:[%s1452 + $0xe8] sm:$0xff]
  %v1483 = vld [vmem:[%s1452 + $0xf0] sm:$0xff]
  %v1484 = vld [vmem:[%s1452 + $0xf8] sm:$0xff]
  %v1517 = vunpack.c.l.b16 %v1453
  %v1518 = vunpack.c.h.b16 %v1453
  %v1519 = vunpack.c.l.b16 %v1454
  %v1520 = vunpack.c.h.b16 %v1454
  %v1521 = vunpack.c.l.b16 %v1455
  %v1522 = vunpack.c.h.b16 %v1455
  %v1523 = vunpack.c.l.b16 %v1456
  %v1524 = vunpack.c.h.b16 %v1456
  %v1525 = vunpack.c.l.b16 %v1457
  %v1526 = vunpack.c.h.b16 %v1457
  %v1527 = vunpack.c.l.b16 %v1458
  %v1528 = vunpack.c.h.b16 %v1458
  %v1529 = vunpack.c.l.b16 %v1459
  %v1530 = vunpack.c.h.b16 %v1459
  %v1531 = vunpack.c.l.b16 %v1460
  %v1532 = vunpack.c.h.b16 %v1460
  %v1533 = vunpack.c.l.b16 %v1461
  %v1534 = vunpack.c.h.b16 %v1461
  %v1535 = vunpack.c.l.b16 %v1462
  %v1536 = vunpack.c.h.b16 %v1462
  %v1537 = vunpack.c.l.b16 %v1463
  %v1538 = vunpack.c.h.b16 %v1463
  %v1539 = vunpack.c.l.b16 %v1464
  %v1540 = vunpack.c.h.b16 %v1464
  %v1541 = vunpack.c.l.b16 %v1465
  %v1542 = vunpack.c.h.b16 %v1465
  %v1543 = vunpack.c.l.b16 %v1466
  %v1544 = vunpack.c.h.b16 %v1466
  %v1545 = vunpack.c.l.b16 %v1467
  %v1546 = vunpack.c.h.b16 %v1467
  %v1547 = vunpack.c.l.b16 %v1468
  %v1548 = vunpack.c.h.b16 %v1468
  %v1549 = vunpack.c.l.b16 %v1469
  %v1550 = vunpack.c.h.b16 %v1469
  %v1551 = vunpack.c.l.b16 %v1470
  %v1552 = vunpack.c.h.b16 %v1470
  %v1553 = vunpack.c.l.b16 %v1471
  %v1554 = vunpack.c.h.b16 %v1471
  %v1555 = vunpack.c.l.b16 %v1472
  %v1556 = vunpack.c.h.b16 %v1472
  %v1557 = vunpack.c.l.b16 %v1473
  %v1558 = vunpack.c.h.b16 %v1473
  %v1559 = vunpack.c.l.b16 %v1474
  %v1560 = vunpack.c.h.b16 %v1474
  %v1561 = vunpack.c.l.b16 %v1475
  %v1562 = vunpack.c.h.b16 %v1475
  %v1563 = vunpack.c.l.b16 %v1476
  %v1564 = vunpack.c.h.b16 %v1476
  %v1565 = vunpack.c.l.b16 %v1477
  %v1566 = vunpack.c.h.b16 %v1477
  %v1567 = vunpack.c.l.b16 %v1478
  %v1568 = vunpack.c.h.b16 %v1478
  %v1569 = vunpack.c.l.b16 %v1479
  %v1570 = vunpack.c.h.b16 %v1479
  %v1571 = vunpack.c.l.b16 %v1480
  %v1572 = vunpack.c.h.b16 %v1480
  %v1573 = vunpack.c.l.b16 %v1481
  %v1574 = vunpack.c.h.b16 %v1481
  %v1575 = vunpack.c.l.b16 %v1482
  %v1576 = vunpack.c.h.b16 %v1482
  %v1577 = vunpack.c.l.b16 %v1483
  %v1578 = vunpack.c.h.b16 %v1483
  %v1579 = vunpack.c.l.b16 %v1484
  %v1580 = vunpack.c.h.b16 %v1484
  %v1581 = vpack.c.b16 %v1525, %v1517
  %v1582 = vpack.c.b16 %v1526, %v1518
  %v1583 = vpack.c.b16 %v1527, %v1519
  %v1584 = vpack.c.b16 %v1528, %v1520
  %v1585 = vpack.c.b16 %v1529, %v1521
  %v1586 = vpack.c.b16 %v1530, %v1522
  %v1587 = vpack.c.b16 %v1531, %v1523
  %v1588 = vpack.c.b16 %v1532, %v1524
  %v1589 = vpack.c.b16 %v1541, %v1533
  %v1590 = vpack.c.b16 %v1542, %v1534
  %v1591 = vpack.c.b16 %v1543, %v1535
  %v1592 = vpack.c.b16 %v1544, %v1536
  %v1593 = vpack.c.b16 %v1545, %v1537
  %v1594 = vpack.c.b16 %v1546, %v1538
  %v1595 = vpack.c.b16 %v1547, %v1539
  %v1596 = vpack.c.b16 %v1548, %v1540
  %v1597 = vpack.c.b16 %v1557, %v1549
  %v1598 = vpack.c.b16 %v1558, %v1550
  %v1599 = vpack.c.b16 %v1559, %v1551
  %v1600 = vpack.c.b16 %v1560, %v1552
  %v1601 = vpack.c.b16 %v1561, %v1553
  %v1602 = vpack.c.b16 %v1562, %v1554
  %v1603 = vpack.c.b16 %v1563, %v1555
  %v1604 = vpack.c.b16 %v1564, %v1556
  %v1605 = vpack.c.b16 %v1573, %v1565
  %v1606 = vpack.c.b16 %v1574, %v1566
  %v1607 = vpack.c.b16 %v1575, %v1567
  %v1608 = vpack.c.b16 %v1576, %v1568
  %v1609 = vpack.c.b16 %v1577, %v1569
  %v1610 = vpack.c.b16 %v1578, %v1570
  %v1611 = vpack.c.b16 %v1579, %v1571
  %v1612 = vpack.c.b16 %v1580, %v1572
  %v1646 = vsel %vm742, %v1435, 0
  %1648 = vmatprep.subr.bf16.mxu0 %v1582
  %1649 = vmatpush1.bf16.msra.mxu0 %v1581
  %1650 = vmatprep.subr.bf16.mxu0 %v1590
  %1651 = vmatpush1.bf16.msra.mxu0 %v1589
  %1652 = vmatprep.subr.bf16.mxu0 %v1598
  %1653 = vmatpush1.bf16.msra.mxu0 %v1597
  %1654 = vmatprep.subr.bf16.mxu0 %v1606
  %1655 = vmatpush1.bf16.msra.mxu0 %v1605
  %1656 = vmatprep.subr.bf16.mxu0 0
  %1657 = vmatpush1.bf16.msra.mxu0 0
  %1658 = vmatprep.subr.bf16.mxu0 0
  %1659 = vmatpush1.bf16.msra.mxu0 0
  %1660 = vmatprep.subr.bf16.mxu0 0
  %1661 = vmatpush1.bf16.msra.mxu0 0
  %1662 = vmatprep.subr.bf16.mxu0 0
  %1663 = vmatpush1.bf16.msra.mxu0 0
  %1664 = vmatprep.subr.bf16.mxu0 0
  %1665 = vmatpush1.bf16.msra.mxu0 0
  %1666 = vmatprep.subr.bf16.mxu0 0
  %1667 = vmatpush1.bf16.msra.mxu0 0
  %1668 = vmatprep.subr.bf16.mxu0 0
  %1669 = vmatpush1.bf16.msra.mxu0 0
  %1670 = vmatprep.subr.bf16.mxu0 0
  %1671 = vmatpush1.bf16.msra.mxu0 0
  %1672 = vmatprep.subr.bf16.mxu0 0
  %1673 = vmatpush1.bf16.msra.mxu0 0
  %1674 = vmatprep.subr.bf16.mxu0 0
  %1675 = vmatpush1.bf16.msra.mxu0 0
  %1676 = vmatprep.subr.bf16.mxu0 0
  %1677 = vmatpush1.bf16.msra.mxu0 0
  %1678 = vmatprep.subr.bf16.mxu0 0
  %1679 = vmatpush1.bf16.msra.mxu0 0
  %1680 = vmatprep.mubr.bf16.mxu0 0
  %1681 = vmatmul.mubr.bf16.gmra.mrb[0].mxu0 %v1646
  %v1682 = vpop.f32.mrb[0].mxu0
  %v1683 = vadd.f32 0.0, %v1682
  %v1684 = vpop.f32.mrb[0].mxu0
  %v1685 = vadd.f32 0.0, %v1684
  %v1686 = vpop.f32.mrb[0].mxu0
  %v1687 = vadd.f32 0.0, %v1686
  %v1688 = vpop.f32.mrb[0].mxu0
  %v1689 = vadd.f32 0.0, %v1688
  %1690 = vdwg.mxu0
  %1691 = vmatprep.subr.bf16.mxu0 %v1584
  %1692 = vmatpush1.bf16.msra.mxu0 %v1583
  %1693 = vmatprep.subr.bf16.mxu0 %v1592
  %1694 = vmatpush1.bf16.msra.mxu0 %v1591
  %1695 = vmatprep.subr.bf16.mxu0 %v1600
  %1696 = vmatpush1.bf16.msra.mxu0 %v1599
  %1697 = vmatprep.subr.bf16.mxu0 %v1608
  %1698 = vmatpush1.bf16.msra.mxu0 %v1607
  %1699 = vmatprep.subr.bf16.mxu0 0
  %1700 = vmatpush1.bf16.msra.mxu0 0
  %1701 = vmatprep.subr.bf16.mxu0 0
  %1702 = vmatpush1.bf16.msra.mxu0 0
  %1703 = vmatprep.subr.bf16.mxu0 0
  %1704 = vmatpush1.bf16.msra.mxu0 0
  %1705 = vmatprep.subr.bf16.mxu0 0
  %1706 = vmatpush1.bf16.msra.mxu0 0
  %1707 = vmatprep.subr.bf16.mxu0 0
  %1708 = vmatpush1.bf16.msra.mxu0 0
  %1709 = vmatprep.subr.bf16.mxu0 0
  %1710 = vmatpush1.bf16.msra.mxu0 0
  %1711 = vmatprep.subr.bf16.mxu0 0
  %1712 = vmatpush1.bf16.msra.mxu0 0
  %1713 = vmatprep.subr.bf16.mxu0 0
  %1714 = vmatpush1.bf16.msra.mxu0 0
  %1715 = vmatprep.subr.bf16.mxu0 0
  %1716 = vmatpush1.bf16.msra.mxu0 0
  %1717 = vmatprep.subr.bf16.mxu0 0
  %1718 = vmatpush1.bf16.msra.mxu0 0
  %1719 = vmatprep.subr.bf16.mxu0 0
  %1720 = vmatpush1.bf16.msra.mxu0 0
  %1721 = vmatprep.subr.bf16.mxu0 0
  %1722 = vmatpush1.bf16.msra.mxu0 0
  %1723 = vmatprep.mubr.bf16.mxu0 0
  %1724 = vmatmul.mubr.bf16.gmra.mrb[0].mxu0 %v1646
  %v1725 = vpop.f32.mrb[0].mxu0
  %v1726 = vadd.f32 0.0, %v1725
  %v1727 = vpop.f32.mrb[0].mxu0
  %v1728 = vadd.f32 0.0, %v1727
  %v1729 = vpop.f32.mrb[0].mxu0
  %v1730 = vadd.f32 0.0, %v1729
  %v1731 = vpop.f32.mrb[0].mxu0
  %v1732 = vadd.f32 0.0, %v1731
  %1733 = vdwg.mxu0
  %1734 = vmatprep.subr.bf16.mxu0 %v1586
  %1735 = vmatpush1.bf16.msra.mxu0 %v1585
  %1736 = vmatprep.subr.bf16.mxu0 %v1594
  %1737 = vmatpush1.bf16.msra.mxu0 %v1593
  %1738 = vmatprep.subr.bf16.mxu0 %v1602
  %1739 = vmatpush1.bf16.msra.mxu0 %v1601
  %1740 = vmatprep.subr.bf16.mxu0 %v1610
  %1741 = vmatpush1.bf16.msra.mxu0 %v1609
  %1742 = vmatprep.subr.bf16.mxu0 0
  %1743 = vmatpush1.bf16.msra.mxu0 0
  %1744 = vmatprep.subr.bf16.mxu0 0
  %1745 = vmatpush1.bf16.msra.mxu0 0
  %1746 = vmatprep.subr.bf16.mxu0 0
  %1747 = vmatpush1.bf16.msra.mxu0 0
  %1748 = vmatprep.subr.bf16.mxu0 0
  %1749 = vmatpush1.bf16.msra.mxu0 0
  %1750 = vmatprep.subr.bf16.mxu0 0
  %1751 = vmatpush1.bf16.msra.mxu0 0
  %1752 = vmatprep.subr.bf16.mxu0 0
  %1753 = vmatpush1.bf16.msra.mxu0 0
  %1754 = vmatprep.subr.bf16.mxu0 0
  %1755 = vmatpush1.bf16.msra.mxu0 0
  %1756 = vmatprep.subr.bf16.mxu0 0
  %1757 = vmatpush1.bf16.msra.mxu0 0
  %1758 = vmatprep.subr.bf16.mxu0 0
  %1759 = vmatpush1.bf16.msra.mxu0 0
  %1760 = vmatprep.subr.bf16.mxu0 0
  %1761 = vmatpush1.bf16.msra.mxu0 0
  %1762 = vmatprep.subr.bf16.mxu0 0
  %1763 = vmatpush1.bf16.msra.mxu0 0
  %1764 = vmatprep.subr.bf16.mxu0 0
  %1765 = vmatpush1.bf16.msra.mxu0 0
  %1766 = vmatprep.mubr.bf16.mxu0 0
  %1767 = vmatmul.mubr.bf16.gmra.mrb[0].mxu0 %v1646
  %v1768 = vpop.f32.mrb[0].mxu0
  %v1769 = vadd.f32 0.0, %v1768
  %v1770 = vpop.f32.mrb[0].mxu0
  %v1771 = vadd.f32 0.0, %v1770
  %v1772 = vpop.f32.mrb[0].mxu0
  %v1773 = vadd.f32 0.0, %v1772
  %v1774 = vpop.f32.mrb[0].mxu0
  %v1775 = vadd.f32 0.0, %v1774
  %1776 = vdwg.mxu0
  %1777 = vmatprep.subr.bf16.mxu0 %v1588
  %1778 = vmatpush1.bf16.msra.mxu0 %v1587
  %1779 = vmatprep.subr.bf16.mxu0 %v1596
  %1780 = vmatpush1.bf16.msra.mxu0 %v1595
  %1781 = vmatprep.subr.bf16.mxu0 %v1604
  %1782 = vmatpush1.bf16.msra.mxu0 %v1603
  %1783 = vmatprep.subr.bf16.mxu0 %v1612
  %1784 = vmatpush1.bf16.msra.mxu0 %v1611
  %1785 = vmatprep.subr.bf16.mxu0 0
  %1786 = vmatpush1.bf16.msra.mxu0 0
  %1787 = vmatprep.subr.bf16.mxu0 0
  %1788 = vmatpush1.bf16.msra.mxu0 0
  %1789 = vmatprep.subr.bf16.mxu0 0
  %1790 = vmatpush1.bf16.msra.mxu0 0
  %1791 = vmatprep.subr.bf16.mxu0 0
  %1792 = vmatpush1.bf16.msra.mxu0 0
  %1793 = vmatprep.subr.bf16.mxu0 0
  %1794 = vmatpush1.bf16.msra.mxu0 0
  %1795 = vmatprep.subr.bf16.mxu0 0
  %1796 = vmatpush1.bf16.msra.mxu0 0
  %1797 = vmatprep.subr.bf16.mxu0 0
  %1798 = vmatpush1.bf16.msra.mxu0 0
  %1799 = vmatprep.subr.bf16.mxu0 0
  %1800 = vmatpush1.bf16.msra.mxu0 0
  %1801 = vmatprep.subr.bf16.mxu0 0
  %1802 = vmatpush1.bf16.msra.mxu0 0
  %1803 = vmatprep.subr.bf16.mxu0 0
  %1804 = vmatpush1.bf16.msra.mxu0 0
  %1805 = vmatprep.subr.bf16.mxu0 0
  %1806 = vmatpush1.bf16.msra.mxu0 0
  %1807 = vmatprep.subr.bf16.mxu0 0
  %1808 = vmatpush1.bf16.msra.mxu0 0
  %1809 = vmatprep.mubr.bf16.mxu0 0
  %1810 = vmatmul.mubr.bf16.gmra.mrb[0].mxu0 %v1646
  %v1811 = vpop.f32.mrb[0].mxu0
  %v1812 = vadd.f32 0.0, %v1811
  %v1813 = vpop.f32.mrb[0].mxu0
  %v1814 = vadd.f32 0.0, %v1813
  %v1815 = vpop.f32.mrb[0].mxu0
  %v1816 = vadd.f32 0.0, %v1815
  %v1817 = vpop.f32.mrb[0].mxu0
  %v1818 = vadd.f32 0.0, %v1817
  %1819 = vdwg.mxu0
  %v1820 = vadd.f32 %v1436, %v1683
  %v1821 = vadd.f32 %v1437, %v1685
  %v1822 = vadd.f32 %v1438, %v1726
  %v1823 = vadd.f32 %v1439, %v1728
  %v1824 = vadd.f32 %v1440, %v1769
  %v1825 = vadd.f32 %v1441, %v1771
  %v1826 = vadd.f32 %v1442, %v1812
  %v1827 = vadd.f32 %v1443, %v1814
  %v1828 = vadd.f32 %v1444, %v1687
  %v1829 = vadd.f32 %v1445, %v1689
  %v1830 = vadd.f32 %v1446, %v1730
  %v1831 = vadd.f32 %v1447, %v1732
  %v1832 = vadd.f32 %v1448, %v1773
  %v1833 = vadd.f32 %v1449, %v1775
  %v1834 = vadd.f32 %v1450, %v1816
  %v1835 = vadd.f32 %v1451, %v1818
  %1836 = vst [vmem:[#allocation2] sm:$0xff] %v1820
  %1837 = vst [vmem:[#allocation2 + $0x8] sm:$0xff] %v1821
  %1838 = vst [vmem:[#allocation2 + $0x10] sm:$0xff] %v1822
  %1839 = vst [vmem:[#allocation2 + $0x18] sm:$0xff] %v1823
  %1840 = vst [vmem:[#allocation2 + $0x20] sm:$0xff] %v1824
  %1841 = vst [vmem:[#allocation2 + $0x28] sm:$0xff] %v1825
  %1842 = vst [vmem:[#allocation2 + $0x30] sm:$0xff] %v1826
  %1843 = vst [vmem:[#allocation2 + $0x38] sm:$0xff] %v1827
  %1844 = vst [vmem:[#allocation2 + $0x40] sm:$0xff] %v1828
  %1845 = vst [vmem:[#allocation2 + $0x48] sm:$0xff] %v1829
  %1846 = vst [vmem:[#allocation2 + $0x50] sm:$0xff] %v1830
  %1847 = vst [vmem:[#allocation2 + $0x58] sm:$0xff] %v1831
  %1848 = vst [vmem:[#allocation2 + $0x60] sm:$0xff] %v1832
  %1849 = vst [vmem:[#allocation2 + $0x68] sm:$0xff] %v1833
  %1850 = vst [vmem:[#allocation2 + $0x70] sm:$0xff] %v1834
  %1851 = vst [vmem:[#allocation2 + $0x78] sm:$0xff] %v1835
  %s1852 = scalar_lea.vmem %s0, 80
  %v1853 = vld [vmem:[%s1852] sm:$0xff]
  %v1854 = vld [vmem:[%s1852 + $0x8] sm:$0xff]
  %v1855 = vld [vmem:[%s1852 + $0x10] sm:$0xf]
  %v1856 = vld [vmem:[%s1852 + $0x14] sm:$0xff]
  %v1857 = vld [vmem:[%s1852 + $0x1c] sm:$0xff]
  %v1858 = vld [vmem:[%s1852 + $0x24] sm:$0xf]
  %v1859 = vld [vmem:[%s1] sm:$0xf]
  %v1860 = vld [vmem:[%s1 + $0x4] sm:$0xf]
  %v1861 = vld [vmem:[%s1 + $0x8] sm:$0xf]
  %v1862 = vld [vmem:[%s1 + $0xc] sm:$0xf]
  %v1863 = vld [vmem:[%s1 + $0x10] sm:$0xf]
  %v1864 = vld [vmem:[%s1 + $0x14] sm:$0xf]
  %v1865 = vld [vmem:[%s1 + $0x18] sm:$0xf]
  %v1866 = vld [vmem:[%s1 + $0x1c] sm:$0xf]
  %v1867 = vld [vmem:[%s1 + $0x20] sm:$0xf]
  %v1868 = vld [vmem:[%s1 + $0x24] sm:$0xf]
  %v1869 = vld [vmem:[%s1 + $0x28] sm:$0xf]
  %v1870 = vld [vmem:[%s1 + $0x2c] sm:$0xf]
  %v1871 = vld [vmem:[%s1 + $0x30] sm:$0xf]
  %v1872 = vld [vmem:[%s1 + $0x34] sm:$0xf]
  %v1873 = vld [vmem:[%s1 + $0x38] sm:$0xf]
  %v1874 = vld [vmem:[%s1 + $0x3c] sm:$0xf]
  %v1875 = vld [vmem:[%s1 + $0x40] sm:$0xf]
  %v1876 = vld [vmem:[%s1 + $0x44] sm:$0xf]
  %v1877 = vld [vmem:[%s1 + $0x48] sm:$0xf]
  %v1878 = vld [vmem:[%s1 + $0x4c] sm:$0xf]
  %v1879 = vld [vmem:[%s1 + $0x50] sm:$0xf]
  %v1880 = vld [vmem:[%s1 + $0x54] sm:$0xf]
  %v1881 = vld [vmem:[%s1 + $0x58] sm:$0xf]
  %v1882 = vld [vmem:[%s1 + $0x5c] sm:$0xf]
  %v1883 = vld [vmem:[%s1 + $0x60] sm:$0xf]
  %v1884 = vld [vmem:[%s1 + $0x64] sm:$0xf]
  %v1885 = vld [vmem:[%s1 + $0x68] sm:$0xf]
  %v1886 = vld [vmem:[%s1 + $0x6c] sm:$0xf]
  %v1887 = vld [vmem:[%s1 + $0x70] sm:$0xf]
  %v1888 = vld [vmem:[%s1 + $0x74] sm:$0xf]
  %v1889 = vld [vmem:[%s1 + $0x78] sm:$0xf]
  %v1890 = vld [vmem:[%s1 + $0x7c] sm:$0xf]
  %v1891 = vld [vmem:[%s1 + $0x80] sm:$0xf]
  %v1892 = vld [vmem:[%s1 + $0x84] sm:$0xf]
  %v1893 = vld [vmem:[%s1 + $0x88] sm:$0xf]
  %v1894 = vld [vmem:[%s1 + $0x8c] sm:$0xf]
  %v1895 = vld [vmem:[%s1 + $0x90] sm:$0xf]
  %v1896 = vld [vmem:[%s1 + $0x94] sm:$0xf]
  %v1897 = vld [vmem:[%s1 + $0x98] sm:$0xf]
  %v1898 = vld [vmem:[%s1 + $0x9c] sm:$0xf]
  %v1899 = vld [vmem:[%s1 + $0xa0] sm:$0xf]
  %v1900 = vld [vmem:[%s1 + $0xa4] sm:$0xf]
  %v1901 = vld [vmem:[%s1 + $0xa8] sm:$0xf]
  %v1902 = vld [vmem:[%s1 + $0xac] sm:$0xf]
  %v1903 = vld [vmem:[%s1 + $0xb0] sm:$0xf]
  %v1904 = vld [vmem:[%s1 + $0xb4] sm:$0xf]
  %v1905 = vld [vmem:[%s1 + $0xb8] sm:$0xf]
  %v1906 = vld [vmem:[%s1 + $0xbc] sm:$0xf]
  %v1907 = vld [vmem:[%s1 + $0xc0] sm:$0xf]
  %v1908 = vld [vmem:[%s1 + $0xc4] sm:$0xf]
  %v1909 = vld [vmem:[%s1 + $0xc8] sm:$0xf]
  %v1910 = vld [vmem:[%s1 + $0xcc] sm:$0xf]
  %v1911 = vld [vmem:[%s1 + $0xd0] sm:$0xf]
  %v1912 = vld [vmem:[%s1 + $0xd4] sm:$0xf]
  %v1913 = vld [vmem:[%s1 + $0xd8] sm:$0xf]
  %v1914 = vld [vmem:[%s1 + $0xdc] sm:$0xf]
  %v1915 = vld [vmem:[%s1 + $0xe0] sm:$0xf]
  %v1916 = vld [vmem:[%s1 + $0xe4] sm:$0xf]
  %v1917 = vld [vmem:[%s1 + $0xe8] sm:$0xf]
  %v1918 = vld [vmem:[%s1 + $0xec] sm:$0xf]
  %v1919 = vld [vmem:[%s1 + $0xf0] sm:$0xf]
  %v1920 = vld [vmem:[%s1 + $0xf4] sm:$0xf]
  %v1921 = vld [vmem:[%s1 + $0xf8] sm:$0xf]
  %v1922 = vld [vmem:[%s1 + $0xfc] sm:$0xf]
  %v1923 = vld [vmem:[%s1 + $0x100] sm:$0xf]
  %v1924 = vld [vmem:[%s1 + $0x104] sm:$0xf]
  %v1925 = vld [vmem:[%s1 + $0x108] sm:$0xf]
  %v1926 = vld [vmem:[%s1 + $0x10c] sm:$0xf]
  %v1927 = vld [vmem:[%s1 + $0x110] sm:$0xf]
  %v1928 = vld [vmem:[%s1 + $0x114] sm:$0xf]
  %v1929 = vld [vmem:[%s1 + $0x118] sm:$0xf]
  %v1930 = vld [vmem:[%s1 + $0x11c] sm:$0xf]
  %v1931 = vld [vmem:[%s1 + $0x120] sm:$0xf]
  %v1932 = vld [vmem:[%s1 + $0x124] sm:$0xf]
  %v1933 = vld [vmem:[%s1 + $0x128] sm:$0xf]
  %v1934 = vld [vmem:[%s1 + $0x12c] sm:$0xf]
  %v1935 = vld [vmem:[%s1 + $0x130] sm:$0xf]
  %v1936 = vld [vmem:[%s1 + $0x134] sm:$0xf]
  %v1937 = vld [vmem:[%s1 + $0x138] sm:$0xf]
  %v1938 = vld [vmem:[%s1 + $0x13c] sm:$0xf]
  %v1939 = vld [vmem:[%s2] sm:$0x1]
  %v1941 = vlaneseq
  %v1942 = vshrl.u32 %v1941, 7
  %v1943 = vsub.s32 0, %v1942
  %v1944 = vrot.slane %v1939, %v1943
  %v1952 = vunpack.c.l.b16 %v1853
  %v1953 = vunpack.c.h.b16 %v1853
  %v1954 = vunpack.c.l.b16 %v1854
  %v1955 = vunpack.c.h.b16 %v1854
  %v1956 = vunpack.c.l.b16 %v1855
  %v1957 = vunpack.c.l.b16 %v1856
  %v1958 = vunpack.c.h.b16 %v1856
  %v1959 = vunpack.c.l.b16 %v1857
  %v1960 = vunpack.c.h.b16 %v1857
  %v1961 = vunpack.c.l.b16 %v1858
  %v1962 = vpack.c.b16 %v1957, %v1952
  %v1963 = vpack.c.b16 %v1958, %v1953
  %v1964 = vpack.c.b16 %v1959, %v1954
  %v1965 = vpack.c.b16 %v1960, %v1955
  %v1966 = vpack.c.b16 %v1961, %v1956
  %v2052 = vunpack.c.l.b16 %v1859
  %v2053 = vunpack.c.l.b16 %v1860
  %v2054 = vunpack.c.l.b16 %v1861
  %v2055 = vunpack.c.l.b16 %v1862
  %v2056 = vunpack.c.l.b16 %v1863
  %v2057 = vunpack.c.l.b16 %v1864
  %v2058 = vunpack.c.l.b16 %v1865
  %v2059 = vunpack.c.l.b16 %v1866
  %v2060 = vunpack.c.l.b16 %v1867
  %v2061 = vunpack.c.l.b16 %v1868
  %v2062 = vunpack.c.l.b16 %v1869
  %v2063 = vunpack.c.l.b16 %v1870
  %v2064 = vunpack.c.l.b16 %v1871
  %v2065 = vunpack.c.l.b16 %v1872
  %v2066 = vunpack.c.l.b16 %v1873
  %v2067 = vunpack.c.l.b16 %v1874
  %v2068 = vunpack.c.l.b16 %v1875
  %v2069 = vunpack.c.l.b16 %v1876
  %v2070 = vunpack.c.l.b16 %v1877
  %v2071 = vunpack.c.l.b16 %v1878
  %v2072 = vunpack.c.l.b16 %v1879
  %v2073 = vunpack.c.l.b16 %v1880
  %v2074 = vunpack.c.l.b16 %v1881
  %v2075 = vunpack.c.l.b16 %v1882
  %v2076 = vunpack.c.l.b16 %v1883
  %v2077 = vunpack.c.l.b16 %v1884
  %v2078 = vunpack.c.l.b16 %v1885
  %v2079 = vunpack.c.l.b16 %v1886
  %v2080 = vunpack.c.l.b16 %v1887
  %v2081 = vunpack.c.l.b16 %v1888
  %v2082 = vunpack.c.l.b16 %v1889
  %v2083 = vunpack.c.l.b16 %v1890
  %v2084 = vunpack.c.l.b16 %v1891
  %v2085 = vunpack.c.l.b16 %v1892
  %v2086 = vunpack.c.l.b16 %v1893
  %v2087 = vunpack.c.l.b16 %v1894
  %v2088 = vunpack.c.l.b16 %v1895
  %v2089 = vunpack.c.l.b16 %v1896
  %v2090 = vunpack.c.l.b16 %v1897
  %v2091 = vunpack.c.l.b16 %v1898
  %v2092 = vunpack.c.l.b16 %v1899
  %v2093 = vunpack.c.l.b16 %v1900
  %v2094 = vunpack.c.l.b16 %v1901
  %v2095 = vunpack.c.l.b16 %v1902
  %v2096 = vunpack.c.l.b16 %v1903
  %v2097 = vunpack.c.l.b16 %v1904
  %v2098 = vunpack.c.l.b16 %v1905
  %v2099 = vunpack.c.l.b16 %v1906
  %v2100 = vunpack.c.l.b16 %v1907
  %v2101 = vunpack.c.l.b16 %v1908
  %v2102 = vunpack.c.l.b16 %v1909
  %v2103 = vunpack.c.l.b16 %v1910
  %v2104 = vunpack.c.l.b16 %v1911
  %v2105 = vunpack.c.l.b16 %v1912
  %v2106 = vunpack.c.l.b16 %v1913
  %v2107 = vunpack.c.l.b16 %v1914
  %v2108 = vunpack.c.l.b16 %v1915
  %v2109 = vunpack.c.l.b16 %v1916
  %v2110 = vunpack.c.l.b16 %v1917
  %v2111 = vunpack.c.l.b16 %v1918
  %v2112 = vunpack.c.l.b16 %v1919
  %v2113 = vunpack.c.l.b16 %v1920
  %v2114 = vunpack.c.l.b16 %v1921
  %v2115 = vunpack.c.l.b16 %v1922
  %v2116 = vunpack.c.l.b16 %v1923
  %v2117 = vunpack.c.l.b16 %v1924
  %v2118 = vunpack.c.l.b16 %v1925
  %v2119 = vunpack.c.l.b16 %v1926
  %v2120 = vunpack.c.l.b16 %v1927
  %v2121 = vunpack.c.l.b16 %v1928
  %v2122 = vunpack.c.l.b16 %v1929
  %v2123 = vunpack.c.l.b16 %v1930
  %v2124 = vunpack.c.l.b16 %v1931
  %v2125 = vunpack.c.l.b16 %v1932
  %v2126 = vunpack.c.l.b16 %v1933
  %v2127 = vunpack.c.l.b16 %v1934
  %v2128 = vunpack.c.l.b16 %v1935
  %v2129 = vunpack.c.l.b16 %v1936
  %v2130 = vunpack.c.l.b16 %v1937
  %v2131 = vunpack.c.l.b16 %v1938
  %v2132 = vpack.c.b16 %v2053, %v2052
  %v2133 = vpack.c.b16 %v2055, %v2054
  %v2134 = vpack.c.b16 %v2057, %v2056
  %v2135 = vpack.c.b16 %v2059, %v2058
  %v2136 = vpack.c.b16 %v2061, %v2060
  %v2137 = vpack.c.b16 %v2063, %v2062
  %v2138 = vpack.c.b16 %v2065, %v2064
  %v2139 = vpack.c.b16 %v2067, %v2066
  %v2140 = vpack.c.b16 %v2069, %v2068
  %v2141 = vpack.c.b16 %v2071, %v2070
  %v2142 = vpack.c.b16 %v2073, %v2072
  %v2143 = vpack.c.b16 %v2075, %v2074
  %v2144 = vpack.c.b16 %v2077, %v2076
  %v2145 = vpack.c.b16 %v2079, %v2078
  %v2146 = vpack.c.b16 %v2081, %v2080
  %v2147 = vpack.c.b16 %v2083, %v2082
  %v2148 = vpack.c.b16 %v2085, %v2084
  %v2149 = vpack.c.b16 %v2087, %v2086
  %v2150 = vpack.c.b16 %v2089, %v2088
  %v2151 = vpack.c.b16 %v2091, %v2090
  %v2152 = vpack.c.b16 %v2093, %v2092
  %v2153 = vpack.c.b16 %v2095, %v2094
  %v2154 = vpack.c.b16 %v2097, %v2096
  %v2155 = vpack.c.b16 %v2099, %v2098
  %v2156 = vpack.c.b16 %v2101, %v2100
  %v2157 = vpack.c.b16 %v2103, %v2102
  %v2158 = vpack.c.b16 %v2105, %v2104
  %v2159 = vpack.c.b16 %v2107, %v2106
  %v2160 = vpack.c.b16 %v2109, %v2108
  %v2161 = vpack.c.b16 %v2111, %v2110
  %v2162 = vpack.c.b16 %v2113, %v2112
  %v2163 = vpack.c.b16 %v2115, %v2114
  %v2164 = vpack.c.b16 %v2117, %v2116
  %v2165 = vpack.c.b16 %v2119, %v2118
  %v2166 = vpack.c.b16 %v2121, %v2120
  %v2167 = vpack.c.b16 %v2123, %v2122
  %v2168 = vpack.c.b16 %v2125, %v2124
  %v2169 = vpack.c.b16 %v2127, %v2126
  %v2170 = vpack.c.b16 %v2129, %v2128
  %v2171 = vpack.c.b16 %v2131, %v2130
  %2212 = vmatprep.subr.bf16.mxu0 0
  %2213 = vmatpush1.bf16.msra.mxu0 %v2132
  %2214 = vmatprep.subr.bf16.mxu0 0
  %2215 = vmatpush1.bf16.msra.mxu0 %v2133
  %2216 = vmatprep.subr.bf16.mxu0 0
  %2217 = vmatpush1.bf16.msra.mxu0 %v2134
  %2218 = vmatprep.subr.bf16.mxu0 0
  %2219 = vmatpush1.bf16.msra.mxu0 %v2135
  %2220 = vmatprep.subr.bf16.mxu0 0
  %2221 = vmatpush1.bf16.msra.mxu0 %v2136
  %2222 = vmatprep.subr.bf16.mxu0 0
  %2223 = vmatpush1.bf16.msra.mxu0 %v2137
  %2224 = vmatprep.subr.bf16.mxu0 0
  %2225 = vmatpush1.bf16.msra.mxu0 %v2138
  %2226 = vmatprep.subr.bf16.mxu0 0
  %2227 = vmatpush1.bf16.msra.mxu0 %v2139
  %2228 = vmatprep.subr.bf16.mxu0 0
  %2229 = vmatpush1.bf16.msra.mxu0 %v2140
  %2230 = vmatprep.subr.bf16.mxu0 0
  %2231 = vmatpush1.bf16.msra.mxu0 %v2141
  %2232 = vmatprep.subr.bf16.mxu0 0
  %2233 = vmatpush1.bf16.msra.mxu0 %v2142
  %2234 = vmatprep.subr.bf16.mxu0 0
  %2235 = vmatpush1.bf16.msra.mxu0 %v2143
  %2236 = vmatprep.subr.bf16.mxu0 0
  %2237 = vmatpush1.bf16.msra.mxu0 %v2144
  %2238 = vmatprep.subr.bf16.mxu0 0
  %2239 = vmatpush1.bf16.msra.mxu0 %v2145
  %2240 = vmatprep.subr.bf16.mxu0 0
  %2241 = vmatpush1.bf16.msra.mxu0 %v2146
  %2242 = vmatprep.subr.bf16.mxu0 0
  %2243 = vmatpush1.bf16.msra.mxu0 %v2147
  %2244 = vmatprep.mubr.bf16.mxu0 %v1963
  %2245 = vmatmul.mubr.bf16.gmra.mrb[0].mxu0 %v1962
  %v2246 = vpop.f32.mrb[0].mxu0
  %v2247 = vadd.f32 %v1944, %v2246
  %v2248 = vpop.f32.mrb[0].mxu0
  %v2249 = vpop.f32.mrb[0].mxu0
  %v2250 = vadd.f32 %v1944, %v2249
  %v2251 = vpop.f32.mrb[0].mxu0
  %2252 = vdwg.mxu0
  %2253 = vmatprep.subr.bf16.mxu0 0
  %2254 = vmatpush1.bf16.msra.mxu0 %v2148
  %2255 = vmatprep.subr.bf16.mxu0 0
  %2256 = vmatpush1.bf16.msra.mxu0 %v2149
  %2257 = vmatprep.subr.bf16.mxu0 0
  %2258 = vmatpush1.bf16.msra.mxu0 %v2150
  %2259 = vmatprep.subr.bf16.mxu0 0
  %2260 = vmatpush1.bf16.msra.mxu0 %v2151
  %2261 = vmatprep.subr.bf16.mxu0 0
  %2262 = vmatpush1.bf16.msra.mxu0 %v2152
  %2263 = vmatprep.subr.bf16.mxu0 0
  %2264 = vmatpush1.bf16.msra.mxu0 %v2153
  %2265 = vmatprep.subr.bf16.mxu0 0
  %2266 = vmatpush1.bf16.msra.mxu0 %v2154
  %2267 = vmatprep.subr.bf16.mxu0 0
  %2268 = vmatpush1.bf16.msra.mxu0 %v2155
  %2269 = vmatprep.subr.bf16.mxu0 0
  %2270 = vmatpush1.bf16.msra.mxu0 %v2156
  %2271 = vmatprep.subr.bf16.mxu0 0
  %2272 = vmatpush1.bf16.msra.mxu0 %v2157
  %2273 = vmatprep.subr.bf16.mxu0 0
  %2274 = vmatpush1.bf16.msra.mxu0 %v2158
  %2275 = vmatprep.subr.bf16.mxu0 0
  %2276 = vmatpush1.bf16.msra.mxu0 %v2159
  %2277 = vmatprep.subr.bf16.mxu0 0
  %2278 = vmatpush1.bf16.msra.mxu0 %v2160
  %2279 = vmatprep.subr.bf16.mxu0 0
  %2280 = vmatpush1.bf16.msra.mxu0 %v2161
  %2281 = vmatprep.subr.bf16.mxu0 0
  %2282 = vmatpush1.bf16.msra.mxu0 %v2162
  %2283 = vmatprep.subr.bf16.mxu0 0
  %2284 = vmatpush1.bf16.msra.mxu0 %v2163
  %2285 = vmatprep.mubr.bf16.mxu0 %v1965
  %2286 = vmatmul.mubr.bf16.gmra.mrb[0].mxu0 %v1964
  %v2287 = vpop.f32.mrb[0].mxu0
  %v2288 = vadd.f32 %v2247, %v2287
  %v2289 = vpop.f32.mrb[0].mxu0
  %v2290 = vpop.f32.mrb[0].mxu0
  %v2291 = vadd.f32 %v2250, %v2290
  %v2292 = vpop.f32.mrb[0].mxu0
  %2293 = vdwg.mxu0
  %2294 = vmatprep.subr.bf16.mxu0 0
  %2295 = vmatpush1.bf16.msra.mxu0 %v2164
  %2296 = vmatprep.subr.bf16.mxu0 0
  %2297 = vmatpush1.bf16.msra.mxu0 %v2165
  %2298 = vmatprep.subr.bf16.mxu0 0
  %2299 = vmatpush1.bf16.msra.mxu0 %v2166
  %2300 = vmatprep.subr.bf16.mxu0 0
  %2301 = vmatpush1.bf16.msra.mxu0 %v2167
  %2302 = vmatprep.subr.bf16.mxu0 0
  %2303 = vmatpush1.bf16.msra.mxu0 %v2168
  %2304 = vmatprep.subr.bf16.mxu0 0
  %2305 = vmatpush1.bf16.msra.mxu0 %v2169
  %2306 = vmatprep.subr.bf16.mxu0 0
  %2307 = vmatpush1.bf16.msra.mxu0 %v2170
  %2308 = vmatprep.subr.bf16.mxu0 0
  %2309 = vmatpush1.bf16.msra.mxu0 %v2171
  %2310 = vmatprep.subr.bf16.mxu0 0
  %2311 = vmatpush1.bf16.msra.mxu0 0
  %2312 = vmatprep.subr.bf16.mxu0 0
  %2313 = vmatpush1.bf16.msra.mxu0 0
  %2314 = vmatprep.subr.bf16.mxu0 0
  %2315 = vmatpush1.bf16.msra.mxu0 0
  %2316 = vmatprep.subr.bf16.mxu0 0
  %2317 = vmatpush1.bf16.msra.mxu0 0
  %2318 = vmatprep.subr.bf16.mxu0 0
  %2319 = vmatpush1.bf16.msra.mxu0 0
  %2320 = vmatprep.subr.bf16.mxu0 0
  %2321 = vmatpush1.bf16.msra.mxu0 0
  %2322 = vmatprep.subr.bf16.mxu0 0
  %2323 = vmatpush1.bf16.msra.mxu0 0
  %2324 = vmatprep.subr.bf16.mxu0 0
  %2325 = vmatpush1.bf16.msra.mxu0 0
  %2326 = vmatprep.mubr.bf16.mxu0 0
  %2327 = vmatmul.mubr.bf16.gmra.mrb[0].mxu0 %v1966
  %v2328 = vpop.f32.mrb[0].mxu0
  %v2329 = vadd.f32 %v2288, %v2328
  %v2330 = vpop.f32.mrb[0].mxu0
  %v2331 = vpop.f32.mrb[0].mxu0
  %v2332 = vadd.f32 %v2291, %v2331
  %v2333 = vpop.f32.mrb[0].mxu0
  %2334 = vdwg.mxu0
  %v2335 = vmax.f32 %v2329, 0.0
  %v2336 = vmax.f32 %v2332, 0.0
  %v2337 = vpack.c.bf16 %v2336, %v2335
  %v2338 = vld [vmem:[#allocation2] sm:$0xff]
  %v2339 = vld [vmem:[#allocation2 + $0x8] sm:$0xff]
  %v2340 = vld [vmem:[#allocation2 + $0x10] sm:$0xff]
  %v2341 = vld [vmem:[#allocation2 + $0x18] sm:$0xff]
  %v2342 = vld [vmem:[#allocation2 + $0x20] sm:$0xff]
  %v2343 = vld [vmem:[#allocation2 + $0x28] sm:$0xff]
  %v2344 = vld [vmem:[#allocation2 + $0x30] sm:$0xff]
  %v2345 = vld [vmem:[#allocation2 + $0x38] sm:$0xff]
  %v2346 = vld [vmem:[#allocation2 + $0x40] sm:$0xff]
  %v2347 = vld [vmem:[#allocation2 + $0x48] sm:$0xff]
  %v2348 = vld [vmem:[#allocation2 + $0x50] sm:$0xff]
  %v2349 = vld [vmem:[#allocation2 + $0x58] sm:$0xff]
  %v2350 = vld [vmem:[#allocation2 + $0x60] sm:$0xff]
  %v2351 = vld [vmem:[#allocation2 + $0x68] sm:$0xff]
  %v2352 = vld [vmem:[#allocation2 + $0x70] sm:$0xff]
  %v2353 = vld [vmem:[#allocation2 + $0x78] sm:$0xff]
  %s2354 = scalar_lea.vmem %s3, 512
  %v2355 = vld [vmem:[%s2354] sm:$0xff]
  %v2356 = vld [vmem:[%s2354 + $0x8] sm:$0xff]
  %v2357 = vld [vmem:[%s2354 + $0x10] sm:$0xff]
  %v2358 = vld [vmem:[%s2354 + $0x18] sm:$0xff]
  %v2359 = vld [vmem:[%s2354 + $0x20] sm:$0xff]
  %v2360 = vld [vmem:[%s2354 + $0x28] sm:$0xff]
  %v2361 = vld [vmem:[%s2354 + $0x30] sm:$0xff]
  %v2362 = vld [vmem:[%s2354 + $0x38] sm:$0xff]
  %v2363 = vld [vmem:[%s2354 + $0x40] sm:$0xff]
  %v2364 = vld [vmem:[%s2354 + $0x48] sm:$0xff]
  %v2365 = vld [vmem:[%s2354 + $0x50] sm:$0xff]
  %v2366 = vld [vmem:[%s2354 + $0x58] sm:$0xff]
  %v2367 = vld [vmem:[%s2354 + $0x60] sm:$0xff]
  %v2368 = vld [vmem:[%s2354 + $0x68] sm:$0xff]
  %v2369 = vld [vmem:[%s2354 + $0x70] sm:$0xff]
  %v2370 = vld [vmem:[%s2354 + $0x78] sm:$0xff]
  %v2371 = vld [vmem:[%s2354 + $0x80] sm:$0xff]
  %v2372 = vld [vmem:[%s2354 + $0x88] sm:$0xff]
  %v2373 = vld [vmem:[%s2354 + $0x90] sm:$0xff]
  %v2374 = vld [vmem:[%s2354 + $0x98] sm:$0xff]
  %v2375 = vld [vmem:[%s2354 + $0xa0] sm:$0xff]
  %v2376 = vld [vmem:[%s2354 + $0xa8] sm:$0xff]
  %v2377 = vld [vmem:[%s2354 + $0xb0] sm:$0xff]
  %v2378 = vld [vmem:[%s2354 + $0xb8] sm:$0xff]
  %v2379 = vld [vmem:[%s2354 + $0xc0] sm:$0xff]
  %v2380 = vld [vmem:[%s2354 + $0xc8] sm:$0xff]
  %v2381 = vld [vmem:[%s2354 + $0xd0] sm:$0xff]
  %v2382 = vld [vmem:[%s2354 + $0xd8] sm:$0xff]
  %v2383 = vld [vmem:[%s2354 + $0xe0] sm:$0xff]
  %v2384 = vld [vmem:[%s2354 + $0xe8] sm:$0xff]
  %v2385 = vld [vmem:[%s2354 + $0xf0] sm:$0xff]
  %v2386 = vld [vmem:[%s2354 + $0xf8] sm:$0xff]
  %v2419 = vunpack.c.l.b16 %v2355
  %v2420 = vunpack.c.h.b16 %v2355
  %v2421 = vunpack.c.l.b16 %v2356
  %v2422 = vunpack.c.h.b16 %v2356
  %v2423 = vunpack.c.l.b16 %v2357
  %v2424 = vunpack.c.h.b16 %v2357
  %v2425 = vunpack.c.l.b16 %v2358
  %v2426 = vunpack.c.h.b16 %v2358
  %v2427 = vunpack.c.l.b16 %v2359
  %v2428 = vunpack.c.h.b16 %v2359
  %v2429 = vunpack.c.l.b16 %v2360
  %v2430 = vunpack.c.h.b16 %v2360
  %v2431 = vunpack.c.l.b16 %v2361
  %v2432 = vunpack.c.h.b16 %v2361
  %v2433 = vunpack.c.l.b16 %v2362
  %v2434 = vunpack.c.h.b16 %v2362
  %v2435 = vunpack.c.l.b16 %v2363
  %v2436 = vunpack.c.h.b16 %v2363
  %v2437 = vunpack.c.l.b16 %v2364
  %v2438 = vunpack.c.h.b16 %v2364
  %v2439 = vunpack.c.l.b16 %v2365
  %v2440 = vunpack.c.h.b16 %v2365
  %v2441 = vunpack.c.l.b16 %v2366
  %v2442 = vunpack.c.h.b16 %v2366
  %v2443 = vunpack.c.l.b16 %v2367
  %v2444 = vunpack.c.h.b16 %v2367
  %v2445 = vunpack.c.l.b16 %v2368
  %v2446 = vunpack.c.h.b16 %v2368
  %v2447 = vunpack.c.l.b16 %v2369
  %v2448 = vunpack.c.h.b16 %v2369
  %v2449 = vunpack.c.l.b16 %v2370
  %v2450 = vunpack.c.h.b16 %v2370
  %v2451 = vunpack.c.l.b16 %v2371
  %v2452 = vunpack.c.h.b16 %v2371
  %v2453 = vunpack.c.l.b16 %v2372
  %v2454 = vunpack.c.h.b16 %v2372
  %v2455 = vunpack.c.l.b16 %v2373
  %v2456 = vunpack.c.h.b16 %v2373
  %v2457 = vunpack.c.l.b16 %v2374
  %v2458 = vunpack.c.h.b16 %v2374
  %v2459 = vunpack.c.l.b16 %v2375
  %v2460 = vunpack.c.h.b16 %v2375
  %v2461 = vunpack.c.l.b16 %v2376
  %v2462 = vunpack.c.h.b16 %v2376
  %v2463 = vunpack.c.l.b16 %v2377
  %v2464 = vunpack.c.h.b16 %v2377
  %v2465 = vunpack.c.l.b16 %v2378
  %v2466 = vunpack.c.h.b16 %v2378
  %v2467 = vunpack.c.l.b16 %v2379
  %v2468 = vunpack.c.h.b16 %v2379
  %v2469 = vunpack.c.l.b16 %v2380
  %v2470 = vunpack.c.h.b16 %v2380
  %v2471 = vunpack.c.l.b16 %v2381
  %v2472 = vunpack.c.h.b16 %v2381
  %v2473 = vunpack.c.l.b16 %v2382
  %v2474 = vunpack.c.h.b16 %v2382
  %v2475 = vunpack.c.l.b16 %v2383
  %v2476 = vunpack.c.h.b16 %v2383
  %v2477 = vunpack.c.l.b16 %v2384
  %v2478 = vunpack.c.h.b16 %v2384
  %v2479 = vunpack.c.l.b16 %v2385
  %v2480 = vunpack.c.h.b16 %v2385
  %v2481 = vunpack.c.l.b16 %v2386
  %v2482 = vunpack.c.h.b16 %v2386
  %v2483 = vpack.c.b16 %v2427, %v2419
  %v2484 = vpack.c.b16 %v2428, %v2420
  %v2485 = vpack.c.b16 %v2429, %v2421
  %v2486 = vpack.c.b16 %v2430, %v2422
  %v2487 = vpack.c.b16 %v2431, %v2423
  %v2488 = vpack.c.b16 %v2432, %v2424
  %v2489 = vpack.c.b16 %v2433, %v2425
  %v2490 = vpack.c.b16 %v2434, %v2426
  %v2491 = vpack.c.b16 %v2443, %v2435
  %v2492 = vpack.c.b16 %v2444, %v2436
  %v2493 = vpack.c.b16 %v2445, %v2437
  %v2494 = vpack.c.b16 %v2446, %v2438
  %v2495 = vpack.c.b16 %v2447, %v2439
  %v2496 = vpack.c.b16 %v2448, %v2440
  %v2497 = vpack.c.b16 %v2449, %v2441
  %v2498 = vpack.c.b16 %v2450, %v2442
  %v2499 = vpack.c.b16 %v2459, %v2451
  %v2500 = vpack.c.b16 %v2460, %v2452
  %v2501 = vpack.c.b16 %v2461, %v2453
  %v2502 = vpack.c.b16 %v2462, %v2454
  %v2503 = vpack.c.b16 %v2463, %v2455
  %v2504 = vpack.c.b16 %v2464, %v2456
  %v2505 = vpack.c.b16 %v2465, %v2457
  %v2506 = vpack.c.b16 %v2466, %v2458
  %v2507 = vpack.c.b16 %v2475, %v2467
  %v2508 = vpack.c.b16 %v2476, %v2468
  %v2509 = vpack.c.b16 %v2477, %v2469
  %v2510 = vpack.c.b16 %v2478, %v2470
  %v2511 = vpack.c.b16 %v2479, %v2471
  %v2512 = vpack.c.b16 %v2480, %v2472
  %v2513 = vpack.c.b16 %v2481, %v2473
  %v2514 = vpack.c.b16 %v2482, %v2474
  %v2548 = vsel %vm742, %v2337, 0
  %2550 = vmatprep.subr.bf16.mxu0 %v2484
  %2551 = vmatpush1.bf16.msra.mxu0 %v2483
  %2552 = vmatprep.subr.bf16.mxu0 %v2492
  %2553 = vmatpush1.bf16.msra.mxu0 %v2491
  %2554 = vmatprep.subr.bf16.mxu0 %v2500
  %2555 = vmatpush1.bf16.msra.mxu0 %v2499
  %2556 = vmatprep.subr.bf16.mxu0 %v2508
  %2557 = vmatpush1.bf16.msra.mxu0 %v2507
  %2558 = vmatprep.subr.bf16.mxu0 0
  %2559 = vmatpush1.bf16.msra.mxu0 0
  %2560 = vmatprep.subr.bf16.mxu0 0
  %2561 = vmatpush1.bf16.msra.mxu0 0
  %2562 = vmatprep.subr.bf16.mxu0 0
  %2563 = vmatpush1.bf16.msra.mxu0 0
  %2564 = vmatprep.subr.bf16.mxu0 0
  %2565 = vmatpush1.bf16.msra.mxu0 0
  %2566 = vmatprep.subr.bf16.mxu0 0
  %2567 = vmatpush1.bf16.msra.mxu0 0
  %2568 = vmatprep.subr.bf16.mxu0 0
  %2569 = vmatpush1.bf16.msra.mxu0 0
  %2570 = vmatprep.subr.bf16.mxu0 0
  %2571 = vmatpush1.bf16.msra.mxu0 0
  %2572 = vmatprep.subr.bf16.mxu0 0
  %2573 = vmatpush1.bf16.msra.mxu0 0
  %2574 = vmatprep.subr.bf16.mxu0 0
  %2575 = vmatpush1.bf16.msra.mxu0 0
  %2576 = vmatprep.subr.bf16.mxu0 0
  %2577 = vmatpush1.bf16.msra.mxu0 0
  %2578 = vmatprep.subr.bf16.mxu0 0
  %2579 = vmatpush1.bf16.msra.mxu0 0
  %2580 = vmatprep.subr.bf16.mxu0 0
  %2581 = vmatpush1.bf16.msra.mxu0 0
  %2582 = vmatprep.mubr.bf16.mxu0 0
  %2583 = vmatmul.mubr.bf16.gmra.mrb[0].mxu0 %v2548
  %v2584 = vpop.f32.mrb[0].mxu0
  %v2585 = vadd.f32 0.0, %v2584
  %v2586 = vpop.f32.mrb[0].mxu0
  %v2587 = vadd.f32 0.0, %v2586
  %v2588 = vpop.f32.mrb[0].mxu0
  %v2589 = vadd.f32 0.0, %v2588
  %v2590 = vpop.f32.mrb[0].mxu0
  %v2591 = vadd.f32 0.0, %v2590
  %2592 = vdwg.mxu0
  %2593 = vmatprep.subr.bf16.mxu0 %v2486
  %2594 = vmatpush1.bf16.msra.mxu0 %v2485
  %2595 = vmatprep.subr.bf16.mxu0 %v2494
  %2596 = vmatpush1.bf16.msra.mxu0 %v2493
  %2597 = vmatprep.subr.bf16.mxu0 %v2502
  %2598 = vmatpush1.bf16.msra.mxu0 %v2501
  %2599 = vmatprep.subr.bf16.mxu0 %v2510
  %2600 = vmatpush1.bf16.msra.mxu0 %v2509
  %2601 = vmatprep.subr.bf16.mxu0 0
  %2602 = vmatpush1.bf16.msra.mxu0 0
  %2603 = vmatprep.subr.bf16.mxu0 0
  %2604 = vmatpush1.bf16.msra.mxu0 0
  %2605 = vmatprep.subr.bf16.mxu0 0
  %2606 = vmatpush1.bf16.msra.mxu0 0
  %2607 = vmatprep.subr.bf16.mxu0 0
  %2608 = vmatpush1.bf16.msra.mxu0 0
  %2609 = vmatprep.subr.bf16.mxu0 0
  %2610 = vmatpush1.bf16.msra.mxu0 0
  %2611 = vmatprep.subr.bf16.mxu0 0
  %2612 = vmatpush1.bf16.msra.mxu0 0
  %2613 = vmatprep.subr.bf16.mxu0 0
  %2614 = vmatpush1.bf16.msra.mxu0 0
  %2615 = vmatprep.subr.bf16.mxu0 0
  %2616 = vmatpush1.bf16.msra.mxu0 0
  %2617 = vmatprep.subr.bf16.mxu0 0
  %2618 = vmatpush1.bf16.msra.mxu0 0
  %2619 = vmatprep.subr.bf16.mxu0 0
  %2620 = vmatpush1.bf16.msra.mxu0 0
  %2621 = vmatprep.subr.bf16.mxu0 0
  %2622 = vmatpush1.bf16.msra.mxu0 0
  %2623 = vmatprep.subr.bf16.mxu0 0
  %2624 = vmatpush1.bf16.msra.mxu0 0
  %2625 = vmatprep.mubr.bf16.mxu0 0
  %2626 = vmatmul.mubr.bf16.gmra.mrb[0].mxu0 %v2548
  %v2627 = vpop.f32.mrb[0].mxu0
  %v2628 = vadd.f32 0.0, %v2627
  %v2629 = vpop.f32.mrb[0].mxu0
  %v2630 = vadd.f32 0.0, %v2629
  %v2631 = vpop.f32.mrb[0].mxu0
  %v2632 = vadd.f32 0.0, %v2631
  %v2633 = vpop.f32.mrb[0].mxu0
  %v2634 = vadd.f32 0.0, %v2633
  %2635 = vdwg.mxu0
  %2636 = vmatprep.subr.bf16.mxu0 %v2488
  %2637 = vmatpush1.bf16.msra.mxu0 %v2487
  %2638 = vmatprep.subr.bf16.mxu0 %v2496
  %2639 = vmatpush1.bf16.msra.mxu0 %v2495
  %2640 = vmatprep.subr.bf16.mxu0 %v2504
  %2641 = vmatpush1.bf16.msra.mxu0 %v2503
  %2642 = vmatprep.subr.bf16.mxu0 %v2512
  %2643 = vmatpush1.bf16.msra.mxu0 %v2511
  %2644 = vmatprep.subr.bf16.mxu0 0
  %2645 = vmatpush1.bf16.msra.mxu0 0
  %2646 = vmatprep.subr.bf16.mxu0 0
  %2647 = vmatpush1.bf16.msra.mxu0 0
  %2648 = vmatprep.subr.bf16.mxu0 0
  %2649 = vmatpush1.bf16.msra.mxu0 0
  %2650 = vmatprep.subr.bf16.mxu0 0
  %2651 = vmatpush1.bf16.msra.mxu0 0
  %2652 = vmatprep.subr.bf16.mxu0 0
  %2653 = vmatpush1.bf16.msra.mxu0 0
  %2654 = vmatprep.subr.bf16.mxu0 0
  %2655 = vmatpush1.bf16.msra.mxu0 0
  %2656 = vmatprep.subr.bf16.mxu0 0
  %2657 = vmatpush1.bf16.msra.mxu0 0
  %2658 = vmatprep.subr.bf16.mxu0 0
  %2659 = vmatpush1.bf16.msra.mxu0 0
  %2660 = vmatprep.subr.bf16.mxu0 0
  %2661 = vmatpush1.bf16.msra.mxu0 0
  %2662 = vmatprep.subr.bf16.mxu0 0
  %2663 = vmatpush1.bf16.msra.mxu0 0
  %2664 = vmatprep.subr.bf16.mxu0 0
  %2665 = vmatpush1.bf16.msra.mxu0 0
  %2666 = vmatprep.subr.bf16.mxu0 0
  %2667 = vmatpush1.bf16.msra.mxu0 0
  %2668 = vmatprep.mubr.bf16.mxu0 0
  %2669 = vmatmul.mubr.bf16.gmra.mrb[0].mxu0 %v2548
  %v2670 = vpop.f32.mrb[0].mxu0
  %v2671 = vadd.f32 0.0, %v2670
  %v2672 = vpop.f32.mrb[0].mxu0
  %v2673 = vadd.f32 0.0, %v2672
  %v2674 = vpop.f32.mrb[0].mxu0
  %v2675 = vadd.f32 0.0, %v2674
  %v2676 = vpop.f32.mrb[0].mxu0
  %v2677 = vadd.f32 0.0, %v2676
  %2678 = vdwg.mxu0
  %2679 = vmatprep.subr.bf16.mxu0 %v2490
  %2680 = vmatpush1.bf16.msra.mxu0 %v2489
  %2681 = vmatprep.subr.bf16.mxu0 %v2498
  %2682 = vmatpush1.bf16.msra.mxu0 %v2497
  %2683 = vmatprep.subr.bf16.mxu0 %v2506
  %2684 = vmatpush1.bf16.msra.mxu0 %v2505
  %2685 = vmatprep.subr.bf16.mxu0 %v2514
  %2686 = vmatpush1.bf16.msra.mxu0 %v2513
  %2687 = vmatprep.subr.bf16.mxu0 0
  %2688 = vmatpush1.bf16.msra.mxu0 0
  %2689 = vmatprep.subr.bf16.mxu0 0
  %2690 = vmatpush1.bf16.msra.mxu0 0
  %2691 = vmatprep.subr.bf16.mxu0 0
  %2692 = vmatpush1.bf16.msra.mxu0 0
  %2693 = vmatprep.subr.bf16.mxu0 0
  %2694 = vmatpush1.bf16.msra.mxu0 0
  %2695 = vmatprep.subr.bf16.mxu0 0
  %2696 = vmatpush1.bf16.msra.mxu0 0
  %2697 = vmatprep.subr.bf16.mxu0 0
  %2698 = vmatpush1.bf16.msra.mxu0 0
  %2699 = vmatprep.subr.bf16.mxu0 0
  %2700 = vmatpush1.bf16.msra.mxu0 0
  %2701 = vmatprep.subr.bf16.mxu0 0
  %2702 = vmatpush1.bf16.msra.mxu0 0
  %2703 = vmatprep.subr.bf16.mxu0 0
  %2704 = vmatpush1.bf16.msra.mxu0 0
  %2705 = vmatprep.subr.bf16.mxu0 0
  %2706 = vmatpush1.bf16.msra.mxu0 0
  %2707 = vmatprep.subr.bf16.mxu0 0
  %2708 = vmatpush1.bf16.msra.mxu0 0
  %2709 = vmatprep.subr.bf16.mxu0 0
  %2710 = vmatpush1.bf16.msra.mxu0 0
  %2711 = vmatprep.mubr.bf16.mxu0 0
  %2712 = vmatmul.mubr.bf16.gmra.mrb[0].mxu0 %v2548
  %v2713 = vpop.f32.mrb[0].mxu0
  %v2714 = vadd.f32 0.0, %v2713
  %v2715 = vpop.f32.mrb[0].mxu0
  %v2716 = vadd.f32 0.0, %v2715
  %v2717 = vpop.f32.mrb[0].mxu0
  %v2718 = vadd.f32 0.0, %v2717
  %v2719 = vpop.f32.mrb[0].mxu0
  %v2720 = vadd.f32 0.0, %v2719
  %2721 = vdwg.mxu0
  %v2722 = vadd.f32 %v2338, %v2585
  %v2723 = vadd.f32 %v2339, %v2587
  %v2724 = vadd.f32 %v2340, %v2628
  %v2725 = vadd.f32 %v2341, %v2630
  %v2726 = vadd.f32 %v2342, %v2671
  %v2727 = vadd.f32 %v2343, %v2673
  %v2728 = vadd.f32 %v2344, %v2714
  %v2729 = vadd.f32 %v2345, %v2716
  %v2730 = vadd.f32 %v2346, %v2589
  %v2731 = vadd.f32 %v2347, %v2591
  %v2732 = vadd.f32 %v2348, %v2632
  %v2733 = vadd.f32 %v2349, %v2634
  %v2734 = vadd.f32 %v2350, %v2675
  %v2735 = vadd.f32 %v2351, %v2677
  %v2736 = vadd.f32 %v2352, %v2718
  %v2737 = vadd.f32 %v2353, %v2720
  %2738 = vst [vmem:[#allocation2] sm:$0xff] %v2722
  %2739 = vst [vmem:[#allocation2 + $0x8] sm:$0xff] %v2723
  %2740 = vst [vmem:[#allocation2 + $0x10] sm:$0xff] %v2724
  %2741 = vst [vmem:[#allocation2 + $0x18] sm:$0xff] %v2725
  %2742 = vst [vmem:[#allocation2 + $0x20] sm:$0xff] %v2726
  %2743 = vst [vmem:[#allocation2 + $0x28] sm:$0xff] %v2727
  %2744 = vst [vmem:[#allocation2 + $0x30] sm:$0xff] %v2728
  %2745 = vst [vmem:[#allocation2 + $0x38] sm:$0xff] %v2729
  %2746 = vst [vmem:[#allocation2 + $0x40] sm:$0xff] %v2730
  %2747 = vst [vmem:[#allocation2 + $0x48] sm:$0xff] %v2731
  %2748 = vst [vmem:[#allocation2 + $0x50] sm:$0xff] %v2732
  %2749 = vst [vmem:[#allocation2 + $0x58] sm:$0xff] %v2733
  %2750 = vst [vmem:[#allocation2 + $0x60] sm:$0xff] %v2734
  %2751 = vst [vmem:[#allocation2 + $0x68] sm:$0xff] %v2735
  %2752 = vst [vmem:[#allocation2 + $0x70] sm:$0xff] %v2736
  %2753 = vst [vmem:[#allocation2 + $0x78] sm:$0xff] %v2737
  %s2754 = scalar_lea.vmem %s0, 120
  %v2755 = vld [vmem:[%s2754] sm:$0xff]
  %v2756 = vld [vmem:[%s2754 + $0x8] sm:$0xff]
  %v2757 = vld [vmem:[%s2754 + $0x10] sm:$0xf]
  %v2758 = vld [vmem:[%s2754 + $0x14] sm:$0xff]
  %v2759 = vld [vmem:[%s2754 + $0x1c] sm:$0xff]
  %v2760 = vld [vmem:[%s2754 + $0x24] sm:$0xf]
  %v2761 = vld [vmem:[%s1] sm:$0xf]
  %v2762 = vld [vmem:[%s1 + $0x4] sm:$0xf]
  %v2763 = vld [vmem:[%s1 + $0x8] sm:$0xf]
  %v2764 = vld [vmem:[%s1 + $0xc] sm:$0xf]
  %v2765 = vld [vmem:[%s1 + $0x10] sm:$0xf]
  %v2766 = vld [vmem:[%s1 + $0x14] sm:$0xf]
  %v2767 = vld [vmem:[%s1 + $0x18] sm:$0xf]
  %v2768 = vld [vmem:[%s1 + $0x1c] sm:$0xf]
  %v2769 = vld [vmem:[%s1 + $0x20] sm:$0xf]
  %v2770 = vld [vmem:[%s1 + $0x24] sm:$0xf]
  %v2771 = vld [vmem:[%s1 + $0x28] sm:$0xf]
  %v2772 = vld [vmem:[%s1 + $0x2c] sm:$0xf]
  %v2773 = vld [vmem:[%s1 + $0x30] sm:$0xf]
  %v2774 = vld [vmem:[%s1 + $0x34] sm:$0xf]
  %v2775 = vld [vmem:[%s1 + $0x38] sm:$0xf]
  %v2776 = vld [vmem:[%s1 + $0x3c] sm:$0xf]
  %v2777 = vld [vmem:[%s1 + $0x40] sm:$0xf]
  %v2778 = vld [vmem:[%s1 + $0x44] sm:$0xf]
  %v2779 = vld [vmem:[%s1 + $0x48] sm:$0xf]
  %v2780 = vld [vmem:[%s1 + $0x4c] sm:$0xf]
  %v2781 = vld [vmem:[%s1 + $0x50] sm:$0xf]
  %v2782 = vld [vmem:[%s1 + $0x54] sm:$0xf]
  %v2783 = vld [vmem:[%s1 + $0x58] sm:$0xf]
  %v2784 = vld [vmem:[%s1 + $0x5c] sm:$0xf]
  %v2785 = vld [vmem:[%s1 + $0x60] sm:$0xf]
  %v2786 = vld [vmem:[%s1 + $0x64] sm:$0xf]
  %v2787 = vld [vmem:[%s1 + $0x68] sm:$0xf]
  %v2788 = vld [vmem:[%s1 + $0x6c] sm:$0xf]
  %v2789 = vld [vmem:[%s1 + $0x70] sm:$0xf]
  %v2790 = vld [vmem:[%s1 + $0x74] sm:$0xf]
  %v2791 = vld [vmem:[%s1 + $0x78] sm:$0xf]
  %v2792 = vld [vmem:[%s1 + $0x7c] sm:$0xf]
  %v2793 = vld [vmem:[%s1 + $0x80] sm:$0xf]
  %v2794 = vld [vmem:[%s1 + $0x84] sm:$0xf]
  %v2795 = vld [vmem:[%s1 + $0x88] sm:$0xf]
  %v2796 = vld [vmem:[%s1 + $0x8c] sm:$0xf]
  %v2797 = vld [vmem:[%s1 + $0x90] sm:$0xf]
  %v2798 = vld [vmem:[%s1 + $0x94] sm:$0xf]
  %v2799 = vld [vmem:[%s1 + $0x98] sm:$0xf]
  %v2800 = vld [vmem:[%s1 + $0x9c] sm:$0xf]
  %v2801 = vld [vmem:[%s1 + $0xa0] sm:$0xf]
  %v2802 = vld [vmem:[%s1 + $0xa4] sm:$0xf]
  %v2803 = vld [vmem:[%s1 + $0xa8] sm:$0xf]
  %v2804 = vld [vmem:[%s1 + $0xac] sm:$0xf]
  %v2805 = vld [vmem:[%s1 + $0xb0] sm:$0xf]
  %v2806 = vld [vmem:[%s1 + $0xb4] sm:$0xf]
  %v2807 = vld [vmem:[%s1 + $0xb8] sm:$0xf]
  %v2808 = vld [vmem:[%s1 + $0xbc] sm:$0xf]
  %v2809 = vld [vmem:[%s1 + $0xc0] sm:$0xf]
  %v2810 = vld [vmem:[%s1 + $0xc4] sm:$0xf]
  %v2811 = vld [vmem:[%s1 + $0xc8] sm:$0xf]
  %v2812 = vld [vmem:[%s1 + $0xcc] sm:$0xf]
  %v2813 = vld [vmem:[%s1 + $0xd0] sm:$0xf]
  %v2814 = vld [vmem:[%s1 + $0xd4] sm:$0xf]
  %v2815 = vld [vmem:[%s1 + $0xd8] sm:$0xf]
  %v2816 = vld [vmem:[%s1 + $0xdc] sm:$0xf]
  %v2817 = vld [vmem:[%s1 + $0xe0] sm:$0xf]
  %v2818 = vld [vmem:[%s1 + $0xe4] sm:$0xf]
  %v2819 = vld [vmem:[%s1 + $0xe8] sm:$0xf]
  %v2820 = vld [vmem:[%s1 + $0xec] sm:$0xf]
  %v2821 = vld [vmem:[%s1 + $0xf0] sm:$0xf]
  %v2822 = vld [vmem:[%s1 + $0xf4] sm:$0xf]
  %v2823 = vld [vmem:[%s1 + $0xf8] sm:$0xf]
  %v2824 = vld [vmem:[%s1 + $0xfc] sm:$0xf]
  %v2825 = vld [vmem:[%s1 + $0x100] sm:$0xf]
  %v2826 = vld [vmem:[%s1 + $0x104] sm:$0xf]
  %v2827 = vld [vmem:[%s1 + $0x108] sm:$0xf]
  %v2828 = vld [vmem:[%s1 + $0x10c] sm:$0xf]
  %v2829 = vld [vmem:[%s1 + $0x110] sm:$0xf]
  %v2830 = vld [vmem:[%s1 + $0x114] sm:$0xf]
  %v2831 = vld [vmem:[%s1 + $0x118] sm:$0xf]
  %v2832 = vld [vmem:[%s1 + $0x11c] sm:$0xf]
  %v2833 = vld [vmem:[%s1 + $0x120] sm:$0xf]
  %v2834 = vld [vmem:[%s1 + $0x124] sm:$0xf]
  %v2835 = vld [vmem:[%s1 + $0x128] sm:$0xf]
  %v2836 = vld [vmem:[%s1 + $0x12c] sm:$0xf]
  %v2837 = vld [vmem:[%s1 + $0x130] sm:$0xf]
  %v2838 = vld [vmem:[%s1 + $0x134] sm:$0xf]
  %v2839 = vld [vmem:[%s1 + $0x138] sm:$0xf]
  %v2840 = vld [vmem:[%s1 + $0x13c] sm:$0xf]
  %v2841 = vld [vmem:[%s2] sm:$0x1]
  %v2843 = vlaneseq
  %v2844 = vshrl.u32 %v2843, 7
  %v2845 = vsub.s32 0, %v2844
  %v2846 = vrot.slane %v2841, %v2845
  %v2854 = vunpack.c.l.b16 %v2755
  %v2855 = vunpack.c.h.b16 %v2755
  %v2856 = vunpack.c.l.b16 %v2756
  %v2857 = vunpack.c.h.b16 %v2756
  %v2858 = vunpack.c.l.b16 %v2757
  %v2859 = vunpack.c.l.b16 %v2758
  %v2860 = vunpack.c.h.b16 %v2758
  %v2861 = vunpack.c.l.b16 %v2759
  %v2862 = vunpack.c.h.b16 %v2759
  %v2863 = vunpack.c.l.b16 %v2760
  %v2864 = vpack.c.b16 %v2859, %v2854
  %v2865 = vpack.c.b16 %v2860, %v2855
  %v2866 = vpack.c.b16 %v2861, %v2856
  %v2867 = vpack.c.b16 %v2862, %v2857
  %v2868 = vpack.c.b16 %v2863, %v2858
  %v2954 = vunpack.c.l.b16 %v2761
  %v2955 = vunpack.c.l.b16 %v2762
  %v2956 = vunpack.c.l.b16 %v2763
  %v2957 = vunpack.c.l.b16 %v2764
  %v2958 = vunpack.c.l.b16 %v2765
  %v2959 = vunpack.c.l.b16 %v2766
  %v2960 = vunpack.c.l.b16 %v2767
  %v2961 = vunpack.c.l.b16 %v2768
  %v2962 = vunpack.c.l.b16 %v2769
  %v2963 = vunpack.c.l.b16 %v2770
  %v2964 = vunpack.c.l.b16 %v2771
  %v2965 = vunpack.c.l.b16 %v2772
  %v2966 = vunpack.c.l.b16 %v2773
  %v2967 = vunpack.c.l.b16 %v2774
  %v2968 = vunpack.c.l.b16 %v2775
  %v2969 = vunpack.c.l.b16 %v2776
  %v2970 = vunpack.c.l.b16 %v2777
  %v2971 = vunpack.c.l.b16 %v2778
  %v2972 = vunpack.c.l.b16 %v2779
  %v2973 = vunpack.c.l.b16 %v2780
  %v2974 = vunpack.c.l.b16 %v2781
  %v2975 = vunpack.c.l.b16 %v2782
  %v2976 = vunpack.c.l.b16 %v2783
  %v2977 = vunpack.c.l.b16 %v2784
  %v2978 = vunpack.c.l.b16 %v2785
  %v2979 = vunpack.c.l.b16 %v2786
  %v2980 = vunpack.c.l.b16 %v2787
  %v2981 = vunpack.c.l.b16 %v2788
  %v2982 = vunpack.c.l.b16 %v2789
  %v2983 = vunpack.c.l.b16 %v2790
  %v2984 = vunpack.c.l.b16 %v2791
  %v2985 = vunpack.c.l.b16 %v2792
  %v2986 = vunpack.c.l.b16 %v2793
  %v2987 = vunpack.c.l.b16 %v2794
  %v2988 = vunpack.c.l.b16 %v2795
  %v2989 = vunpack.c.l.b16 %v2796
  %v2990 = vunpack.c.l.b16 %v2797
  %v2991 = vunpack.c.l.b16 %v2798
  %v2992 = vunpack.c.l.b16 %v2799
  %v2993 = vunpack.c.l.b16 %v2800
  %v2994 = vunpack.c.l.b16 %v2801
  %v2995 = vunpack.c.l.b16 %v2802
  %v2996 = vunpack.c.l.b16 %v2803
  %v2997 = vunpack.c.l.b16 %v2804
  %v2998 = vunpack.c.l.b16 %v2805
  %v2999 = vunpack.c.l.b16 %v2806
  %v3000 = vunpack.c.l.b16 %v2807
  %v3001 = vunpack.c.l.b16 %v2808
  %v3002 = vunpack.c.l.b16 %v2809
  %v3003 = vunpack.c.l.b16 %v2810
  %v3004 = vunpack.c.l.b16 %v2811
  %v3005 = vunpack.c.l.b16 %v2812
  %v3006 = vunpack.c.l.b16 %v2813
  %v3007 = vunpack.c.l.b16 %v2814
  %v3008 = vunpack.c.l.b16 %v2815
  %v3009 = vunpack.c.l.b16 %v2816
  %v3010 = vunpack.c.l.b16 %v2817
  %v3011 = vunpack.c.l.b16 %v2818
  %v3012 = vunpack.c.l.b16 %v2819
  %v3013 = vunpack.c.l.b16 %v2820
  %v3014 = vunpack.c.l.b16 %v2821
  %v3015 = vunpack.c.l.b16 %v2822
  %v3016 = vunpack.c.l.b16 %v2823
  %v3017 = vunpack.c.l.b16 %v2824
  %v3018 = vunpack.c.l.b16 %v2825
  %v3019 = vunpack.c.l.b16 %v2826
  %v3020 = vunpack.c.l.b16 %v2827
  %v3021 = vunpack.c.l.b16 %v2828
  %v3022 = vunpack.c.l.b16 %v2829
  %v3023 = vunpack.c.l.b16 %v2830
  %v3024 = vunpack.c.l.b16 %v2831
  %v3025 = vunpack.c.l.b16 %v2832
  %v3026 = vunpack.c.l.b16 %v2833
  %v3027 = vunpack.c.l.b16 %v2834
  %v3028 = vunpack.c.l.b16 %v2835
  %v3029 = vunpack.c.l.b16 %v2836
  %v3030 = vunpack.c.l.b16 %v2837
  %v3031 = vunpack.c.l.b16 %v2838
  %v3032 = vunpack.c.l.b16 %v2839
  %v3033 = vunpack.c.l.b16 %v2840
  %v3034 = vpack.c.b16 %v2955, %v2954
  %v3035 = vpack.c.b16 %v2957, %v2956
  %v3036 = vpack.c.b16 %v2959, %v2958
  %v3037 = vpack.c.b16 %v2961, %v2960
  %v3038 = vpack.c.b16 %v2963, %v2962
  %v3039 = vpack.c.b16 %v2965, %v2964
  %v3040 = vpack.c.b16 %v2967, %v2966
  %v3041 = vpack.c.b16 %v2969, %v2968
  %v3042 = vpack.c.b16 %v2971, %v2970
  %v3043 = vpack.c.b16 %v2973, %v2972
  %v3044 = vpack.c.b16 %v2975, %v2974
  %v3045 = vpack.c.b16 %v2977, %v2976
  %v3046 = vpack.c.b16 %v2979, %v2978
  %v3047 = vpack.c.b16 %v2981, %v2980
  %v3048 = vpack.c.b16 %v2983, %v2982
  %v3049 = vpack.c.b16 %v2985, %v2984
  %v3050 = vpack.c.b16 %v2987, %v2986
  %v3051 = vpack.c.b16 %v2989, %v2988
  %v3052 = vpack.c.b16 %v2991, %v2990
  %v3053 = vpack.c.b16 %v2993, %v2992
  %v3054 = vpack.c.b16 %v2995, %v2994
  %v3055 = vpack.c.b16 %v2997, %v2996
  %v3056 = vpack.c.b16 %v2999, %v2998
  %v3057 = vpack.c.b16 %v3001, %v3000
  %v3058 = vpack.c.b16 %v3003, %v3002
  %v3059 = vpack.c.b16 %v3005, %v3004
  %v3060 = vpack.c.b16 %v3007, %v3006
  %v3061 = vpack.c.b16 %v3009, %v3008
  %v3062 = vpack.c.b16 %v3011, %v3010
  %v3063 = vpack.c.b16 %v3013, %v3012
  %v3064 = vpack.c.b16 %v3015, %v3014
  %v3065 = vpack.c.b16 %v3017, %v3016
  %v3066 = vpack.c.b16 %v3019, %v3018
  %v3067 = vpack.c.b16 %v3021, %v3020
  %v3068 = vpack.c.b16 %v3023, %v3022
  %v3069 = vpack.c.b16 %v3025, %v3024
  %v3070 = vpack.c.b16 %v3027, %v3026
  %v3071 = vpack.c.b16 %v3029, %v3028
  %v3072 = vpack.c.b16 %v3031, %v3030
  %v3073 = vpack.c.b16 %v3033, %v3032
  %3114 = vmatprep.subr.bf16.mxu0 0
  %3115 = vmatpush1.bf16.msra.mxu0 %v3034
  %3116 = vmatprep.subr.bf16.mxu0 0
  %3117 = vmatpush1.bf16.msra.mxu0 %v3035
  %3118 = vmatprep.subr.bf16.mxu0 0
  %3119 = vmatpush1.bf16.msra.mxu0 %v3036
  %3120 = vmatprep.subr.bf16.mxu0 0
  %3121 = vmatpush1.bf16.msra.mxu0 %v3037
  %3122 = vmatprep.subr.bf16.mxu0 0
  %3123 = vmatpush1.bf16.msra.mxu0 %v3038
  %3124 = vmatprep.subr.bf16.mxu0 0
  %3125 = vmatpush1.bf16.msra.mxu0 %v3039
  %3126 = vmatprep.subr.bf16.mxu0 0
  %3127 = vmatpush1.bf16.msra.mxu0 %v3040
  %3128 = vmatprep.subr.bf16.mxu0 0
  %3129 = vmatpush1.bf16.msra.mxu0 %v3041
  %3130 = vmatprep.subr.bf16.mxu0 0
  %3131 = vmatpush1.bf16.msra.mxu0 %v3042
  %3132 = vmatprep.subr.bf16.mxu0 0
  %3133 = vmatpush1.bf16.msra.mxu0 %v3043
  %3134 = vmatprep.subr.bf16.mxu0 0
  %3135 = vmatpush1.bf16.msra.mxu0 %v3044
  %3136 = vmatprep.subr.bf16.mxu0 0
  %3137 = vmatpush1.bf16.msra.mxu0 %v3045
  %3138 = vmatprep.subr.bf16.mxu0 0
  %3139 = vmatpush1.bf16.msra.mxu0 %v3046
  %3140 = vmatprep.subr.bf16.mxu0 0
  %3141 = vmatpush1.bf16.msra.mxu0 %v3047
  %3142 = vmatprep.subr.bf16.mxu0 0
  %3143 = vmatpush1.bf16.msra.mxu0 %v3048
  %3144 = vmatprep.subr.bf16.mxu0 0
  %3145 = vmatpush1.bf16.msra.mxu0 %v3049
  %3146 = vmatprep.mubr.bf16.mxu0 %v2865
  %3147 = vmatmul.mubr.bf16.gmra.mrb[0].mxu0 %v2864
  %v3148 = vpop.f32.mrb[0].mxu0
  %v3149 = vadd.f32 %v2846, %v3148
  %v3150 = vpop.f32.mrb[0].mxu0
  %v3151 = vpop.f32.mrb[0].mxu0
  %v3152 = vadd.f32 %v2846, %v3151
  %v3153 = vpop.f32.mrb[0].mxu0
  %3154 = vdwg.mxu0
  %3155 = vmatprep.subr.bf16.mxu0 0
  %3156 = vmatpush1.bf16.msra.mxu0 %v3050
  %3157 = vmatprep.subr.bf16.mxu0 0
  %3158 = vmatpush1.bf16.msra.mxu0 %v3051
  %3159 = vmatprep.subr.bf16.mxu0 0
  %3160 = vmatpush1.bf16.msra.mxu0 %v3052
  %3161 = vmatprep.subr.bf16.mxu0 0
  %3162 = vmatpush1.bf16.msra.mxu0 %v3053
  %3163 = vmatprep.subr.bf16.mxu0 0
  %3164 = vmatpush1.bf16.msra.mxu0 %v3054
  %3165 = vmatprep.subr.bf16.mxu0 0
  %3166 = vmatpush1.bf16.msra.mxu0 %v3055
  %3167 = vmatprep.subr.bf16.mxu0 0
  %3168 = vmatpush1.bf16.msra.mxu0 %v3056
  %3169 = vmatprep.subr.bf16.mxu0 0
  %3170 = vmatpush1.bf16.msra.mxu0 %v3057
  %3171 = vmatprep.subr.bf16.mxu0 0
  %3172 = vmatpush1.bf16.msra.mxu0 %v3058
  %3173 = vmatprep.subr.bf16.mxu0 0
  %3174 = vmatpush1.bf16.msra.mxu0 %v3059
  %3175 = vmatprep.subr.bf16.mxu0 0
  %3176 = vmatpush1.bf16.msra.mxu0 %v3060
  %3177 = vmatprep.subr.bf16.mxu0 0
  %3178 = vmatpush1.bf16.msra.mxu0 %v3061
  %3179 = vmatprep.subr.bf16.mxu0 0
  %3180 = vmatpush1.bf16.msra.mxu0 %v3062
  %3181 = vmatprep.subr.bf16.mxu0 0
  %3182 = vmatpush1.bf16.msra.mxu0 %v3063
  %3183 = vmatprep.subr.bf16.mxu0 0
  %3184 = vmatpush1.bf16.msra.mxu0 %v3064
  %3185 = vmatprep.subr.bf16.mxu0 0
  %3186 = vmatpush1.bf16.msra.mxu0 %v3065
  %3187 = vmatprep.mubr.bf16.mxu0 %v2867
  %3188 = vmatmul.mubr.bf16.gmra.mrb[0].mxu0 %v2866
  %v3189 = vpop.f32.mrb[0].mxu0
  %v3190 = vadd.f32 %v3149, %v3189
  %v3191 = vpop.f32.mrb[0].mxu0
  %v3192 = vpop.f32.mrb[0].mxu0
  %v3193 = vadd.f32 %v3152, %v3192
  %v3194 = vpop.f32.mrb[0].mxu0
  %3195 = vdwg.mxu0
  %3196 = vmatprep.subr.bf16.mxu0 0
  %3197 = vmatpush1.bf16.msra.mxu0 %v3066
  %3198 = vmatprep.subr.bf16.mxu0 0
  %3199 = vmatpush1.bf16.msra.mxu0 %v3067
  %3200 = vmatprep.subr.bf16.mxu0 0
  %3201 = vmatpush1.bf16.msra.mxu0 %v3068
  %3202 = vmatprep.subr.bf16.mxu0 0
  %3203 = vmatpush1.bf16.msra.mxu0 %v3069
  %3204 = vmatprep.subr.bf16.mxu0 0
  %3205 = vmatpush1.bf16.msra.mxu0 %v3070
  %3206 = vmatprep.subr.bf16.mxu0 0
  %3207 = vmatpush1.bf16.msra.mxu0 %v3071
  %3208 = vmatprep.subr.bf16.mxu0 0
  %3209 = vmatpush1.bf16.msra.mxu0 %v3072
  %3210 = vmatprep.subr.bf16.mxu0 0
  %3211 = vmatpush1.bf16.msra.mxu0 %v3073
  %3212 = vmatprep.subr.bf16.mxu0 0
  %3213 = vmatpush1.bf16.msra.mxu0 0
  %3214 = vmatprep.subr.bf16.mxu0 0
  %3215 = vmatpush1.bf16.msra.mxu0 0
  %3216 = vmatprep.subr.bf16.mxu0 0
  %3217 = vmatpush1.bf16.msra.mxu0 0
  %3218 = vmatprep.subr.bf16.mxu0 0
  %3219 = vmatpush1.bf16.msra.mxu0 0
  %3220 = vmatprep.subr.bf16.mxu0 0
  %3221 = vmatpush1.bf16.msra.mxu0 0
  %3222 = vmatprep.subr.bf16.mxu0 0
  %3223 = vmatpush1.bf16.msra.mxu0 0
  %3224 = vmatprep.subr.bf16.mxu0 0
  %3225 = vmatpush1.bf16.msra.mxu0 0
  %3226 = vmatprep.subr.bf16.mxu0 0
  %3227 = vmatpush1.bf16.msra.mxu0 0
  %3228 = vmatprep.mubr.bf16.mxu0 0
  %3229 = vmatmul.mubr.bf16.gmra.mrb[0].mxu0 %v2868
  %v3230 = vpop.f32.mrb[0].mxu0
  %v3231 = vadd.f32 %v3190, %v3230
  %v3232 = vpop.f32.mrb[0].mxu0
  %v3233 = vpop.f32.mrb[0].mxu0
  %v3234 = vadd.f32 %v3193, %v3233
  %v3235 = vpop.f32.mrb[0].mxu0
  %3236 = vdwg.mxu0
  %v3237 = vmax.f32 %v3231, 0.0
  %v3238 = vmax.f32 %v3234, 0.0
  %v3239 = vpack.c.bf16 %v3238, %v3237
  %v3240 = vld [vmem:[#allocation2] sm:$0xff]
  %v3241 = vld [vmem:[#allocation2 + $0x8] sm:$0xff]
  %v3242 = vld [vmem:[#allocation2 + $0x10] sm:$0xff]
  %v3243 = vld [vmem:[#allocation2 + $0x18] sm:$0xff]
  %v3244 = vld [vmem:[#allocation2 + $0x20] sm:$0xff]
  %v3245 = vld [vmem:[#allocation2 + $0x28] sm:$0xff]
  %v3246 = vld [vmem:[#allocation2 + $0x30] sm:$0xff]
  %v3247 = vld [vmem:[#allocation2 + $0x38] sm:$0xff]
  %v3248 = vld [vmem:[#allocation2 + $0x40] sm:$0xff]
  %v3249 = vld [vmem:[#allocation2 + $0x48] sm:$0xff]
  %v3250 = vld [vmem:[#allocation2 + $0x50] sm:$0xff]
  %v3251 = vld [vmem:[#allocation2 + $0x58] sm:$0xff]
  %v3252 = vld [vmem:[#allocation2 + $0x60] sm:$0xff]
  %v3253 = vld [vmem:[#allocation2 + $0x68] sm:$0xff]
  %v3254 = vld [vmem:[#allocation2 + $0x70] sm:$0xff]
  %v3255 = vld [vmem:[#allocation2 + $0x78] sm:$0xff]
  %s3256 = scalar_lea.vmem %s3, 768
  %v3257 = vld [vmem:[%s3256] sm:$0xff]
  %v3258 = vld [vmem:[%s3256 + $0x8] sm:$0xff]
  %v3259 = vld [vmem:[%s3256 + $0x10] sm:$0xff]
  %v3260 = vld [vmem:[%s3256 + $0x18] sm:$0xff]
  %v3261 = vld [vmem:[%s3256 + $0x20] sm:$0xff]
  %v3262 = vld [vmem:[%s3256 + $0x28] sm:$0xff]
  %v3263 = vld [vmem:[%s3256 + $0x30] sm:$0xff]
  %v3264 = vld [vmem:[%s3256 + $0x38] sm:$0xff]
  %v3265 = vld [vmem:[%s3256 + $0x40] sm:$0xff]
  %v3266 = vld [vmem:[%s3256 + $0x48] sm:$0xff]
  %v3267 = vld [vmem:[%s3256 + $0x50] sm:$0xff]
  %v3268 = vld [vmem:[%s3256 + $0x58] sm:$0xff]
  %v3269 = vld [vmem:[%s3256 + $0x60] sm:$0xff]
  %v3270 = vld [vmem:[%s3256 + $0x68] sm:$0xff]
  %v3271 = vld [vmem:[%s3256 + $0x70] sm:$0xff]
  %v3272 = vld [vmem:[%s3256 + $0x78] sm:$0xff]
  %v3273 = vld [vmem:[%s3256 + $0x80] sm:$0xff]
  %v3274 = vld [vmem:[%s3256 + $0x88] sm:$0xff]
  %v3275 = vld [vmem:[%s3256 + $0x90] sm:$0xff]
  %v3276 = vld [vmem:[%s3256 + $0x98] sm:$0xff]
  %v3277 = vld [vmem:[%s3256 + $0xa0] sm:$0xff]
  %v3278 = vld [vmem:[%s3256 + $0xa8] sm:$0xff]
  %v3279 = vld [vmem:[%s3256 + $0xb0] sm:$0xff]
  %v3280 = vld [vmem:[%s3256 + $0xb8] sm:$0xff]
  %v3281 = vld [vmem:[%s3256 + $0xc0] sm:$0xff]
  %v3282 = vld [vmem:[%s3256 + $0xc8] sm:$0xff]
  %v3283 = vld [vmem:[%s3256 + $0xd0] sm:$0xff]
  %v3284 = vld [vmem:[%s3256 + $0xd8] sm:$0xff]
  %v3285 = vld [vmem:[%s3256 + $0xe0] sm:$0xff]
  %v3286 = vld [vmem:[%s3256 + $0xe8] sm:$0xff]
  %v3287 = vld [vmem:[%s3256 + $0xf0] sm:$0xff]
  %v3288 = vld [vmem:[%s3256 + $0xf8] sm:$0xff]
  %v3321 = vunpack.c.l.b16 %v3257
  %v3322 = vunpack.c.h.b16 %v3257
  %v3323 = vunpack.c.l.b16 %v3258
  %v3324 = vunpack.c.h.b16 %v3258
  %v3325 = vunpack.c.l.b16 %v3259
  %v3326 = vunpack.c.h.b16 %v3259
  %v3327 = vunpack.c.l.b16 %v3260
  %v3328 = vunpack.c.h.b16 %v3260
  %v3329 = vunpack.c.l.b16 %v3261
  %v3330 = vunpack.c.h.b16 %v3261
  %v3331 = vunpack.c.l.b16 %v3262
  %v3332 = vunpack.c.h.b16 %v3262
  %v3333 = vunpack.c.l.b16 %v3263
  %v3334 = vunpack.c.h.b16 %v3263
  %v3335 = vunpack.c.l.b16 %v3264
  %v3336 = vunpack.c.h.b16 %v3264
  %v3337 = vunpack.c.l.b16 %v3265
  %v3338 = vunpack.c.h.b16 %v3265
  %v3339 = vunpack.c.l.b16 %v3266
  %v3340 = vunpack.c.h.b16 %v3266
  %v3341 = vunpack.c.l.b16 %v3267
  %v3342 = vunpack.c.h.b16 %v3267
  %v3343 = vunpack.c.l.b16 %v3268
  %v3344 = vunpack.c.h.b16 %v3268
  %v3345 = vunpack.c.l.b16 %v3269
  %v3346 = vunpack.c.h.b16 %v3269
  %v3347 = vunpack.c.l.b16 %v3270
  %v3348 = vunpack.c.h.b16 %v3270
  %v3349 = vunpack.c.l.b16 %v3271
  %v3350 = vunpack.c.h.b16 %v3271
  %v3351 = vunpack.c.l.b16 %v3272
  %v3352 = vunpack.c.h.b16 %v3272
  %v3353 = vunpack.c.l.b16 %v3273
  %v3354 = vunpack.c.h.b16 %v3273
  %v3355 = vunpack.c.l.b16 %v3274
  %v3356 = vunpack.c.h.b16 %v3274
  %v3357 = vunpack.c.l.b16 %v3275
  %v3358 = vunpack.c.h.b16 %v3275
  %v3359 = vunpack.c.l.b16 %v3276
  %v3360 = vunpack.c.h.b16 %v3276
  %v3361 = vunpack.c.l.b16 %v3277
  %v3362 = vunpack.c.h.b16 %v3277
  %v3363 = vunpack.c.l.b16 %v3278
  %v3364 = vunpack.c.h.b16 %v3278
  %v3365 = vunpack.c.l.b16 %v3279
  %v3366 = vunpack.c.h.b16 %v3279
  %v3367 = vunpack.c.l.b16 %v3280
  %v3368 = vunpack.c.h.b16 %v3280
  %v3369 = vunpack.c.l.b16 %v3281
  %v3370 = vunpack.c.h.b16 %v3281
  %v3371 = vunpack.c.l.b16 %v3282
  %v3372 = vunpack.c.h.b16 %v3282
  %v3373 = vunpack.c.l.b16 %v3283
  %v3374 = vunpack.c.h.b16 %v3283
  %v3375 = vunpack.c.l.b16 %v3284
  %v3376 = vunpack.c.h.b16 %v3284
  %v3377 = vunpack.c.l.b16 %v3285
  %v3378 = vunpack.c.h.b16 %v3285
  %v3379 = vunpack.c.l.b16 %v3286
  %v3380 = vunpack.c.h.b16 %v3286
  %v3381 = vunpack.c.l.b16 %v3287
  %v3382 = vunpack.c.h.b16 %v3287
  %v3383 = vunpack.c.l.b16 %v3288
  %v3384 = vunpack.c.h.b16 %v3288
  %v3385 = vpack.c.b16 %v3329, %v3321
  %v3386 = vpack.c.b16 %v3330, %v3322
  %v3387 = vpack.c.b16 %v3331, %v3323
  %v3388 = vpack.c.b16 %v3332, %v3324
  %v3389 = vpack.c.b16 %v3333, %v3325
  %v3390 = vpack.c.b16 %v3334, %v3326
  %v3391 = vpack.c.b16 %v3335, %v3327
  %v3392 = vpack.c.b16 %v3336, %v3328
  %v3393 = vpack.c.b16 %v3345, %v3337
  %v3394 = vpack.c.b16 %v3346, %v3338
  %v3395 = vpack.c.b16 %v3347, %v3339
  %v3396 = vpack.c.b16 %v3348, %v3340
  %v3397 = vpack.c.b16 %v3349, %v3341
  %v3398 = vpack.c.b16 %v3350, %v3342
  %v3399 = vpack.c.b16 %v3351, %v3343
  %v3400 = vpack.c.b16 %v3352, %v3344
  %v3401 = vpack.c.b16 %v3361, %v3353
  %v3402 = vpack.c.b16 %v3362, %v3354
  %v3403 = vpack.c.b16 %v3363, %v3355
  %v3404 = vpack.c.b16 %v3364, %v3356
  %v3405 = vpack.c.b16 %v3365, %v3357
  %v3406 = vpack.c.b16 %v3366, %v3358
  %v3407 = vpack.c.b16 %v3367, %v3359
  %v3408 = vpack.c.b16 %v3368, %v3360
  %v3409 = vpack.c.b16 %v3377, %v3369
  %v3410 = vpack.c.b16 %v3378, %v3370
  %v3411 = vpack.c.b16 %v3379, %v3371
  %v3412 = vpack.c.b16 %v3380, %v3372
  %v3413 = vpack.c.b16 %v3381, %v3373
  %v3414 = vpack.c.b16 %v3382, %v3374
  %v3415 = vpack.c.b16 %v3383, %v3375
  %v3416 = vpack.c.b16 %v3384, %v3376
  %v3450 = vsel %vm742, %v3239, 0
  %3452 = vmatprep.subr.bf16.mxu0 %v3386
  %3453 = vmatpush1.bf16.msra.mxu0 %v3385
  %3454 = vmatprep.subr.bf16.mxu0 %v3394
  %3455 = vmatpush1.bf16.msra.mxu0 %v3393
  %3456 = vmatprep.subr.bf16.mxu0 %v3402
  %3457 = vmatpush1.bf16.msra.mxu0 %v3401
  %3458 = vmatprep.subr.bf16.mxu0 %v3410
  %3459 = vmatpush1.bf16.msra.mxu0 %v3409
  %3460 = vmatprep.subr.bf16.mxu0 0
  %3461 = vmatpush1.bf16.msra.mxu0 0
  %3462 = vmatprep.subr.bf16.mxu0 0
  %3463 = vmatpush1.bf16.msra.mxu0 0
  %3464 = vmatprep.subr.bf16.mxu0 0
  %3465 = vmatpush1.bf16.msra.mxu0 0
  %3466 = vmatprep.subr.bf16.mxu0 0
  %3467 = vmatpush1.bf16.msra.mxu0 0
  %3468 = vmatprep.subr.bf16.mxu0 0
  %3469 = vmatpush1.bf16.msra.mxu0 0
  %3470 = vmatprep.subr.bf16.mxu0 0
  %3471 = vmatpush1.bf16.msra.mxu0 0
  %3472 = vmatprep.subr.bf16.mxu0 0
  %3473 = vmatpush1.bf16.msra.mxu0 0
  %3474 = vmatprep.subr.bf16.mxu0 0
  %3475 = vmatpush1.bf16.msra.mxu0 0
  %3476 = vmatprep.subr.bf16.mxu0 0
  %3477 = vmatpush1.bf16.msra.mxu0 0
  %3478 = vmatprep.subr.bf16.mxu0 0
  %3479 = vmatpush1.bf16.msra.mxu0 0
  %3480 = vmatprep.subr.bf16.mxu0 0
  %3481 = vmatpush1.bf16.msra.mxu0 0
  %3482 = vmatprep.subr.bf16.mxu0 0
  %3483 = vmatpush1.bf16.msra.mxu0 0
  %3484 = vmatprep.mubr.bf16.mxu0 0
  %3485 = vmatmul.mubr.bf16.gmra.mrb[0].mxu0 %v3450
  %v3486 = vpop.f32.mrb[0].mxu0
  %v3487 = vadd.f32 0.0, %v3486
  %v3488 = vpop.f32.mrb[0].mxu0
  %v3489 = vadd.f32 0.0, %v3488
  %v3490 = vpop.f32.mrb[0].mxu0
  %v3491 = vadd.f32 0.0, %v3490
  %v3492 = vpop.f32.mrb[0].mxu0
  %v3493 = vadd.f32 0.0, %v3492
  %3494 = vdwg.mxu0
  %3495 = vmatprep.subr.bf16.mxu0 %v3388
  %3496 = vmatpush1.bf16.msra.mxu0 %v3387
  %3497 = vmatprep.subr.bf16.mxu0 %v3396
  %3498 = vmatpush1.bf16.msra.mxu0 %v3395
  %3499 = vmatprep.subr.bf16.mxu0 %v3404
  %3500 = vmatpush1.bf16.msra.mxu0 %v3403
  %3501 = vmatprep.subr.bf16.mxu0 %v3412
  %3502 = vmatpush1.bf16.msra.mxu0 %v3411
  %3503 = vmatprep.subr.bf16.mxu0 0
  %3504 = vmatpush1.bf16.msra.mxu0 0
  %3505 = vmatprep.subr.bf16.mxu0 0
  %3506 = vmatpush1.bf16.msra.mxu0 0
  %3507 = vmatprep.subr.bf16.mxu0 0
  %3508 = vmatpush1.bf16.msra.mxu0 0
  %3509 = vmatprep.subr.bf16.mxu0 0
  %3510 = vmatpush1.bf16.msra.mxu0 0
  %3511 = vmatprep.subr.bf16.mxu0 0
  %3512 = vmatpush1.bf16.msra.mxu0 0
  %3513 = vmatprep.subr.bf16.mxu0 0
  %3514 = vmatpush1.bf16.msra.mxu0 0
  %3515 = vmatprep.subr.bf16.mxu0 0
  %3516 = vmatpush1.bf16.msra.mxu0 0
  %3517 = vmatprep.subr.bf16.mxu0 0
  %3518 = vmatpush1.bf16.msra.mxu0 0
  %3519 = vmatprep.subr.bf16.mxu0 0
  %3520 = vmatpush1.bf16.msra.mxu0 0
  %3521 = vmatprep.subr.bf16.mxu0 0
  %3522 = vmatpush1.bf16.msra.mxu0 0
  %3523 = vmatprep.subr.bf16.mxu0 0
  %3524 = vmatpush1.bf16.msra.mxu0 0
  %3525 = vmatprep.subr.bf16.mxu0 0
  %3526 = vmatpush1.bf16.msra.mxu0 0
  %3527 = vmatprep.mubr.bf16.mxu0 0
  %3528 = vmatmul.mubr.bf16.gmra.mrb[0].mxu0 %v3450
  %v3529 = vpop.f32.mrb[0].mxu0
  %v3530 = vadd.f32 0.0, %v3529
  %v3531 = vpop.f32.mrb[0].mxu0
  %v3532 = vadd.f32 0.0, %v3531
  %v3533 = vpop.f32.mrb[0].mxu0
  %v3534 = vadd.f32 0.0, %v3533
  %v3535 = vpop.f32.mrb[0].mxu0
  %v3536 = vadd.f32 0.0, %v3535
  %3537 = vdwg.mxu0
  %3538 = vmatprep.subr.bf16.mxu0 %v3390
  %3539 = vmatpush1.bf16.msra.mxu0 %v3389
  %3540 = vmatprep.subr.bf16.mxu0 %v3398
  %3541 = vmatpush1.bf16.msra.mxu0 %v3397
  %3542 = vmatprep.subr.bf16.mxu0 %v3406
  %3543 = vmatpush1.bf16.msra.mxu0 %v3405
  %3544 = vmatprep.subr.bf16.mxu0 %v3414
  %3545 = vmatpush1.bf16.msra.mxu0 %v3413
  %3546 = vmatprep.subr.bf16.mxu0 0
  %3547 = vmatpush1.bf16.msra.mxu0 0
  %3548 = vmatprep.subr.bf16.mxu0 0
  %3549 = vmatpush1.bf16.msra.mxu0 0
  %3550 = vmatprep.subr.bf16.mxu0 0
  %3551 = vmatpush1.bf16.msra.mxu0 0
  %3552 = vmatprep.subr.bf16.mxu0 0
  %3553 = vmatpush1.bf16.msra.mxu0 0
  %3554 = vmatprep.subr.bf16.mxu0 0
  %3555 = vmatpush1.bf16.msra.mxu0 0
  %3556 = vmatprep.subr.bf16.mxu0 0
  %3557 = vmatpush1.bf16.msra.mxu0 0
  %3558 = vmatprep.subr.bf16.mxu0 0
  %3559 = vmatpush1.bf16.msra.mxu0 0
  %3560 = vmatprep.subr.bf16.mxu0 0
  %3561 = vmatpush1.bf16.msra.mxu0 0
  %3562 = vmatprep.subr.bf16.mxu0 0
  %3563 = vmatpush1.bf16.msra.mxu0 0
  %3564 = vmatprep.subr.bf16.mxu0 0
  %3565 = vmatpush1.bf16.msra.mxu0 0
  %3566 = vmatprep.subr.bf16.mxu0 0
  %3567 = vmatpush1.bf16.msra.mxu0 0
  %3568 = vmatprep.subr.bf16.mxu0 0
  %3569 = vmatpush1.bf16.msra.mxu0 0
  %3570 = vmatprep.mubr.bf16.mxu0 0
  %3571 = vmatmul.mubr.bf16.gmra.mrb[0].mxu0 %v3450
  %v3572 = vpop.f32.mrb[0].mxu0
  %v3573 = vadd.f32 0.0, %v3572
  %v3574 = vpop.f32.mrb[0].mxu0
  %v3575 = vadd.f32 0.0, %v3574
  %v3576 = vpop.f32.mrb[0].mxu0
  %v3577 = vadd.f32 0.0, %v3576
  %v3578 = vpop.f32.mrb[0].mxu0
  %v3579 = vadd.f32 0.0, %v3578
  %3580 = vdwg.mxu0
  %3581 = vmatprep.subr.bf16.mxu0 %v3392
  %3582 = vmatpush1.bf16.msra.mxu0 %v3391
  %3583 = vmatprep.subr.bf16.mxu0 %v3400
  %3584 = vmatpush1.bf16.msra.mxu0 %v3399
  %3585 = vmatprep.subr.bf16.mxu0 %v3408
  %3586 = vmatpush1.bf16.msra.mxu0 %v3407
  %3587 = vmatprep.subr.bf16.mxu0 %v3416
  %3588 = vmatpush1.bf16.msra.mxu0 %v3415
  %3589 = vmatprep.subr.bf16.mxu0 0
  %3590 = vmatpush1.bf16.msra.mxu0 0
  %3591 = vmatprep.subr.bf16.mxu0 0
  %3592 = vmatpush1.bf16.msra.mxu0 0
  %3593 = vmatprep.subr.bf16.mxu0 0
  %3594 = vmatpush1.bf16.msra.mxu0 0
  %3595 = vmatprep.subr.bf16.mxu0 0
  %3596 = vmatpush1.bf16.msra.mxu0 0
  %3597 = vmatprep.subr.bf16.mxu0 0
  %3598 = vmatpush1.bf16.msra.mxu0 0
  %3599 = vmatprep.subr.bf16.mxu0 0
  %3600 = vmatpush1.bf16.msra.mxu0 0
  %3601 = vmatprep.subr.bf16.mxu0 0
  %3602 = vmatpush1.bf16.msra.mxu0 0
  %3603 = vmatprep.subr.bf16.mxu0 0
  %3604 = vmatpush1.bf16.msra.mxu0 0
  %3605 = vmatprep.subr.bf16.mxu0 0
  %3606 = vmatpush1.bf16.msra.mxu0 0
  %3607 = vmatprep.subr.bf16.mxu0 0
  %3608 = vmatpush1.bf16.msra.mxu0 0
  %3609 = vmatprep.subr.bf16.mxu0 0
  %3610 = vmatpush1.bf16.msra.mxu0 0
  %3611 = vmatprep.subr.bf16.mxu0 0
  %3612 = vmatpush1.bf16.msra.mxu0 0
  %3613 = vmatprep.mubr.bf16.mxu0 0
  %3614 = vmatmul.mubr.bf16.gmra.mrb[0].mxu0 %v3450
  %v3615 = vpop.f32.mrb[0].mxu0
  %v3616 = vadd.f32 0.0, %v3615
  %v3617 = vpop.f32.mrb[0].mxu0
  %v3618 = vadd.f32 0.0, %v3617
  %v3619 = vpop.f32.mrb[0].mxu0
  %v3620 = vadd.f32 0.0, %v3619
  %v3621 = vpop.f32.mrb[0].mxu0
  %v3622 = vadd.f32 0.0, %v3621
  %3623 = vdwg.mxu0
  %v3624 = vadd.f32 %v3240, %v3487
  %v3625 = vadd.f32 %v3241, %v3489
  %v3626 = vadd.f32 %v3242, %v3530
  %v3627 = vadd.f32 %v3243, %v3532
  %v3628 = vadd.f32 %v3244, %v3573
  %v3629 = vadd.f32 %v3245, %v3575
  %v3630 = vadd.f32 %v3246, %v3616
  %v3631 = vadd.f32 %v3247, %v3618
  %v3632 = vadd.f32 %v3248, %v3491
  %v3633 = vadd.f32 %v3249, %v3493
  %v3634 = vadd.f32 %v3250, %v3534
  %v3635 = vadd.f32 %v3251, %v3536
  %v3636 = vadd.f32 %v3252, %v3577
  %v3637 = vadd.f32 %v3253, %v3579
  %v3638 = vadd.f32 %v3254, %v3620
  %v3639 = vadd.f32 %v3255, %v3622
  %3640 = vst [vmem:[#allocation2] sm:$0xff] %v3624
  %3641 = vst [vmem:[#allocation2 + $0x8] sm:$0xff] %v3625
  %3642 = vst [vmem:[#allocation2 + $0x10] sm:$0xff] %v3626
  %3643 = vst [vmem:[#allocation2 + $0x18] sm:$0xff] %v3627
  %3644 = vst [vmem:[#allocation2 + $0x20] sm:$0xff] %v3628
  %3645 = vst [vmem:[#allocation2 + $0x28] sm:$0xff] %v3629
  %3646 = vst [vmem:[#allocation2 + $0x30] sm:$0xff] %v3630
  %3647 = vst [vmem:[#allocation2 + $0x38] sm:$0xff] %v3631
  %3648 = vst [vmem:[#allocation2 + $0x40] sm:$0xff] %v3632
  %3649 = vst [vmem:[#allocation2 + $0x48] sm:$0xff] %v3633
  %3650 = vst [vmem:[#allocation2 + $0x50] sm:$0xff] %v3634
  %3651 = vst [vmem:[#allocation2 + $0x58] sm:$0xff] %v3635
  %3652 = vst [vmem:[#allocation2 + $0x60] sm:$0xff] %v3636
  %3653 = vst [vmem:[#allocation2 + $0x68] sm:$0xff] %v3637
  %3654 = vst [vmem:[#allocation2 + $0x70] sm:$0xff] %v3638
  %3655 = vst [vmem:[#allocation2 + $0x78] sm:$0xff] %v3639
  %v3656 = vld [vmem:[#allocation2] sm:$0xff]
  %v3657 = vld [vmem:[#allocation2 + $0x8] sm:$0xff]
  %v3658 = vld [vmem:[#allocation2 + $0x10] sm:$0xff]
  %v3659 = vld [vmem:[#allocation2 + $0x18] sm:$0xff]
  %v3660 = vld [vmem:[#allocation2 + $0x20] sm:$0xff]
  %v3661 = vld [vmem:[#allocation2 + $0x28] sm:$0xff]
  %v3662 = vld [vmem:[#allocation2 + $0x30] sm:$0xff]
  %v3663 = vld [vmem:[#allocation2 + $0x38] sm:$0xff]
  %v3664 = vld [vmem:[#allocation2 + $0x40] sm:$0xff]
  %v3665 = vld [vmem:[#allocation2 + $0x48] sm:$0xff]
  %v3666 = vld [vmem:[#allocation2 + $0x50] sm:$0xff]
  %v3667 = vld [vmem:[#allocation2 + $0x58] sm:$0xff]
  %v3668 = vld [vmem:[#allocation2 + $0x60] sm:$0xff]
  %v3669 = vld [vmem:[#allocation2 + $0x68] sm:$0xff]
  %v3670 = vld [vmem:[#allocation2 + $0x70] sm:$0xff]
  %v3671 = vld [vmem:[#allocation2 + $0x78] sm:$0xff]
  %v3672 = vld [vmem:[%s4] sm:$0xff]
  %v3674 = vlaneseq
  %v3675 = vshrl.u32 %v3674, 7
  %v3676 = vsub.s32 0, %v3675
  %v3677 = vrot.slane %v3672, %v3676
  %v3678 = vlaneseq
  %v3679 = vshrl.u32 %v3678, 7
  %v3680 = vsub.s32 1, %v3679
  %v3681 = vrot.slane %v3672, %v3680
  %v3682 = vlaneseq
  %v3683 = vshrl.u32 %v3682, 7
  %v3684 = vsub.s32 2, %v3683
  %v3685 = vrot.slane %v3672, %v3684
  %v3686 = vlaneseq
  %v3687 = vshrl.u32 %v3686, 7
  %v3688 = vsub.s32 3, %v3687
  %v3689 = vrot.slane %v3672, %v3688
  %v3690 = vlaneseq
  %v3691 = vshrl.u32 %v3690, 7
  %v3692 = vsub.s32 4, %v3691
  %v3693 = vrot.slane %v3672, %v3692
  %v3694 = vlaneseq
  %v3695 = vshrl.u32 %v3694, 7
  %v3696 = vsub.s32 5, %v3695
  %v3697 = vrot.slane %v3672, %v3696
  %v3698 = vlaneseq
  %v3699 = vshrl.u32 %v3698, 7
  %v3700 = vsub.s32 6, %v3699
  %v3701 = vrot.slane %v3672, %v3700
  %v3702 = vlaneseq
  %v3703 = vshrl.u32 %v3702, 7
  %v3704 = vsub.s32 7, %v3703
  %v3705 = vrot.slane %v3672, %v3704
  %v3714 = vadd.f32 %v3656, %v3677
  %v3715 = vadd.f32 %v3657, %v3681
  %v3716 = vadd.f32 %v3658, %v3685
  %v3717 = vadd.f32 %v3659, %v3689
  %v3718 = vadd.f32 %v3660, %v3693
  %v3719 = vadd.f32 %v3661, %v3697
  %v3720 = vadd.f32 %v3662, %v3701
  %v3721 = vadd.f32 %v3663, %v3705
  %v3722 = vadd.f32 %v3664, %v3677
  %v3723 = vadd.f32 %v3665, %v3681
  %v3724 = vadd.f32 %v3666, %v3685
  %v3725 = vadd.f32 %v3667, %v3689
  %v3726 = vadd.f32 %v3668, %v3693
  %v3727 = vadd.f32 %v3669, %v3697
  %v3728 = vadd.f32 %v3670, %v3701
  %v3729 = vadd.f32 %v3671, %v3705
  %v3730 = vmax.f32 %v3714, 0.0
  %v3731 = vmax.f32 %v3715, 0.0
  %v3732 = vmax.f32 %v3716, 0.0
  %v3733 = vmax.f32 %v3717, 0.0
  %v3734 = vmax.f32 %v3718, 0.0
  %v3735 = vmax.f32 %v3719, 0.0
  %v3736 = vmax.f32 %v3720, 0.0
  %v3737 = vmax.f32 %v3721, 0.0
  %v3738 = vmax.f32 %v3722, 0.0
  %v3739 = vmax.f32 %v3723, 0.0
  %v3740 = vmax.f32 %v3724, 0.0
  %v3741 = vmax.f32 %v3725, 0.0
  %v3742 = vmax.f32 %v3726, 0.0
  %v3743 = vmax.f32 %v3727, 0.0
  %v3744 = vmax.f32 %v3728, 0.0
  %v3745 = vmax.f32 %v3729, 0.0
  %v3746 = vpack.c.bf16 %v3738, %v3730
  %v3747 = vpack.c.bf16 %v3739, %v3731
  %v3748 = vpack.c.bf16 %v3740, %v3732
  %v3749 = vpack.c.bf16 %v3741, %v3733
  %v3750 = vpack.c.bf16 %v3742, %v3734
  %v3751 = vpack.c.bf16 %v3743, %v3735
  %v3752 = vpack.c.bf16 %v3744, %v3736
  %v3753 = vpack.c.bf16 %v3745, %v3737
  %3754 = vst [vmem:[#allocation3] sm:$0xff] %v3746
  %3755 = vst [vmem:[#allocation3 + $0x8] sm:$0xff] %v3747
  %3756 = vst [vmem:[#allocation3 + $0x10] sm:$0xff] %v3748
  %3757 = vst [vmem:[#allocation3 + $0x18] sm:$0xff] %v3749
  %3758 = vst [vmem:[#allocation3 + $0x20] sm:$0xff] %v3750
  %3759 = vst [vmem:[#allocation3 + $0x28] sm:$0xff] %v3751
  %3760 = vst [vmem:[#allocation3 + $0x30] sm:$0xff] %v3752
  %3761 = vst [vmem:[#allocation3 + $0x38] sm:$0xff] %v3753
  %v3762 = vld [vmem:[#allocation3] sm:$0xff]
  %v3763 = vld [vmem:[#allocation3 + $0x8] sm:$0xff]
  %v3764 = vld [vmem:[#allocation3 + $0x10] sm:$0xff]
  %v3765 = vld [vmem:[#allocation3 + $0x18] sm:$0xff]
  %v3766 = vld [vmem:[#allocation3 + $0x20] sm:$0xff]
  %v3767 = vld [vmem:[#allocation3 + $0x28] sm:$0xff]
  %v3768 = vld [vmem:[#allocation3 + $0x30] sm:$0xff]
  %v3769 = vld [vmem:[#allocation3 + $0x38] sm:$0xff]
  %v3770 = vld [vmem:[%s5] sm:$0xff]
  %v3771 = vld [vmem:[%s5 + $0x8] sm:$0xff]
  %v3772 = vld [vmem:[%s5 + $0x10] sm:$0xff]
  %v3773 = vld [vmem:[%s5 + $0x18] sm:$0xff]
  %v3774 = vld [vmem:[%s5 + $0x20] sm:$0xff]
  %v3775 = vld [vmem:[%s5 + $0x28] sm:$0xff]
  %v3776 = vld [vmem:[%s5 + $0x30] sm:$0xff]
  %v3777 = vld [vmem:[%s5 + $0x38] sm:$0xff]
  %v3778 = vld [vmem:[%s5 + $0x40] sm:$0xff]
  %v3779 = vld [vmem:[%s5 + $0x48] sm:$0xff]
  %v3780 = vld [vmem:[%s5 + $0x50] sm:$0xff]
  %v3781 = vld [vmem:[%s5 + $0x58] sm:$0xff]
  %v3782 = vld [vmem:[%s5 + $0x60] sm:$0xff]
  %v3783 = vld [vmem:[%s5 + $0x68] sm:$0xff]
  %v3784 = vld [vmem:[%s5 + $0x70] sm:$0xff]
  %v3785 = vld [vmem:[%s5 + $0x78] sm:$0xff]
  %v3786 = vld [vmem:[%s5 + $0x80] sm:$0xff]
  %v3787 = vld [vmem:[%s5 + $0x88] sm:$0xff]
  %v3788 = vld [vmem:[%s5 + $0x90] sm:$0xff]
  %v3789 = vld [vmem:[%s5 + $0x98] sm:$0xff]
  %v3790 = vld [vmem:[%s5 + $0xa0] sm:$0xff]
  %v3791 = vld [vmem:[%s5 + $0xa8] sm:$0xff]
  %v3792 = vld [vmem:[%s5 + $0xb0] sm:$0xff]
  %v3793 = vld [vmem:[%s5 + $0xb8] sm:$0xff]
  %v3794 = vld [vmem:[%s5 + $0xc0] sm:$0xff]
  %v3795 = vld [vmem:[%s5 + $0xc8] sm:$0xff]
  %v3796 = vld [vmem:[%s5 + $0xd0] sm:$0xff]
  %v3797 = vld [vmem:[%s5 + $0xd8] sm:$0xff]
  %v3798 = vld [vmem:[%s5 + $0xe0] sm:$0xff]
  %v3799 = vld [vmem:[%s5 + $0xe8] sm:$0xff]
  %v3800 = vld [vmem:[%s5 + $0xf0] sm:$0xff]
  %v3801 = vld [vmem:[%s5 + $0xf8] sm:$0xff]
  %v3802 = vld [vmem:[%s5 + $0x100] sm:$0xff]
  %v3803 = vld [vmem:[%s5 + $0x108] sm:$0xff]
  %v3804 = vld [vmem:[%s5 + $0x110] sm:$0xff]
  %v3805 = vld [vmem:[%s5 + $0x118] sm:$0xff]
  %v3806 = vld [vmem:[%s5 + $0x120] sm:$0xff]
  %v3807 = vld [vmem:[%s5 + $0x128] sm:$0xff]
  %v3808 = vld [vmem:[%s5 + $0x130] sm:$0xff]
  %v3809 = vld [vmem:[%s5 + $0x138] sm:$0xff]
  %v3810 = vld [vmem:[%s5 + $0x140] sm:$0xff]
  %v3811 = vld [vmem:[%s5 + $0x148] sm:$0xff]
  %v3812 = vld [vmem:[%s5 + $0x150] sm:$0xff]
  %v3813 = vld [vmem:[%s5 + $0x158] sm:$0xff]
  %v3814 = vld [vmem:[%s5 + $0x160] sm:$0xff]
  %v3815 = vld [vmem:[%s5 + $0x168] sm:$0xff]
  %v3816 = vld [vmem:[%s5 + $0x170] sm:$0xff]
  %v3817 = vld [vmem:[%s5 + $0x178] sm:$0xff]
  %v3818 = vld [vmem:[%s5 + $0x180] sm:$0xff]
  %v3819 = vld [vmem:[%s5 + $0x188] sm:$0xff]
  %v3820 = vld [vmem:[%s5 + $0x190] sm:$0xff]
  %v3821 = vld [vmem:[%s5 + $0x198] sm:$0xff]
  %v3822 = vld [vmem:[%s5 + $0x1a0] sm:$0xff]
  %v3823 = vld [vmem:[%s5 + $0x1a8] sm:$0xff]
  %v3824 = vld [vmem:[%s5 + $0x1b0] sm:$0xff]
  %v3825 = vld [vmem:[%s5 + $0x1b8] sm:$0xff]
  %v3826 = vld [vmem:[%s5 + $0x1c0] sm:$0xff]
  %v3827 = vld [vmem:[%s5 + $0x1c8] sm:$0xff]
  %v3828 = vld [vmem:[%s5 + $0x1d0] sm:$0xff]
  %v3829 = vld [vmem:[%s5 + $0x1d8] sm:$0xff]
  %v3830 = vld [vmem:[%s5 + $0x1e0] sm:$0xff]
  %v3831 = vld [vmem:[%s5 + $0x1e8] sm:$0xff]
  %v3832 = vld [vmem:[%s5 + $0x1f0] sm:$0xff]
  %v3833 = vld [vmem:[%s5 + $0x1f8] sm:$0xff]
  %v3834 = vld [vmem:[%s5 + $0x200] sm:$0xff]
  %v3835 = vld [vmem:[%s5 + $0x208] sm:$0xff]
  %v3836 = vld [vmem:[%s5 + $0x210] sm:$0xff]
  %v3837 = vld [vmem:[%s5 + $0x218] sm:$0xff]
  %v3838 = vld [vmem:[%s5 + $0x220] sm:$0xff]
  %v3839 = vld [vmem:[%s5 + $0x228] sm:$0xff]
  %v3840 = vld [vmem:[%s5 + $0x230] sm:$0xff]
  %v3841 = vld [vmem:[%s5 + $0x238] sm:$0xff]
  %v3842 = vld [vmem:[%s5 + $0x240] sm:$0xff]
  %v3843 = vld [vmem:[%s5 + $0x248] sm:$0xff]
  %v3844 = vld [vmem:[%s5 + $0x250] sm:$0xff]
  %v3845 = vld [vmem:[%s5 + $0x258] sm:$0xff]
  %v3846 = vld [vmem:[%s5 + $0x260] sm:$0xff]
  %v3847 = vld [vmem:[%s5 + $0x268] sm:$0xff]
  %v3848 = vld [vmem:[%s5 + $0x270] sm:$0xff]
  %v3849 = vld [vmem:[%s5 + $0x278] sm:$0xff]
  %v3850 = vld [vmem:[%s5 + $0x280] sm:$0xff]
  %v3851 = vld [vmem:[%s5 + $0x288] sm:$0xff]
  %v3852 = vld [vmem:[%s5 + $0x290] sm:$0xff]
  %v3853 = vld [vmem:[%s5 + $0x298] sm:$0xff]
  %v3854 = vld [vmem:[%s5 + $0x2a0] sm:$0xff]
  %v3855 = vld [vmem:[%s5 + $0x2a8] sm:$0xff]
  %v3856 = vld [vmem:[%s5 + $0x2b0] sm:$0xff]
  %v3857 = vld [vmem:[%s5 + $0x2b8] sm:$0xff]
  %v3858 = vld [vmem:[%s5 + $0x2c0] sm:$0xff]
  %v3859 = vld [vmem:[%s5 + $0x2c8] sm:$0xff]
  %v3860 = vld [vmem:[%s5 + $0x2d0] sm:$0xff]
  %v3861 = vld [vmem:[%s5 + $0x2d8] sm:$0xff]
  %v3862 = vld [vmem:[%s5 + $0x2e0] sm:$0xff]
  %v3863 = vld [vmem:[%s5 + $0x2e8] sm:$0xff]
  %v3864 = vld [vmem:[%s5 + $0x2f0] sm:$0xff]
  %v3865 = vld [vmem:[%s5 + $0x2f8] sm:$0xff]
  %v3866 = vld [vmem:[%s5 + $0x300] sm:$0xff]
  %v3867 = vld [vmem:[%s5 + $0x308] sm:$0xff]
  %v3868 = vld [vmem:[%s5 + $0x310] sm:$0xff]
  %v3869 = vld [vmem:[%s5 + $0x318] sm:$0xff]
  %v3870 = vld [vmem:[%s5 + $0x320] sm:$0xff]
  %v3871 = vld [vmem:[%s5 + $0x328] sm:$0xff]
  %v3872 = vld [vmem:[%s5 + $0x330] sm:$0xff]
  %v3873 = vld [vmem:[%s5 + $0x338] sm:$0xff]
  %v3874 = vld [vmem:[%s5 + $0x340] sm:$0xff]
  %v3875 = vld [vmem:[%s5 + $0x348] sm:$0xff]
  %v3876 = vld [vmem:[%s5 + $0x350] sm:$0xff]
  %v3877 = vld [vmem:[%s5 + $0x358] sm:$0xff]
  %v3878 = vld [vmem:[%s5 + $0x360] sm:$0xff]
  %v3879 = vld [vmem:[%s5 + $0x368] sm:$0xff]
  %v3880 = vld [vmem:[%s5 + $0x370] sm:$0xff]
  %v3881 = vld [vmem:[%s5 + $0x378] sm:$0xff]
  %v3882 = vld [vmem:[%s5 + $0x380] sm:$0xff]
  %v3883 = vld [vmem:[%s5 + $0x388] sm:$0xff]
  %v3884 = vld [vmem:[%s5 + $0x390] sm:$0xff]
  %v3885 = vld [vmem:[%s5 + $0x398] sm:$0xff]
  %v3886 = vld [vmem:[%s5 + $0x3a0] sm:$0xff]
  %v3887 = vld [vmem:[%s5 + $0x3a8] sm:$0xff]
  %v3888 = vld [vmem:[%s5 + $0x3b0] sm:$0xff]
  %v3889 = vld [vmem:[%s5 + $0x3b8] sm:$0xff]
  %v3890 = vld [vmem:[%s5 + $0x3c0] sm:$0xff]
  %v3891 = vld [vmem:[%s5 + $0x3c8] sm:$0xff]
  %v3892 = vld [vmem:[%s5 + $0x3d0] sm:$0xff]
  %v3893 = vld [vmem:[%s5 + $0x3d8] sm:$0xff]
  %v3894 = vld [vmem:[%s5 + $0x3e0] sm:$0xff]
  %v3895 = vld [vmem:[%s5 + $0x3e8] sm:$0xff]
  %v3896 = vld [vmem:[%s5 + $0x3f0] sm:$0xff]
  %v3897 = vld [vmem:[%s5 + $0x3f8] sm:$0xff]
  %v3898 = vld [vmem:[%s5 + $0x400] sm:$0xff]
  %v3899 = vld [vmem:[%s5 + $0x408] sm:$0xff]
  %v3900 = vld [vmem:[%s5 + $0x410] sm:$0xff]
  %v3901 = vld [vmem:[%s5 + $0x418] sm:$0xff]
  %v3902 = vld [vmem:[%s5 + $0x420] sm:$0xff]
  %v3903 = vld [vmem:[%s5 + $0x428] sm:$0xff]
  %v3904 = vld [vmem:[%s5 + $0x430] sm:$0xff]
  %v3905 = vld [vmem:[%s5 + $0x438] sm:$0xff]
  %v3906 = vld [vmem:[%s5 + $0x440] sm:$0xff]
  %v3907 = vld [vmem:[%s5 + $0x448] sm:$0xff]
  %v3908 = vld [vmem:[%s5 + $0x450] sm:$0xff]
  %v3909 = vld [vmem:[%s5 + $0x458] sm:$0xff]
  %v3910 = vld [vmem:[%s5 + $0x460] sm:$0xff]
  %v3911 = vld [vmem:[%s5 + $0x468] sm:$0xff]
  %v3912 = vld [vmem:[%s5 + $0x470] sm:$0xff]
  %v3913 = vld [vmem:[%s5 + $0x478] sm:$0xff]
  %v3914 = vld [vmem:[%s5 + $0x480] sm:$0xff]
  %v3915 = vld [vmem:[%s5 + $0x488] sm:$0xff]
  %v3916 = vld [vmem:[%s5 + $0x490] sm:$0xff]
  %v3917 = vld [vmem:[%s5 + $0x498] sm:$0xff]
  %v3918 = vld [vmem:[%s5 + $0x4a0] sm:$0xff]
  %v3919 = vld [vmem:[%s5 + $0x4a8] sm:$0xff]
  %v3920 = vld [vmem:[%s5 + $0x4b0] sm:$0xff]
  %v3921 = vld [vmem:[%s5 + $0x4b8] sm:$0xff]
  %v3922 = vld [vmem:[%s5 + $0x4c0] sm:$0xff]
  %v3923 = vld [vmem:[%s5 + $0x4c8] sm:$0xff]
  %v3924 = vld [vmem:[%s5 + $0x4d0] sm:$0xff]
  %v3925 = vld [vmem:[%s5 + $0x4d8] sm:$0xff]
  %v3926 = vld [vmem:[%s5 + $0x4e0] sm:$0xff]
  %v3927 = vld [vmem:[%s5 + $0x4e8] sm:$0xff]
  %v3928 = vld [vmem:[%s5 + $0x4f0] sm:$0xff]
  %v3929 = vld [vmem:[%s5 + $0x4f8] sm:$0xff]
  %v3930 = vld [vmem:[%s5 + $0x500] sm:$0xff]
  %v3931 = vld [vmem:[%s5 + $0x508] sm:$0xff]
  %v3932 = vld [vmem:[%s5 + $0x510] sm:$0xff]
  %v3933 = vld [vmem:[%s5 + $0x518] sm:$0xff]
  %v3934 = vld [vmem:[%s5 + $0x520] sm:$0xff]
  %v3935 = vld [vmem:[%s5 + $0x528] sm:$0xff]
  %v3936 = vld [vmem:[%s5 + $0x530] sm:$0xff]
  %v3937 = vld [vmem:[%s5 + $0x538] sm:$0xff]
  %v3938 = vld [vmem:[%s5 + $0x540] sm:$0xff]
  %v3939 = vld [vmem:[%s5 + $0x548] sm:$0xff]
  %v3940 = vld [vmem:[%s5 + $0x550] sm:$0xff]
  %v3941 = vld [vmem:[%s5 + $0x558] sm:$0xff]
  %v3942 = vld [vmem:[%s5 + $0x560] sm:$0xff]
  %v3943 = vld [vmem:[%s5 + $0x568] sm:$0xff]
  %v3944 = vld [vmem:[%s5 + $0x570] sm:$0xff]
  %v3945 = vld [vmem:[%s5 + $0x578] sm:$0xff]
  %v3946 = vld [vmem:[%s5 + $0x580] sm:$0xff]
  %v3947 = vld [vmem:[%s5 + $0x588] sm:$0xff]
  %v3948 = vld [vmem:[%s5 + $0x590] sm:$0xff]
  %v3949 = vld [vmem:[%s5 + $0x598] sm:$0xff]
  %v3950 = vld [vmem:[%s5 + $0x5a0] sm:$0xff]
  %v3951 = vld [vmem:[%s5 + $0x5a8] sm:$0xff]
  %v3952 = vld [vmem:[%s5 + $0x5b0] sm:$0xff]
  %v3953 = vld [vmem:[%s5 + $0x5b8] sm:$0xff]
  %v3954 = vld [vmem:[%s5 + $0x5c0] sm:$0xff]
  %v3955 = vld [vmem:[%s5 + $0x5c8] sm:$0xff]
  %v3956 = vld [vmem:[%s5 + $0x5d0] sm:$0xff]
  %v3957 = vld [vmem:[%s5 + $0x5d8] sm:$0xff]
  %v3958 = vld [vmem:[%s5 + $0x5e0] sm:$0xff]
  %v3959 = vld [vmem:[%s5 + $0x5e8] sm:$0xff]
  %v3960 = vld [vmem:[%s5 + $0x5f0] sm:$0xff]
  %v3961 = vld [vmem:[%s5 + $0x5f8] sm:$0xff]
  %v3962 = vld [vmem:[%s5 + $0x600] sm:$0xff]
  %v3963 = vld [vmem:[%s5 + $0x608] sm:$0xff]
  %v3964 = vld [vmem:[%s5 + $0x610] sm:$0xff]
  %v3965 = vld [vmem:[%s5 + $0x618] sm:$0xff]
  %v3966 = vld [vmem:[%s5 + $0x620] sm:$0xff]
  %v3967 = vld [vmem:[%s5 + $0x628] sm:$0xff]
  %v3968 = vld [vmem:[%s5 + $0x630] sm:$0xff]
  %v3969 = vld [vmem:[%s5 + $0x638] sm:$0xff]
  %v3970 = vld [vmem:[%s5 + $0x640] sm:$0xff]
  %v3971 = vld [vmem:[%s5 + $0x648] sm:$0xff]
  %v3972 = vld [vmem:[%s5 + $0x650] sm:$0xff]
  %v3973 = vld [vmem:[%s5 + $0x658] sm:$0xff]
  %v3974 = vld [vmem:[%s5 + $0x660] sm:$0xff]
  %v3975 = vld [vmem:[%s5 + $0x668] sm:$0xff]
  %v3976 = vld [vmem:[%s5 + $0x670] sm:$0xff]
  %v3977 = vld [vmem:[%s5 + $0x678] sm:$0xff]
  %v3978 = vld [vmem:[%s5 + $0x680] sm:$0xff]
  %v3979 = vld [vmem:[%s5 + $0x688] sm:$0xff]
  %v3980 = vld [vmem:[%s5 + $0x690] sm:$0xff]
  %v3981 = vld [vmem:[%s5 + $0x698] sm:$0xff]
  %v3982 = vld [vmem:[%s5 + $0x6a0] sm:$0xff]
  %v3983 = vld [vmem:[%s5 + $0x6a8] sm:$0xff]
  %v3984 = vld [vmem:[%s5 + $0x6b0] sm:$0xff]
  %v3985 = vld [vmem:[%s5 + $0x6b8] sm:$0xff]
  %v3986 = vld [vmem:[%s5 + $0x6c0] sm:$0xff]
  %v3987 = vld [vmem:[%s5 + $0x6c8] sm:$0xff]
  %v3988 = vld [vmem:[%s5 + $0x6d0] sm:$0xff]
  %v3989 = vld [vmem:[%s5 + $0x6d8] sm:$0xff]
  %v3990 = vld [vmem:[%s5 + $0x6e0] sm:$0xff]
  %v3991 = vld [vmem:[%s5 + $0x6e8] sm:$0xff]
  %v3992 = vld [vmem:[%s5 + $0x6f0] sm:$0xff]
  %v3993 = vld [vmem:[%s5 + $0x6f8] sm:$0xff]
  %v3994 = vld [vmem:[%s5 + $0x700] sm:$0xff]
  %v3995 = vld [vmem:[%s5 + $0x708] sm:$0xff]
  %v3996 = vld [vmem:[%s5 + $0x710] sm:$0xff]
  %v3997 = vld [vmem:[%s5 + $0x718] sm:$0xff]
  %v3998 = vld [vmem:[%s5 + $0x720] sm:$0xff]
  %v3999 = vld [vmem:[%s5 + $0x728] sm:$0xff]
  %v4000 = vld [vmem:[%s5 + $0x730] sm:$0xff]
  %v4001 = vld [vmem:[%s5 + $0x738] sm:$0xff]
  %v4002 = vld [vmem:[%s5 + $0x740] sm:$0xff]
  %v4003 = vld [vmem:[%s5 + $0x748] sm:$0xff]
  %v4004 = vld [vmem:[%s5 + $0x750] sm:$0xff]
  %v4005 = vld [vmem:[%s5 + $0x758] sm:$0xff]
  %v4006 = vld [vmem:[%s5 + $0x760] sm:$0xff]
  %v4007 = vld [vmem:[%s5 + $0x768] sm:$0xff]
  %v4008 = vld [vmem:[%s5 + $0x770] sm:$0xff]
  %v4009 = vld [vmem:[%s5 + $0x778] sm:$0xff]
  %v4010 = vld [vmem:[%s5 + $0x780] sm:$0xff]
  %v4011 = vld [vmem:[%s5 + $0x788] sm:$0xff]
  %v4012 = vld [vmem:[%s5 + $0x790] sm:$0xff]
  %v4013 = vld [vmem:[%s5 + $0x798] sm:$0xff]
  %v4014 = vld [vmem:[%s5 + $0x7a0] sm:$0xff]
  %v4015 = vld [vmem:[%s5 + $0x7a8] sm:$0xff]
  %v4016 = vld [vmem:[%s5 + $0x7b0] sm:$0xff]
  %v4017 = vld [vmem:[%s5 + $0x7b8] sm:$0xff]
  %v4018 = vld [vmem:[%s5 + $0x7c0] sm:$0xff]
  %v4019 = vld [vmem:[%s5 + $0x7c8] sm:$0xff]
  %v4020 = vld [vmem:[%s5 + $0x7d0] sm:$0xff]
  %v4021 = vld [vmem:[%s5 + $0x7d8] sm:$0xff]
  %v4022 = vld [vmem:[%s5 + $0x7e0] sm:$0xff]
  %v4023 = vld [vmem:[%s5 + $0x7e8] sm:$0xff]
  %v4024 = vld [vmem:[%s5 + $0x7f0] sm:$0xff]
  %v4025 = vld [vmem:[%s5 + $0x7f8] sm:$0xff]
  %v4026 = vld [vmem:[%s6] sm:$0xf]
  %v4028 = vlaneseq
  %v4029 = vshrl.u32 %v4028, 7
  %v4030 = vsub.s32 0, %v4029
  %v4031 = vrot.slane %v4026, %v4030
  %v4032 = vlaneseq
  %v4033 = vshrl.u32 %v4032, 7
  %v4034 = vsub.s32 1, %v4033
  %v4035 = vrot.slane %v4026, %v4034
  %v4036 = vlaneseq
  %v4037 = vshrl.u32 %v4036, 7
  %v4038 = vsub.s32 2, %v4037
  %v4039 = vrot.slane %v4026, %v4038
  %v4040 = vlaneseq
  %v4041 = vshrl.u32 %v4040, 7
  %v4042 = vsub.s32 3, %v4041
  %v4043 = vrot.slane %v4026, %v4042
  %v4304 = vunpack.c.l.b16 %v3770
  %v4305 = vunpack.c.h.b16 %v3770
  %v4306 = vunpack.c.l.b16 %v3771
  %v4307 = vunpack.c.h.b16 %v3771
  %v4308 = vunpack.c.l.b16 %v3772
  %v4309 = vunpack.c.h.b16 %v3772
  %v4310 = vunpack.c.l.b16 %v3773
  %v4311 = vunpack.c.h.b16 %v3773
  %v4312 = vunpack.c.l.b16 %v3774
  %v4313 = vunpack.c.h.b16 %v3774
  %v4314 = vunpack.c.l.b16 %v3775
  %v4315 = vunpack.c.h.b16 %v3775
  %v4316 = vunpack.c.l.b16 %v3776
  %v4317 = vunpack.c.h.b16 %v3776
  %v4318 = vunpack.c.l.b16 %v3777
  %v4319 = vunpack.c.h.b16 %v3777
  %v4320 = vunpack.c.l.b16 %v3778
  %v4321 = vunpack.c.h.b16 %v3778
  %v4322 = vunpack.c.l.b16 %v3779
  %v4323 = vunpack.c.h.b16 %v3779
  %v4324 = vunpack.c.l.b16 %v3780
  %v4325 = vunpack.c.h.b16 %v3780
  %v4326 = vunpack.c.l.b16 %v3781
  %v4327 = vunpack.c.h.b16 %v3781
  %v4328 = vunpack.c.l.b16 %v3782
  %v4329 = vunpack.c.h.b16 %v3782
  %v4330 = vunpack.c.l.b16 %v3783
  %v4331 = vunpack.c.h.b16 %v3783
  %v4332 = vunpack.c.l.b16 %v3784
  %v4333 = vunpack.c.h.b16 %v3784
  %v4334 = vunpack.c.l.b16 %v3785
  %v4335 = vunpack.c.h.b16 %v3785
  %v4336 = vunpack.c.l.b16 %v3786
  %v4337 = vunpack.c.h.b16 %v3786
  %v4338 = vunpack.c.l.b16 %v3787
  %v4339 = vunpack.c.h.b16 %v3787
  %v4340 = vunpack.c.l.b16 %v3788
  %v4341 = vunpack.c.h.b16 %v3788
  %v4342 = vunpack.c.l.b16 %v3789
  %v4343 = vunpack.c.h.b16 %v3789
  %v4344 = vunpack.c.l.b16 %v3790
  %v4345 = vunpack.c.h.b16 %v3790
  %v4346 = vunpack.c.l.b16 %v3791
  %v4347 = vunpack.c.h.b16 %v3791
  %v4348 = vunpack.c.l.b16 %v3792
  %v4349 = vunpack.c.h.b16 %v3792
  %v4350 = vunpack.c.l.b16 %v3793
  %v4351 = vunpack.c.h.b16 %v3793
  %v4352 = vunpack.c.l.b16 %v3794
  %v4353 = vunpack.c.h.b16 %v3794
  %v4354 = vunpack.c.l.b16 %v3795
  %v4355 = vunpack.c.h.b16 %v3795
  %v4356 = vunpack.c.l.b16 %v3796
  %v4357 = vunpack.c.h.b16 %v3796
  %v4358 = vunpack.c.l.b16 %v3797
  %v4359 = vunpack.c.h.b16 %v3797
  %v4360 = vunpack.c.l.b16 %v3798
  %v4361 = vunpack.c.h.b16 %v3798
  %v4362 = vunpack.c.l.b16 %v3799
  %v4363 = vunpack.c.h.b16 %v3799
  %v4364 = vunpack.c.l.b16 %v3800
  %v4365 = vunpack.c.h.b16 %v3800
  %v4366 = vunpack.c.l.b16 %v3801
  %v4367 = vunpack.c.h.b16 %v3801
  %v4368 = vunpack.c.l.b16 %v3802
  %v4369 = vunpack.c.h.b16 %v3802
  %v4370 = vunpack.c.l.b16 %v3803
  %v4371 = vunpack.c.h.b16 %v3803
  %v4372 = vunpack.c.l.b16 %v3804
  %v4373 = vunpack.c.h.b16 %v3804
  %v4374 = vunpack.c.l.b16 %v3805
  %v4375 = vunpack.c.h.b16 %v3805
  %v4376 = vunpack.c.l.b16 %v3806
  %v4377 = vunpack.c.h.b16 %v3806
  %v4378 = vunpack.c.l.b16 %v3807
  %v4379 = vunpack.c.h.b16 %v3807
  %v4380 = vunpack.c.l.b16 %v3808
  %v4381 = vunpack.c.h.b16 %v3808
  %v4382 = vunpack.c.l.b16 %v3809
  %v4383 = vunpack.c.h.b16 %v3809
  %v4384 = vunpack.c.l.b16 %v3810
  %v4385 = vunpack.c.h.b16 %v3810
  %v4386 = vunpack.c.l.b16 %v3811
  %v4387 = vunpack.c.h.b16 %v3811
  %v4388 = vunpack.c.l.b16 %v3812
  %v4389 = vunpack.c.h.b16 %v3812
  %v4390 = vunpack.c.l.b16 %v3813
  %v4391 = vunpack.c.h.b16 %v3813
  %v4392 = vunpack.c.l.b16 %v3814
  %v4393 = vunpack.c.h.b16 %v3814
  %v4394 = vunpack.c.l.b16 %v3815
  %v4395 = vunpack.c.h.b16 %v3815
  %v4396 = vunpack.c.l.b16 %v3816
  %v4397 = vunpack.c.h.b16 %v3816
  %v4398 = vunpack.c.l.b16 %v3817
  %v4399 = vunpack.c.h.b16 %v3817
  %v4400 = vunpack.c.l.b16 %v3818
  %v4401 = vunpack.c.h.b16 %v3818
  %v4402 = vunpack.c.l.b16 %v3819
  %v4403 = vunpack.c.h.b16 %v3819
  %v4404 = vunpack.c.l.b16 %v3820
  %v4405 = vunpack.c.h.b16 %v3820
  %v4406 = vunpack.c.l.b16 %v3821
  %v4407 = vunpack.c.h.b16 %v3821
  %v4408 = vunpack.c.l.b16 %v3822
  %v4409 = vunpack.c.h.b16 %v3822
  %v4410 = vunpack.c.l.b16 %v3823
  %v4411 = vunpack.c.h.b16 %v3823
  %v4412 = vunpack.c.l.b16 %v3824
  %v4413 = vunpack.c.h.b16 %v3824
  %v4414 = vunpack.c.l.b16 %v3825
  %v4415 = vunpack.c.h.b16 %v3825
  %v4416 = vunpack.c.l.b16 %v3826
  %v4417 = vunpack.c.h.b16 %v3826
  %v4418 = vunpack.c.l.b16 %v3827
  %v4419 = vunpack.c.h.b16 %v3827
  %v4420 = vunpack.c.l.b16 %v3828
  %v4421 = vunpack.c.h.b16 %v3828
  %v4422 = vunpack.c.l.b16 %v3829
  %v4423 = vunpack.c.h.b16 %v3829
  %v4424 = vunpack.c.l.b16 %v3830
  %v4425 = vunpack.c.h.b16 %v3830
  %v4426 = vunpack.c.l.b16 %v3831
  %v4427 = vunpack.c.h.b16 %v3831
  %v4428 = vunpack.c.l.b16 %v3832
  %v4429 = vunpack.c.h.b16 %v3832
  %v4430 = vunpack.c.l.b16 %v3833
  %v4431 = vunpack.c.h.b16 %v3833
  %v4432 = vunpack.c.l.b16 %v3834
  %v4433 = vunpack.c.h.b16 %v3834
  %v4434 = vunpack.c.l.b16 %v3835
  %v4435 = vunpack.c.h.b16 %v3835
  %v4436 = vunpack.c.l.b16 %v3836
  %v4437 = vunpack.c.h.b16 %v3836
  %v4438 = vunpack.c.l.b16 %v3837
  %v4439 = vunpack.c.h.b16 %v3837
  %v4440 = vunpack.c.l.b16 %v3838
  %v4441 = vunpack.c.h.b16 %v3838
  %v4442 = vunpack.c.l.b16 %v3839
  %v4443 = vunpack.c.h.b16 %v3839
  %v4444 = vunpack.c.l.b16 %v3840
  %v4445 = vunpack.c.h.b16 %v3840
  %v4446 = vunpack.c.l.b16 %v3841
  %v4447 = vunpack.c.h.b16 %v3841
  %v4448 = vunpack.c.l.b16 %v3842
  %v4449 = vunpack.c.h.b16 %v3842
  %v4450 = vunpack.c.l.b16 %v3843
  %v4451 = vunpack.c.h.b16 %v3843
  %v4452 = vunpack.c.l.b16 %v3844
  %v4453 = vunpack.c.h.b16 %v3844
  %v4454 = vunpack.c.l.b16 %v3845
  %v4455 = vunpack.c.h.b16 %v3845
  %v4456 = vunpack.c.l.b16 %v3846
  %v4457 = vunpack.c.h.b16 %v3846
  %v4458 = vunpack.c.l.b16 %v3847
  %v4459 = vunpack.c.h.b16 %v3847
  %v4460 = vunpack.c.l.b16 %v3848
  %v4461 = vunpack.c.h.b16 %v3848
  %v4462 = vunpack.c.l.b16 %v3849
  %v4463 = vunpack.c.h.b16 %v3849
  %v4464 = vunpack.c.l.b16 %v3850
  %v4465 = vunpack.c.h.b16 %v3850
  %v4466 = vunpack.c.l.b16 %v3851
  %v4467 = vunpack.c.h.b16 %v3851
  %v4468 = vunpack.c.l.b16 %v3852
  %v4469 = vunpack.c.h.b16 %v3852
  %v4470 = vunpack.c.l.b16 %v3853
  %v4471 = vunpack.c.h.b16 %v3853
  %v4472 = vunpack.c.l.b16 %v3854
  %v4473 = vunpack.c.h.b16 %v3854
  %v4474 = vunpack.c.l.b16 %v3855
  %v4475 = vunpack.c.h.b16 %v3855
  %v4476 = vunpack.c.l.b16 %v3856
  %v4477 = vunpack.c.h.b16 %v3856
  %v4478 = vunpack.c.l.b16 %v3857
  %v4479 = vunpack.c.h.b16 %v3857
  %v4480 = vunpack.c.l.b16 %v3858
  %v4481 = vunpack.c.h.b16 %v3858
  %v4482 = vunpack.c.l.b16 %v3859
  %v4483 = vunpack.c.h.b16 %v3859
  %v4484 = vunpack.c.l.b16 %v3860
  %v4485 = vunpack.c.h.b16 %v3860
  %v4486 = vunpack.c.l.b16 %v3861
  %v4487 = vunpack.c.h.b16 %v3861
  %v4488 = vunpack.c.l.b16 %v3862
  %v4489 = vunpack.c.h.b16 %v3862
  %v4490 = vunpack.c.l.b16 %v3863
  %v4491 = vunpack.c.h.b16 %v3863
  %v4492 = vunpack.c.l.b16 %v3864
  %v4493 = vunpack.c.h.b16 %v3864
  %v4494 = vunpack.c.l.b16 %v3865
  %v4495 = vunpack.c.h.b16 %v3865
  %v4496 = vunpack.c.l.b16 %v3866
  %v4497 = vunpack.c.h.b16 %v3866
  %v4498 = vunpack.c.l.b16 %v3867
  %v4499 = vunpack.c.h.b16 %v3867
  %v4500 = vunpack.c.l.b16 %v3868
  %v4501 = vunpack.c.h.b16 %v3868
  %v4502 = vunpack.c.l.b16 %v3869
  %v4503 = vunpack.c.h.b16 %v3869
  %v4504 = vunpack.c.l.b16 %v3870
  %v4505 = vunpack.c.h.b16 %v3870
  %v4506 = vunpack.c.l.b16 %v3871
  %v4507 = vunpack.c.h.b16 %v3871
  %v4508 = vunpack.c.l.b16 %v3872
  %v4509 = vunpack.c.h.b16 %v3872
  %v4510 = vunpack.c.l.b16 %v3873
  %v4511 = vunpack.c.h.b16 %v3873
  %v4512 = vunpack.c.l.b16 %v3874
  %v4513 = vunpack.c.h.b16 %v3874
  %v4514 = vunpack.c.l.b16 %v3875
  %v4515 = vunpack.c.h.b16 %v3875
  %v4516 = vunpack.c.l.b16 %v3876
  %v4517 = vunpack.c.h.b16 %v3876
  %v4518 = vunpack.c.l.b16 %v3877
  %v4519 = vunpack.c.h.b16 %v3877
  %v4520 = vunpack.c.l.b16 %v3878
  %v4521 = vunpack.c.h.b16 %v3878
  %v4522 = vunpack.c.l.b16 %v3879
  %v4523 = vunpack.c.h.b16 %v3879
  %v4524 = vunpack.c.l.b16 %v3880
  %v4525 = vunpack.c.h.b16 %v3880
  %v4526 = vunpack.c.l.b16 %v3881
  %v4527 = vunpack.c.h.b16 %v3881
  %v4528 = vunpack.c.l.b16 %v3882
  %v4529 = vunpack.c.h.b16 %v3882
  %v4530 = vunpack.c.l.b16 %v3883
  %v4531 = vunpack.c.h.b16 %v3883
  %v4532 = vunpack.c.l.b16 %v3884
  %v4533 = vunpack.c.h.b16 %v3884
  %v4534 = vunpack.c.l.b16 %v3885
  %v4535 = vunpack.c.h.b16 %v3885
  %v4536 = vunpack.c.l.b16 %v3886
  %v4537 = vunpack.c.h.b16 %v3886
  %v4538 = vunpack.c.l.b16 %v3887
  %v4539 = vunpack.c.h.b16 %v3887
  %v4540 = vunpack.c.l.b16 %v3888
  %v4541 = vunpack.c.h.b16 %v3888
  %v4542 = vunpack.c.l.b16 %v3889
  %v4543 = vunpack.c.h.b16 %v3889
  %v4544 = vunpack.c.l.b16 %v3890
  %v4545 = vunpack.c.h.b16 %v3890
  %v4546 = vunpack.c.l.b16 %v3891
  %v4547 = vunpack.c.h.b16 %v3891
  %v4548 = vunpack.c.l.b16 %v3892
  %v4549 = vunpack.c.h.b16 %v3892
  %v4550 = vunpack.c.l.b16 %v3893
  %v4551 = vunpack.c.h.b16 %v3893
  %v4552 = vunpack.c.l.b16 %v3894
  %v4553 = vunpack.c.h.b16 %v3894
  %v4554 = vunpack.c.l.b16 %v3895
  %v4555 = vunpack.c.h.b16 %v3895
  %v4556 = vunpack.c.l.b16 %v3896
  %v4557 = vunpack.c.h.b16 %v3896
  %v4558 = vunpack.c.l.b16 %v3897
  %v4559 = vunpack.c.h.b16 %v3897
  %v4560 = vunpack.c.l.b16 %v3898
  %v4561 = vunpack.c.h.b16 %v3898
  %v4562 = vunpack.c.l.b16 %v3899
  %v4563 = vunpack.c.h.b16 %v3899
  %v4564 = vunpack.c.l.b16 %v3900
  %v4565 = vunpack.c.h.b16 %v3900
  %v4566 = vunpack.c.l.b16 %v3901
  %v4567 = vunpack.c.h.b16 %v3901
  %v4568 = vunpack.c.l.b16 %v3902
  %v4569 = vunpack.c.h.b16 %v3902
  %v4570 = vunpack.c.l.b16 %v3903
  %v4571 = vunpack.c.h.b16 %v3903
  %v4572 = vunpack.c.l.b16 %v3904
  %v4573 = vunpack.c.h.b16 %v3904
  %v4574 = vunpack.c.l.b16 %v3905
  %v4575 = vunpack.c.h.b16 %v3905
  %v4576 = vunpack.c.l.b16 %v3906
  %v4577 = vunpack.c.h.b16 %v3906
  %v4578 = vunpack.c.l.b16 %v3907
  %v4579 = vunpack.c.h.b16 %v3907
  %v4580 = vunpack.c.l.b16 %v3908
  %v4581 = vunpack.c.h.b16 %v3908
  %v4582 = vunpack.c.l.b16 %v3909
  %v4583 = vunpack.c.h.b16 %v3909
  %v4584 = vunpack.c.l.b16 %v3910
  %v4585 = vunpack.c.h.b16 %v3910
  %v4586 = vunpack.c.l.b16 %v3911
  %v4587 = vunpack.c.h.b16 %v3911
  %v4588 = vunpack.c.l.b16 %v3912
  %v4589 = vunpack.c.h.b16 %v3912
  %v4590 = vunpack.c.l.b16 %v3913
  %v4591 = vunpack.c.h.b16 %v3913
  %v4592 = vunpack.c.l.b16 %v3914
  %v4593 = vunpack.c.h.b16 %v3914
  %v4594 = vunpack.c.l.b16 %v3915
  %v4595 = vunpack.c.h.b16 %v3915
  %v4596 = vunpack.c.l.b16 %v3916
  %v4597 = vunpack.c.h.b16 %v3916
  %v4598 = vunpack.c.l.b16 %v3917
  %v4599 = vunpack.c.h.b16 %v3917
  %v4600 = vunpack.c.l.b16 %v3918
  %v4601 = vunpack.c.h.b16 %v3918
  %v4602 = vunpack.c.l.b16 %v3919
  %v4603 = vunpack.c.h.b16 %v3919
  %v4604 = vunpack.c.l.b16 %v3920
  %v4605 = vunpack.c.h.b16 %v3920
  %v4606 = vunpack.c.l.b16 %v3921
  %v4607 = vunpack.c.h.b16 %v3921
  %v4608 = vunpack.c.l.b16 %v3922
  %v4609 = vunpack.c.h.b16 %v3922
  %v4610 = vunpack.c.l.b16 %v3923
  %v4611 = vunpack.c.h.b16 %v3923
  %v4612 = vunpack.c.l.b16 %v3924
  %v4613 = vunpack.c.h.b16 %v3924
  %v4614 = vunpack.c.l.b16 %v3925
  %v4615 = vunpack.c.h.b16 %v3925
  %v4616 = vunpack.c.l.b16 %v3926
  %v4617 = vunpack.c.h.b16 %v3926
  %v4618 = vunpack.c.l.b16 %v3927
  %v4619 = vunpack.c.h.b16 %v3927
  %v4620 = vunpack.c.l.b16 %v3928
  %v4621 = vunpack.c.h.b16 %v3928
  %v4622 = vunpack.c.l.b16 %v3929
  %v4623 = vunpack.c.h.b16 %v3929
  %v4624 = vunpack.c.l.b16 %v3930
  %v4625 = vunpack.c.h.b16 %v3930
  %v4626 = vunpack.c.l.b16 %v3931
  %v4627 = vunpack.c.h.b16 %v3931
  %v4628 = vunpack.c.l.b16 %v3932
  %v4629 = vunpack.c.h.b16 %v3932
  %v4630 = vunpack.c.l.b16 %v3933
  %v4631 = vunpack.c.h.b16 %v3933
  %v4632 = vunpack.c.l.b16 %v3934
  %v4633 = vunpack.c.h.b16 %v3934
  %v4634 = vunpack.c.l.b16 %v3935
  %v4635 = vunpack.c.h.b16 %v3935
  %v4636 = vunpack.c.l.b16 %v3936
  %v4637 = vunpack.c.h.b16 %v3936
  %v4638 = vunpack.c.l.b16 %v3937
  %v4639 = vunpack.c.h.b16 %v3937
  %v4640 = vunpack.c.l.b16 %v3938
  %v4641 = vunpack.c.h.b16 %v3938
  %v4642 = vunpack.c.l.b16 %v3939
  %v4643 = vunpack.c.h.b16 %v3939
  %v4644 = vunpack.c.l.b16 %v3940
  %v4645 = vunpack.c.h.b16 %v3940
  %v4646 = vunpack.c.l.b16 %v3941
  %v4647 = vunpack.c.h.b16 %v3941
  %v4648 = vunpack.c.l.b16 %v3942
  %v4649 = vunpack.c.h.b16 %v3942
  %v4650 = vunpack.c.l.b16 %v3943
  %v4651 = vunpack.c.h.b16 %v3943
  %v4652 = vunpack.c.l.b16 %v3944
  %v4653 = vunpack.c.h.b16 %v3944
  %v4654 = vunpack.c.l.b16 %v3945
  %v4655 = vunpack.c.h.b16 %v3945
  %v4656 = vunpack.c.l.b16 %v3946
  %v4657 = vunpack.c.h.b16 %v3946
  %v4658 = vunpack.c.l.b16 %v3947
  %v4659 = vunpack.c.h.b16 %v3947
  %v4660 = vunpack.c.l.b16 %v3948
  %v4661 = vunpack.c.h.b16 %v3948
  %v4662 = vunpack.c.l.b16 %v3949
  %v4663 = vunpack.c.h.b16 %v3949
  %v4664 = vunpack.c.l.b16 %v3950
  %v4665 = vunpack.c.h.b16 %v3950
  %v4666 = vunpack.c.l.b16 %v3951
  %v4667 = vunpack.c.h.b16 %v3951
  %v4668 = vunpack.c.l.b16 %v3952
  %v4669 = vunpack.c.h.b16 %v3952
  %v4670 = vunpack.c.l.b16 %v3953
  %v4671 = vunpack.c.h.b16 %v3953
  %v4672 = vunpack.c.l.b16 %v3954
  %v4673 = vunpack.c.h.b16 %v3954
  %v4674 = vunpack.c.l.b16 %v3955
  %v4675 = vunpack.c.h.b16 %v3955
  %v4676 = vunpack.c.l.b16 %v3956
  %v4677 = vunpack.c.h.b16 %v3956
  %v4678 = vunpack.c.l.b16 %v3957
  %v4679 = vunpack.c.h.b16 %v3957
  %v4680 = vunpack.c.l.b16 %v3958
  %v4681 = vunpack.c.h.b16 %v3958
  %v4682 = vunpack.c.l.b16 %v3959
  %v4683 = vunpack.c.h.b16 %v3959
  %v4684 = vunpack.c.l.b16 %v3960
  %v4685 = vunpack.c.h.b16 %v3960
  %v4686 = vunpack.c.l.b16 %v3961
  %v4687 = vunpack.c.h.b16 %v3961
  %v4688 = vunpack.c.l.b16 %v3962
  %v4689 = vunpack.c.h.b16 %v3962
  %v4690 = vunpack.c.l.b16 %v3963
  %v4691 = vunpack.c.h.b16 %v3963
  %v4692 = vunpack.c.l.b16 %v3964
  %v4693 = vunpack.c.h.b16 %v3964
  %v4694 = vunpack.c.l.b16 %v3965
  %v4695 = vunpack.c.h.b16 %v3965
  %v4696 = vunpack.c.l.b16 %v3966
  %v4697 = vunpack.c.h.b16 %v3966
  %v4698 = vunpack.c.l.b16 %v3967
  %v4699 = vunpack.c.h.b16 %v3967
  %v4700 = vunpack.c.l.b16 %v3968
  %v4701 = vunpack.c.h.b16 %v3968
  %v4702 = vunpack.c.l.b16 %v3969
  %v4703 = vunpack.c.h.b16 %v3969
  %v4704 = vunpack.c.l.b16 %v3970
  %v4705 = vunpack.c.h.b16 %v3970
  %v4706 = vunpack.c.l.b16 %v3971
  %v4707 = vunpack.c.h.b16 %v3971
  %v4708 = vunpack.c.l.b16 %v3972
  %v4709 = vunpack.c.h.b16 %v3972
  %v4710 = vunpack.c.l.b16 %v3973
  %v4711 = vunpack.c.h.b16 %v3973
  %v4712 = vunpack.c.l.b16 %v3974
  %v4713 = vunpack.c.h.b16 %v3974
  %v4714 = vunpack.c.l.b16 %v3975
  %v4715 = vunpack.c.h.b16 %v3975
  %v4716 = vunpack.c.l.b16 %v3976
  %v4717 = vunpack.c.h.b16 %v3976
  %v4718 = vunpack.c.l.b16 %v3977
  %v4719 = vunpack.c.h.b16 %v3977
  %v4720 = vunpack.c.l.b16 %v3978
  %v4721 = vunpack.c.h.b16 %v3978
  %v4722 = vunpack.c.l.b16 %v3979
  %v4723 = vunpack.c.h.b16 %v3979
  %v4724 = vunpack.c.l.b16 %v3980
  %v4725 = vunpack.c.h.b16 %v3980
  %v4726 = vunpack.c.l.b16 %v3981
  %v4727 = vunpack.c.h.b16 %v3981
  %v4728 = vunpack.c.l.b16 %v3982
  %v4729 = vunpack.c.h.b16 %v3982
  %v4730 = vunpack.c.l.b16 %v3983
  %v4731 = vunpack.c.h.b16 %v3983
  %v4732 = vunpack.c.l.b16 %v3984
  %v4733 = vunpack.c.h.b16 %v3984
  %v4734 = vunpack.c.l.b16 %v3985
  %v4735 = vunpack.c.h.b16 %v3985
  %v4736 = vunpack.c.l.b16 %v3986
  %v4737 = vunpack.c.h.b16 %v3986
  %v4738 = vunpack.c.l.b16 %v3987
  %v4739 = vunpack.c.h.b16 %v3987
  %v4740 = vunpack.c.l.b16 %v3988
  %v4741 = vunpack.c.h.b16 %v3988
  %v4742 = vunpack.c.l.b16 %v3989
  %v4743 = vunpack.c.h.b16 %v3989
  %v4744 = vunpack.c.l.b16 %v3990
  %v4745 = vunpack.c.h.b16 %v3990
  %v4746 = vunpack.c.l.b16 %v3991
  %v4747 = vunpack.c.h.b16 %v3991
  %v4748 = vunpack.c.l.b16 %v3992
  %v4749 = vunpack.c.h.b16 %v3992
  %v4750 = vunpack.c.l.b16 %v3993
  %v4751 = vunpack.c.h.b16 %v3993
  %v4752 = vunpack.c.l.b16 %v3994
  %v4753 = vunpack.c.h.b16 %v3994
  %v4754 = vunpack.c.l.b16 %v3995
  %v4755 = vunpack.c.h.b16 %v3995
  %v4756 = vunpack.c.l.b16 %v3996
  %v4757 = vunpack.c.h.b16 %v3996
  %v4758 = vunpack.c.l.b16 %v3997
  %v4759 = vunpack.c.h.b16 %v3997
  %v4760 = vunpack.c.l.b16 %v3998
  %v4761 = vunpack.c.h.b16 %v3998
  %v4762 = vunpack.c.l.b16 %v3999
  %v4763 = vunpack.c.h.b16 %v3999
  %v4764 = vunpack.c.l.b16 %v4000
  %v4765 = vunpack.c.h.b16 %v4000
  %v4766 = vunpack.c.l.b16 %v4001
  %v4767 = vunpack.c.h.b16 %v4001
  %v4768 = vunpack.c.l.b16 %v4002
  %v4769 = vunpack.c.h.b16 %v4002
  %v4770 = vunpack.c.l.b16 %v4003
  %v4771 = vunpack.c.h.b16 %v4003
  %v4772 = vunpack.c.l.b16 %v4004
  %v4773 = vunpack.c.h.b16 %v4004
  %v4774 = vunpack.c.l.b16 %v4005
  %v4775 = vunpack.c.h.b16 %v4005
  %v4776 = vunpack.c.l.b16 %v4006
  %v4777 = vunpack.c.h.b16 %v4006
  %v4778 = vunpack.c.l.b16 %v4007
  %v4779 = vunpack.c.h.b16 %v4007
  %v4780 = vunpack.c.l.b16 %v4008
  %v4781 = vunpack.c.h.b16 %v4008
  %v4782 = vunpack.c.l.b16 %v4009
  %v4783 = vunpack.c.h.b16 %v4009
  %v4784 = vunpack.c.l.b16 %v4010
  %v4785 = vunpack.c.h.b16 %v4010
  %v4786 = vunpack.c.l.b16 %v4011
  %v4787 = vunpack.c.h.b16 %v4011
  %v4788 = vunpack.c.l.b16 %v4012
  %v4789 = vunpack.c.h.b16 %v4012
  %v4790 = vunpack.c.l.b16 %v4013
  %v4791 = vunpack.c.h.b16 %v4013
  %v4792 = vunpack.c.l.b16 %v4014
  %v4793 = vunpack.c.h.b16 %v4014
  %v4794 = vunpack.c.l.b16 %v4015
  %v4795 = vunpack.c.h.b16 %v4015
  %v4796 = vunpack.c.l.b16 %v4016
  %v4797 = vunpack.c.h.b16 %v4016
  %v4798 = vunpack.c.l.b16 %v4017
  %v4799 = vunpack.c.h.b16 %v4017
  %v4800 = vunpack.c.l.b16 %v4018
  %v4801 = vunpack.c.h.b16 %v4018
  %v4802 = vunpack.c.l.b16 %v4019
  %v4803 = vunpack.c.h.b16 %v4019
  %v4804 = vunpack.c.l.b16 %v4020
  %v4805 = vunpack.c.h.b16 %v4020
  %v4806 = vunpack.c.l.b16 %v4021
  %v4807 = vunpack.c.h.b16 %v4021
  %v4808 = vunpack.c.l.b16 %v4022
  %v4809 = vunpack.c.h.b16 %v4022
  %v4810 = vunpack.c.l.b16 %v4023
  %v4811 = vunpack.c.h.b16 %v4023
  %v4812 = vunpack.c.l.b16 %v4024
  %v4813 = vunpack.c.h.b16 %v4024
  %v4814 = vunpack.c.l.b16 %v4025
  %v4815 = vunpack.c.h.b16 %v4025
  %v4816 = vpack.c.b16 %v4308, %v4304
  %v4817 = vpack.c.b16 %v4309, %v4305
  %v4818 = vpack.c.b16 %v4310, %v4306
  %v4819 = vpack.c.b16 %v4311, %v4307
  %v4820 = vpack.c.b16 %v4316, %v4312
  %v4821 = vpack.c.b16 %v4317, %v4313
  %v4822 = vpack.c.b16 %v4318, %v4314
  %v4823 = vpack.c.b16 %v4319, %v4315
  %v4824 = vpack.c.b16 %v4324, %v4320
  %v4825 = vpack.c.b16 %v4325, %v4321
  %v4826 = vpack.c.b16 %v4326, %v4322
  %v4827 = vpack.c.b16 %v4327, %v4323
  %v4828 = vpack.c.b16 %v4332, %v4328
  %v4829 = vpack.c.b16 %v4333, %v4329
  %v4830 = vpack.c.b16 %v4334, %v4330
  %v4831 = vpack.c.b16 %v4335, %v4331
  %v4832 = vpack.c.b16 %v4340, %v4336
  %v4833 = vpack.c.b16 %v4341, %v4337
  %v4834 = vpack.c.b16 %v4342, %v4338
  %v4835 = vpack.c.b16 %v4343, %v4339
  %v4836 = vpack.c.b16 %v4348, %v4344
  %v4837 = vpack.c.b16 %v4349, %v4345
  %v4838 = vpack.c.b16 %v4350, %v4346
  %v4839 = vpack.c.b16 %v4351, %v4347
  %v4840 = vpack.c.b16 %v4356, %v4352
  %v4841 = vpack.c.b16 %v4357, %v4353
  %v4842 = vpack.c.b16 %v4358, %v4354
  %v4843 = vpack.c.b16 %v4359, %v4355
  %v4844 = vpack.c.b16 %v4364, %v4360
  %v4845 = vpack.c.b16 %v4365, %v4361
  %v4846 = vpack.c.b16 %v4366, %v4362
  %v4847 = vpack.c.b16 %v4367, %v4363
  %v4848 = vpack.c.b16 %v4372, %v4368
  %v4849 = vpack.c.b16 %v4373, %v4369
  %v4850 = vpack.c.b16 %v4374, %v4370
  %v4851 = vpack.c.b16 %v4375, %v4371
  %v4852 = vpack.c.b16 %v4380, %v4376
  %v4853 = vpack.c.b16 %v4381, %v4377
  %v4854 = vpack.c.b16 %v4382, %v4378
  %v4855 = vpack.c.b16 %v4383, %v4379
  %v4856 = vpack.c.b16 %v4388, %v4384
  %v4857 = vpack.c.b16 %v4389, %v4385
  %v4858 = vpack.c.b16 %v4390, %v4386
  %v4859 = vpack.c.b16 %v4391, %v4387
  %v4860 = vpack.c.b16 %v4396, %v4392
  %v4861 = vpack.c.b16 %v4397, %v4393
  %v4862 = vpack.c.b16 %v4398, %v4394
  %v4863 = vpack.c.b16 %v4399, %v4395
  %v4864 = vpack.c.b16 %v4404, %v4400
  %v4865 = vpack.c.b16 %v4405, %v4401
  %v4866 = vpack.c.b16 %v4406, %v4402
  %v4867 = vpack.c.b16 %v4407, %v4403
  %v4868 = vpack.c.b16 %v4412, %v4408
  %v4869 = vpack.c.b16 %v4413, %v4409
  %v4870 = vpack.c.b16 %v4414, %v4410
  %v4871 = vpack.c.b16 %v4415, %v4411
  %v4872 = vpack.c.b16 %v4420, %v4416
  %v4873 = vpack.c.b16 %v4421, %v4417
  %v4874 = vpack.c.b16 %v4422, %v4418
  %v4875 = vpack.c.b16 %v4423, %v4419
  %v4876 = vpack.c.b16 %v4428, %v4424
  %v4877 = vpack.c.b16 %v4429, %v4425
  %v4878 = vpack.c.b16 %v4430, %v4426
  %v4879 = vpack.c.b16 %v4431, %v4427
  %v4880 = vpack.c.b16 %v4436, %v4432
  %v4881 = vpack.c.b16 %v4437, %v4433
  %v4882 = vpack.c.b16 %v4438, %v4434
  %v4883 = vpack.c.b16 %v4439, %v4435
  %v4884 = vpack.c.b16 %v4444, %v4440
  %v4885 = vpack.c.b16 %v4445, %v4441
  %v4886 = vpack.c.b16 %v4446, %v4442
  %v4887 = vpack.c.b16 %v4447, %v4443
  %v4888 = vpack.c.b16 %v4452, %v4448
  %v4889 = vpack.c.b16 %v4453, %v4449
  %v4890 = vpack.c.b16 %v4454, %v4450
  %v4891 = vpack.c.b16 %v4455, %v4451
  %v4892 = vpack.c.b16 %v4460, %v4456
  %v4893 = vpack.c.b16 %v4461, %v4457
  %v4894 = vpack.c.b16 %v4462, %v4458
  %v4895 = vpack.c.b16 %v4463, %v4459
  %v4896 = vpack.c.b16 %v4468, %v4464
  %v4897 = vpack.c.b16 %v4469, %v4465
  %v4898 = vpack.c.b16 %v4470, %v4466
  %v4899 = vpack.c.b16 %v4471, %v4467
  %v4900 = vpack.c.b16 %v4476, %v4472
  %v4901 = vpack.c.b16 %v4477, %v4473
  %v4902 = vpack.c.b16 %v4478, %v4474
  %v4903 = vpack.c.b16 %v4479, %v4475
  %v4904 = vpack.c.b16 %v4484, %v4480
  %v4905 = vpack.c.b16 %v4485, %v4481
  %v4906 = vpack.c.b16 %v4486, %v4482
  %v4907 = vpack.c.b16 %v4487, %v4483
  %v4908 = vpack.c.b16 %v4492, %v4488
  %v4909 = vpack.c.b16 %v4493, %v4489
  %v4910 = vpack.c.b16 %v4494, %v4490
  %v4911 = vpack.c.b16 %v4495, %v4491
  %v4912 = vpack.c.b16 %v4500, %v4496
  %v4913 = vpack.c.b16 %v4501, %v4497
  %v4914 = vpack.c.b16 %v4502, %v4498
  %v4915 = vpack.c.b16 %v4503, %v4499
  %v4916 = vpack.c.b16 %v4508, %v4504
  %v4917 = vpack.c.b16 %v4509, %v4505
  %v4918 = vpack.c.b16 %v4510, %v4506
  %v4919 = vpack.c.b16 %v4511, %v4507
  %v4920 = vpack.c.b16 %v4516, %v4512
  %v4921 = vpack.c.b16 %v4517, %v4513
  %v4922 = vpack.c.b16 %v4518, %v4514
  %v4923 = vpack.c.b16 %v4519, %v4515
  %v4924 = vpack.c.b16 %v4524, %v4520
  %v4925 = vpack.c.b16 %v4525, %v4521
  %v4926 = vpack.c.b16 %v4526, %v4522
  %v4927 = vpack.c.b16 %v4527, %v4523
  %v4928 = vpack.c.b16 %v4532, %v4528
  %v4929 = vpack.c.b16 %v4533, %v4529
  %v4930 = vpack.c.b16 %v4534, %v4530
  %v4931 = vpack.c.b16 %v4535, %v4531
  %v4932 = vpack.c.b16 %v4540, %v4536
  %v4933 = vpack.c.b16 %v4541, %v4537
  %v4934 = vpack.c.b16 %v4542, %v4538
  %v4935 = vpack.c.b16 %v4543, %v4539
  %v4936 = vpack.c.b16 %v4548, %v4544
  %v4937 = vpack.c.b16 %v4549, %v4545
  %v4938 = vpack.c.b16 %v4550, %v4546
  %v4939 = vpack.c.b16 %v4551, %v4547
  %v4940 = vpack.c.b16 %v4556, %v4552
  %v4941 = vpack.c.b16 %v4557, %v4553
  %v4942 = vpack.c.b16 %v4558, %v4554
  %v4943 = vpack.c.b16 %v4559, %v4555
  %v4944 = vpack.c.b16 %v4564, %v4560
  %v4945 = vpack.c.b16 %v4565, %v4561
  %v4946 = vpack.c.b16 %v4566, %v4562
  %v4947 = vpack.c.b16 %v4567, %v4563
  %v4948 = vpack.c.b16 %v4572, %v4568
  %v4949 = vpack.c.b16 %v4573, %v4569
  %v4950 = vpack.c.b16 %v4574, %v4570
  %v4951 = vpack.c.b16 %v4575, %v4571
  %v4952 = vpack.c.b16 %v4580, %v4576
  %v4953 = vpack.c.b16 %v4581, %v4577
  %v4954 = vpack.c.b16 %v4582, %v4578
  %v4955 = vpack.c.b16 %v4583, %v4579
  %v4956 = vpack.c.b16 %v4588, %v4584
  %v4957 = vpack.c.b16 %v4589, %v4585
  %v4958 = vpack.c.b16 %v4590, %v4586
  %v4959 = vpack.c.b16 %v4591, %v4587
  %v4960 = vpack.c.b16 %v4596, %v4592
  %v4961 = vpack.c.b16 %v4597, %v4593
  %v4962 = vpack.c.b16 %v4598, %v4594
  %v4963 = vpack.c.b16 %v4599, %v4595
  %v4964 = vpack.c.b16 %v4604, %v4600
  %v4965 = vpack.c.b16 %v4605, %v4601
  %v4966 = vpack.c.b16 %v4606, %v4602
  %v4967 = vpack.c.b16 %v4607, %v4603
  %v4968 = vpack.c.b16 %v4612, %v4608
  %v4969 = vpack.c.b16 %v4613, %v4609
  %v4970 = vpack.c.b16 %v4614, %v4610
  %v4971 = vpack.c.b16 %v4615, %v4611
  %v4972 = vpack.c.b16 %v4620, %v4616
  %v4973 = vpack.c.b16 %v4621, %v4617
  %v4974 = vpack.c.b16 %v4622, %v4618
  %v4975 = vpack.c.b16 %v4623, %v4619
  %v4976 = vpack.c.b16 %v4628, %v4624
  %v4977 = vpack.c.b16 %v4629, %v4625
  %v4978 = vpack.c.b16 %v4630, %v4626
  %v4979 = vpack.c.b16 %v4631, %v4627
  %v4980 = vpack.c.b16 %v4636, %v4632
  %v4981 = vpack.c.b16 %v4637, %v4633
  %v4982 = vpack.c.b16 %v4638, %v4634
  %v4983 = vpack.c.b16 %v4639, %v4635
  %v4984 = vpack.c.b16 %v4644, %v4640
  %v4985 = vpack.c.b16 %v4645, %v4641
  %v4986 = vpack.c.b16 %v4646, %v4642
  %v4987 = vpack.c.b16 %v4647, %v4643
  %v4988 = vpack.c.b16 %v4652, %v4648
  %v4989 = vpack.c.b16 %v4653, %v4649
  %v4990 = vpack.c.b16 %v4654, %v4650
  %v4991 = vpack.c.b16 %v4655, %v4651
  %v4992 = vpack.c.b16 %v4660, %v4656
  %v4993 = vpack.c.b16 %v4661, %v4657
  %v4994 = vpack.c.b16 %v4662, %v4658
  %v4995 = vpack.c.b16 %v4663, %v4659
  %v4996 = vpack.c.b16 %v4668, %v4664
  %v4997 = vpack.c.b16 %v4669, %v4665
  %v4998 = vpack.c.b16 %v4670, %v4666
  %v4999 = vpack.c.b16 %v4671, %v4667
  %v5000 = vpack.c.b16 %v4676, %v4672
  %v5001 = vpack.c.b16 %v4677, %v4673
  %v5002 = vpack.c.b16 %v4678, %v4674
  %v5003 = vpack.c.b16 %v4679, %v4675
  %v5004 = vpack.c.b16 %v4684, %v4680
  %v5005 = vpack.c.b16 %v4685, %v4681
  %v5006 = vpack.c.b16 %v4686, %v4682
  %v5007 = vpack.c.b16 %v4687, %v4683
  %v5008 = vpack.c.b16 %v4692, %v4688
  %v5009 = vpack.c.b16 %v4693, %v4689
  %v5010 = vpack.c.b16 %v4694, %v4690
  %v5011 = vpack.c.b16 %v4695, %v4691
  %v5012 = vpack.c.b16 %v4700, %v4696
  %v5013 = vpack.c.b16 %v4701, %v4697
  %v5014 = vpack.c.b16 %v4702, %v4698
  %v5015 = vpack.c.b16 %v4703, %v4699
  %v5016 = vpack.c.b16 %v4708, %v4704
  %v5017 = vpack.c.b16 %v4709, %v4705
  %v5018 = vpack.c.b16 %v4710, %v4706
  %v5019 = vpack.c.b16 %v4711, %v4707
  %v5020 = vpack.c.b16 %v4716, %v4712
  %v5021 = vpack.c.b16 %v4717, %v4713
  %v5022 = vpack.c.b16 %v4718, %v4714
  %v5023 = vpack.c.b16 %v4719, %v4715
  %v5024 = vpack.c.b16 %v4724, %v4720
  %v5025 = vpack.c.b16 %v4725, %v4721
  %v5026 = vpack.c.b16 %v4726, %v4722
  %v5027 = vpack.c.b16 %v4727, %v4723
  %v5028 = vpack.c.b16 %v4732, %v4728
  %v5029 = vpack.c.b16 %v4733, %v4729
  %v5030 = vpack.c.b16 %v4734, %v4730
  %v5031 = vpack.c.b16 %v4735, %v4731
  %v5032 = vpack.c.b16 %v4740, %v4736
  %v5033 = vpack.c.b16 %v4741, %v4737
  %v5034 = vpack.c.b16 %v4742, %v4738
  %v5035 = vpack.c.b16 %v4743, %v4739
  %v5036 = vpack.c.b16 %v4748, %v4744
  %v5037 = vpack.c.b16 %v4749, %v4745
  %v5038 = vpack.c.b16 %v4750, %v4746
  %v5039 = vpack.c.b16 %v4751, %v4747
  %v5040 = vpack.c.b16 %v4756, %v4752
  %v5041 = vpack.c.b16 %v4757, %v4753
  %v5042 = vpack.c.b16 %v4758, %v4754
  %v5043 = vpack.c.b16 %v4759, %v4755
  %v5044 = vpack.c.b16 %v4764, %v4760
  %v5045 = vpack.c.b16 %v4765, %v4761
  %v5046 = vpack.c.b16 %v4766, %v4762
  %v5047 = vpack.c.b16 %v4767, %v4763
  %v5048 = vpack.c.b16 %v4772, %v4768
  %v5049 = vpack.c.b16 %v4773, %v4769
  %v5050 = vpack.c.b16 %v4774, %v4770
  %v5051 = vpack.c.b16 %v4775, %v4771
  %v5052 = vpack.c.b16 %v4780, %v4776
  %v5053 = vpack.c.b16 %v4781, %v4777
  %v5054 = vpack.c.b16 %v4782, %v4778
  %v5055 = vpack.c.b16 %v4783, %v4779
  %v5056 = vpack.c.b16 %v4788, %v4784
  %v5057 = vpack.c.b16 %v4789, %v4785
  %v5058 = vpack.c.b16 %v4790, %v4786
  %v5059 = vpack.c.b16 %v4791, %v4787
  %v5060 = vpack.c.b16 %v4796, %v4792
  %v5061 = vpack.c.b16 %v4797, %v4793
  %v5062 = vpack.c.b16 %v4798, %v4794
  %v5063 = vpack.c.b16 %v4799, %v4795
  %v5064 = vpack.c.b16 %v4804, %v4800
  %v5065 = vpack.c.b16 %v4805, %v4801
  %v5066 = vpack.c.b16 %v4806, %v4802
  %v5067 = vpack.c.b16 %v4807, %v4803
  %v5068 = vpack.c.b16 %v4812, %v4808
  %v5069 = vpack.c.b16 %v4813, %v4809
  %v5070 = vpack.c.b16 %v4814, %v4810
  %v5071 = vpack.c.b16 %v4815, %v4811
  %5328 = vmatprep.subr.bf16.mxu0 %v4817
  %5329 = vmatpush1.bf16.msra.mxu0 %v4816
  %5330 = vmatprep.subr.bf16.mxu0 %v4821
  %5331 = vmatpush1.bf16.msra.mxu0 %v4820
  %5332 = vmatprep.subr.bf16.mxu0 %v4825
  %5333 = vmatpush1.bf16.msra.mxu0 %v4824
  %5334 = vmatprep.subr.bf16.mxu0 %v4829
  %5335 = vmatpush1.bf16.msra.mxu0 %v4828
  %5336 = vmatprep.subr.bf16.mxu0 %v4833
  %5337 = vmatpush1.bf16.msra.mxu0 %v4832
  %5338 = vmatprep.subr.bf16.mxu0 %v4837
  %5339 = vmatpush1.bf16.msra.mxu0 %v4836
  %5340 = vmatprep.subr.bf16.mxu0 %v4841
  %5341 = vmatpush1.bf16.msra.mxu0 %v4840
  %5342 = vmatprep.subr.bf16.mxu0 %v4845
  %5343 = vmatpush1.bf16.msra.mxu0 %v4844
  %5344 = vmatprep.subr.bf16.mxu0 %v4849
  %5345 = vmatpush1.bf16.msra.mxu0 %v4848
  %5346 = vmatprep.subr.bf16.mxu0 %v4853
  %5347 = vmatpush1.bf16.msra.mxu0 %v4852
  %5348 = vmatprep.subr.bf16.mxu0 %v4857
  %5349 = vmatpush1.bf16.msra.mxu0 %v4856
  %5350 = vmatprep.subr.bf16.mxu0 %v4861
  %5351 = vmatpush1.bf16.msra.mxu0 %v4860
  %5352 = vmatprep.subr.bf16.mxu0 %v4865
  %5353 = vmatpush1.bf16.msra.mxu0 %v4864
  %5354 = vmatprep.subr.bf16.mxu0 %v4869
  %5355 = vmatpush1.bf16.msra.mxu0 %v4868
  %5356 = vmatprep.subr.bf16.mxu0 %v4873
  %5357 = vmatpush1.bf16.msra.mxu0 %v4872
  %5358 = vmatprep.subr.bf16.mxu0 %v4877
  %5359 = vmatpush1.bf16.msra.mxu0 %v4876
  %5360 = vmatprep.mubr.bf16.mxu0 %v3763
  %5361 = vmatmul.mubr.bf16.gmra.mrb[0].mxu0 %v3762
  %v5362 = vpop.f32.mrb[0].mxu0
  %v5363 = vadd.f32 %v4031, %v5362
  %v5364 = vpop.f32.mrb[0].mxu0
  %v5365 = vadd.f32 %v4035, %v5364
  %v5366 = vpop.f32.mrb[0].mxu0
  %v5367 = vadd.f32 %v4031, %v5366
  %v5368 = vpop.f32.mrb[0].mxu0
  %v5369 = vadd.f32 %v4035, %v5368
  %5370 = vdwg.mxu0
  %5371 = vmatprep.subr.bf16.mxu0 %v4881
  %5372 = vmatpush1.bf16.msra.mxu0 %v4880
  %5373 = vmatprep.subr.bf16.mxu0 %v4885
  %5374 = vmatpush1.bf16.msra.mxu0 %v4884
  %5375 = vmatprep.subr.bf16.mxu0 %v4889
  %5376 = vmatpush1.bf16.msra.mxu0 %v4888
  %5377 = vmatprep.subr.bf16.mxu0 %v4893
  %5378 = vmatpush1.bf16.msra.mxu0 %v4892
  %5379 = vmatprep.subr.bf16.mxu0 %v4897
  %5380 = vmatpush1.bf16.msra.mxu0 %v4896
  %5381 = vmatprep.subr.bf16.mxu0 %v4901
  %5382 = vmatpush1.bf16.msra.mxu0 %v4900
  %5383 = vmatprep.subr.bf16.mxu0 %v4905
  %5384 = vmatpush1.bf16.msra.mxu0 %v4904
  %5385 = vmatprep.subr.bf16.mxu0 %v4909
  %5386 = vmatpush1.bf16.msra.mxu0 %v4908
  %5387 = vmatprep.subr.bf16.mxu0 %v4913
  %5388 = vmatpush1.bf16.msra.mxu0 %v4912
  %5389 = vmatprep.subr.bf16.mxu0 %v4917
  %5390 = vmatpush1.bf16.msra.mxu0 %v4916
  %5391 = vmatprep.subr.bf16.mxu0 %v4921
  %5392 = vmatpush1.bf16.msra.mxu0 %v4920
  %5393 = vmatprep.subr.bf16.mxu0 %v4925
  %5394 = vmatpush1.bf16.msra.mxu0 %v4924
  %5395 = vmatprep.subr.bf16.mxu0 %v4929
  %5396 = vmatpush1.bf16.msra.mxu0 %v4928
  %5397 = vmatprep.subr.bf16.mxu0 %v4933
  %5398 = vmatpush1.bf16.msra.mxu0 %v4932
  %5399 = vmatprep.subr.bf16.mxu0 %v4937
  %5400 = vmatpush1.bf16.msra.mxu0 %v4936
  %5401 = vmatprep.subr.bf16.mxu0 %v4941
  %5402 = vmatpush1.bf16.msra.mxu0 %v4940
  %5403 = vmatprep.mubr.bf16.mxu0 %v3765
  %5404 = vmatmul.mubr.bf16.gmra.mrb[0].mxu0 %v3764
  %v5405 = vpop.f32.mrb[0].mxu0
  %v5406 = vadd.f32 %v5363, %v5405
  %v5407 = vpop.f32.mrb[0].mxu0
  %v5408 = vadd.f32 %v5365, %v5407
  %v5409 = vpop.f32.mrb[0].mxu0
  %v5410 = vadd.f32 %v5367, %v5409
  %v5411 = vpop.f32.mrb[0].mxu0
  %v5412 = vadd.f32 %v5369, %v5411
  %5413 = vdwg.mxu0
  %5414 = vmatprep.subr.bf16.mxu0 %v4945
  %5415 = vmatpush1.bf16.msra.mxu0 %v4944
  %5416 = vmatprep.subr.bf16.mxu0 %v4949
  %5417 = vmatpush1.bf16.msra.mxu0 %v4948
  %5418 = vmatprep.subr.bf16.mxu0 %v4953
  %5419 = vmatpush1.bf16.msra.mxu0 %v4952
  %5420 = vmatprep.subr.bf16.mxu0 %v4957
  %5421 = vmatpush1.bf16.msra.mxu0 %v4956
  %5422 = vmatprep.subr.bf16.mxu0 %v4961
  %5423 = vmatpush1.bf16.msra.mxu0 %v4960
  %5424 = vmatprep.subr.bf16.mxu0 %v4965
  %5425 = vmatpush1.bf16.msra.mxu0 %v4964
  %5426 = vmatprep.subr.bf16.mxu0 %v4969
  %5427 = vmatpush1.bf16.msra.mxu0 %v4968
  %5428 = vmatprep.subr.bf16.mxu0 %v4973
  %5429 = vmatpush1.bf16.msra.mxu0 %v4972
  %5430 = vmatprep.subr.bf16.mxu0 %v4977
  %5431 = vmatpush1.bf16.msra.mxu0 %v4976
  %5432 = vmatprep.subr.bf16.mxu0 %v4981
  %5433 = vmatpush1.bf16.msra.mxu0 %v4980
  %5434 = vmatprep.subr.bf16.mxu0 %v4985
  %5435 = vmatpush1.bf16.msra.mxu0 %v4984
  %5436 = vmatprep.subr.bf16.mxu0 %v4989
  %5437 = vmatpush1.bf16.msra.mxu0 %v4988
  %5438 = vmatprep.subr.bf16.mxu0 %v4993
  %5439 = vmatpush1.bf16.msra.mxu0 %v4992
  %5440 = vmatprep.subr.bf16.mxu0 %v4997
  %5441 = vmatpush1.bf16.msra.mxu0 %v4996
  %5442 = vmatprep.subr.bf16.mxu0 %v5001
  %5443 = vmatpush1.bf16.msra.mxu0 %v5000
  %5444 = vmatprep.subr.bf16.mxu0 %v5005
  %5445 = vmatpush1.bf16.msra.mxu0 %v5004
  %5446 = vmatprep.mubr.bf16.mxu0 %v3767
  %5447 = vmatmul.mubr.bf16.gmra.mrb[0].mxu0 %v3766
  %v5448 = vpop.f32.mrb[0].mxu0
  %v5449 = vadd.f32 %v5406, %v5448
  %v5450 = vpop.f32.mrb[0].mxu0
  %v5451 = vadd.f32 %v5408, %v5450
  %v5452 = vpop.f32.mrb[0].mxu0
  %v5453 = vadd.f32 %v5410, %v5452
  %v5454 = vpop.f32.mrb[0].mxu0
  %v5455 = vadd.f32 %v5412, %v5454
  %5456 = vdwg.mxu0
  %5457 = vmatprep.subr.bf16.mxu0 %v5009
  %5458 = vmatpush1.bf16.msra.mxu0 %v5008
  %5459 = vmatprep.subr.bf16.mxu0 %v5013
  %5460 = vmatpush1.bf16.msra.mxu0 %v5012
  %5461 = vmatprep.subr.bf16.mxu0 %v5017
  %5462 = vmatpush1.bf16.msra.mxu0 %v5016
  %5463 = vmatprep.subr.bf16.mxu0 %v5021
  %5464 = vmatpush1.bf16.msra.mxu0 %v5020
  %5465 = vmatprep.subr.bf16.mxu0 %v5025
  %5466 = vmatpush1.bf16.msra.mxu0 %v5024
  %5467 = vmatprep.subr.bf16.mxu0 %v5029
  %5468 = vmatpush1.bf16.msra.mxu0 %v5028
  %5469 = vmatprep.subr.bf16.mxu0 %v5033
  %5470 = vmatpush1.bf16.msra.mxu0 %v5032
  %5471 = vmatprep.subr.bf16.mxu0 %v5037
  %5472 = vmatpush1.bf16.msra.mxu0 %v5036
  %5473 = vmatprep.subr.bf16.mxu0 %v5041
  %5474 = vmatpush1.bf16.msra.mxu0 %v5040
  %5475 = vmatprep.subr.bf16.mxu0 %v5045
  %5476 = vmatpush1.bf16.msra.mxu0 %v5044
  %5477 = vmatprep.subr.bf16.mxu0 %v5049
  %5478 = vmatpush1.bf16.msra.mxu0 %v5048
  %5479 = vmatprep.subr.bf16.mxu0 %v5053
  %5480 = vmatpush1.bf16.msra.mxu0 %v5052
  %5481 = vmatprep.subr.bf16.mxu0 %v5057
  %5482 = vmatpush1.bf16.msra.mxu0 %v5056
  %5483 = vmatprep.subr.bf16.mxu0 %v5061
  %5484 = vmatpush1.bf16.msra.mxu0 %v5060
  %5485 = vmatprep.subr.bf16.mxu0 %v5065
  %5486 = vmatpush1.bf16.msra.mxu0 %v5064
  %5487 = vmatprep.subr.bf16.mxu0 %v5069
  %5488 = vmatpush1.bf16.msra.mxu0 %v5068
  %5489 = vmatprep.mubr.bf16.mxu0 %v3769
  %5490 = vmatmul.mubr.bf16.gmra.mrb[0].mxu0 %v3768
  %v5491 = vpop.f32.mrb[0].mxu0
  %v5492 = vadd.f32 %v5449, %v5491
  %v5493 = vpop.f32.mrb[0].mxu0
  %v5494 = vadd.f32 %v5451, %v5493
  %v5495 = vpop.f32.mrb[0].mxu0
  %v5496 = vadd.f32 %v5453, %v5495
  %v5497 = vpop.f32.mrb[0].mxu0
  %v5498 = vadd.f32 %v5455, %v5497
  %5499 = vdwg.mxu0
  %5500 = vmatprep.subr.bf16.mxu0 %v4819
  %5501 = vmatpush1.bf16.msra.mxu0 %v4818
  %5502 = vmatprep.subr.bf16.mxu0 %v4823
  %5503 = vmatpush1.bf16.msra.mxu0 %v4822
  %5504 = vmatprep.subr.bf16.mxu0 %v4827
  %5505 = vmatpush1.bf16.msra.mxu0 %v4826
  %5506 = vmatprep.subr.bf16.mxu0 %v4831
  %5507 = vmatpush1.bf16.msra.mxu0 %v4830
  %5508 = vmatprep.subr.bf16.mxu0 %v4835
  %5509 = vmatpush1.bf16.msra.mxu0 %v4834
  %5510 = vmatprep.subr.bf16.mxu0 %v4839
  %5511 = vmatpush1.bf16.msra.mxu0 %v4838
  %5512 = vmatprep.subr.bf16.mxu0 %v4843
  %5513 = vmatpush1.bf16.msra.mxu0 %v4842
  %5514 = vmatprep.subr.bf16.mxu0 %v4847
  %5515 = vmatpush1.bf16.msra.mxu0 %v4846
  %5516 = vmatprep.subr.bf16.mxu0 %v4851
  %5517 = vmatpush1.bf16.msra.mxu0 %v4850
  %5518 = vmatprep.subr.bf16.mxu0 %v4855
  %5519 = vmatpush1.bf16.msra.mxu0 %v4854
  %5520 = vmatprep.subr.bf16.mxu0 %v4859
  %5521 = vmatpush1.bf16.msra.mxu0 %v4858
  %5522 = vmatprep.subr.bf16.mxu0 %v4863
  %5523 = vmatpush1.bf16.msra.mxu0 %v4862
  %5524 = vmatprep.subr.bf16.mxu0 %v4867
  %5525 = vmatpush1.bf16.msra.mxu0 %v4866
  %5526 = vmatprep.subr.bf16.mxu0 %v4871
  %5527 = vmatpush1.bf16.msra.mxu0 %v4870
  %5528 = vmatprep.subr.bf16.mxu0 %v4875
  %5529 = vmatpush1.bf16.msra.mxu0 %v4874
  %5530 = vmatprep.subr.bf16.mxu0 %v4879
  %5531 = vmatpush1.bf16.msra.mxu0 %v4878
  %5532 = vmatprep.mubr.bf16.mxu0 %v3763
  %5533 = vmatmul.mubr.bf16.gmra.mrb[0].mxu0 %v3762
  %v5534 = vpop.f32.mrb[0].mxu0
  %v5535 = vadd.f32 %v4039, %v5534
  %v5536 = vpop.f32.mrb[0].mxu0
  %v5537 = vadd.f32 %v4043, %v5536
  %v5538 = vpop.f32.mrb[0].mxu0
  %v5539 = vadd.f32 %v4039, %v5538
  %v5540 = vpop.f32.mrb[0].mxu0
  %v5541 = vadd.f32 %v4043, %v5540
  %5542 = vdwg.mxu0
  %5543 = vmatprep.subr.bf16.mxu0 %v4883
  %5544 = vmatpush1.bf16.msra.mxu0 %v4882
  %5545 = vmatprep.subr.bf16.mxu0 %v4887
  %5546 = vmatpush1.bf16.msra.mxu0 %v4886
  %5547 = vmatprep.subr.bf16.mxu0 %v4891
  %5548 = vmatpush1.bf16.msra.mxu0 %v4890
  %5549 = vmatprep.subr.bf16.mxu0 %v4895
  %5550 = vmatpush1.bf16.msra.mxu0 %v4894
  %5551 = vmatprep.subr.bf16.mxu0 %v4899
  %5552 = vmatpush1.bf16.msra.mxu0 %v4898
  %5553 = vmatprep.subr.bf16.mxu0 %v4903
  %5554 = vmatpush1.bf16.msra.mxu0 %v4902
  %5555 = vmatprep.subr.bf16.mxu0 %v4907
  %5556 = vmatpush1.bf16.msra.mxu0 %v4906
  %5557 = vmatprep.subr.bf16.mxu0 %v4911
  %5558 = vmatpush1.bf16.msra.mxu0 %v4910
  %5559 = vmatprep.subr.bf16.mxu0 %v4915
  %5560 = vmatpush1.bf16.msra.mxu0 %v4914
  %5561 = vmatprep.subr.bf16.mxu0 %v4919
  %5562 = vmatpush1.bf16.msra.mxu0 %v4918
  %5563 = vmatprep.subr.bf16.mxu0 %v4923
  %5564 = vmatpush1.bf16.msra.mxu0 %v4922
  %5565 = vmatprep.subr.bf16.mxu0 %v4927
  %5566 = vmatpush1.bf16.msra.mxu0 %v4926
  %5567 = vmatprep.subr.bf16.mxu0 %v4931
  %5568 = vmatpush1.bf16.msra.mxu0 %v4930
  %5569 = vmatprep.subr.bf16.mxu0 %v4935
  %5570 = vmatpush1.bf16.msra.mxu0 %v4934
  %5571 = vmatprep.subr.bf16.mxu0 %v4939
  %5572 = vmatpush1.bf16.msra.mxu0 %v4938
  %5573 = vmatprep.subr.bf16.mxu0 %v4943
  %5574 = vmatpush1.bf16.msra.mxu0 %v4942
  %5575 = vmatprep.mubr.bf16.mxu0 %v3765
  %5576 = vmatmul.mubr.bf16.gmra.mrb[0].mxu0 %v3764
  %v5577 = vpop.f32.mrb[0].mxu0
  %v5578 = vadd.f32 %v5535, %v5577
  %v5579 = vpop.f32.mrb[0].mxu0
  %v5580 = vadd.f32 %v5537, %v5579
  %v5581 = vpop.f32.mrb[0].mxu0
  %v5582 = vadd.f32 %v5539, %v5581
  %v5583 = vpop.f32.mrb[0].mxu0
  %v5584 = vadd.f32 %v5541, %v5583
  %5585 = vdwg.mxu0
  %5586 = vmatprep.subr.bf16.mxu0 %v4947
  %5587 = vmatpush1.bf16.msra.mxu0 %v4946
  %5588 = vmatprep.subr.bf16.mxu0 %v4951
  %5589 = vmatpush1.bf16.msra.mxu0 %v4950
  %5590 = vmatprep.subr.bf16.mxu0 %v4955
  %5591 = vmatpush1.bf16.msra.mxu0 %v4954
  %5592 = vmatprep.subr.bf16.mxu0 %v4959
  %5593 = vmatpush1.bf16.msra.mxu0 %v4958
  %5594 = vmatprep.subr.bf16.mxu0 %v4963
  %5595 = vmatpush1.bf16.msra.mxu0 %v4962
  %5596 = vmatprep.subr.bf16.mxu0 %v4967
  %5597 = vmatpush1.bf16.msra.mxu0 %v4966
  %5598 = vmatprep.subr.bf16.mxu0 %v4971
  %5599 = vmatpush1.bf16.msra.mxu0 %v4970
  %5600 = vmatprep.subr.bf16.mxu0 %v4975
  %5601 = vmatpush1.bf16.msra.mxu0 %v4974
  %5602 = vmatprep.subr.bf16.mxu0 %v4979
  %5603 = vmatpush1.bf16.msra.mxu0 %v4978
  %5604 = vmatprep.subr.bf16.mxu0 %v4983
  %5605 = vmatpush1.bf16.msra.mxu0 %v4982
  %5606 = vmatprep.subr.bf16.mxu0 %v4987
  %5607 = vmatpush1.bf16.msra.mxu0 %v4986
  %5608 = vmatprep.subr.bf16.mxu0 %v4991
  %5609 = vmatpush1.bf16.msra.mxu0 %v4990
  %5610 = vmatprep.subr.bf16.mxu0 %v4995
  %5611 = vmatpush1.bf16.msra.mxu0 %v4994
  %5612 = vmatprep.subr.bf16.mxu0 %v4999
  %5613 = vmatpush1.bf16.msra.mxu0 %v4998
  %5614 = vmatprep.subr.bf16.mxu0 %v5003
  %5615 = vmatpush1.bf16.msra.mxu0 %v5002
  %5616 = vmatprep.subr.bf16.mxu0 %v5007
  %5617 = vmatpush1.bf16.msra.mxu0 %v5006
  %5618 = vmatprep.mubr.bf16.mxu0 %v3767
  %5619 = vmatmul.mubr.bf16.gmra.mrb[0].mxu0 %v3766
  %v5620 = vpop.f32.mrb[0].mxu0
  %v5621 = vadd.f32 %v5578, %v5620
  %v5622 = vpop.f32.mrb[0].mxu0
  %v5623 = vadd.f32 %v5580, %v5622
  %v5624 = vpop.f32.mrb[0].mxu0
  %v5625 = vadd.f32 %v5582, %v5624
  %v5626 = vpop.f32.mrb[0].mxu0
  %v5627 = vadd.f32 %v5584, %v5626
  %5628 = vdwg.mxu0
  %5629 = vmatprep.subr.bf16.mxu0 %v5011
  %5630 = vmatpush1.bf16.msra.mxu0 %v5010
  %5631 = vmatprep.subr.bf16.mxu0 %v5015
  %5632 = vmatpush1.bf16.msra.mxu0 %v5014
  %5633 = vmatprep.subr.bf16.mxu0 %v5019
  %5634 = vmatpush1.bf16.msra.mxu0 %v5018
  %5635 = vmatprep.subr.bf16.mxu0 %v5023
  %5636 = vmatpush1.bf16.msra.mxu0 %v5022
  %5637 = vmatprep.subr.bf16.mxu0 %v5027
  %5638 = vmatpush1.bf16.msra.mxu0 %v5026
  %5639 = vmatprep.subr.bf16.mxu0 %v5031
  %5640 = vmatpush1.bf16.msra.mxu0 %v5030
  %5641 = vmatprep.subr.bf16.mxu0 %v5035
  %5642 = vmatpush1.bf16.msra.mxu0 %v5034
  %5643 = vmatprep.subr.bf16.mxu0 %v5039
  %5644 = vmatpush1.bf16.msra.mxu0 %v5038
  %5645 = vmatprep.subr.bf16.mxu0 %v5043
  %5646 = vmatpush1.bf16.msra.mxu0 %v5042
  %5647 = vmatprep.subr.bf16.mxu0 %v5047
  %5648 = vmatpush1.bf16.msra.mxu0 %v5046
  %5649 = vmatprep.subr.bf16.mxu0 %v5051
  %5650 = vmatpush1.bf16.msra.mxu0 %v5050
  %5651 = vmatprep.subr.bf16.mxu0 %v5055
  %5652 = vmatpush1.bf16.msra.mxu0 %v5054
  %5653 = vmatprep.subr.bf16.mxu0 %v5059
  %5654 = vmatpush1.bf16.msra.mxu0 %v5058
  %5655 = vmatprep.subr.bf16.mxu0 %v5063
  %5656 = vmatpush1.bf16.msra.mxu0 %v5062
  %5657 = vmatprep.subr.bf16.mxu0 %v5067
  %5658 = vmatpush1.bf16.msra.mxu0 %v5066
  %5659 = vmatprep.subr.bf16.mxu0 %v5071
  %5660 = vmatpush1.bf16.msra.mxu0 %v5070
  %5661 = vmatprep.mubr.bf16.mxu0 %v3769
  %5662 = vmatmul.mubr.bf16.gmra.mrb[0].mxu0 %v3768
  %v5663 = vpop.f32.mrb[0].mxu0
  %v5664 = vadd.f32 %v5621, %v5663
  %v5665 = vpop.f32.mrb[0].mxu0
  %v5666 = vadd.f32 %v5623, %v5665
  %v5667 = vpop.f32.mrb[0].mxu0
  %v5668 = vadd.f32 %v5625, %v5667
  %v5669 = vpop.f32.mrb[0].mxu0
  %v5670 = vadd.f32 %v5627, %v5669
  %5671 = vdwg.mxu0
  %v5672 = vmax.f32 %v5492, 0.0
  %v5673 = vmax.f32 %v5494, 0.0
  %v5674 = vmax.f32 %v5664, 0.0
  %v5675 = vmax.f32 %v5666, 0.0
  %v5676 = vmax.f32 %v5496, 0.0
  %v5677 = vmax.f32 %v5498, 0.0
  %v5678 = vmax.f32 %v5668, 0.0
  %v5679 = vmax.f32 %v5670, 0.0
  %v5680 = vpack.c.bf16 %v5676, %v5672
  %v5681 = vpack.c.bf16 %v5677, %v5673
  %v5682 = vpack.c.bf16 %v5678, %v5674
  %v5683 = vpack.c.bf16 %v5679, %v5675
  %5684 = vst [vmem:[#allocation4] sm:$0xff] %v5680
  %5685 = vst [vmem:[#allocation4 + $0x8] sm:$0xff] %v5681
  %5686 = vst [vmem:[#allocation4 + $0x10] sm:$0xff] %v5682
  %5687 = vst [vmem:[#allocation4 + $0x18] sm:$0xff] %v5683
  %v5688 = vld [vmem:[#allocation4] sm:$0xff]
  %v5689 = vld [vmem:[#allocation4 + $0x8] sm:$0xff]
  %v5690 = vld [vmem:[#allocation4 + $0x10] sm:$0xff]
  %v5691 = vld [vmem:[#allocation4 + $0x18] sm:$0xff]
  %v5692 = vld [vmem:[%s7] sm:$0xf]
  %v5693 = vld [vmem:[%s7 + $0x4] sm:$0xf]
  %v5694 = vld [vmem:[%s7 + $0x8] sm:$0xf]
  %v5695 = vld [vmem:[%s7 + $0xc] sm:$0xf]
  %v5696 = vld [vmem:[%s7 + $0x10] sm:$0xf]
  %v5697 = vld [vmem:[%s7 + $0x14] sm:$0xf]
  %v5698 = vld [vmem:[%s7 + $0x18] sm:$0xf]
  %v5699 = vld [vmem:[%s7 + $0x1c] sm:$0xf]
  %v5700 = vld [vmem:[%s7 + $0x20] sm:$0xf]
  %v5701 = vld [vmem:[%s7 + $0x24] sm:$0xf]
  %v5702 = vld [vmem:[%s7 + $0x28] sm:$0xf]
  %v5703 = vld [vmem:[%s7 + $0x2c] sm:$0xf]
  %v5704 = vld [vmem:[%s7 + $0x30] sm:$0xf]
  %v5705 = vld [vmem:[%s7 + $0x34] sm:$0xf]
  %v5706 = vld [vmem:[%s7 + $0x38] sm:$0xf]
  %v5707 = vld [vmem:[%s7 + $0x3c] sm:$0xf]
  %v5708 = vld [vmem:[%s7 + $0x40] sm:$0xf]
  %v5709 = vld [vmem:[%s7 + $0x44] sm:$0xf]
  %v5710 = vld [vmem:[%s7 + $0x48] sm:$0xf]
  %v5711 = vld [vmem:[%s7 + $0x4c] sm:$0xf]
  %v5712 = vld [vmem:[%s7 + $0x50] sm:$0xf]
  %v5713 = vld [vmem:[%s7 + $0x54] sm:$0xf]
  %v5714 = vld [vmem:[%s7 + $0x58] sm:$0xf]
  %v5715 = vld [vmem:[%s7 + $0x5c] sm:$0xf]
  %v5716 = vld [vmem:[%s7 + $0x60] sm:$0xf]
  %v5717 = vld [vmem:[%s7 + $0x64] sm:$0xf]
  %v5718 = vld [vmem:[%s7 + $0x68] sm:$0xf]
  %v5719 = vld [vmem:[%s7 + $0x6c] sm:$0xf]
  %v5720 = vld [vmem:[%s7 + $0x70] sm:$0xf]
  %v5721 = vld [vmem:[%s7 + $0x74] sm:$0xf]
  %v5722 = vld [vmem:[%s7 + $0x78] sm:$0xf]
  %v5723 = vld [vmem:[%s7 + $0x7c] sm:$0xf]
  %v5724 = vld [vmem:[%s7 + $0x80] sm:$0xf]
  %v5725 = vld [vmem:[%s7 + $0x84] sm:$0xf]
  %v5726 = vld [vmem:[%s7 + $0x88] sm:$0xf]
  %v5727 = vld [vmem:[%s7 + $0x8c] sm:$0xf]
  %v5728 = vld [vmem:[%s7 + $0x90] sm:$0xf]
  %v5729 = vld [vmem:[%s7 + $0x94] sm:$0xf]
  %v5730 = vld [vmem:[%s7 + $0x98] sm:$0xf]
  %v5731 = vld [vmem:[%s7 + $0x9c] sm:$0xf]
  %v5732 = vld [vmem:[%s7 + $0xa0] sm:$0xf]
  %v5733 = vld [vmem:[%s7 + $0xa4] sm:$0xf]
  %v5734 = vld [vmem:[%s7 + $0xa8] sm:$0xf]
  %v5735 = vld [vmem:[%s7 + $0xac] sm:$0xf]
  %v5736 = vld [vmem:[%s7 + $0xb0] sm:$0xf]
  %v5737 = vld [vmem:[%s7 + $0xb4] sm:$0xf]
  %v5738 = vld [vmem:[%s7 + $0xb8] sm:$0xf]
  %v5739 = vld [vmem:[%s7 + $0xbc] sm:$0xf]
  %v5740 = vld [vmem:[%s7 + $0xc0] sm:$0xf]
  %v5741 = vld [vmem:[%s7 + $0xc4] sm:$0xf]
  %v5742 = vld [vmem:[%s7 + $0xc8] sm:$0xf]
  %v5743 = vld [vmem:[%s7 + $0xcc] sm:$0xf]
  %v5744 = vld [vmem:[%s7 + $0xd0] sm:$0xf]
  %v5745 = vld [vmem:[%s7 + $0xd4] sm:$0xf]
  %v5746 = vld [vmem:[%s7 + $0xd8] sm:$0xf]
  %v5747 = vld [vmem:[%s7 + $0xdc] sm:$0xf]
  %v5748 = vld [vmem:[%s7 + $0xe0] sm:$0xf]
  %v5749 = vld [vmem:[%s7 + $0xe4] sm:$0xf]
  %v5750 = vld [vmem:[%s7 + $0xe8] sm:$0xf]
  %v5751 = vld [vmem:[%s7 + $0xec] sm:$0xf]
  %v5752 = vld [vmem:[%s7 + $0xf0] sm:$0xf]
  %v5753 = vld [vmem:[%s7 + $0xf4] sm:$0xf]
  %v5754 = vld [vmem:[%s7 + $0xf8] sm:$0xf]
  %v5755 = vld [vmem:[%s7 + $0xfc] sm:$0xf]
  %v5756 = vld [vmem:[%s8] sm:$0x1]
  %v5758 = vlaneseq
  %v5759 = vshrl.u32 %v5758, 7
  %v5760 = vsub.s32 0, %v5759
  %v5761 = vrot.slane %v5756, %v5760
  %v5827 = vunpack.c.l.b16 %v5692
  %v5828 = vunpack.c.l.b16 %v5693
  %v5829 = vunpack.c.l.b16 %v5694
  %v5830 = vunpack.c.l.b16 %v5695
  %v5831 = vunpack.c.l.b16 %v5696
  %v5832 = vunpack.c.l.b16 %v5697
  %v5833 = vunpack.c.l.b16 %v5698
  %v5834 = vunpack.c.l.b16 %v5699
  %v5835 = vunpack.c.l.b16 %v5700
  %v5836 = vunpack.c.l.b16 %v5701
  %v5837 = vunpack.c.l.b16 %v5702
  %v5838 = vunpack.c.l.b16 %v5703
  %v5839 = vunpack.c.l.b16 %v5704
  %v5840 = vunpack.c.l.b16 %v5705
  %v5841 = vunpack.c.l.b16 %v5706
  %v5842 = vunpack.c.l.b16 %v5707
  %v5843 = vunpack.c.l.b16 %v5708
  %v5844 = vunpack.c.l.b16 %v5709
  %v5845 = vunpack.c.l.b16 %v5710
  %v5846 = vunpack.c.l.b16 %v5711
  %v5847 = vunpack.c.l.b16 %v5712
  %v5848 = vunpack.c.l.b16 %v5713
  %v5849 = vunpack.c.l.b16 %v5714
  %v5850 = vunpack.c.l.b16 %v5715
  %v5851 = vunpack.c.l.b16 %v5716
  %v5852 = vunpack.c.l.b16 %v5717
  %v5853 = vunpack.c.l.b16 %v5718
  %v5854 = vunpack.c.l.b16 %v5719
  %v5855 = vunpack.c.l.b16 %v5720
  %v5856 = vunpack.c.l.b16 %v5721
  %v5857 = vunpack.c.l.b16 %v5722
  %v5858 = vunpack.c.l.b16 %v5723
  %v5859 = vunpack.c.l.b16 %v5724
  %v5860 = vunpack.c.l.b16 %v5725
  %v5861 = vunpack.c.l.b16 %v5726
  %v5862 = vunpack.c.l.b16 %v5727
  %v5863 = vunpack.c.l.b16 %v5728
  %v5864 = vunpack.c.l.b16 %v5729
  %v5865 = vunpack.c.l.b16 %v5730
  %v5866 = vunpack.c.l.b16 %v5731
  %v5867 = vunpack.c.l.b16 %v5732
  %v5868 = vunpack.c.l.b16 %v5733
  %v5869 = vunpack.c.l.b16 %v5734
  %v5870 = vunpack.c.l.b16 %v5735
  %v5871 = vunpack.c.l.b16 %v5736
  %v5872 = vunpack.c.l.b16 %v5737
  %v5873 = vunpack.c.l.b16 %v5738
  %v5874 = vunpack.c.l.b16 %v5739
  %v5875 = vunpack.c.l.b16 %v5740
  %v5876 = vunpack.c.l.b16 %v5741
  %v5877 = vunpack.c.l.b16 %v5742
  %v5878 = vunpack.c.l.b16 %v5743
  %v5879 = vunpack.c.l.b16 %v5744
  %v5880 = vunpack.c.l.b16 %v5745
  %v5881 = vunpack.c.l.b16 %v5746
  %v5882 = vunpack.c.l.b16 %v5747
  %v5883 = vunpack.c.l.b16 %v5748
  %v5884 = vunpack.c.l.b16 %v5749
  %v5885 = vunpack.c.l.b16 %v5750
  %v5886 = vunpack.c.l.b16 %v5751
  %v5887 = vunpack.c.l.b16 %v5752
  %v5888 = vunpack.c.l.b16 %v5753
  %v5889 = vunpack.c.l.b16 %v5754
  %v5890 = vunpack.c.l.b16 %v5755
  %v5891 = vpack.c.b16 %v5828, %v5827
  %v5892 = vpack.c.b16 %v5830, %v5829
  %v5893 = vpack.c.b16 %v5832, %v5831
  %v5894 = vpack.c.b16 %v5834, %v5833
  %v5895 = vpack.c.b16 %v5836, %v5835
  %v5896 = vpack.c.b16 %v5838, %v5837
  %v5897 = vpack.c.b16 %v5840, %v5839
  %v5898 = vpack.c.b16 %v5842, %v5841
  %v5899 = vpack.c.b16 %v5844, %v5843
  %v5900 = vpack.c.b16 %v5846, %v5845
  %v5901 = vpack.c.b16 %v5848, %v5847
  %v5902 = vpack.c.b16 %v5850, %v5849
  %v5903 = vpack.c.b16 %v5852, %v5851
  %v5904 = vpack.c.b16 %v5854, %v5853
  %v5905 = vpack.c.b16 %v5856, %v5855
  %v5906 = vpack.c.b16 %v5858, %v5857
  %v5907 = vpack.c.b16 %v5860, %v5859
  %v5908 = vpack.c.b16 %v5862, %v5861
  %v5909 = vpack.c.b16 %v5864, %v5863
  %v5910 = vpack.c.b16 %v5866, %v5865
  %v5911 = vpack.c.b16 %v5868, %v5867
  %v5912 = vpack.c.b16 %v5870, %v5869
  %v5913 = vpack.c.b16 %v5872, %v5871
  %v5914 = vpack.c.b16 %v5874, %v5873
  %v5915 = vpack.c.b16 %v5876, %v5875
  %v5916 = vpack.c.b16 %v5878, %v5877
  %v5917 = vpack.c.b16 %v5880, %v5879
  %v5918 = vpack.c.b16 %v5882, %v5881
  %v5919 = vpack.c.b16 %v5884, %v5883
  %v5920 = vpack.c.b16 %v5886, %v5885
  %v5921 = vpack.c.b16 %v5888, %v5887
  %v5922 = vpack.c.b16 %v5890, %v5889
  %5955 = vmatprep.subr.bf16.mxu0 0
  %5956 = vmatpush1.bf16.msra.mxu0 %v5891
  %5957 = vmatprep.subr.bf16.mxu0 0
  %5958 = vmatpush1.bf16.msra.mxu0 %v5892
  %5959 = vmatprep.subr.bf16.mxu0 0
  %5960 = vmatpush1.bf16.msra.mxu0 %v5893
  %5961 = vmatprep.subr.bf16.mxu0 0
  %5962 = vmatpush1.bf16.msra.mxu0 %v5894
  %5963 = vmatprep.subr.bf16.mxu0 0
  %5964 = vmatpush1.bf16.msra.mxu0 %v5895
  %5965 = vmatprep.subr.bf16.mxu0 0
  %5966 = vmatpush1.bf16.msra.mxu0 %v5896
  %5967 = vmatprep.subr.bf16.mxu0 0
  %5968 = vmatpush1.bf16.msra.mxu0 %v5897
  %5969 = vmatprep.subr.bf16.mxu0 0
  %5970 = vmatpush1.bf16.msra.mxu0 %v5898
  %5971 = vmatprep.subr.bf16.mxu0 0
  %5972 = vmatpush1.bf16.msra.mxu0 %v5899
  %5973 = vmatprep.subr.bf16.mxu0 0
  %5974 = vmatpush1.bf16.msra.mxu0 %v5900
  %5975 = vmatprep.subr.bf16.mxu0 0
  %5976 = vmatpush1.bf16.msra.mxu0 %v5901
  %5977 = vmatprep.subr.bf16.mxu0 0
  %5978 = vmatpush1.bf16.msra.mxu0 %v5902
  %5979 = vmatprep.subr.bf16.mxu0 0
  %5980 = vmatpush1.bf16.msra.mxu0 %v5903
  %5981 = vmatprep.subr.bf16.mxu0 0
  %5982 = vmatpush1.bf16.msra.mxu0 %v5904
  %5983 = vmatprep.subr.bf16.mxu0 0
  %5984 = vmatpush1.bf16.msra.mxu0 %v5905
  %5985 = vmatprep.subr.bf16.mxu0 0
  %5986 = vmatpush1.bf16.msra.mxu0 %v5906
  %5987 = vmatprep.mubr.bf16.mxu0 %v5689
  %5988 = vmatmul.mubr.bf16.gmra.mrb[0].mxu0 %v5688
  %v5989 = vpop.f32.mrb[0].mxu0
  %v5990 = vadd.f32 %v5761, %v5989
  %v5991 = vpop.f32.mrb[0].mxu0
  %v5992 = vpop.f32.mrb[0].mxu0
  %v5993 = vadd.f32 %v5761, %v5992
  %v5994 = vpop.f32.mrb[0].mxu0
  %5995 = vdwg.mxu0
  %5996 = vmatprep.subr.bf16.mxu0 0
  %5997 = vmatpush1.bf16.msra.mxu0 %v5907
  %5998 = vmatprep.subr.bf16.mxu0 0
  %5999 = vmatpush1.bf16.msra.mxu0 %v5908
  %6000 = vmatprep.subr.bf16.mxu0 0
  %6001 = vmatpush1.bf16.msra.mxu0 %v5909
  %6002 = vmatprep.subr.bf16.mxu0 0
  %6003 = vmatpush1.bf16.msra.mxu0 %v5910
  %6004 = vmatprep.subr.bf16.mxu0 0
  %6005 = vmatpush1.bf16.msra.mxu0 %v5911
  %6006 = vmatprep.subr.bf16.mxu0 0
  %6007 = vmatpush1.bf16.msra.mxu0 %v5912
  %6008 = vmatprep.subr.bf16.mxu0 0
  %6009 = vmatpush1.bf16.msra.mxu0 %v5913
  %6010 = vmatprep.subr.bf16.mxu0 0
  %6011 = vmatpush1.bf16.msra.mxu0 %v5914
  %6012 = vmatprep.subr.bf16.mxu0 0
  %6013 = vmatpush1.bf16.msra.mxu0 %v5915
  %6014 = vmatprep.subr.bf16.mxu0 0
  %6015 = vmatpush1.bf16.msra.mxu0 %v5916
  %6016 = vmatprep.subr.bf16.mxu0 0
  %6017 = vmatpush1.bf16.msra.mxu0 %v5917
  %6018 = vmatprep.subr.bf16.mxu0 0
  %6019 = vmatpush1.bf16.msra.mxu0 %v5918
  %6020 = vmatprep.subr.bf16.mxu0 0
  %6021 = vmatpush1.bf16.msra.mxu0 %v5919
  %6022 = vmatprep.subr.bf16.mxu0 0
  %6023 = vmatpush1.bf16.msra.mxu0 %v5920
  %6024 = vmatprep.subr.bf16.mxu0 0
  %6025 = vmatpush1.bf16.msra.mxu0 %v5921
  %6026 = vmatprep.subr.bf16.mxu0 0
  %6027 = vmatpush1.bf16.msra.mxu0 %v5922
  %6028 = vmatprep.mubr.bf16.mxu0 %v5691
  %6029 = vmatmul.mubr.bf16.gmra.mrb[0].mxu0 %v5690
  %v6030 = vpop.f32.mrb[0].mxu0
  %v6031 = vadd.f32 %v5990, %v6030
  %v6032 = vpop.f32.mrb[0].mxu0
  %v6033 = vpop.f32.mrb[0].mxu0
  %v6034 = vadd.f32 %v5993, %v6033
  %v6035 = vpop.f32.mrb[0].mxu0
  %6036 = vdwg.mxu0
  %6037 = vst [vmem:[%s9] sm:$0xff] %v6031
  %6038 = vst [vmem:[%s9 + $0x8] sm:$0xff] %v6034
  // Predicated region
  $region38: #{forward.5} parent=0 // pred_check
    _
  $region39: #{forward.5} parent=0 // pred_check_branch
    %6040 = sbr.rel (0) target = $region41
  $region40: #{forward.5} parent=0 // pred_region
    _
  $region41: #{forward.5} parent=0 // pred_fallthru
    _
  // Predicated region
  $region42: #{forward.5} parent=0 // pred_check
    _
  $region43: #{forward.5} parent=0 // pred_check_branch
    %6042 = sbr.rel (0) target = $region45
  $region44: #{forward.5} parent=0 // pred_region
    _
  $region45: #{forward.5} parent=0 // pred_fallthru
    _

</llo_original>
